<compile_context>
chip_gen: v7x
topology: tpu7x:2x2x1
jax: 0.10.0
libtpu: 0.0.40
codegen_flags: <defaults>
</compile_context>

<pallas_src>
import functools
import math

import jax
import jax.numpy as jnp
from jax.experimental import pallas as pl
from jax.experimental.pallas import tpu as pltpu

HIDDEN = 768
INTERMEDIATE = 2304
GATING = 1152


def _round_up(x, m):
    return ((x + m - 1) // m) * m


def _cdiv(a, b):
    return (a + b - 1) // b


def _gelu_exact(x):
    # matches torch.nn.GELU() default (erf formulation)
    return 0.5 * x * (1.0 + jax.lax.erf(x * (1.0 / math.sqrt(2.0))))


def _gelu_tanh(x):
    # opt-in cheaper variant (EUP tanh); slight numerics change vs torch GELU.
    return jax.nn.gelu(x, approximate=True)


def _vmem_limit_bytes():
    """~3/4 of physical per-core VMEM (96 MiB on v5e/v6e, 48 MiB on v7x)."""
    try:
        cap = pltpu.get_tpu_info().vmem_capacity_bytes
        if cap:
            return min(int(cap) * 3 // 4, 100 << 20)
    except Exception:
        pass
    return 48 << 20  # conservative fallback, valid on every generation


def _pick_n_chunks(gating):
    """Largest small chunk count whose chunk width is a 128-lane multiple."""
    for n in (3, 4, 2):
        if gating % n == 0 and (gating // n) % 128 == 0:
            return n
    return 1


def _mlp_kernel(x_ref, wi_ref, wo_ref, o_ref, *, gating, n_chunks, m_total,
                tm, compute_dtype, approximate_gelu):
    """Fused GeGLU MLP tile, gating dimension chunked for MXU/VPU overlap."""
    # Cast activations to the MXU compute dtype in-kernel (no extra HBM pass).
    x = x_ref[...].astype(compute_dtype)

    # Ragged last block: zero out rows past M so no garbage/NaN can propagate
    # (Pallas also masks the out-of-bounds writeback).
    if m_total % tm != 0:
        row = (jax.lax.broadcasted_iota(jnp.int32, (tm, 1), 0)
               + pl.program_id(0) * tm)
        x = jnp.where(row < m_total, x, jnp.zeros_like(x))

    act = _gelu_tanh if approximate_gelu else _gelu_exact
    cw = gating // n_chunks  # 384 for the 768/2304/1152 config (3 * 128 lanes)

    acc = None
    for c in range(n_chunks):  # static, unrolled -> scheduler overlaps chunks
        g0, g1 = c * cw, (c + 1) * cw
        # matmul1, gate & transform column chunks (bf16 in, f32 accumulate)
        gate = jnp.dot(x, wi_ref[:, g0:g1],
                       preferred_element_type=jnp.float32)
        transform = jnp.dot(x, wi_ref[:, gating + g0:gating + g1],
                            preferred_element_type=jnp.float32)
        g = act(gate) * transform                      # GeGLU chunk in f32
        # Dropout(p=0.0) is an identity at inference -> no-op in the kernel.
        # matmul2 row chunk, accumulated in f32
        part = jnp.dot(g.astype(compute_dtype), wo_ref[g0:g1, :],
                       preferred_element_type=jnp.float32)
        acc = part if acc is None else acc + part

    o_ref[...] = acc.astype(o_ref.dtype)


def prepare_weights(wi, wo, compute_dtype=jnp.bfloat16):
    """One-time weight prep (hoisted out of the per-call path).

    wi: [intermediate, hidden], wo: [hidden, gating]  (PyTorch nn.Linear layout)
    Returns row-major [in, out] operands in the MXU compute dtype.
    """
    wi_t = jnp.transpose(wi).astype(compute_dtype)   # (hidden, intermediate)
    wo_t = jnp.transpose(wo).astype(compute_dtype)   # (gating, hidden)
    return wi_t, wo_t


def modern_bert_mlp(x, wi_t, wo_t, *, tm=512, compute_dtype=jnp.bfloat16,
                    out_dtype=None, approximate_gelu=False):
    """x: [M, hidden]; wi_t: [hidden, intermediate]; wo_t: [gating, hidden]."""
    M, H = x.shape
    hidden, intermediate = wi_t.shape
    gating, hidden_o = wo_t.shape
    assert H == hidden and hidden_o == hidden and intermediate == 2 * gating
    out_dtype = x.dtype if out_dtype is None else out_dtype

    # Token tile: multiple of 16 (bf16 sublane), large enough to amortize the
    # ~0.35us per-grid-step overhead.  Keep >= 2 grid steps when there is
    # enough work so "parallel" can shard tiles across both v7x TensorCores.
    tm_eff = min(tm, _round_up(M, 16))
    if M > 512:
        tm_eff = min(tm_eff, max(256, _round_up(_cdiv(M, 2), 16)))
    grid_m = _cdiv(M, tm_eff)

    n_chunks = _pick_n_chunks(gating)

    w_item = jnp.dtype(compute_dtype).itemsize
    cost = pl.CostEstimate(
        flops=2 * M * hidden * intermediate + 2 * M * gating * hidden,
        transcendentals=M * gating,  # erf in the exact GELU
        bytes_accessed=(
            M * hidden * jnp.dtype(x.dtype).itemsize       # x
            + hidden * intermediate * w_item               # Wi
            + gating * hidden * w_item                     # Wo
            + M * hidden * jnp.dtype(out_dtype).itemsize   # out
        ),
    )

    kernel = functools.partial(
        _mlp_kernel, gating=gating, n_chunks=n_chunks, m_total=M, tm=tm_eff,
        compute_dtype=compute_dtype, approximate_gelu=approximate_gelu)

    return pl.pallas_call(
        kernel,
        out_shape=jax.ShapeDtypeStruct((M, hidden), out_dtype),
        grid_spec=pltpu.PrefetchScalarGridSpec(
            num_scalar_prefetch=0,
            grid=(grid_m,),
            in_specs=[
                # x tile streamed along the token grid axis (double-buffered).
                pl.BlockSpec((tm_eff, hidden), lambda i: (i, 0)),
                # Weights: constant block index -> DMA'd once, stay resident.
                pl.BlockSpec((hidden, intermediate), lambda i: (0, 0)),
                pl.BlockSpec((gating, hidden), lambda i: (0, 0)),
            ],
            out_specs=pl.BlockSpec((tm_eff, hidden), lambda i: (i, 0)),
        ),
        compiler_params=pltpu.CompilerParams(
            dimension_semantics=("parallel",),   # megacore-shards tiles on v7x
            vmem_limit_bytes=_vmem_limit_bytes(),
        ),
        cost_estimate=cost,
    )(x, wi_t, wo_t)


def _reference(x, wi, wo):
    h = x @ wi.T
    gating = wo.shape[1]
    gate, transform = h[:, :gating], h[:, gating:]
    h = _gelu_exact(gate) * transform
    return h @ wo.T


if __name__ == "__main__":
    key = jax.random.PRNGKey(0)
    k_x, k_wi, k_wo, k_x2 = jax.random.split(key, 4)

    batch, seq = 2, 8
    M = batch * seq  # tokens flattened onto the row axis

    x = jax.random.normal(k_x, (M, HIDDEN), dtype=jnp.float32)
    # Deterministic synthetic weights (PyTorch nn.Linear layout: [out, in]).
    wi = jax.random.normal(k_wi, (INTERMEDIATE, HIDDEN), dtype=jnp.float32) * 0.02
    wo = jax.random.normal(k_wo, (HIDDEN, GATING), dtype=jnp.float32) * 0.02

    # One-time weight prep (transpose + bf16 cast) hoisted out of the call.
    wi_t, wo_t = prepare_weights(wi, wo)

    out = jax.block_until_ready(modern_bert_mlp(x, wi_t, wo_t))
    ref = _reference(x, wi, wo)
    assert out.shape == (M, HIDDEN)
    assert jnp.allclose(out, ref, rtol=2e-2, atol=2e-2), "mismatch vs reference"

    # Also exercise the ragged-tail path (M not a multiple of 16 / token tile).
    M2 = 20
    x2 = jax.random.normal(k_x2, (M2, HIDDEN), dtype=jnp.float32)
    out2 = jax.block_until_ready(modern_bert_mlp(x2, wi_t, wo_t))
    ref2 = _reference(x2, wi, wo)
    assert out2.shape == (M2, HIDDEN)
    assert jnp.allclose(out2, ref2, rtol=2e-2, atol=2e-2), "mismatch (ragged tail)"

    print("KERNEL_OK")
</pallas_src>

<mosaic_0001>
module attributes {stable_mosaic.version = 11 : i64} {
  func.func @_mlp_kernel(%arg0: i32, %arg1: memref<16x768xf32, #tpu.memory_space<vmem>>, %arg2: memref<768x2304xbf16, #tpu.memory_space<vmem>>, %arg3: memref<1152x768xbf16, #tpu.memory_space<vmem>>, %arg4: memref<16x768xf32, #tpu.memory_space<vmem>>) attributes {dimension_semantics = [#tpu.dimension_semantics<parallel>], iteration_bounds = array<i64: 1>, scalar_prefetch = 0 : i64, scratch_operands = 0 : i64, tpu.core_type = #tpu.core_type<tc>, window_params = [{transform_indices = @transform_0, window_bounds = array<i64: 16, 768>}, {pipeline_mode = #tpu.pipeline_mode<synchronous>, transform_indices = @transform_1, window_bounds = array<i64: 768, 2304>}, {pipeline_mode = #tpu.pipeline_mode<synchronous>, transform_indices = @transform_2, window_bounds = array<i64: 1152, 768>}, {transform_indices = @transform_3, window_bounds = array<i64: 16, 768>}]} {
    %c0 = arith.constant 0 : index
    %c0_0 = arith.constant 0 : index
    %0 = vector.load %arg1[%c0, %c0_0] : memref<16x768xf32, #tpu.memory_space<vmem>>, vector<16x768xf32>
    %1 = arith.truncf %0 : vector<16x768xf32> to vector<16x768xbf16>
    %c0_1 = arith.constant 0 : index
    %c0_2 = arith.constant 0 : index
    %2 = vector.load %arg2[%c0_1, %c0_2] : memref<768x2304xbf16, #tpu.memory_space<vmem>>, vector<768x384xbf16>
    %cst = arith.constant dense<0.000000e+00> : vector<16x384xf32>
    %3 = tpu.matmul %1, %2, %cst {dimension_numbers = #tpu.dot_dimension_numbers<[1], [0], [0], [1], [0, 0, 1, 1], [], []>} : vector<16x768xbf16>, vector<768x384xbf16>, vector<16x384xf32> -> vector<16x384xf32>
    %c0_3 = arith.constant 0 : index
    %c1152 = arith.constant 1152 : index
    %4 = vector.load %arg2[%c0_3, %c1152] : memref<768x2304xbf16, #tpu.memory_space<vmem>>, vector<768x384xbf16>
    %cst_4 = arith.constant dense<0.000000e+00> : vector<16x384xf32>
    %5 = tpu.matmul %1, %4, %cst_4 {dimension_numbers = #tpu.dot_dimension_numbers<[1], [0], [0], [1], [0, 0, 1, 1], [], []>} : vector<16x768xbf16>, vector<768x384xbf16>, vector<16x384xf32> -> vector<16x384xf32>
    %cst_5 = arith.constant 5.000000e-01 : f32
    %6 = vector.broadcast %cst_5 : f32 to vector<16x384xf32>
    %7 = arith.mulf %6, %3 : vector<16x384xf32>
    %cst_6 = arith.constant 0.707106769 : f32
    %8 = vector.broadcast %cst_6 : f32 to vector<16x384xf32>
    %9 = arith.mulf %3, %8 : vector<16x384xf32>
    %10 = math.erf %9 : vector<16x384xf32>
    %cst_7 = arith.constant 1.000000e+00 : f32
    %11 = vector.broadcast %cst_7 : f32 to vector<16x384xf32>
    %12 = arith.addf %11, %10 : vector<16x384xf32>
    %13 = arith.mulf %7, %12 : vector<16x384xf32>
    %14 = arith.mulf %13, %5 : vector<16x384xf32>
    %15 = arith.truncf %14 : vector<16x384xf32> to vector<16x384xbf16>
    %c0_8 = arith.constant 0 : index
    %c0_9 = arith.constant 0 : index
    %16 = vector.load %arg3[%c0_8, %c0_9] : memref<1152x768xbf16, #tpu.memory_space<vmem>>, vector<384x768xbf16>
    %cst_10 = arith.constant dense<0.000000e+00> : vector<16x768xf32>
    %17 = tpu.matmul %15, %16, %cst_10 {dimension_numbers = #tpu.dot_dimension_numbers<[1], [0], [0], [1], [0, 0, 1, 1], [], []>} : vector<16x384xbf16>, vector<384x768xbf16>, vector<16x768xf32> -> vector<16x768xf32>
    %c0_11 = arith.constant 0 : index
    %c384 = arith.constant 384 : index
    %18 = vector.load %arg2[%c0_11, %c384] : memref<768x2304xbf16, #tpu.memory_space<vmem>>, vector<768x384xbf16>
    %cst_12 = arith.constant dense<0.000000e+00> : vector<16x384xf32>
    %19 = tpu.matmul %1, %18, %cst_12 {dimension_numbers = #tpu.dot_dimension_numbers<[1], [0], [0], [1], [0, 0, 1, 1], [], []>} : vector<16x768xbf16>, vector<768x384xbf16>, vector<16x384xf32> -> vector<16x384xf32>
    %c0_13 = arith.constant 0 : index
    %c1536 = arith.constant 1536 : index
    %20 = vector.load %arg2[%c0_13, %c1536] : memref<768x2304xbf16, #tpu.memory_space<vmem>>, vector<768x384xbf16>
    %cst_14 = arith.constant dense<0.000000e+00> : vector<16x384xf32>
    %21 = tpu.matmul %1, %20, %cst_14 {dimension_numbers = #tpu.dot_dimension_numbers<[1], [0], [0], [1], [0, 0, 1, 1], [], []>} : vector<16x768xbf16>, vector<768x384xbf16>, vector<16x384xf32> -> vector<16x384xf32>
    %cst_15 = arith.constant 5.000000e-01 : f32
    %22 = vector.broadcast %cst_15 : f32 to vector<16x384xf32>
    %23 = arith.mulf %22, %19 : vector<16x384xf32>
    %cst_16 = arith.constant 0.707106769 : f32
    %24 = vector.broadcast %cst_16 : f32 to vector<16x384xf32>
    %25 = arith.mulf %19, %24 : vector<16x384xf32>
    %26 = math.erf %25 : vector<16x384xf32>
    %cst_17 = arith.constant 1.000000e+00 : f32
    %27 = vector.broadcast %cst_17 : f32 to vector<16x384xf32>
    %28 = arith.addf %27, %26 : vector<16x384xf32>
    %29 = arith.mulf %23, %28 : vector<16x384xf32>
    %30 = arith.mulf %29, %21 : vector<16x384xf32>
    %31 = arith.truncf %30 : vector<16x384xf32> to vector<16x384xbf16>
    %c384_18 = arith.constant 384 : index
    %c0_19 = arith.constant 0 : index
    %32 = vector.load %arg3[%c384_18, %c0_19] : memref<1152x768xbf16, #tpu.memory_space<vmem>>, vector<384x768xbf16>
    %cst_20 = arith.constant dense<0.000000e+00> : vector<16x768xf32>
    %33 = tpu.matmul %31, %32, %cst_20 {dimension_numbers = #tpu.dot_dimension_numbers<[1], [0], [0], [1], [0, 0, 1, 1], [], []>} : vector<16x384xbf16>, vector<384x768xbf16>, vector<16x768xf32> -> vector<16x768xf32>
    %34 = arith.addf %17, %33 : vector<16x768xf32>
    %c0_21 = arith.constant 0 : index
    %c768 = arith.constant 768 : index
    %35 = vector.load %arg2[%c0_21, %c768] : memref<768x2304xbf16, #tpu.memory_space<vmem>>, vector<768x384xbf16>
    %cst_22 = arith.constant dense<0.000000e+00> : vector<16x384xf32>
    %36 = tpu.matmul %1, %35, %cst_22 {dimension_numbers = #tpu.dot_dimension_numbers<[1], [0], [0], [1], [0, 0, 1, 1], [], []>} : vector<16x768xbf16>, vector<768x384xbf16>, vector<16x384xf32> -> vector<16x384xf32>
    %c0_23 = arith.constant 0 : index
    %c1920 = arith.constant 1920 : index
    %37 = vector.load %arg2[%c0_23, %c1920] : memref<768x2304xbf16, #tpu.memory_space<vmem>>, vector<768x384xbf16>
    %cst_24 = arith.constant dense<0.000000e+00> : vector<16x384xf32>
    %38 = tpu.matmul %1, %37, %cst_24 {dimension_numbers = #tpu.dot_dimension_numbers<[1], [0], [0], [1], [0, 0, 1, 1], [], []>} : vector<16x768xbf16>, vector<768x384xbf16>, vector<16x384xf32> -> vector<16x384xf32>
    %cst_25 = arith.constant 5.000000e-01 : f32
    %39 = vector.broadcast %cst_25 : f32 to vector<16x384xf32>
    %40 = arith.mulf %39, %36 : vector<16x384xf32>
    %cst_26 = arith.constant 0.707106769 : f32
    %41 = vector.broadcast %cst_26 : f32 to vector<16x384xf32>
    %42 = arith.mulf %36, %41 : vector<16x384xf32>
    %43 = math.erf %42 : vector<16x384xf32>
    %cst_27 = arith.constant 1.000000e+00 : f32
    %44 = vector.broadcast %cst_27 : f32 to vector<16x384xf32>
    %45 = arith.addf %44, %43 : vector<16x384xf32>
    %46 = arith.mulf %40, %45 : vector<16x384xf32>
    %47 = arith.mulf %46, %38 : vector<16x384xf32>
    %48 = arith.truncf %47 : vector<16x384xf32> to vector<16x384xbf16>
    %c768_28 = arith.constant 768 : index
    %c0_29 = arith.constant 0 : index
    %49 = vector.load %arg3[%c768_28, %c0_29] : memref<1152x768xbf16, #tpu.memory_space<vmem>>, vector<384x768xbf16>
    %cst_30 = arith.constant dense<0.000000e+00> : vector<16x768xf32>
    %50 = tpu.matmul %48, %49, %cst_30 {dimension_numbers = #tpu.dot_dimension_numbers<[1], [0], [0], [1], [0, 0, 1, 1], [], []>} : vector<16x384xbf16>, vector<384x768xbf16>, vector<16x768xf32> -> vector<16x768xf32>
    %51 = arith.addf %34, %50 : vector<16x768xf32>
    %c0_31 = arith.constant 0 : index
    %c0_32 = arith.constant 0 : index
    %52 = vector.load %arg4[%c0_31, %c0_32] : memref<16x768xf32, #tpu.memory_space<vmem>>, vector<16x768xf32>
    tpu.vector_store %arg4[%c0_31, %c0_32], %51 {strides = array<i32>} : memref<16x768xf32, #tpu.memory_space<vmem>>, vector<16x768xf32>,
    return
  }
  func.func @transform_0(%arg0: i32) -> (i32, i32) {
    %c0_i32 = arith.constant 0 : i32
    %c0_i32_0 = arith.constant 0 : i32
    return %arg0, %c0_i32 : i32, i32
  }
  func.func @transform_1(%arg0: i32) -> (i32, i32) {
    %c0_i32 = arith.constant 0 : i32
    %c0_i32_0 = arith.constant 0 : i32
    %c0_i32_1 = arith.constant 0 : i32
    return %c0_i32, %c0_i32_0 : i32, i32
  }
  func.func @transform_2(%arg0: i32) -> (i32, i32) {
    %c0_i32 = arith.constant 0 : i32
    %c0_i32_0 = arith.constant 0 : i32
    %c0_i32_1 = arith.constant 0 : i32
    return %c0_i32, %c0_i32_0 : i32, i32
  }
  func.func @transform_3(%arg0: i32) -> (i32, i32) {
    %c0_i32 = arith.constant 0 : i32
    %c0_i32_0 = arith.constant 0 : i32
    return %arg0, %c0_i32 : i32, i32
  }
}

</mosaic_0001>

<llo_original>
// kernel: tpu_custom_call.1
$region0: #{tpu_custom_call.1}
  #allocation0 [shape = 'u32[]', space=smem, size = 0x4, offset = 0x4, fixed_abs, tag = 'smem constant byte address 0x4 - core index']
  #allocation1 [shape = 'u32[144,128]{1,0:T(1,128)}', space=vmem, size = 0x12000, scoped, tag = 'internal scratch']
  %s0 = inlined_call_operand.hbm [shape: f32[16,768], index: 0, kind: input, shape index: {}]
  %s1 = inlined_call_operand.hbm [shape: bf16[768,2304], index: 1, kind: input, shape index: {}]
  %s2 = inlined_call_operand.hbm [shape: bf16[1152,768], index: 2, kind: input, shape index: {}]
  %s3 = inlined_call_operand.hbm [shape: f32[16,768], index: 3, kind: output, shape index: {}]
  %s4 = sld [smem:[#allocation0]]
  $region34: #{tpu_custom_call.1} parent=0
    _
  %s6 = ssub.s32 1, %s4
  %s7 = scalar_select 0, %s6, %s4
  $region1: #{tpu_custom_call.1} parent=0
    #allocation2 [shape = 'u8[49152]{0}', space=vmem, size = 0xc000, scoped, tag = 'input window, operand 0, single buffered']
    #allocation3 [shape = 's32[1]{0}', space=sflag, size = 0x4, scoped, tag = 'scoped memory for tpu_custom_call.1']
    #allocation4 [shape = 's32[1]{0}', space=sflag, size = 0x4, scoped, tag = 'scoped memory for tpu_custom_call.1']
    #allocation5 [shape = 'u8[3538944]{0}', space=vmem, size = 0x360000, scoped, tag = 'input window, operand 1, single buffered']
    #allocation6 [shape = 's32[1]{0}', space=sflag, size = 0x4, scoped, tag = 'scoped memory for tpu_custom_call.1']
    #allocation7 [shape = 'u8[1769472]{0}', space=vmem, size = 0x1b0000, scoped, tag = 'input window, operand 2, single buffered']
    #allocation8 [shape = 'u8[49152]{0}', space=vmem, size = 0xc000, scoped, tag = 'output window, operand 0, single buffered']
    %8 = vsyncpa [#allocation3], 0
    %9 = vsyncpa [#allocation6], 0
    %10 = vsyncpa [#allocation4], 0
    // Predicated region
    $region2: #{tpu_custom_call.1} parent=1 // pred_check
      _
    $region3: #{tpu_custom_call.1} parent=1 // pred_check_branch
      %12 = sbr.rel (0) target = $region5
    $region4: #{tpu_custom_call.1} parent=1 // pred_region
      %s14 = ssub.s32 1536, 1536
      %15 = vsyncadd [#allocation3], %s14
      %s16 = sshll.u32 [#allocation2], 4
      %s17 = int_to_ptr.vmem [resolvable:$true] %s16
      %22 = dma.hbm_to_vmem [thread:$0]  %s0, 1536, %s17, [#allocation3], 768, 768, 48
    $region5: #{tpu_custom_call.1} parent=1 // pred_fallthru
      _
    // Predicated region
    $region6: #{tpu_custom_call.1} parent=1 // pred_check
      _
    $region7: #{tpu_custom_call.1} parent=1 // pred_check_branch
      %24 = sbr.rel (0) target = $region9
    $region8: #{tpu_custom_call.1} parent=1 // pred_region
      %s26 = ssub.s32 110592, 110592
      %27 = vsyncadd [#allocation6], %s26
      %s28 = sshll.u32 [#allocation5], 4
      %s29 = int_to_ptr.vmem [resolvable:$true] %s28
      %34 = dma.hbm_to_vmem [thread:$0]  %s1, 110592, %s29, [#allocation6], 1152, 1152, 72
    $region9: #{tpu_custom_call.1} parent=1 // pred_fallthru
      _
    // Predicated region
    $region10: #{tpu_custom_call.1} parent=1 // pred_check
      _
    $region11: #{tpu_custom_call.1} parent=1 // pred_check_branch
      %36 = sbr.rel (0) target = $region13
    $region12: #{tpu_custom_call.1} parent=1 // pred_region
      %s38 = ssub.s32 55296, 55296
      %39 = vsyncadd [#allocation6], %s38
      %s40 = sshll.u32 [#allocation7], 4
      %s41 = int_to_ptr.vmem [resolvable:$true] %s40
      %46 = dma.hbm_to_vmem [thread:$0]  %s2, 55296, %s41, [#allocation6], 384, 384, 24
    $region13: #{tpu_custom_call.1} parent=1 // pred_fallthru
      _
    // Predicated region
    $region14: #{tpu_custom_call.1} parent=1 // pred_check
      _
    $region15: #{tpu_custom_call.1} parent=1 // pred_check_branch
      %48 = sbr.rel (0) target = $region17
    $region16: #{tpu_custom_call.1} parent=1 // pred_region
      %49 = dma.done [#allocation3], 1536
    $region17: #{tpu_custom_call.1} parent=1 // pred_fallthru
      _
    // Predicated region
    $region18: #{tpu_custom_call.1} parent=1 // pred_check
      _
    $region19: #{tpu_custom_call.1} parent=1 // pred_check_branch
      %51 = sbr.rel (0) target = $region21
    $region20: #{tpu_custom_call.1} parent=1 // pred_region
      %52 = dma.done [#allocation6], 110592
    $region21: #{tpu_custom_call.1} parent=1 // pred_fallthru
      _
    // Predicated region
    $region22: #{tpu_custom_call.1} parent=1 // pred_check
      _
    $region23: #{tpu_custom_call.1} parent=1 // pred_check_branch
      %54 = sbr.rel (0) target = $region25
    $region24: #{tpu_custom_call.1} parent=1 // pred_region
      %55 = dma.done [#allocation6], 55296
    $region25: #{tpu_custom_call.1} parent=1 // pred_fallthru
      _
    %v57 = vld [vmem:[#allocation2] sm:$0xff]
    %v58 = vld [vmem:[#allocation2 + $0x8] sm:$0xff]
    %v59 = vld [vmem:[#allocation2 + $0x10] sm:$0xff]
    %v60 = vld [vmem:[#allocation2 + $0x18] sm:$0xff]
    %v61 = vld [vmem:[#allocation2 + $0x20] sm:$0xff]
    %v62 = vld [vmem:[#allocation2 + $0x28] sm:$0xff]
    %v63 = vld [vmem:[#allocation2 + $0x30] sm:$0xff]
    %v64 = vld [vmem:[#allocation2 + $0x38] sm:$0xff]
    %v65 = vld [vmem:[#allocation2 + $0x40] sm:$0xff]
    %v66 = vld [vmem:[#allocation2 + $0x48] sm:$0xff]
    %v67 = vld [vmem:[#allocation2 + $0x50] sm:$0xff]
    %v68 = vld [vmem:[#allocation2 + $0x58] sm:$0xff]
    %v69 = vpack.c.bf16 %v63, %v57
    %v70 = vpack.c.bf16 %v64, %v58
    %v71 = vpack.c.bf16 %v65, %v59
    %v72 = vpack.c.bf16 %v66, %v60
    %v73 = vpack.c.bf16 %v67, %v61
    %v74 = vpack.c.bf16 %v68, %v62
    %v75 = vld [vmem:[#allocation5] sm:$0xff]
    %v76 = vld [vmem:[#allocation5 + $0x8] sm:$0xf]
    %v77 = vld [vmem:[#allocation5 + $0x48] sm:$0xff]
    %v78 = vld [vmem:[#allocation5 + $0x50] sm:$0xf]
    %v79 = vld [vmem:[#allocation5 + $0x90] sm:$0xff]
    %v80 = vld [vmem:[#allocation5 + $0x98] sm:$0xf]
    %v81 = vld [vmem:[#allocation5 + $0xd8] sm:$0xff]
    %v82 = vld [vmem:[#allocation5 + $0xe0] sm:$0xf]
    %v83 = vld [vmem:[#allocation5 + $0x120] sm:$0xff]
    %v84 = vld [vmem:[#allocation5 + $0x128] sm:$0xf]
    %v85 = vld [vmem:[#allocation5 + $0x168] sm:$0xff]
    %v86 = vld [vmem:[#allocation5 + $0x170] sm:$0xf]
    %v87 = vld [vmem:[#allocation5 + $0x1b0] sm:$0xff]
    %v88 = vld [vmem:[#allocation5 + $0x1b8] sm:$0xf]
    %v89 = vld [vmem:[#allocation5 + $0x1f8] sm:$0xff]
    %v90 = vld [vmem:[#allocation5 + $0x200] sm:$0xf]
    %v91 = vld [vmem:[#allocation5 + $0x240] sm:$0xff]
    %v92 = vld [vmem:[#allocation5 + $0x248] sm:$0xf]
    %v93 = vld [vmem:[#allocation5 + $0x288] sm:$0xff]
    %v94 = vld [vmem:[#allocation5 + $0x290] sm:$0xf]
    %v95 = vld [vmem:[#allocation5 + $0x2d0] sm:$0xff]
    %v96 = vld [vmem:[#allocation5 + $0x2d8] sm:$0xf]
    %v97 = vld [vmem:[#allocation5 + $0x318] sm:$0xff]
    %v98 = vld [vmem:[#allocation5 + $0x320] sm:$0xf]
    %v99 = vld [vmem:[#allocation5 + $0x360] sm:$0xff]
    %v100 = vld [vmem:[#allocation5 + $0x368] sm:$0xf]
    %v101 = vld [vmem:[#allocation5 + $0x3a8] sm:$0xff]
    %v102 = vld [vmem:[#allocation5 + $0x3b0] sm:$0xf]
    %v103 = vld [vmem:[#allocation5 + $0x3f0] sm:$0xff]
    %v104 = vld [vmem:[#allocation5 + $0x3f8] sm:$0xf]
    %v105 = vld [vmem:[#allocation5 + $0x438] sm:$0xff]
    %v106 = vld [vmem:[#allocation5 + $0x440] sm:$0xf]
    %v107 = vld [vmem:[#allocation5 + $0x480] sm:$0xff]
    %v108 = vld [vmem:[#allocation5 + $0x488] sm:$0xf]
    %v109 = vld [vmem:[#allocation5 + $0x4c8] sm:$0xff]
    %v110 = vld [vmem:[#allocation5 + $0x4d0] sm:$0xf]
    %v111 = vld [vmem:[#allocation5 + $0x510] sm:$0xff]
    %v112 = vld [vmem:[#allocation5 + $0x518] sm:$0xf]
    %v113 = vld [vmem:[#allocation5 + $0x558] sm:$0xff]
    %v114 = vld [vmem:[#allocation5 + $0x560] sm:$0xf]
    %v115 = vld [vmem:[#allocation5 + $0x5a0] sm:$0xff]
    %v116 = vld [vmem:[#allocation5 + $0x5a8] sm:$0xf]
    %v117 = vld [vmem:[#allocation5 + $0x5e8] sm:$0xff]
    %v118 = vld [vmem:[#allocation5 + $0x5f0] sm:$0xf]
    %v119 = vld [vmem:[#allocation5 + $0x630] sm:$0xff]
    %v120 = vld [vmem:[#allocation5 + $0x638] sm:$0xf]
    %v121 = vld [vmem:[#allocation5 + $0x678] sm:$0xff]
    %v122 = vld [vmem:[#allocation5 + $0x680] sm:$0xf]
    %v123 = vld [vmem:[#allocation5 + $0x6c0] sm:$0xff]
    %v124 = vld [vmem:[#allocation5 + $0x6c8] sm:$0xf]
    %v125 = vld [vmem:[#allocation5 + $0x708] sm:$0xff]
    %v126 = vld [vmem:[#allocation5 + $0x710] sm:$0xf]
    %v127 = vld [vmem:[#allocation5 + $0x750] sm:$0xff]
    %v128 = vld [vmem:[#allocation5 + $0x758] sm:$0xf]
    %v129 = vld [vmem:[#allocation5 + $0x798] sm:$0xff]
    %v130 = vld [vmem:[#allocation5 + $0x7a0] sm:$0xf]
    %v131 = vld [vmem:[#allocation5 + $0x7e0] sm:$0xff]
    %v132 = vld [vmem:[#allocation5 + $0x7e8] sm:$0xf]
    %v133 = vld [vmem:[#allocation5 + $0x828] sm:$0xff]
    %v134 = vld [vmem:[#allocation5 + $0x830] sm:$0xf]
    %v135 = vld [vmem:[#allocation5 + $0x870] sm:$0xff]
    %v136 = vld [vmem:[#allocation5 + $0x878] sm:$0xf]
    %v137 = vld [vmem:[#allocation5 + $0x8b8] sm:$0xff]
    %v138 = vld [vmem:[#allocation5 + $0x8c0] sm:$0xf]
    %v139 = vld [vmem:[#allocation5 + $0x900] sm:$0xff]
    %v140 = vld [vmem:[#allocation5 + $0x908] sm:$0xf]
    %v141 = vld [vmem:[#allocation5 + $0x948] sm:$0xff]
    %v142 = vld [vmem:[#allocation5 + $0x950] sm:$0xf]
    %v143 = vld [vmem:[#allocation5 + $0x990] sm:$0xff]
    %v144 = vld [vmem:[#allocation5 + $0x998] sm:$0xf]
    %v145 = vld [vmem:[#allocation5 + $0x9d8] sm:$0xff]
    %v146 = vld [vmem:[#allocation5 + $0x9e0] sm:$0xf]
    %v147 = vld [vmem:[#allocation5 + $0xa20] sm:$0xff]
    %v148 = vld [vmem:[#allocation5 + $0xa28] sm:$0xf]
    %v149 = vld [vmem:[#allocation5 + $0xa68] sm:$0xff]
    %v150 = vld [vmem:[#allocation5 + $0xa70] sm:$0xf]
    %v151 = vld [vmem:[#allocation5 + $0xab0] sm:$0xff]
    %v152 = vld [vmem:[#allocation5 + $0xab8] sm:$0xf]
    %v153 = vld [vmem:[#allocation5 + $0xaf8] sm:$0xff]
    %v154 = vld [vmem:[#allocation5 + $0xb00] sm:$0xf]
    %v155 = vld [vmem:[#allocation5 + $0xb40] sm:$0xff]
    %v156 = vld [vmem:[#allocation5 + $0xb48] sm:$0xf]
    %v157 = vld [vmem:[#allocation5 + $0xb88] sm:$0xff]
    %v158 = vld [vmem:[#allocation5 + $0xb90] sm:$0xf]
    %v159 = vld [vmem:[#allocation5 + $0xbd0] sm:$0xff]
    %v160 = vld [vmem:[#allocation5 + $0xbd8] sm:$0xf]
    %v161 = vld [vmem:[#allocation5 + $0xc18] sm:$0xff]
    %v162 = vld [vmem:[#allocation5 + $0xc20] sm:$0xf]
    %v163 = vld [vmem:[#allocation5 + $0xc60] sm:$0xff]
    %v164 = vld [vmem:[#allocation5 + $0xc68] sm:$0xf]
    %v165 = vld [vmem:[#allocation5 + $0xca8] sm:$0xff]
    %v166 = vld [vmem:[#allocation5 + $0xcb0] sm:$0xf]
    %v167 = vld [vmem:[#allocation5 + $0xcf0] sm:$0xff]
    %v168 = vld [vmem:[#allocation5 + $0xcf8] sm:$0xf]
    %v169 = vld [vmem:[#allocation5 + $0xd38] sm:$0xff]
    %v170 = vld [vmem:[#allocation5 + $0xd40] sm:$0xf]
    %v171 = vld [vmem:[#allocation5 + $0xd80] sm:$0xff]
    %v172 = vld [vmem:[#allocation5 + $0xd88] sm:$0xf]
    %v173 = vld [vmem:[#allocation5 + $0xdc8] sm:$0xff]
    %v174 = vld [vmem:[#allocation5 + $0xdd0] sm:$0xf]
    %v175 = vld [vmem:[#allocation5 + $0xe10] sm:$0xff]
    %v176 = vld [vmem:[#allocation5 + $0xe18] sm:$0xf]
    %v177 = vld [vmem:[#allocation5 + $0xe58] sm:$0xff]
    %v178 = vld [vmem:[#allocation5 + $0xe60] sm:$0xf]
    %v179 = vld [vmem:[#allocation5 + $0xea0] sm:$0xff]
    %v180 = vld [vmem:[#allocation5 + $0xea8] sm:$0xf]
    %v181 = vld [vmem:[#allocation5 + $0xee8] sm:$0xff]
    %v182 = vld [vmem:[#allocation5 + $0xef0] sm:$0xf]
    %v183 = vld [vmem:[#allocation5 + $0xf30] sm:$0xff]
    %v184 = vld [vmem:[#allocation5 + $0xf38] sm:$0xf]
    %v185 = vld [vmem:[#allocation5 + $0xf78] sm:$0xff]
    %v186 = vld [vmem:[#allocation5 + $0xf80] sm:$0xf]
    %v187 = vld [vmem:[#allocation5 + $0xfc0] sm:$0xff]
    %v188 = vld [vmem:[#allocation5 + $0xfc8] sm:$0xf]
    %v189 = vld [vmem:[#allocation5 + $0x1008] sm:$0xff]
    %v190 = vld [vmem:[#allocation5 + $0x1010] sm:$0xf]
    %v191 = vld [vmem:[#allocation5 + $0x1050] sm:$0xff]
    %v192 = vld [vmem:[#allocation5 + $0x1058] sm:$0xf]
    %v193 = vld [vmem:[#allocation5 + $0x1098] sm:$0xff]
    %v194 = vld [vmem:[#allocation5 + $0x10a0] sm:$0xf]
    %v195 = vld [vmem:[#allocation5 + $0x10e0] sm:$0xff]
    %v196 = vld [vmem:[#allocation5 + $0x10e8] sm:$0xf]
    %v197 = vld [vmem:[#allocation5 + $0x1128] sm:$0xff]
    %v198 = vld [vmem:[#allocation5 + $0x1130] sm:$0xf]
    %v199 = vld [vmem:[#allocation5 + $0x1170] sm:$0xff]
    %v200 = vld [vmem:[#allocation5 + $0x1178] sm:$0xf]
    %v201 = vld [vmem:[#allocation5 + $0x11b8] sm:$0xff]
    %v202 = vld [vmem:[#allocation5 + $0x11c0] sm:$0xf]
    %v203 = vld [vmem:[#allocation5 + $0x1200] sm:$0xff]
    %v204 = vld [vmem:[#allocation5 + $0x1208] sm:$0xf]
    %v205 = vld [vmem:[#allocation5 + $0x1248] sm:$0xff]
    %v206 = vld [vmem:[#allocation5 + $0x1250] sm:$0xf]
    %v207 = vld [vmem:[#allocation5 + $0x1290] sm:$0xff]
    %v208 = vld [vmem:[#allocation5 + $0x1298] sm:$0xf]
    %v209 = vld [vmem:[#allocation5 + $0x12d8] sm:$0xff]
    %v210 = vld [vmem:[#allocation5 + $0x12e0] sm:$0xf]
    %v211 = vld [vmem:[#allocation5 + $0x1320] sm:$0xff]
    %v212 = vld [vmem:[#allocation5 + $0x1328] sm:$0xf]
    %v213 = vld [vmem:[#allocation5 + $0x1368] sm:$0xff]
    %v214 = vld [vmem:[#allocation5 + $0x1370] sm:$0xf]
    %v215 = vld [vmem:[#allocation5 + $0x13b0] sm:$0xff]
    %v216 = vld [vmem:[#allocation5 + $0x13b8] sm:$0xf]
    %v217 = vld [vmem:[#allocation5 + $0x13f8] sm:$0xff]
    %v218 = vld [vmem:[#allocation5 + $0x1400] sm:$0xf]
    %v219 = vld [vmem:[#allocation5 + $0x1440] sm:$0xff]
    %v220 = vld [vmem:[#allocation5 + $0x1448] sm:$0xf]
    %v221 = vld [vmem:[#allocation5 + $0x1488] sm:$0xff]
    %v222 = vld [vmem:[#allocation5 + $0x1490] sm:$0xf]
    %v223 = vld [vmem:[#allocation5 + $0x14d0] sm:$0xff]
    %v224 = vld [vmem:[#allocation5 + $0x14d8] sm:$0xf]
    %v225 = vld [vmem:[#allocation5 + $0x1518] sm:$0xff]
    %v226 = vld [vmem:[#allocation5 + $0x1520] sm:$0xf]
    %v227 = vld [vmem:[#allocation5 + $0x1560] sm:$0xff]
    %v228 = vld [vmem:[#allocation5 + $0x1568] sm:$0xf]
    %v229 = vld [vmem:[#allocation5 + $0x15a8] sm:$0xff]
    %v230 = vld [vmem:[#allocation5 + $0x15b0] sm:$0xf]
    %v231 = vld [vmem:[#allocation5 + $0x15f0] sm:$0xff]
    %v232 = vld [vmem:[#allocation5 + $0x15f8] sm:$0xf]
    %v233 = vld [vmem:[#allocation5 + $0x1638] sm:$0xff]
    %v234 = vld [vmem:[#allocation5 + $0x1640] sm:$0xf]
    %v235 = vld [vmem:[#allocation5 + $0x1680] sm:$0xff]
    %v236 = vld [vmem:[#allocation5 + $0x1688] sm:$0xf]
    %v237 = vld [vmem:[#allocation5 + $0x16c8] sm:$0xff]
    %v238 = vld [vmem:[#allocation5 + $0x16d0] sm:$0xf]
    %v239 = vld [vmem:[#allocation5 + $0x1710] sm:$0xff]
    %v240 = vld [vmem:[#allocation5 + $0x1718] sm:$0xf]
    %v241 = vld [vmem:[#allocation5 + $0x1758] sm:$0xff]
    %v242 = vld [vmem:[#allocation5 + $0x1760] sm:$0xf]
    %v243 = vld [vmem:[#allocation5 + $0x17a0] sm:$0xff]
    %v244 = vld [vmem:[#allocation5 + $0x17a8] sm:$0xf]
    %v245 = vld [vmem:[#allocation5 + $0x17e8] sm:$0xff]
    %v246 = vld [vmem:[#allocation5 + $0x17f0] sm:$0xf]
    %v247 = vld [vmem:[#allocation5 + $0x1830] sm:$0xff]
    %v248 = vld [vmem:[#allocation5 + $0x1838] sm:$0xf]
    %v249 = vld [vmem:[#allocation5 + $0x1878] sm:$0xff]
    %v250 = vld [vmem:[#allocation5 + $0x1880] sm:$0xf]
    %v251 = vld [vmem:[#allocation5 + $0x18c0] sm:$0xff]
    %v252 = vld [vmem:[#allocation5 + $0x18c8] sm:$0xf]
    %v253 = vld [vmem:[#allocation5 + $0x1908] sm:$0xff]
    %v254 = vld [vmem:[#allocation5 + $0x1910] sm:$0xf]
    %v255 = vld [vmem:[#allocation5 + $0x1950] sm:$0xff]
    %v256 = vld [vmem:[#allocation5 + $0x1958] sm:$0xf]
    %v257 = vld [vmem:[#allocation5 + $0x1998] sm:$0xff]
    %v258 = vld [vmem:[#allocation5 + $0x19a0] sm:$0xf]
    %v259 = vld [vmem:[#allocation5 + $0x19e0] sm:$0xff]
    %v260 = vld [vmem:[#allocation5 + $0x19e8] sm:$0xf]
    %v261 = vld [vmem:[#allocation5 + $0x1a28] sm:$0xff]
    %v262 = vld [vmem:[#allocation5 + $0x1a30] sm:$0xf]
    %v263 = vld [vmem:[#allocation5 + $0x1a70] sm:$0xff]
    %v264 = vld [vmem:[#allocation5 + $0x1a78] sm:$0xf]
    %v265 = vld [vmem:[#allocation5 + $0x1ab8] sm:$0xff]
    %v266 = vld [vmem:[#allocation5 + $0x1ac0] sm:$0xf]
    %v459 = vunpack.c.l.b16 %v75
    %v460 = vunpack.c.h.b16 %v75
    %v461 = vunpack.c.l.b16 %v76
    %v462 = vunpack.c.l.b16 %v77
    %v463 = vunpack.c.h.b16 %v77
    %v464 = vunpack.c.l.b16 %v78
    %v465 = vunpack.c.l.b16 %v79
    %v466 = vunpack.c.h.b16 %v79
    %v467 = vunpack.c.l.b16 %v80
    %v468 = vunpack.c.l.b16 %v81
    %v469 = vunpack.c.h.b16 %v81
    %v470 = vunpack.c.l.b16 %v82
    %v471 = vunpack.c.l.b16 %v83
    %v472 = vunpack.c.h.b16 %v83
    %v473 = vunpack.c.l.b16 %v84
    %v474 = vunpack.c.l.b16 %v85
    %v475 = vunpack.c.h.b16 %v85
    %v476 = vunpack.c.l.b16 %v86
    %v477 = vunpack.c.l.b16 %v87
    %v478 = vunpack.c.h.b16 %v87
    %v479 = vunpack.c.l.b16 %v88
    %v480 = vunpack.c.l.b16 %v89
    %v481 = vunpack.c.h.b16 %v89
    %v482 = vunpack.c.l.b16 %v90
    %v483 = vunpack.c.l.b16 %v91
    %v484 = vunpack.c.h.b16 %v91
    %v485 = vunpack.c.l.b16 %v92
    %v486 = vunpack.c.l.b16 %v93
    %v487 = vunpack.c.h.b16 %v93
    %v488 = vunpack.c.l.b16 %v94
    %v489 = vunpack.c.l.b16 %v95
    %v490 = vunpack.c.h.b16 %v95
    %v491 = vunpack.c.l.b16 %v96
    %v492 = vunpack.c.l.b16 %v97
    %v493 = vunpack.c.h.b16 %v97
    %v494 = vunpack.c.l.b16 %v98
    %v495 = vunpack.c.l.b16 %v99
    %v496 = vunpack.c.h.b16 %v99
    %v497 = vunpack.c.l.b16 %v100
    %v498 = vunpack.c.l.b16 %v101
    %v499 = vunpack.c.h.b16 %v101
    %v500 = vunpack.c.l.b16 %v102
    %v501 = vunpack.c.l.b16 %v103
    %v502 = vunpack.c.h.b16 %v103
    %v503 = vunpack.c.l.b16 %v104
    %v504 = vunpack.c.l.b16 %v105
    %v505 = vunpack.c.h.b16 %v105
    %v506 = vunpack.c.l.b16 %v106
    %v507 = vunpack.c.l.b16 %v107
    %v508 = vunpack.c.h.b16 %v107
    %v509 = vunpack.c.l.b16 %v108
    %v510 = vunpack.c.l.b16 %v109
    %v511 = vunpack.c.h.b16 %v109
    %v512 = vunpack.c.l.b16 %v110
    %v513 = vunpack.c.l.b16 %v111
    %v514 = vunpack.c.h.b16 %v111
    %v515 = vunpack.c.l.b16 %v112
    %v516 = vunpack.c.l.b16 %v113
    %v517 = vunpack.c.h.b16 %v113
    %v518 = vunpack.c.l.b16 %v114
    %v519 = vunpack.c.l.b16 %v115
    %v520 = vunpack.c.h.b16 %v115
    %v521 = vunpack.c.l.b16 %v116
    %v522 = vunpack.c.l.b16 %v117
    %v523 = vunpack.c.h.b16 %v117
    %v524 = vunpack.c.l.b16 %v118
    %v525 = vunpack.c.l.b16 %v119
    %v526 = vunpack.c.h.b16 %v119
    %v527 = vunpack.c.l.b16 %v120
    %v528 = vunpack.c.l.b16 %v121
    %v529 = vunpack.c.h.b16 %v121
    %v530 = vunpack.c.l.b16 %v122
    %v531 = vunpack.c.l.b16 %v123
    %v532 = vunpack.c.h.b16 %v123
    %v533 = vunpack.c.l.b16 %v124
    %v534 = vunpack.c.l.b16 %v125
    %v535 = vunpack.c.h.b16 %v125
    %v536 = vunpack.c.l.b16 %v126
    %v537 = vunpack.c.l.b16 %v127
    %v538 = vunpack.c.h.b16 %v127
    %v539 = vunpack.c.l.b16 %v128
    %v540 = vunpack.c.l.b16 %v129
    %v541 = vunpack.c.h.b16 %v129
    %v542 = vunpack.c.l.b16 %v130
    %v543 = vunpack.c.l.b16 %v131
    %v544 = vunpack.c.h.b16 %v131
    %v545 = vunpack.c.l.b16 %v132
    %v546 = vunpack.c.l.b16 %v133
    %v547 = vunpack.c.h.b16 %v133
    %v548 = vunpack.c.l.b16 %v134
    %v549 = vunpack.c.l.b16 %v135
    %v550 = vunpack.c.h.b16 %v135
    %v551 = vunpack.c.l.b16 %v136
    %v552 = vunpack.c.l.b16 %v137
    %v553 = vunpack.c.h.b16 %v137
    %v554 = vunpack.c.l.b16 %v138
    %v555 = vunpack.c.l.b16 %v139
    %v556 = vunpack.c.h.b16 %v139
    %v557 = vunpack.c.l.b16 %v140
    %v558 = vunpack.c.l.b16 %v141
    %v559 = vunpack.c.h.b16 %v141
    %v560 = vunpack.c.l.b16 %v142
    %v561 = vunpack.c.l.b16 %v143
    %v562 = vunpack.c.h.b16 %v143
    %v563 = vunpack.c.l.b16 %v144
    %v564 = vunpack.c.l.b16 %v145
    %v565 = vunpack.c.h.b16 %v145
    %v566 = vunpack.c.l.b16 %v146
    %v567 = vunpack.c.l.b16 %v147
    %v568 = vunpack.c.h.b16 %v147
    %v569 = vunpack.c.l.b16 %v148
    %v570 = vunpack.c.l.b16 %v149
    %v571 = vunpack.c.h.b16 %v149
    %v572 = vunpack.c.l.b16 %v150
    %v573 = vunpack.c.l.b16 %v151
    %v574 = vunpack.c.h.b16 %v151
    %v575 = vunpack.c.l.b16 %v152
    %v576 = vunpack.c.l.b16 %v153
    %v577 = vunpack.c.h.b16 %v153
    %v578 = vunpack.c.l.b16 %v154
    %v579 = vunpack.c.l.b16 %v155
    %v580 = vunpack.c.h.b16 %v155
    %v581 = vunpack.c.l.b16 %v156
    %v582 = vunpack.c.l.b16 %v157
    %v583 = vunpack.c.h.b16 %v157
    %v584 = vunpack.c.l.b16 %v158
    %v585 = vunpack.c.l.b16 %v159
    %v586 = vunpack.c.h.b16 %v159
    %v587 = vunpack.c.l.b16 %v160
    %v588 = vunpack.c.l.b16 %v161
    %v589 = vunpack.c.h.b16 %v161
    %v590 = vunpack.c.l.b16 %v162
    %v591 = vunpack.c.l.b16 %v163
    %v592 = vunpack.c.h.b16 %v163
    %v593 = vunpack.c.l.b16 %v164
    %v594 = vunpack.c.l.b16 %v165
    %v595 = vunpack.c.h.b16 %v165
    %v596 = vunpack.c.l.b16 %v166
    %v597 = vunpack.c.l.b16 %v167
    %v598 = vunpack.c.h.b16 %v167
    %v599 = vunpack.c.l.b16 %v168
    %v600 = vunpack.c.l.b16 %v169
    %v601 = vunpack.c.h.b16 %v169
    %v602 = vunpack.c.l.b16 %v170
    %v603 = vunpack.c.l.b16 %v171
    %v604 = vunpack.c.h.b16 %v171
    %v605 = vunpack.c.l.b16 %v172
    %v606 = vunpack.c.l.b16 %v173
    %v607 = vunpack.c.h.b16 %v173
    %v608 = vunpack.c.l.b16 %v174
    %v609 = vunpack.c.l.b16 %v175
    %v610 = vunpack.c.h.b16 %v175
    %v611 = vunpack.c.l.b16 %v176
    %v612 = vunpack.c.l.b16 %v177
    %v613 = vunpack.c.h.b16 %v177
    %v614 = vunpack.c.l.b16 %v178
    %v615 = vunpack.c.l.b16 %v179
    %v616 = vunpack.c.h.b16 %v179
    %v617 = vunpack.c.l.b16 %v180
    %v618 = vunpack.c.l.b16 %v181
    %v619 = vunpack.c.h.b16 %v181
    %v620 = vunpack.c.l.b16 %v182
    %v621 = vunpack.c.l.b16 %v183
    %v622 = vunpack.c.h.b16 %v183
    %v623 = vunpack.c.l.b16 %v184
    %v624 = vunpack.c.l.b16 %v185
    %v625 = vunpack.c.h.b16 %v185
    %v626 = vunpack.c.l.b16 %v186
    %v627 = vunpack.c.l.b16 %v187
    %v628 = vunpack.c.h.b16 %v187
    %v629 = vunpack.c.l.b16 %v188
    %v630 = vunpack.c.l.b16 %v189
    %v631 = vunpack.c.h.b16 %v189
    %v632 = vunpack.c.l.b16 %v190
    %v633 = vunpack.c.l.b16 %v191
    %v634 = vunpack.c.h.b16 %v191
    %v635 = vunpack.c.l.b16 %v192
    %v636 = vunpack.c.l.b16 %v193
    %v637 = vunpack.c.h.b16 %v193
    %v638 = vunpack.c.l.b16 %v194
    %v639 = vunpack.c.l.b16 %v195
    %v640 = vunpack.c.h.b16 %v195
    %v641 = vunpack.c.l.b16 %v196
    %v642 = vunpack.c.l.b16 %v197
    %v643 = vunpack.c.h.b16 %v197
    %v644 = vunpack.c.l.b16 %v198
    %v645 = vunpack.c.l.b16 %v199
    %v646 = vunpack.c.h.b16 %v199
    %v647 = vunpack.c.l.b16 %v200
    %v648 = vunpack.c.l.b16 %v201
    %v649 = vunpack.c.h.b16 %v201
    %v650 = vunpack.c.l.b16 %v202
    %v651 = vunpack.c.l.b16 %v203
    %v652 = vunpack.c.h.b16 %v203
    %v653 = vunpack.c.l.b16 %v204
    %v654 = vunpack.c.l.b16 %v205
    %v655 = vunpack.c.h.b16 %v205
    %v656 = vunpack.c.l.b16 %v206
    %v657 = vunpack.c.l.b16 %v207
    %v658 = vunpack.c.h.b16 %v207
    %v659 = vunpack.c.l.b16 %v208
    %v660 = vunpack.c.l.b16 %v209
    %v661 = vunpack.c.h.b16 %v209
    %v662 = vunpack.c.l.b16 %v210
    %v663 = vunpack.c.l.b16 %v211
    %v664 = vunpack.c.h.b16 %v211
    %v665 = vunpack.c.l.b16 %v212
    %v666 = vunpack.c.l.b16 %v213
    %v667 = vunpack.c.h.b16 %v213
    %v668 = vunpack.c.l.b16 %v214
    %v669 = vunpack.c.l.b16 %v215
    %v670 = vunpack.c.h.b16 %v215
    %v671 = vunpack.c.l.b16 %v216
    %v672 = vunpack.c.l.b16 %v217
    %v673 = vunpack.c.h.b16 %v217
    %v674 = vunpack.c.l.b16 %v218
    %v675 = vunpack.c.l.b16 %v219
    %v676 = vunpack.c.h.b16 %v219
    %v677 = vunpack.c.l.b16 %v220
    %v678 = vunpack.c.l.b16 %v221
    %v679 = vunpack.c.h.b16 %v221
    %v680 = vunpack.c.l.b16 %v222
    %v681 = vunpack.c.l.b16 %v223
    %v682 = vunpack.c.h.b16 %v223
    %v683 = vunpack.c.l.b16 %v224
    %v684 = vunpack.c.l.b16 %v225
    %v685 = vunpack.c.h.b16 %v225
    %v686 = vunpack.c.l.b16 %v226
    %v687 = vunpack.c.l.b16 %v227
    %v688 = vunpack.c.h.b16 %v227
    %v689 = vunpack.c.l.b16 %v228
    %v690 = vunpack.c.l.b16 %v229
    %v691 = vunpack.c.h.b16 %v229
    %v692 = vunpack.c.l.b16 %v230
    %v693 = vunpack.c.l.b16 %v231
    %v694 = vunpack.c.h.b16 %v231
    %v695 = vunpack.c.l.b16 %v232
    %v696 = vunpack.c.l.b16 %v233
    %v697 = vunpack.c.h.b16 %v233
    %v698 = vunpack.c.l.b16 %v234
    %v699 = vunpack.c.l.b16 %v235
    %v700 = vunpack.c.h.b16 %v235
    %v701 = vunpack.c.l.b16 %v236
    %v702 = vunpack.c.l.b16 %v237
    %v703 = vunpack.c.h.b16 %v237
    %v704 = vunpack.c.l.b16 %v238
    %v705 = vunpack.c.l.b16 %v239
    %v706 = vunpack.c.h.b16 %v239
    %v707 = vunpack.c.l.b16 %v240
    %v708 = vunpack.c.l.b16 %v241
    %v709 = vunpack.c.h.b16 %v241
    %v710 = vunpack.c.l.b16 %v242
    %v711 = vunpack.c.l.b16 %v243
    %v712 = vunpack.c.h.b16 %v243
    %v713 = vunpack.c.l.b16 %v244
    %v714 = vunpack.c.l.b16 %v245
    %v715 = vunpack.c.h.b16 %v245
    %v716 = vunpack.c.l.b16 %v246
    %v717 = vunpack.c.l.b16 %v247
    %v718 = vunpack.c.h.b16 %v247
    %v719 = vunpack.c.l.b16 %v248
    %v720 = vunpack.c.l.b16 %v249
    %v721 = vunpack.c.h.b16 %v249
    %v722 = vunpack.c.l.b16 %v250
    %v723 = vunpack.c.l.b16 %v251
    %v724 = vunpack.c.h.b16 %v251
    %v725 = vunpack.c.l.b16 %v252
    %v726 = vunpack.c.l.b16 %v253
    %v727 = vunpack.c.h.b16 %v253
    %v728 = vunpack.c.l.b16 %v254
    %v729 = vunpack.c.l.b16 %v255
    %v730 = vunpack.c.h.b16 %v255
    %v731 = vunpack.c.l.b16 %v256
    %v732 = vunpack.c.l.b16 %v257
    %v733 = vunpack.c.h.b16 %v257
    %v734 = vunpack.c.l.b16 %v258
    %v735 = vunpack.c.l.b16 %v259
    %v736 = vunpack.c.h.b16 %v259
    %v737 = vunpack.c.l.b16 %v260
    %v738 = vunpack.c.l.b16 %v261
    %v739 = vunpack.c.h.b16 %v261
    %v740 = vunpack.c.l.b16 %v262
    %v741 = vunpack.c.l.b16 %v263
    %v742 = vunpack.c.h.b16 %v263
    %v743 = vunpack.c.l.b16 %v264
    %v744 = vunpack.c.l.b16 %v265
    %v745 = vunpack.c.h.b16 %v265
    %v746 = vunpack.c.l.b16 %v266
    %v747 = vpack.c.b16 %v462, %v459
    %v748 = vpack.c.b16 %v463, %v460
    %v749 = vpack.c.b16 %v464, %v461
    %v750 = vpack.c.b16 %v468, %v465
    %v751 = vpack.c.b16 %v469, %v466
    %v752 = vpack.c.b16 %v470, %v467
    %v753 = vpack.c.b16 %v474, %v471
    %v754 = vpack.c.b16 %v475, %v472
    %v755 = vpack.c.b16 %v476, %v473
    %v756 = vpack.c.b16 %v480, %v477
    %v757 = vpack.c.b16 %v481, %v478
    %v758 = vpack.c.b16 %v482, %v479
    %v759 = vpack.c.b16 %v486, %v483
    %v760 = vpack.c.b16 %v487, %v484
    %v761 = vpack.c.b16 %v488, %v485
    %v762 = vpack.c.b16 %v492, %v489
    %v763 = vpack.c.b16 %v493, %v490
    %v764 = vpack.c.b16 %v494, %v491
    %v765 = vpack.c.b16 %v498, %v495
    %v766 = vpack.c.b16 %v499, %v496
    %v767 = vpack.c.b16 %v500, %v497
    %v768 = vpack.c.b16 %v504, %v501
    %v769 = vpack.c.b16 %v505, %v502
    %v770 = vpack.c.b16 %v506, %v503
    %v771 = vpack.c.b16 %v510, %v507
    %v772 = vpack.c.b16 %v511, %v508
    %v773 = vpack.c.b16 %v512, %v509
    %v774 = vpack.c.b16 %v516, %v513
    %v775 = vpack.c.b16 %v517, %v514
    %v776 = vpack.c.b16 %v518, %v515
    %v777 = vpack.c.b16 %v522, %v519
    %v778 = vpack.c.b16 %v523, %v520
    %v779 = vpack.c.b16 %v524, %v521
    %v780 = vpack.c.b16 %v528, %v525
    %v781 = vpack.c.b16 %v529, %v526
    %v782 = vpack.c.b16 %v530, %v527
    %v783 = vpack.c.b16 %v534, %v531
    %v784 = vpack.c.b16 %v535, %v532
    %v785 = vpack.c.b16 %v536, %v533
    %v786 = vpack.c.b16 %v540, %v537
    %v787 = vpack.c.b16 %v541, %v538
    %v788 = vpack.c.b16 %v542, %v539
    %v789 = vpack.c.b16 %v546, %v543
    %v790 = vpack.c.b16 %v547, %v544
    %v791 = vpack.c.b16 %v548, %v545
    %v792 = vpack.c.b16 %v552, %v549
    %v793 = vpack.c.b16 %v553, %v550
    %v794 = vpack.c.b16 %v554, %v551
    %v795 = vpack.c.b16 %v558, %v555
    %v796 = vpack.c.b16 %v559, %v556
    %v797 = vpack.c.b16 %v560, %v557
    %v798 = vpack.c.b16 %v564, %v561
    %v799 = vpack.c.b16 %v565, %v562
    %v800 = vpack.c.b16 %v566, %v563
    %v801 = vpack.c.b16 %v570, %v567
    %v802 = vpack.c.b16 %v571, %v568
    %v803 = vpack.c.b16 %v572, %v569
    %v804 = vpack.c.b16 %v576, %v573
    %v805 = vpack.c.b16 %v577, %v574
    %v806 = vpack.c.b16 %v578, %v575
    %v807 = vpack.c.b16 %v582, %v579
    %v808 = vpack.c.b16 %v583, %v580
    %v809 = vpack.c.b16 %v584, %v581
    %v810 = vpack.c.b16 %v588, %v585
    %v811 = vpack.c.b16 %v589, %v586
    %v812 = vpack.c.b16 %v590, %v587
    %v813 = vpack.c.b16 %v594, %v591
    %v814 = vpack.c.b16 %v595, %v592
    %v815 = vpack.c.b16 %v596, %v593
    %v816 = vpack.c.b16 %v600, %v597
    %v817 = vpack.c.b16 %v601, %v598
    %v818 = vpack.c.b16 %v602, %v599
    %v819 = vpack.c.b16 %v606, %v603
    %v820 = vpack.c.b16 %v607, %v604
    %v821 = vpack.c.b16 %v608, %v605
    %v822 = vpack.c.b16 %v612, %v609
    %v823 = vpack.c.b16 %v613, %v610
    %v824 = vpack.c.b16 %v614, %v611
    %v825 = vpack.c.b16 %v618, %v615
    %v826 = vpack.c.b16 %v619, %v616
    %v827 = vpack.c.b16 %v620, %v617
    %v828 = vpack.c.b16 %v624, %v621
    %v829 = vpack.c.b16 %v625, %v622
    %v830 = vpack.c.b16 %v626, %v623
    %v831 = vpack.c.b16 %v630, %v627
    %v832 = vpack.c.b16 %v631, %v628
    %v833 = vpack.c.b16 %v632, %v629
    %v834 = vpack.c.b16 %v636, %v633
    %v835 = vpack.c.b16 %v637, %v634
    %v836 = vpack.c.b16 %v638, %v635
    %v837 = vpack.c.b16 %v642, %v639
    %v838 = vpack.c.b16 %v643, %v640
    %v839 = vpack.c.b16 %v644, %v641
    %v840 = vpack.c.b16 %v648, %v645
    %v841 = vpack.c.b16 %v649, %v646
    %v842 = vpack.c.b16 %v650, %v647
    %v843 = vpack.c.b16 %v654, %v651
    %v844 = vpack.c.b16 %v655, %v652
    %v845 = vpack.c.b16 %v656, %v653
    %v846 = vpack.c.b16 %v660, %v657
    %v847 = vpack.c.b16 %v661, %v658
    %v848 = vpack.c.b16 %v662, %v659
    %v849 = vpack.c.b16 %v666, %v663
    %v850 = vpack.c.b16 %v667, %v664
    %v851 = vpack.c.b16 %v668, %v665
    %v852 = vpack.c.b16 %v672, %v669
    %v853 = vpack.c.b16 %v673, %v670
    %v854 = vpack.c.b16 %v674, %v671
    %v855 = vpack.c.b16 %v678, %v675
    %v856 = vpack.c.b16 %v679, %v676
    %v857 = vpack.c.b16 %v680, %v677
    %v858 = vpack.c.b16 %v684, %v681
    %v859 = vpack.c.b16 %v685, %v682
    %v860 = vpack.c.b16 %v686, %v683
    %v861 = vpack.c.b16 %v690, %v687
    %v862 = vpack.c.b16 %v691, %v688
    %v863 = vpack.c.b16 %v692, %v689
    %v864 = vpack.c.b16 %v696, %v693
    %v865 = vpack.c.b16 %v697, %v694
    %v866 = vpack.c.b16 %v698, %v695
    %v867 = vpack.c.b16 %v702, %v699
    %v868 = vpack.c.b16 %v703, %v700
    %v869 = vpack.c.b16 %v704, %v701
    %v870 = vpack.c.b16 %v708, %v705
    %v871 = vpack.c.b16 %v709, %v706
    %v872 = vpack.c.b16 %v710, %v707
    %v873 = vpack.c.b16 %v714, %v711
    %v874 = vpack.c.b16 %v715, %v712
    %v875 = vpack.c.b16 %v716, %v713
    %v876 = vpack.c.b16 %v720, %v717
    %v877 = vpack.c.b16 %v721, %v718
    %v878 = vpack.c.b16 %v722, %v719
    %v879 = vpack.c.b16 %v726, %v723
    %v880 = vpack.c.b16 %v727, %v724
    %v881 = vpack.c.b16 %v728, %v725
    %v882 = vpack.c.b16 %v732, %v729
    %v883 = vpack.c.b16 %v733, %v730
    %v884 = vpack.c.b16 %v734, %v731
    %v885 = vpack.c.b16 %v738, %v735
    %v886 = vpack.c.b16 %v739, %v736
    %v887 = vpack.c.b16 %v740, %v737
    %v888 = vpack.c.b16 %v744, %v741
    %v889 = vpack.c.b16 %v745, %v742
    %v890 = vpack.c.b16 %v746, %v743
    %1035 = vmatprep.subr.bf16.mxu0 %v748
    %1036 = vmatpush1.bf16.msra.mxu0 %v747
    %1037 = vmatprep.subr.bf16.mxu0 %v751
    %1038 = vmatpush1.bf16.msra.mxu0 %v750
    %1039 = vmatprep.subr.bf16.mxu0 %v754
    %1040 = vmatpush1.bf16.msra.mxu0 %v753
    %1041 = vmatprep.subr.bf16.mxu0 %v757
    %1042 = vmatpush1.bf16.msra.mxu0 %v756
    %1043 = vmatprep.subr.bf16.mxu0 %v760
    %1044 = vmatpush1.bf16.msra.mxu0 %v759
    %1045 = vmatprep.subr.bf16.mxu0 %v763
    %1046 = vmatpush1.bf16.msra.mxu0 %v762
    %1047 = vmatprep.subr.bf16.mxu0 %v766
    %1048 = vmatpush1.bf16.msra.mxu0 %v765
    %1049 = vmatprep.subr.bf16.mxu0 %v769
    %1050 = vmatpush1.bf16.msra.mxu0 %v768
    %1051 = vmatprep.subr.bf16.mxu0 %v772
    %1052 = vmatpush1.bf16.msra.mxu0 %v771
    %1053 = vmatprep.subr.bf16.mxu0 %v775
    %1054 = vmatpush1.bf16.msra.mxu0 %v774
    %1055 = vmatprep.subr.bf16.mxu0 %v778
    %1056 = vmatpush1.bf16.msra.mxu0 %v777
    %1057 = vmatprep.subr.bf16.mxu0 %v781
    %1058 = vmatpush1.bf16.msra.mxu0 %v780
    %1059 = vmatprep.subr.bf16.mxu0 %v784
    %1060 = vmatpush1.bf16.msra.mxu0 %v783
    %1061 = vmatprep.subr.bf16.mxu0 %v787
    %1062 = vmatpush1.bf16.msra.mxu0 %v786
    %1063 = vmatprep.subr.bf16.mxu0 %v790
    %1064 = vmatpush1.bf16.msra.mxu0 %v789
    %1065 = vmatprep.subr.bf16.mxu0 %v793
    %1066 = vmatpush1.bf16.msra.mxu0 %v792
    %1067 = vmatprep.mubr.bf16.mxu0 %v70
    %1068 = vmatmul.mubr.bf16.gmra.mrb[0].mxu0 %v69
    %v1069 = vpop.f32.mrb[0].mxu0
    %v1070 = vadd.f32 0.0, %v1069
    %v1071 = vpop.f32.mrb[0].mxu0
    %v1072 = vadd.f32 0.0, %v1071
    %v1073 = vpop.f32.mrb[0].mxu0
    %v1074 = vadd.f32 0.0, %v1073
    %v1075 = vpop.f32.mrb[0].mxu0
    %v1076 = vadd.f32 0.0, %v1075
    %1077 = vdwg.mxu0
    %1078 = vmatprep.subr.bf16.mxu0 %v796
    %1079 = vmatpush1.bf16.msra.mxu0 %v795
    %1080 = vmatprep.subr.bf16.mxu0 %v799
    %1081 = vmatpush1.bf16.msra.mxu0 %v798
    %1082 = vmatprep.subr.bf16.mxu0 %v802
    %1083 = vmatpush1.bf16.msra.mxu0 %v801
    %1084 = vmatprep.subr.bf16.mxu0 %v805
    %1085 = vmatpush1.bf16.msra.mxu0 %v804
    %1086 = vmatprep.subr.bf16.mxu0 %v808
    %1087 = vmatpush1.bf16.msra.mxu0 %v807
    %1088 = vmatprep.subr.bf16.mxu0 %v811
    %1089 = vmatpush1.bf16.msra.mxu0 %v810
    %1090 = vmatprep.subr.bf16.mxu0 %v814
    %1091 = vmatpush1.bf16.msra.mxu0 %v813
    %1092 = vmatprep.subr.bf16.mxu0 %v817
    %1093 = vmatpush1.bf16.msra.mxu0 %v816
    %1094 = vmatprep.subr.bf16.mxu0 %v820
    %1095 = vmatpush1.bf16.msra.mxu0 %v819
    %1096 = vmatprep.subr.bf16.mxu0 %v823
    %1097 = vmatpush1.bf16.msra.mxu0 %v822
    %1098 = vmatprep.subr.bf16.mxu0 %v826
    %1099 = vmatpush1.bf16.msra.mxu0 %v825
    %1100 = vmatprep.subr.bf16.mxu0 %v829
    %1101 = vmatpush1.bf16.msra.mxu0 %v828
    %1102 = vmatprep.subr.bf16.mxu0 %v832
    %1103 = vmatpush1.bf16.msra.mxu0 %v831
    %1104 = vmatprep.subr.bf16.mxu0 %v835
    %1105 = vmatpush1.bf16.msra.mxu0 %v834
    %1106 = vmatprep.subr.bf16.mxu0 %v838
    %1107 = vmatpush1.bf16.msra.mxu0 %v837
    %1108 = vmatprep.subr.bf16.mxu0 %v841
    %1109 = vmatpush1.bf16.msra.mxu0 %v840
    %1110 = vmatprep.mubr.bf16.mxu0 %v72
    %1111 = vmatmul.mubr.bf16.gmra.mrb[0].mxu0 %v71
    %v1112 = vpop.f32.mrb[0].mxu0
    %v1113 = vadd.f32 %v1070, %v1112
    %v1114 = vpop.f32.mrb[0].mxu0
    %v1115 = vadd.f32 %v1072, %v1114
    %v1116 = vpop.f32.mrb[0].mxu0
    %v1117 = vadd.f32 %v1074, %v1116
    %v1118 = vpop.f32.mrb[0].mxu0
    %v1119 = vadd.f32 %v1076, %v1118
    %1120 = vdwg.mxu0
    %1121 = vmatprep.subr.bf16.mxu0 %v844
    %1122 = vmatpush1.bf16.msra.mxu0 %v843
    %1123 = vmatprep.subr.bf16.mxu0 %v847
    %1124 = vmatpush1.bf16.msra.mxu0 %v846
    %1125 = vmatprep.subr.bf16.mxu0 %v850
    %1126 = vmatpush1.bf16.msra.mxu0 %v849
    %1127 = vmatprep.subr.bf16.mxu0 %v853
    %1128 = vmatpush1.bf16.msra.mxu0 %v852
    %1129 = vmatprep.subr.bf16.mxu0 %v856
    %1130 = vmatpush1.bf16.msra.mxu0 %v855
    %1131 = vmatprep.subr.bf16.mxu0 %v859
    %1132 = vmatpush1.bf16.msra.mxu0 %v858
    %1133 = vmatprep.subr.bf16.mxu0 %v862
    %1134 = vmatpush1.bf16.msra.mxu0 %v861
    %1135 = vmatprep.subr.bf16.mxu0 %v865
    %1136 = vmatpush1.bf16.msra.mxu0 %v864
    %1137 = vmatprep.subr.bf16.mxu0 %v868
    %1138 = vmatpush1.bf16.msra.mxu0 %v867
    %1139 = vmatprep.subr.bf16.mxu0 %v871
    %1140 = vmatpush1.bf16.msra.mxu0 %v870
    %1141 = vmatprep.subr.bf16.mxu0 %v874
    %1142 = vmatpush1.bf16.msra.mxu0 %v873
    %1143 = vmatprep.subr.bf16.mxu0 %v877
    %1144 = vmatpush1.bf16.msra.mxu0 %v876
    %1145 = vmatprep.subr.bf16.mxu0 %v880
    %1146 = vmatpush1.bf16.msra.mxu0 %v879
    %1147 = vmatprep.subr.bf16.mxu0 %v883
    %1148 = vmatpush1.bf16.msra.mxu0 %v882
    %1149 = vmatprep.subr.bf16.mxu0 %v886
    %1150 = vmatpush1.bf16.msra.mxu0 %v885
    %1151 = vmatprep.subr.bf16.mxu0 %v889
    %1152 = vmatpush1.bf16.msra.mxu0 %v888
    %1153 = vmatprep.mubr.bf16.mxu0 %v74
    %1154 = vmatmul.mubr.bf16.gmra.mrb[0].mxu0 %v73
    %v1155 = vpop.f32.mrb[0].mxu0
    %v1156 = vadd.f32 %v1113, %v1155
    %v1157 = vpop.f32.mrb[0].mxu0
    %v1158 = vadd.f32 %v1115, %v1157
    %v1159 = vpop.f32.mrb[0].mxu0
    %v1160 = vadd.f32 %v1117, %v1159
    %v1161 = vpop.f32.mrb[0].mxu0
    %v1162 = vadd.f32 %v1119, %v1161
    %1163 = vdwg.mxu0
    %1164 = vmatprep.subr.bf16.mxu0 0
    %1165 = vmatpush1.bf16.msra.mxu0 %v749
    %1166 = vmatprep.subr.bf16.mxu0 0
    %1167 = vmatpush1.bf16.msra.mxu0 %v752
    %1168 = vmatprep.subr.bf16.mxu0 0
    %1169 = vmatpush1.bf16.msra.mxu0 %v755
    %1170 = vmatprep.subr.bf16.mxu0 0
    %1171 = vmatpush1.bf16.msra.mxu0 %v758
    %1172 = vmatprep.subr.bf16.mxu0 0
    %1173 = vmatpush1.bf16.msra.mxu0 %v761
    %1174 = vmatprep.subr.bf16.mxu0 0
    %1175 = vmatpush1.bf16.msra.mxu0 %v764
    %1176 = vmatprep.subr.bf16.mxu0 0
    %1177 = vmatpush1.bf16.msra.mxu0 %v767
    %1178 = vmatprep.subr.bf16.mxu0 0
    %1179 = vmatpush1.bf16.msra.mxu0 %v770
    %1180 = vmatprep.subr.bf16.mxu0 0
    %1181 = vmatpush1.bf16.msra.mxu0 %v773
    %1182 = vmatprep.subr.bf16.mxu0 0
    %1183 = vmatpush1.bf16.msra.mxu0 %v776
    %1184 = vmatprep.subr.bf16.mxu0 0
    %1185 = vmatpush1.bf16.msra.mxu0 %v779
    %1186 = vmatprep.subr.bf16.mxu0 0
    %1187 = vmatpush1.bf16.msra.mxu0 %v782
    %1188 = vmatprep.subr.bf16.mxu0 0
    %1189 = vmatpush1.bf16.msra.mxu0 %v785
    %1190 = vmatprep.subr.bf16.mxu0 0
    %1191 = vmatpush1.bf16.msra.mxu0 %v788
    %1192 = vmatprep.subr.bf16.mxu0 0
    %1193 = vmatpush1.bf16.msra.mxu0 %v791
    %1194 = vmatprep.subr.bf16.mxu0 0
    %1195 = vmatpush1.bf16.msra.mxu0 %v794
    %1196 = vmatprep.mubr.bf16.mxu0 %v70
    %1197 = vmatmul.mubr.bf16.gmra.mrb[0].mxu0 %v69
    %v1198 = vpop.f32.mrb[0].mxu0
    %v1199 = vadd.f32 0.0, %v1198
    %v1200 = vpop.f32.mrb[0].mxu0
    %v1201 = vpop.f32.mrb[0].mxu0
    %v1202 = vadd.f32 0.0, %v1201
    %v1203 = vpop.f32.mrb[0].mxu0
    %1204 = vdwg.mxu0
    %1205 = vmatprep.subr.bf16.mxu0 0
    %1206 = vmatpush1.bf16.msra.mxu0 %v797
    %1207 = vmatprep.subr.bf16.mxu0 0
    %1208 = vmatpush1.bf16.msra.mxu0 %v800
    %1209 = vmatprep.subr.bf16.mxu0 0
    %1210 = vmatpush1.bf16.msra.mxu0 %v803
    %1211 = vmatprep.subr.bf16.mxu0 0
    %1212 = vmatpush1.bf16.msra.mxu0 %v806
    %1213 = vmatprep.subr.bf16.mxu0 0
    %1214 = vmatpush1.bf16.msra.mxu0 %v809
    %1215 = vmatprep.subr.bf16.mxu0 0
    %1216 = vmatpush1.bf16.msra.mxu0 %v812
    %1217 = vmatprep.subr.bf16.mxu0 0
    %1218 = vmatpush1.bf16.msra.mxu0 %v815
    %1219 = vmatprep.subr.bf16.mxu0 0
    %1220 = vmatpush1.bf16.msra.mxu0 %v818
    %1221 = vmatprep.subr.bf16.mxu0 0
    %1222 = vmatpush1.bf16.msra.mxu0 %v821
    %1223 = vmatprep.subr.bf16.mxu0 0
    %1224 = vmatpush1.bf16.msra.mxu0 %v824
    %1225 = vmatprep.subr.bf16.mxu0 0
    %1226 = vmatpush1.bf16.msra.mxu0 %v827
    %1227 = vmatprep.subr.bf16.mxu0 0
    %1228 = vmatpush1.bf16.msra.mxu0 %v830
    %1229 = vmatprep.subr.bf16.mxu0 0
    %1230 = vmatpush1.bf16.msra.mxu0 %v833
    %1231 = vmatprep.subr.bf16.mxu0 0
    %1232 = vmatpush1.bf16.msra.mxu0 %v836
    %1233 = vmatprep.subr.bf16.mxu0 0
    %1234 = vmatpush1.bf16.msra.mxu0 %v839
    %1235 = vmatprep.subr.bf16.mxu0 0
    %1236 = vmatpush1.bf16.msra.mxu0 %v842
    %1237 = vmatprep.mubr.bf16.mxu0 %v72
    %1238 = vmatmul.mubr.bf16.gmra.mrb[0].mxu0 %v71
    %v1239 = vpop.f32.mrb[0].mxu0
    %v1240 = vadd.f32 %v1199, %v1239
    %v1241 = vpop.f32.mrb[0].mxu0
    %v1242 = vpop.f32.mrb[0].mxu0
    %v1243 = vadd.f32 %v1202, %v1242
    %v1244 = vpop.f32.mrb[0].mxu0
    %1245 = vdwg.mxu0
    %1246 = vmatprep.subr.bf16.mxu0 0
    %1247 = vmatpush1.bf16.msra.mxu0 %v845
    %1248 = vmatprep.subr.bf16.mxu0 0
    %1249 = vmatpush1.bf16.msra.mxu0 %v848
    %1250 = vmatprep.subr.bf16.mxu0 0
    %1251 = vmatpush1.bf16.msra.mxu0 %v851
    %1252 = vmatprep.subr.bf16.mxu0 0
    %1253 = vmatpush1.bf16.msra.mxu0 %v854
    %1254 = vmatprep.subr.bf16.mxu0 0
    %1255 = vmatpush1.bf16.msra.mxu0 %v857
    %1256 = vmatprep.subr.bf16.mxu0 0
    %1257 = vmatpush1.bf16.msra.mxu0 %v860
    %1258 = vmatprep.subr.bf16.mxu0 0
    %1259 = vmatpush1.bf16.msra.mxu0 %v863
    %1260 = vmatprep.subr.bf16.mxu0 0
    %1261 = vmatpush1.bf16.msra.mxu0 %v866
    %1262 = vmatprep.subr.bf16.mxu0 0
    %1263 = vmatpush1.bf16.msra.mxu0 %v869
    %1264 = vmatprep.subr.bf16.mxu0 0
    %1265 = vmatpush1.bf16.msra.mxu0 %v872
    %1266 = vmatprep.subr.bf16.mxu0 0
    %1267 = vmatpush1.bf16.msra.mxu0 %v875
    %1268 = vmatprep.subr.bf16.mxu0 0
    %1269 = vmatpush1.bf16.msra.mxu0 %v878
    %1270 = vmatprep.subr.bf16.mxu0 0
    %1271 = vmatpush1.bf16.msra.mxu0 %v881
    %1272 = vmatprep.subr.bf16.mxu0 0
    %1273 = vmatpush1.bf16.msra.mxu0 %v884
    %1274 = vmatprep.subr.bf16.mxu0 0
    %1275 = vmatpush1.bf16.msra.mxu0 %v887
    %1276 = vmatprep.subr.bf16.mxu0 0
    %1277 = vmatpush1.bf16.msra.mxu0 %v890
    %1278 = vmatprep.mubr.bf16.mxu0 %v74
    %1279 = vmatmul.mubr.bf16.gmra.mrb[0].mxu0 %v73
    %v1280 = vpop.f32.mrb[0].mxu0
    %v1281 = vadd.f32 %v1240, %v1280
    %v1282 = vpop.f32.mrb[0].mxu0
    %v1283 = vpop.f32.mrb[0].mxu0
    %v1284 = vadd.f32 %v1243, %v1283
    %v1285 = vpop.f32.mrb[0].mxu0
    %1286 = vdwg.mxu0
    %v1287 = vld [vmem:[#allocation5 + $0x24] sm:$0xff]
    %v1288 = vld [vmem:[#allocation5 + $0x2c] sm:$0xf]
    %v1289 = vld [vmem:[#allocation5 + $0x6c] sm:$0xff]
    %v1290 = vld [vmem:[#allocation5 + $0x74] sm:$0xf]
    %v1291 = vld [vmem:[#allocation5 + $0xb4] sm:$0xff]
    %v1292 = vld [vmem:[#allocation5 + $0xbc] sm:$0xf]
    %v1293 = vld [vmem:[#allocation5 + $0xfc] sm:$0xff]
    %v1294 = vld [vmem:[#allocation5 + $0x104] sm:$0xf]
    %v1295 = vld [vmem:[#allocation5 + $0x144] sm:$0xff]
    %v1296 = vld [vmem:[#allocation5 + $0x14c] sm:$0xf]
    %v1297 = vld [vmem:[#allocation5 + $0x18c] sm:$0xff]
    %v1298 = vld [vmem:[#allocation5 + $0x194] sm:$0xf]
    %v1299 = vld [vmem:[#allocation5 + $0x1d4] sm:$0xff]
    %v1300 = vld [vmem:[#allocation5 + $0x1dc] sm:$0xf]
    %v1301 = vld [vmem:[#allocation5 + $0x21c] sm:$0xff]
    %v1302 = vld [vmem:[#allocation5 + $0x224] sm:$0xf]
    %v1303 = vld [vmem:[#allocation5 + $0x264] sm:$0xff]
    %v1304 = vld [vmem:[#allocation5 + $0x26c] sm:$0xf]
    %v1305 = vld [vmem:[#allocation5 + $0x2ac] sm:$0xff]
    %v1306 = vld [vmem:[#allocation5 + $0x2b4] sm:$0xf]
    %v1307 = vld [vmem:[#allocation5 + $0x2f4] sm:$0xff]
    %v1308 = vld [vmem:[#allocation5 + $0x2fc] sm:$0xf]
    %v1309 = vld [vmem:[#allocation5 + $0x33c] sm:$0xff]
    %v1310 = vld [vmem:[#allocation5 + $0x344] sm:$0xf]
    %v1311 = vld [vmem:[#allocation5 + $0x384] sm:$0xff]
    %v1312 = vld [vmem:[#allocation5 + $0x38c] sm:$0xf]
    %v1313 = vld [vmem:[#allocation5 + $0x3cc] sm:$0xff]
    %v1314 = vld [vmem:[#allocation5 + $0x3d4] sm:$0xf]
    %v1315 = vld [vmem:[#allocation5 + $0x414] sm:$0xff]
    %v1316 = vld [vmem:[#allocation5 + $0x41c] sm:$0xf]
    %v1317 = vld [vmem:[#allocation5 + $0x45c] sm:$0xff]
    %v1318 = vld [vmem:[#allocation5 + $0x464] sm:$0xf]
    %v1319 = vld [vmem:[#allocation5 + $0x4a4] sm:$0xff]
    %v1320 = vld [vmem:[#allocation5 + $0x4ac] sm:$0xf]
    %v1321 = vld [vmem:[#allocation5 + $0x4ec] sm:$0xff]
    %v1322 = vld [vmem:[#allocation5 + $0x4f4] sm:$0xf]
    %v1323 = vld [vmem:[#allocation5 + $0x534] sm:$0xff]
    %v1324 = vld [vmem:[#allocation5 + $0x53c] sm:$0xf]
    %v1325 = vld [vmem:[#allocation5 + $0x57c] sm:$0xff]
    %v1326 = vld [vmem:[#allocation5 + $0x584] sm:$0xf]
    %v1327 = vld [vmem:[#allocation5 + $0x5c4] sm:$0xff]
    %v1328 = vld [vmem:[#allocation5 + $0x5cc] sm:$0xf]
    %v1329 = vld [vmem:[#allocation5 + $0x60c] sm:$0xff]
    %v1330 = vld [vmem:[#allocation5 + $0x614] sm:$0xf]
    %v1331 = vld [vmem:[#allocation5 + $0x654] sm:$0xff]
    %v1332 = vld [vmem:[#allocation5 + $0x65c] sm:$0xf]
    %v1333 = vld [vmem:[#allocation5 + $0x69c] sm:$0xff]
    %v1334 = vld [vmem:[#allocation5 + $0x6a4] sm:$0xf]
    %v1335 = vld [vmem:[#allocation5 + $0x6e4] sm:$0xff]
    %v1336 = vld [vmem:[#allocation5 + $0x6ec] sm:$0xf]
    %v1337 = vld [vmem:[#allocation5 + $0x72c] sm:$0xff]
    %v1338 = vld [vmem:[#allocation5 + $0x734] sm:$0xf]
    %v1339 = vld [vmem:[#allocation5 + $0x774] sm:$0xff]
    %v1340 = vld [vmem:[#allocation5 + $0x77c] sm:$0xf]
    %v1341 = vld [vmem:[#allocation5 + $0x7bc] sm:$0xff]
    %v1342 = vld [vmem:[#allocation5 + $0x7c4] sm:$0xf]
    %v1343 = vld [vmem:[#allocation5 + $0x804] sm:$0xff]
    %v1344 = vld [vmem:[#allocation5 + $0x80c] sm:$0xf]
    %v1345 = vld [vmem:[#allocation5 + $0x84c] sm:$0xff]
    %v1346 = vld [vmem:[#allocation5 + $0x854] sm:$0xf]
    %v1347 = vld [vmem:[#allocation5 + $0x894] sm:$0xff]
    %v1348 = vld [vmem:[#allocation5 + $0x89c] sm:$0xf]
    %v1349 = vld [vmem:[#allocation5 + $0x8dc] sm:$0xff]
    %v1350 = vld [vmem:[#allocation5 + $0x8e4] sm:$0xf]
    %v1351 = vld [vmem:[#allocation5 + $0x924] sm:$0xff]
    %v1352 = vld [vmem:[#allocation5 + $0x92c] sm:$0xf]
    %v1353 = vld [vmem:[#allocation5 + $0x96c] sm:$0xff]
    %v1354 = vld [vmem:[#allocation5 + $0x974] sm:$0xf]
    %v1355 = vld [vmem:[#allocation5 + $0x9b4] sm:$0xff]
    %v1356 = vld [vmem:[#allocation5 + $0x9bc] sm:$0xf]
    %v1357 = vld [vmem:[#allocation5 + $0x9fc] sm:$0xff]
    %v1358 = vld [vmem:[#allocation5 + $0xa04] sm:$0xf]
    %v1359 = vld [vmem:[#allocation5 + $0xa44] sm:$0xff]
    %v1360 = vld [vmem:[#allocation5 + $0xa4c] sm:$0xf]
    %v1361 = vld [vmem:[#allocation5 + $0xa8c] sm:$0xff]
    %v1362 = vld [vmem:[#allocation5 + $0xa94] sm:$0xf]
    %v1363 = vld [vmem:[#allocation5 + $0xad4] sm:$0xff]
    %v1364 = vld [vmem:[#allocation5 + $0xadc] sm:$0xf]
    %v1365 = vld [vmem:[#allocation5 + $0xb1c] sm:$0xff]
    %v1366 = vld [vmem:[#allocation5 + $0xb24] sm:$0xf]
    %v1367 = vld [vmem:[#allocation5 + $0xb64] sm:$0xff]
    %v1368 = vld [vmem:[#allocation5 + $0xb6c] sm:$0xf]
    %v1369 = vld [vmem:[#allocation5 + $0xbac] sm:$0xff]
    %v1370 = vld [vmem:[#allocation5 + $0xbb4] sm:$0xf]
    %v1371 = vld [vmem:[#allocation5 + $0xbf4] sm:$0xff]
    %v1372 = vld [vmem:[#allocation5 + $0xbfc] sm:$0xf]
    %v1373 = vld [vmem:[#allocation5 + $0xc3c] sm:$0xff]
    %v1374 = vld [vmem:[#allocation5 + $0xc44] sm:$0xf]
    %v1375 = vld [vmem:[#allocation5 + $0xc84] sm:$0xff]
    %v1376 = vld [vmem:[#allocation5 + $0xc8c] sm:$0xf]
    %v1377 = vld [vmem:[#allocation5 + $0xccc] sm:$0xff]
    %v1378 = vld [vmem:[#allocation5 + $0xcd4] sm:$0xf]
    %v1379 = vld [vmem:[#allocation5 + $0xd14] sm:$0xff]
    %v1380 = vld [vmem:[#allocation5 + $0xd1c] sm:$0xf]
    %v1381 = vld [vmem:[#allocation5 + $0xd5c] sm:$0xff]
    %v1382 = vld [vmem:[#allocation5 + $0xd64] sm:$0xf]
    %v1383 = vld [vmem:[#allocation5 + $0xda4] sm:$0xff]
    %v1384 = vld [vmem:[#allocation5 + $0xdac] sm:$0xf]
    %v1385 = vld [vmem:[#allocation5 + $0xdec] sm:$0xff]
    %v1386 = vld [vmem:[#allocation5 + $0xdf4] sm:$0xf]
    %v1387 = vld [vmem:[#allocation5 + $0xe34] sm:$0xff]
    %v1388 = vld [vmem:[#allocation5 + $0xe3c] sm:$0xf]
    %v1389 = vld [vmem:[#allocation5 + $0xe7c] sm:$0xff]
    %v1390 = vld [vmem:[#allocation5 + $0xe84] sm:$0xf]
    %v1391 = vld [vmem:[#allocation5 + $0xec4] sm:$0xff]
    %v1392 = vld [vmem:[#allocation5 + $0xecc] sm:$0xf]
    %v1393 = vld [vmem:[#allocation5 + $0xf0c] sm:$0xff]
    %v1394 = vld [vmem:[#allocation5 + $0xf14] sm:$0xf]
    %v1395 = vld [vmem:[#allocation5 + $0xf54] sm:$0xff]
    %v1396 = vld [vmem:[#allocation5 + $0xf5c] sm:$0xf]
    %v1397 = vld [vmem:[#allocation5 + $0xf9c] sm:$0xff]
    %v1398 = vld [vmem:[#allocation5 + $0xfa4] sm:$0xf]
    %v1399 = vld [vmem:[#allocation5 + $0xfe4] sm:$0xff]
    %v1400 = vld [vmem:[#allocation5 + $0xfec] sm:$0xf]
    %v1401 = vld [vmem:[#allocation5 + $0x102c] sm:$0xff]
    %v1402 = vld [vmem:[#allocation5 + $0x1034] sm:$0xf]
    %v1403 = vld [vmem:[#allocation5 + $0x1074] sm:$0xff]
    %v1404 = vld [vmem:[#allocation5 + $0x107c] sm:$0xf]
    %v1405 = vld [vmem:[#allocation5 + $0x10bc] sm:$0xff]
    %v1406 = vld [vmem:[#allocation5 + $0x10c4] sm:$0xf]
    %v1407 = vld [vmem:[#allocation5 + $0x1104] sm:$0xff]
    %v1408 = vld [vmem:[#allocation5 + $0x110c] sm:$0xf]
    %v1409 = vld [vmem:[#allocation5 + $0x114c] sm:$0xff]
    %v1410 = vld [vmem:[#allocation5 + $0x1154] sm:$0xf]
    %v1411 = vld [vmem:[#allocation5 + $0x1194] sm:$0xff]
    %v1412 = vld [vmem:[#allocation5 + $0x119c] sm:$0xf]
    %v1413 = vld [vmem:[#allocation5 + $0x11dc] sm:$0xff]
    %v1414 = vld [vmem:[#allocation5 + $0x11e4] sm:$0xf]
    %v1415 = vld [vmem:[#allocation5 + $0x1224] sm:$0xff]
    %v1416 = vld [vmem:[#allocation5 + $0x122c] sm:$0xf]
    %v1417 = vld [vmem:[#allocation5 + $0x126c] sm:$0xff]
    %v1418 = vld [vmem:[#allocation5 + $0x1274] sm:$0xf]
    %v1419 = vld [vmem:[#allocation5 + $0x12b4] sm:$0xff]
    %v1420 = vld [vmem:[#allocation5 + $0x12bc] sm:$0xf]
    %v1421 = vld [vmem:[#allocation5 + $0x12fc] sm:$0xff]
    %v1422 = vld [vmem:[#allocation5 + $0x1304] sm:$0xf]
    %v1423 = vld [vmem:[#allocation5 + $0x1344] sm:$0xff]
    %v1424 = vld [vmem:[#allocation5 + $0x134c] sm:$0xf]
    %v1425 = vld [vmem:[#allocation5 + $0x138c] sm:$0xff]
    %v1426 = vld [vmem:[#allocation5 + $0x1394] sm:$0xf]
    %v1427 = vld [vmem:[#allocation5 + $0x13d4] sm:$0xff]
    %v1428 = vld [vmem:[#allocation5 + $0x13dc] sm:$0xf]
    %v1429 = vld [vmem:[#allocation5 + $0x141c] sm:$0xff]
    %v1430 = vld [vmem:[#allocation5 + $0x1424] sm:$0xf]
    %v1431 = vld [vmem:[#allocation5 + $0x1464] sm:$0xff]
    %v1432 = vld [vmem:[#allocation5 + $0x146c] sm:$0xf]
    %v1433 = vld [vmem:[#allocation5 + $0x14ac] sm:$0xff]
    %v1434 = vld [vmem:[#allocation5 + $0x14b4] sm:$0xf]
    %v1435 = vld [vmem:[#allocation5 + $0x14f4] sm:$0xff]
    %v1436 = vld [vmem:[#allocation5 + $0x14fc] sm:$0xf]
    %v1437 = vld [vmem:[#allocation5 + $0x153c] sm:$0xff]
    %v1438 = vld [vmem:[#allocation5 + $0x1544] sm:$0xf]
    %v1439 = vld [vmem:[#allocation5 + $0x1584] sm:$0xff]
    %v1440 = vld [vmem:[#allocation5 + $0x158c] sm:$0xf]
    %v1441 = vld [vmem:[#allocation5 + $0x15cc] sm:$0xff]
    %v1442 = vld [vmem:[#allocation5 + $0x15d4] sm:$0xf]
    %v1443 = vld [vmem:[#allocation5 + $0x1614] sm:$0xff]
    %v1444 = vld [vmem:[#allocation5 + $0x161c] sm:$0xf]
    %v1445 = vld [vmem:[#allocation5 + $0x165c] sm:$0xff]
    %v1446 = vld [vmem:[#allocation5 + $0x1664] sm:$0xf]
    %v1447 = vld [vmem:[#allocation5 + $0x16a4] sm:$0xff]
    %v1448 = vld [vmem:[#allocation5 + $0x16ac] sm:$0xf]
    %v1449 = vld [vmem:[#allocation5 + $0x16ec] sm:$0xff]
    %v1450 = vld [vmem:[#allocation5 + $0x16f4] sm:$0xf]
    %v1451 = vld [vmem:[#allocation5 + $0x1734] sm:$0xff]
    %v1452 = vld [vmem:[#allocation5 + $0x173c] sm:$0xf]
    %v1453 = vld [vmem:[#allocation5 + $0x177c] sm:$0xff]
    %v1454 = vld [vmem:[#allocation5 + $0x1784] sm:$0xf]
    %v1455 = vld [vmem:[#allocation5 + $0x17c4] sm:$0xff]
    %v1456 = vld [vmem:[#allocation5 + $0x17cc] sm:$0xf]
    %v1457 = vld [vmem:[#allocation5 + $0x180c] sm:$0xff]
    %v1458 = vld [vmem:[#allocation5 + $0x1814] sm:$0xf]
    %v1459 = vld [vmem:[#allocation5 + $0x1854] sm:$0xff]
    %v1460 = vld [vmem:[#allocation5 + $0x185c] sm:$0xf]
    %v1461 = vld [vmem:[#allocation5 + $0x189c] sm:$0xff]
    %v1462 = vld [vmem:[#allocation5 + $0x18a4] sm:$0xf]
    %v1463 = vld [vmem:[#allocation5 + $0x18e4] sm:$0xff]
    %v1464 = vld [vmem:[#allocation5 + $0x18ec] sm:$0xf]
    %v1465 = vld [vmem:[#allocation5 + $0x192c] sm:$0xff]
    %v1466 = vld [vmem:[#allocation5 + $0x1934] sm:$0xf]
    %v1467 = vld [vmem:[#allocation5 + $0x1974] sm:$0xff]
    %v1468 = vld [vmem:[#allocation5 + $0x197c] sm:$0xf]
    %v1469 = vld [vmem:[#allocation5 + $0x19bc] sm:$0xff]
    %v1470 = vld [vmem:[#allocation5 + $0x19c4] sm:$0xf]
    %v1471 = vld [vmem:[#allocation5 + $0x1a04] sm:$0xff]
    %v1472 = vld [vmem:[#allocation5 + $0x1a0c] sm:$0xf]
    %v1473 = vld [vmem:[#allocation5 + $0x1a4c] sm:$0xff]
    %v1474 = vld [vmem:[#allocation5 + $0x1a54] sm:$0xf]
    %v1475 = vld [vmem:[#allocation5 + $0x1a94] sm:$0xff]
    %v1476 = vld [vmem:[#allocation5 + $0x1a9c] sm:$0xf]
    %v1477 = vld [vmem:[#allocation5 + $0x1adc] sm:$0xff]
    %v1478 = vld [vmem:[#allocation5 + $0x1ae4] sm:$0xf]
    %v1671 = vunpack.c.l.b16 %v1287
    %v1672 = vunpack.c.h.b16 %v1287
    %v1673 = vunpack.c.l.b16 %v1288
    %v1674 = vunpack.c.l.b16 %v1289
    %v1675 = vunpack.c.h.b16 %v1289
    %v1676 = vunpack.c.l.b16 %v1290
    %v1677 = vunpack.c.l.b16 %v1291
    %v1678 = vunpack.c.h.b16 %v1291
    %v1679 = vunpack.c.l.b16 %v1292
    %v1680 = vunpack.c.l.b16 %v1293
    %v1681 = vunpack.c.h.b16 %v1293
    %v1682 = vunpack.c.l.b16 %v1294
    %v1683 = vunpack.c.l.b16 %v1295
    %v1684 = vunpack.c.h.b16 %v1295
    %v1685 = vunpack.c.l.b16 %v1296
    %v1686 = vunpack.c.l.b16 %v1297
    %v1687 = vunpack.c.h.b16 %v1297
    %v1688 = vunpack.c.l.b16 %v1298
    %v1689 = vunpack.c.l.b16 %v1299
    %v1690 = vunpack.c.h.b16 %v1299
    %v1691 = vunpack.c.l.b16 %v1300
    %v1692 = vunpack.c.l.b16 %v1301
    %v1693 = vunpack.c.h.b16 %v1301
    %v1694 = vunpack.c.l.b16 %v1302
    %v1695 = vunpack.c.l.b16 %v1303
    %v1696 = vunpack.c.h.b16 %v1303
    %v1697 = vunpack.c.l.b16 %v1304
    %v1698 = vunpack.c.l.b16 %v1305
    %v1699 = vunpack.c.h.b16 %v1305
    %v1700 = vunpack.c.l.b16 %v1306
    %v1701 = vunpack.c.l.b16 %v1307
    %v1702 = vunpack.c.h.b16 %v1307
    %v1703 = vunpack.c.l.b16 %v1308
    %v1704 = vunpack.c.l.b16 %v1309
    %v1705 = vunpack.c.h.b16 %v1309
    %v1706 = vunpack.c.l.b16 %v1310
    %v1707 = vunpack.c.l.b16 %v1311
    %v1708 = vunpack.c.h.b16 %v1311
    %v1709 = vunpack.c.l.b16 %v1312
    %v1710 = vunpack.c.l.b16 %v1313
    %v1711 = vunpack.c.h.b16 %v1313
    %v1712 = vunpack.c.l.b16 %v1314
    %v1713 = vunpack.c.l.b16 %v1315
    %v1714 = vunpack.c.h.b16 %v1315
    %v1715 = vunpack.c.l.b16 %v1316
    %v1716 = vunpack.c.l.b16 %v1317
    %v1717 = vunpack.c.h.b16 %v1317
    %v1718 = vunpack.c.l.b16 %v1318
    %v1719 = vunpack.c.l.b16 %v1319
    %v1720 = vunpack.c.h.b16 %v1319
    %v1721 = vunpack.c.l.b16 %v1320
    %v1722 = vunpack.c.l.b16 %v1321
    %v1723 = vunpack.c.h.b16 %v1321
    %v1724 = vunpack.c.l.b16 %v1322
    %v1725 = vunpack.c.l.b16 %v1323
    %v1726 = vunpack.c.h.b16 %v1323
    %v1727 = vunpack.c.l.b16 %v1324
    %v1728 = vunpack.c.l.b16 %v1325
    %v1729 = vunpack.c.h.b16 %v1325
    %v1730 = vunpack.c.l.b16 %v1326
    %v1731 = vunpack.c.l.b16 %v1327
    %v1732 = vunpack.c.h.b16 %v1327
    %v1733 = vunpack.c.l.b16 %v1328
    %v1734 = vunpack.c.l.b16 %v1329
    %v1735 = vunpack.c.h.b16 %v1329
    %v1736 = vunpack.c.l.b16 %v1330
    %v1737 = vunpack.c.l.b16 %v1331
    %v1738 = vunpack.c.h.b16 %v1331
    %v1739 = vunpack.c.l.b16 %v1332
    %v1740 = vunpack.c.l.b16 %v1333
    %v1741 = vunpack.c.h.b16 %v1333
    %v1742 = vunpack.c.l.b16 %v1334
    %v1743 = vunpack.c.l.b16 %v1335
    %v1744 = vunpack.c.h.b16 %v1335
    %v1745 = vunpack.c.l.b16 %v1336
    %v1746 = vunpack.c.l.b16 %v1337
    %v1747 = vunpack.c.h.b16 %v1337
    %v1748 = vunpack.c.l.b16 %v1338
    %v1749 = vunpack.c.l.b16 %v1339
    %v1750 = vunpack.c.h.b16 %v1339
    %v1751 = vunpack.c.l.b16 %v1340
    %v1752 = vunpack.c.l.b16 %v1341
    %v1753 = vunpack.c.h.b16 %v1341
    %v1754 = vunpack.c.l.b16 %v1342
    %v1755 = vunpack.c.l.b16 %v1343
    %v1756 = vunpack.c.h.b16 %v1343
    %v1757 = vunpack.c.l.b16 %v1344
    %v1758 = vunpack.c.l.b16 %v1345
    %v1759 = vunpack.c.h.b16 %v1345
    %v1760 = vunpack.c.l.b16 %v1346
    %v1761 = vunpack.c.l.b16 %v1347
    %v1762 = vunpack.c.h.b16 %v1347
    %v1763 = vunpack.c.l.b16 %v1348
    %v1764 = vunpack.c.l.b16 %v1349
    %v1765 = vunpack.c.h.b16 %v1349
    %v1766 = vunpack.c.l.b16 %v1350
    %v1767 = vunpack.c.l.b16 %v1351
    %v1768 = vunpack.c.h.b16 %v1351
    %v1769 = vunpack.c.l.b16 %v1352
    %v1770 = vunpack.c.l.b16 %v1353
    %v1771 = vunpack.c.h.b16 %v1353
    %v1772 = vunpack.c.l.b16 %v1354
    %v1773 = vunpack.c.l.b16 %v1355
    %v1774 = vunpack.c.h.b16 %v1355
    %v1775 = vunpack.c.l.b16 %v1356
    %v1776 = vunpack.c.l.b16 %v1357
    %v1777 = vunpack.c.h.b16 %v1357
    %v1778 = vunpack.c.l.b16 %v1358
    %v1779 = vunpack.c.l.b16 %v1359
    %v1780 = vunpack.c.h.b16 %v1359
    %v1781 = vunpack.c.l.b16 %v1360
    %v1782 = vunpack.c.l.b16 %v1361
    %v1783 = vunpack.c.h.b16 %v1361
    %v1784 = vunpack.c.l.b16 %v1362
    %v1785 = vunpack.c.l.b16 %v1363
    %v1786 = vunpack.c.h.b16 %v1363
    %v1787 = vunpack.c.l.b16 %v1364
    %v1788 = vunpack.c.l.b16 %v1365
    %v1789 = vunpack.c.h.b16 %v1365
    %v1790 = vunpack.c.l.b16 %v1366
    %v1791 = vunpack.c.l.b16 %v1367
    %v1792 = vunpack.c.h.b16 %v1367
    %v1793 = vunpack.c.l.b16 %v1368
    %v1794 = vunpack.c.l.b16 %v1369
    %v1795 = vunpack.c.h.b16 %v1369
    %v1796 = vunpack.c.l.b16 %v1370
    %v1797 = vunpack.c.l.b16 %v1371
    %v1798 = vunpack.c.h.b16 %v1371
    %v1799 = vunpack.c.l.b16 %v1372
    %v1800 = vunpack.c.l.b16 %v1373
    %v1801 = vunpack.c.h.b16 %v1373
    %v1802 = vunpack.c.l.b16 %v1374
    %v1803 = vunpack.c.l.b16 %v1375
    %v1804 = vunpack.c.h.b16 %v1375
    %v1805 = vunpack.c.l.b16 %v1376
    %v1806 = vunpack.c.l.b16 %v1377
    %v1807 = vunpack.c.h.b16 %v1377
    %v1808 = vunpack.c.l.b16 %v1378
    %v1809 = vunpack.c.l.b16 %v1379
    %v1810 = vunpack.c.h.b16 %v1379
    %v1811 = vunpack.c.l.b16 %v1380
    %v1812 = vunpack.c.l.b16 %v1381
    %v1813 = vunpack.c.h.b16 %v1381
    %v1814 = vunpack.c.l.b16 %v1382
    %v1815 = vunpack.c.l.b16 %v1383
    %v1816 = vunpack.c.h.b16 %v1383
    %v1817 = vunpack.c.l.b16 %v1384
    %v1818 = vunpack.c.l.b16 %v1385
    %v1819 = vunpack.c.h.b16 %v1385
    %v1820 = vunpack.c.l.b16 %v1386
    %v1821 = vunpack.c.l.b16 %v1387
    %v1822 = vunpack.c.h.b16 %v1387
    %v1823 = vunpack.c.l.b16 %v1388
    %v1824 = vunpack.c.l.b16 %v1389
    %v1825 = vunpack.c.h.b16 %v1389
    %v1826 = vunpack.c.l.b16 %v1390
    %v1827 = vunpack.c.l.b16 %v1391
    %v1828 = vunpack.c.h.b16 %v1391
    %v1829 = vunpack.c.l.b16 %v1392
    %v1830 = vunpack.c.l.b16 %v1393
    %v1831 = vunpack.c.h.b16 %v1393
    %v1832 = vunpack.c.l.b16 %v1394
    %v1833 = vunpack.c.l.b16 %v1395
    %v1834 = vunpack.c.h.b16 %v1395
    %v1835 = vunpack.c.l.b16 %v1396
    %v1836 = vunpack.c.l.b16 %v1397
    %v1837 = vunpack.c.h.b16 %v1397
    %v1838 = vunpack.c.l.b16 %v1398
    %v1839 = vunpack.c.l.b16 %v1399
    %v1840 = vunpack.c.h.b16 %v1399
    %v1841 = vunpack.c.l.b16 %v1400
    %v1842 = vunpack.c.l.b16 %v1401
    %v1843 = vunpack.c.h.b16 %v1401
    %v1844 = vunpack.c.l.b16 %v1402
    %v1845 = vunpack.c.l.b16 %v1403
    %v1846 = vunpack.c.h.b16 %v1403
    %v1847 = vunpack.c.l.b16 %v1404
    %v1848 = vunpack.c.l.b16 %v1405
    %v1849 = vunpack.c.h.b16 %v1405
    %v1850 = vunpack.c.l.b16 %v1406
    %v1851 = vunpack.c.l.b16 %v1407
    %v1852 = vunpack.c.h.b16 %v1407
    %v1853 = vunpack.c.l.b16 %v1408
    %v1854 = vunpack.c.l.b16 %v1409
    %v1855 = vunpack.c.h.b16 %v1409
    %v1856 = vunpack.c.l.b16 %v1410
    %v1857 = vunpack.c.l.b16 %v1411
    %v1858 = vunpack.c.h.b16 %v1411
    %v1859 = vunpack.c.l.b16 %v1412
    %v1860 = vunpack.c.l.b16 %v1413
    %v1861 = vunpack.c.h.b16 %v1413
    %v1862 = vunpack.c.l.b16 %v1414
    %v1863 = vunpack.c.l.b16 %v1415
    %v1864 = vunpack.c.h.b16 %v1415
    %v1865 = vunpack.c.l.b16 %v1416
    %v1866 = vunpack.c.l.b16 %v1417
    %v1867 = vunpack.c.h.b16 %v1417
    %v1868 = vunpack.c.l.b16 %v1418
    %v1869 = vunpack.c.l.b16 %v1419
    %v1870 = vunpack.c.h.b16 %v1419
    %v1871 = vunpack.c.l.b16 %v1420
    %v1872 = vunpack.c.l.b16 %v1421
    %v1873 = vunpack.c.h.b16 %v1421
    %v1874 = vunpack.c.l.b16 %v1422
    %v1875 = vunpack.c.l.b16 %v1423
    %v1876 = vunpack.c.h.b16 %v1423
    %v1877 = vunpack.c.l.b16 %v1424
    %v1878 = vunpack.c.l.b16 %v1425
    %v1879 = vunpack.c.h.b16 %v1425
    %v1880 = vunpack.c.l.b16 %v1426
    %v1881 = vunpack.c.l.b16 %v1427
    %v1882 = vunpack.c.h.b16 %v1427
    %v1883 = vunpack.c.l.b16 %v1428
    %v1884 = vunpack.c.l.b16 %v1429
    %v1885 = vunpack.c.h.b16 %v1429
    %v1886 = vunpack.c.l.b16 %v1430
    %v1887 = vunpack.c.l.b16 %v1431
    %v1888 = vunpack.c.h.b16 %v1431
    %v1889 = vunpack.c.l.b16 %v1432
    %v1890 = vunpack.c.l.b16 %v1433
    %v1891 = vunpack.c.h.b16 %v1433
    %v1892 = vunpack.c.l.b16 %v1434
    %v1893 = vunpack.c.l.b16 %v1435
    %v1894 = vunpack.c.h.b16 %v1435
    %v1895 = vunpack.c.l.b16 %v1436
    %v1896 = vunpack.c.l.b16 %v1437
    %v1897 = vunpack.c.h.b16 %v1437
    %v1898 = vunpack.c.l.b16 %v1438
    %v1899 = vunpack.c.l.b16 %v1439
    %v1900 = vunpack.c.h.b16 %v1439
    %v1901 = vunpack.c.l.b16 %v1440
    %v1902 = vunpack.c.l.b16 %v1441
    %v1903 = vunpack.c.h.b16 %v1441
    %v1904 = vunpack.c.l.b16 %v1442
    %v1905 = vunpack.c.l.b16 %v1443
    %v1906 = vunpack.c.h.b16 %v1443
    %v1907 = vunpack.c.l.b16 %v1444
    %v1908 = vunpack.c.l.b16 %v1445
    %v1909 = vunpack.c.h.b16 %v1445
    %v1910 = vunpack.c.l.b16 %v1446
    %v1911 = vunpack.c.l.b16 %v1447
    %v1912 = vunpack.c.h.b16 %v1447
    %v1913 = vunpack.c.l.b16 %v1448
    %v1914 = vunpack.c.l.b16 %v1449
    %v1915 = vunpack.c.h.b16 %v1449
    %v1916 = vunpack.c.l.b16 %v1450
    %v1917 = vunpack.c.l.b16 %v1451
    %v1918 = vunpack.c.h.b16 %v1451
    %v1919 = vunpack.c.l.b16 %v1452
    %v1920 = vunpack.c.l.b16 %v1453
    %v1921 = vunpack.c.h.b16 %v1453
    %v1922 = vunpack.c.l.b16 %v1454
    %v1923 = vunpack.c.l.b16 %v1455
    %v1924 = vunpack.c.h.b16 %v1455
    %v1925 = vunpack.c.l.b16 %v1456
    %v1926 = vunpack.c.l.b16 %v1457
    %v1927 = vunpack.c.h.b16 %v1457
    %v1928 = vunpack.c.l.b16 %v1458
    %v1929 = vunpack.c.l.b16 %v1459
    %v1930 = vunpack.c.h.b16 %v1459
    %v1931 = vunpack.c.l.b16 %v1460
    %v1932 = vunpack.c.l.b16 %v1461
    %v1933 = vunpack.c.h.b16 %v1461
    %v1934 = vunpack.c.l.b16 %v1462
    %v1935 = vunpack.c.l.b16 %v1463
    %v1936 = vunpack.c.h.b16 %v1463
    %v1937 = vunpack.c.l.b16 %v1464
    %v1938 = vunpack.c.l.b16 %v1465
    %v1939 = vunpack.c.h.b16 %v1465
    %v1940 = vunpack.c.l.b16 %v1466
    %v1941 = vunpack.c.l.b16 %v1467
    %v1942 = vunpack.c.h.b16 %v1467
    %v1943 = vunpack.c.l.b16 %v1468
    %v1944 = vunpack.c.l.b16 %v1469
    %v1945 = vunpack.c.h.b16 %v1469
    %v1946 = vunpack.c.l.b16 %v1470
    %v1947 = vunpack.c.l.b16 %v1471
    %v1948 = vunpack.c.h.b16 %v1471
    %v1949 = vunpack.c.l.b16 %v1472
    %v1950 = vunpack.c.l.b16 %v1473
    %v1951 = vunpack.c.h.b16 %v1473
    %v1952 = vunpack.c.l.b16 %v1474
    %v1953 = vunpack.c.l.b16 %v1475
    %v1954 = vunpack.c.h.b16 %v1475
    %v1955 = vunpack.c.l.b16 %v1476
    %v1956 = vunpack.c.l.b16 %v1477
    %v1957 = vunpack.c.h.b16 %v1477
    %v1958 = vunpack.c.l.b16 %v1478
    %v1959 = vpack.c.b16 %v1674, %v1671
    %v1960 = vpack.c.b16 %v1675, %v1672
    %v1961 = vpack.c.b16 %v1676, %v1673
    %v1962 = vpack.c.b16 %v1680, %v1677
    %v1963 = vpack.c.b16 %v1681, %v1678
    %v1964 = vpack.c.b16 %v1682, %v1679
    %v1965 = vpack.c.b16 %v1686, %v1683
    %v1966 = vpack.c.b16 %v1687, %v1684
    %v1967 = vpack.c.b16 %v1688, %v1685
    %v1968 = vpack.c.b16 %v1692, %v1689
    %v1969 = vpack.c.b16 %v1693, %v1690
    %v1970 = vpack.c.b16 %v1694, %v1691
    %v1971 = vpack.c.b16 %v1698, %v1695
    %v1972 = vpack.c.b16 %v1699, %v1696
    %v1973 = vpack.c.b16 %v1700, %v1697
    %v1974 = vpack.c.b16 %v1704, %v1701
    %v1975 = vpack.c.b16 %v1705, %v1702
    %v1976 = vpack.c.b16 %v1706, %v1703
    %v1977 = vpack.c.b16 %v1710, %v1707
    %v1978 = vpack.c.b16 %v1711, %v1708
    %v1979 = vpack.c.b16 %v1712, %v1709
    %v1980 = vpack.c.b16 %v1716, %v1713
    %v1981 = vpack.c.b16 %v1717, %v1714
    %v1982 = vpack.c.b16 %v1718, %v1715
    %v1983 = vpack.c.b16 %v1722, %v1719
    %v1984 = vpack.c.b16 %v1723, %v1720
    %v1985 = vpack.c.b16 %v1724, %v1721
    %v1986 = vpack.c.b16 %v1728, %v1725
    %v1987 = vpack.c.b16 %v1729, %v1726
    %v1988 = vpack.c.b16 %v1730, %v1727
    %v1989 = vpack.c.b16 %v1734, %v1731
    %v1990 = vpack.c.b16 %v1735, %v1732
    %v1991 = vpack.c.b16 %v1736, %v1733
    %v1992 = vpack.c.b16 %v1740, %v1737
    %v1993 = vpack.c.b16 %v1741, %v1738
    %v1994 = vpack.c.b16 %v1742, %v1739
    %v1995 = vpack.c.b16 %v1746, %v1743
    %v1996 = vpack.c.b16 %v1747, %v1744
    %v1997 = vpack.c.b16 %v1748, %v1745
    %v1998 = vpack.c.b16 %v1752, %v1749
    %v1999 = vpack.c.b16 %v1753, %v1750
    %v2000 = vpack.c.b16 %v1754, %v1751
    %v2001 = vpack.c.b16 %v1758, %v1755
    %v2002 = vpack.c.b16 %v1759, %v1756
    %v2003 = vpack.c.b16 %v1760, %v1757
    %v2004 = vpack.c.b16 %v1764, %v1761
    %v2005 = vpack.c.b16 %v1765, %v1762
    %v2006 = vpack.c.b16 %v1766, %v1763
    %v2007 = vpack.c.b16 %v1770, %v1767
    %v2008 = vpack.c.b16 %v1771, %v1768
    %v2009 = vpack.c.b16 %v1772, %v1769
    %v2010 = vpack.c.b16 %v1776, %v1773
    %v2011 = vpack.c.b16 %v1777, %v1774
    %v2012 = vpack.c.b16 %v1778, %v1775
    %v2013 = vpack.c.b16 %v1782, %v1779
    %v2014 = vpack.c.b16 %v1783, %v1780
    %v2015 = vpack.c.b16 %v1784, %v1781
    %v2016 = vpack.c.b16 %v1788, %v1785
    %v2017 = vpack.c.b16 %v1789, %v1786
    %v2018 = vpack.c.b16 %v1790, %v1787
    %v2019 = vpack.c.b16 %v1794, %v1791
    %v2020 = vpack.c.b16 %v1795, %v1792
    %v2021 = vpack.c.b16 %v1796, %v1793
    %v2022 = vpack.c.b16 %v1800, %v1797
    %v2023 = vpack.c.b16 %v1801, %v1798
    %v2024 = vpack.c.b16 %v1802, %v1799
    %v2025 = vpack.c.b16 %v1806, %v1803
    %v2026 = vpack.c.b16 %v1807, %v1804
    %v2027 = vpack.c.b16 %v1808, %v1805
    %v2028 = vpack.c.b16 %v1812, %v1809
    %v2029 = vpack.c.b16 %v1813, %v1810
    %v2030 = vpack.c.b16 %v1814, %v1811
    %v2031 = vpack.c.b16 %v1818, %v1815
    %v2032 = vpack.c.b16 %v1819, %v1816
    %v2033 = vpack.c.b16 %v1820, %v1817
    %v2034 = vpack.c.b16 %v1824, %v1821
    %v2035 = vpack.c.b16 %v1825, %v1822
    %v2036 = vpack.c.b16 %v1826, %v1823
    %v2037 = vpack.c.b16 %v1830, %v1827
    %v2038 = vpack.c.b16 %v1831, %v1828
    %v2039 = vpack.c.b16 %v1832, %v1829
    %v2040 = vpack.c.b16 %v1836, %v1833
    %v2041 = vpack.c.b16 %v1837, %v1834
    %v2042 = vpack.c.b16 %v1838, %v1835
    %v2043 = vpack.c.b16 %v1842, %v1839
    %v2044 = vpack.c.b16 %v1843, %v1840
    %v2045 = vpack.c.b16 %v1844, %v1841
    %v2046 = vpack.c.b16 %v1848, %v1845
    %v2047 = vpack.c.b16 %v1849, %v1846
    %v2048 = vpack.c.b16 %v1850, %v1847
    %v2049 = vpack.c.b16 %v1854, %v1851
    %v2050 = vpack.c.b16 %v1855, %v1852
    %v2051 = vpack.c.b16 %v1856, %v1853
    %v2052 = vpack.c.b16 %v1860, %v1857
    %v2053 = vpack.c.b16 %v1861, %v1858
    %v2054 = vpack.c.b16 %v1862, %v1859
    %v2055 = vpack.c.b16 %v1866, %v1863
    %v2056 = vpack.c.b16 %v1867, %v1864
    %v2057 = vpack.c.b16 %v1868, %v1865
    %v2058 = vpack.c.b16 %v1872, %v1869
    %v2059 = vpack.c.b16 %v1873, %v1870
    %v2060 = vpack.c.b16 %v1874, %v1871
    %v2061 = vpack.c.b16 %v1878, %v1875
    %v2062 = vpack.c.b16 %v1879, %v1876
    %v2063 = vpack.c.b16 %v1880, %v1877
    %v2064 = vpack.c.b16 %v1884, %v1881
    %v2065 = vpack.c.b16 %v1885, %v1882
    %v2066 = vpack.c.b16 %v1886, %v1883
    %v2067 = vpack.c.b16 %v1890, %v1887
    %v2068 = vpack.c.b16 %v1891, %v1888
    %v2069 = vpack.c.b16 %v1892, %v1889
    %v2070 = vpack.c.b16 %v1896, %v1893
    %v2071 = vpack.c.b16 %v1897, %v1894
    %v2072 = vpack.c.b16 %v1898, %v1895
    %v2073 = vpack.c.b16 %v1902, %v1899
    %v2074 = vpack.c.b16 %v1903, %v1900
    %v2075 = vpack.c.b16 %v1904, %v1901
    %v2076 = vpack.c.b16 %v1908, %v1905
    %v2077 = vpack.c.b16 %v1909, %v1906
    %v2078 = vpack.c.b16 %v1910, %v1907
    %v2079 = vpack.c.b16 %v1914, %v1911
    %v2080 = vpack.c.b16 %v1915, %v1912
    %v2081 = vpack.c.b16 %v1916, %v1913
    %v2082 = vpack.c.b16 %v1920, %v1917
    %v2083 = vpack.c.b16 %v1921, %v1918
    %v2084 = vpack.c.b16 %v1922, %v1919
    %v2085 = vpack.c.b16 %v1926, %v1923
    %v2086 = vpack.c.b16 %v1927, %v1924
    %v2087 = vpack.c.b16 %v1928, %v1925
    %v2088 = vpack.c.b16 %v1932, %v1929
    %v2089 = vpack.c.b16 %v1933, %v1930
    %v2090 = vpack.c.b16 %v1934, %v1931
    %v2091 = vpack.c.b16 %v1938, %v1935
    %v2092 = vpack.c.b16 %v1939, %v1936
    %v2093 = vpack.c.b16 %v1940, %v1937
    %v2094 = vpack.c.b16 %v1944, %v1941
    %v2095 = vpack.c.b16 %v1945, %v1942
    %v2096 = vpack.c.b16 %v1946, %v1943
    %v2097 = vpack.c.b16 %v1950, %v1947
    %v2098 = vpack.c.b16 %v1951, %v1948
    %v2099 = vpack.c.b16 %v1952, %v1949
    %v2100 = vpack.c.b16 %v1956, %v1953
    %v2101 = vpack.c.b16 %v1957, %v1954
    %v2102 = vpack.c.b16 %v1958, %v1955
    %2247 = vmatprep.subr.bf16.mxu0 %v1960
    %2248 = vmatpush1.bf16.msra.mxu0 %v1959
    %2249 = vmatprep.subr.bf16.mxu0 %v1963
    %2250 = vmatpush1.bf16.msra.mxu0 %v1962
    %2251 = vmatprep.subr.bf16.mxu0 %v1966
    %2252 = vmatpush1.bf16.msra.mxu0 %v1965
    %2253 = vmatprep.subr.bf16.mxu0 %v1969
    %2254 = vmatpush1.bf16.msra.mxu0 %v1968
    %2255 = vmatprep.subr.bf16.mxu0 %v1972
    %2256 = vmatpush1.bf16.msra.mxu0 %v1971
    %2257 = vmatprep.subr.bf16.mxu0 %v1975
    %2258 = vmatpush1.bf16.msra.mxu0 %v1974
    %2259 = vmatprep.subr.bf16.mxu0 %v1978
    %2260 = vmatpush1.bf16.msra.mxu0 %v1977
    %2261 = vmatprep.subr.bf16.mxu0 %v1981
    %2262 = vmatpush1.bf16.msra.mxu0 %v1980
    %2263 = vmatprep.subr.bf16.mxu0 %v1984
    %2264 = vmatpush1.bf16.msra.mxu0 %v1983
    %2265 = vmatprep.subr.bf16.mxu0 %v1987
    %2266 = vmatpush1.bf16.msra.mxu0 %v1986
    %2267 = vmatprep.subr.bf16.mxu0 %v1990
    %2268 = vmatpush1.bf16.msra.mxu0 %v1989
    %2269 = vmatprep.subr.bf16.mxu0 %v1993
    %2270 = vmatpush1.bf16.msra.mxu0 %v1992
    %2271 = vmatprep.subr.bf16.mxu0 %v1996
    %2272 = vmatpush1.bf16.msra.mxu0 %v1995
    %2273 = vmatprep.subr.bf16.mxu0 %v1999
    %2274 = vmatpush1.bf16.msra.mxu0 %v1998
    %2275 = vmatprep.subr.bf16.mxu0 %v2002
    %2276 = vmatpush1.bf16.msra.mxu0 %v2001
    %2277 = vmatprep.subr.bf16.mxu0 %v2005
    %2278 = vmatpush1.bf16.msra.mxu0 %v2004
    %2279 = vmatprep.mubr.bf16.mxu0 %v70
    %2280 = vmatmul.mubr.bf16.gmra.mrb[0].mxu0 %v69
    %v2281 = vpop.f32.mrb[0].mxu0
    %v2282 = vadd.f32 0.0, %v2281
    %v2283 = vpop.f32.mrb[0].mxu0
    %v2284 = vadd.f32 0.0, %v2283
    %v2285 = vpop.f32.mrb[0].mxu0
    %v2286 = vadd.f32 0.0, %v2285
    %v2287 = vpop.f32.mrb[0].mxu0
    %v2288 = vadd.f32 0.0, %v2287
    %2289 = vdwg.mxu0
    %2290 = vmatprep.subr.bf16.mxu0 %v2008
    %2291 = vmatpush1.bf16.msra.mxu0 %v2007
    %2292 = vmatprep.subr.bf16.mxu0 %v2011
    %2293 = vmatpush1.bf16.msra.mxu0 %v2010
    %2294 = vmatprep.subr.bf16.mxu0 %v2014
    %2295 = vmatpush1.bf16.msra.mxu0 %v2013
    %2296 = vmatprep.subr.bf16.mxu0 %v2017
    %2297 = vmatpush1.bf16.msra.mxu0 %v2016
    %2298 = vmatprep.subr.bf16.mxu0 %v2020
    %2299 = vmatpush1.bf16.msra.mxu0 %v2019
    %2300 = vmatprep.subr.bf16.mxu0 %v2023
    %2301 = vmatpush1.bf16.msra.mxu0 %v2022
    %2302 = vmatprep.subr.bf16.mxu0 %v2026
    %2303 = vmatpush1.bf16.msra.mxu0 %v2025
    %2304 = vmatprep.subr.bf16.mxu0 %v2029
    %2305 = vmatpush1.bf16.msra.mxu0 %v2028
    %2306 = vmatprep.subr.bf16.mxu0 %v2032
    %2307 = vmatpush1.bf16.msra.mxu0 %v2031
    %2308 = vmatprep.subr.bf16.mxu0 %v2035
    %2309 = vmatpush1.bf16.msra.mxu0 %v2034
    %2310 = vmatprep.subr.bf16.mxu0 %v2038
    %2311 = vmatpush1.bf16.msra.mxu0 %v2037
    %2312 = vmatprep.subr.bf16.mxu0 %v2041
    %2313 = vmatpush1.bf16.msra.mxu0 %v2040
    %2314 = vmatprep.subr.bf16.mxu0 %v2044
    %2315 = vmatpush1.bf16.msra.mxu0 %v2043
    %2316 = vmatprep.subr.bf16.mxu0 %v2047
    %2317 = vmatpush1.bf16.msra.mxu0 %v2046
    %2318 = vmatprep.subr.bf16.mxu0 %v2050
    %2319 = vmatpush1.bf16.msra.mxu0 %v2049
    %2320 = vmatprep.subr.bf16.mxu0 %v2053
    %2321 = vmatpush1.bf16.msra.mxu0 %v2052
    %2322 = vmatprep.mubr.bf16.mxu0 %v72
    %2323 = vmatmul.mubr.bf16.gmra.mrb[0].mxu0 %v71
    %v2324 = vpop.f32.mrb[0].mxu0
    %v2325 = vadd.f32 %v2282, %v2324
    %v2326 = vpop.f32.mrb[0].mxu0
    %v2327 = vadd.f32 %v2284, %v2326
    %v2328 = vpop.f32.mrb[0].mxu0
    %v2329 = vadd.f32 %v2286, %v2328
    %v2330 = vpop.f32.mrb[0].mxu0
    %v2331 = vadd.f32 %v2288, %v2330
    %2332 = vdwg.mxu0
    %2333 = vmatprep.subr.bf16.mxu0 %v2056
    %2334 = vmatpush1.bf16.msra.mxu0 %v2055
    %2335 = vmatprep.subr.bf16.mxu0 %v2059
    %2336 = vmatpush1.bf16.msra.mxu0 %v2058
    %2337 = vmatprep.subr.bf16.mxu0 %v2062
    %2338 = vmatpush1.bf16.msra.mxu0 %v2061
    %2339 = vmatprep.subr.bf16.mxu0 %v2065
    %2340 = vmatpush1.bf16.msra.mxu0 %v2064
    %2341 = vmatprep.subr.bf16.mxu0 %v2068
    %2342 = vmatpush1.bf16.msra.mxu0 %v2067
    %2343 = vmatprep.subr.bf16.mxu0 %v2071
    %2344 = vmatpush1.bf16.msra.mxu0 %v2070
    %2345 = vmatprep.subr.bf16.mxu0 %v2074
    %2346 = vmatpush1.bf16.msra.mxu0 %v2073
    %2347 = vmatprep.subr.bf16.mxu0 %v2077
    %2348 = vmatpush1.bf16.msra.mxu0 %v2076
    %2349 = vmatprep.subr.bf16.mxu0 %v2080
    %2350 = vmatpush1.bf16.msra.mxu0 %v2079
    %2351 = vmatprep.subr.bf16.mxu0 %v2083
    %2352 = vmatpush1.bf16.msra.mxu0 %v2082
    %2353 = vmatprep.subr.bf16.mxu0 %v2086
    %2354 = vmatpush1.bf16.msra.mxu0 %v2085
    %2355 = vmatprep.subr.bf16.mxu0 %v2089
    %2356 = vmatpush1.bf16.msra.mxu0 %v2088
    %2357 = vmatprep.subr.bf16.mxu0 %v2092
    %2358 = vmatpush1.bf16.msra.mxu0 %v2091
    %2359 = vmatprep.subr.bf16.mxu0 %v2095
    %2360 = vmatpush1.bf16.msra.mxu0 %v2094
    %2361 = vmatprep.subr.bf16.mxu0 %v2098
    %2362 = vmatpush1.bf16.msra.mxu0 %v2097
    %2363 = vmatprep.subr.bf16.mxu0 %v2101
    %2364 = vmatpush1.bf16.msra.mxu0 %v2100
    %2365 = vmatprep.mubr.bf16.mxu0 %v74
    %2366 = vmatmul.mubr.bf16.gmra.mrb[0].mxu0 %v73
    %v2367 = vpop.f32.mrb[0].mxu0
    %v2368 = vadd.f32 %v2325, %v2367
    %v2369 = vpop.f32.mrb[0].mxu0
    %v2370 = vadd.f32 %v2327, %v2369
    %v2371 = vpop.f32.mrb[0].mxu0
    %v2372 = vadd.f32 %v2329, %v2371
    %v2373 = vpop.f32.mrb[0].mxu0
    %v2374 = vadd.f32 %v2331, %v2373
    %2375 = vdwg.mxu0
    %2376 = vmatprep.subr.bf16.mxu0 0
    %2377 = vmatpush1.bf16.msra.mxu0 %v1961
    %2378 = vmatprep.subr.bf16.mxu0 0
    %2379 = vmatpush1.bf16.msra.mxu0 %v1964
    %2380 = vmatprep.subr.bf16.mxu0 0
    %2381 = vmatpush1.bf16.msra.mxu0 %v1967
    %2382 = vmatprep.subr.bf16.mxu0 0
    %2383 = vmatpush1.bf16.msra.mxu0 %v1970
    %2384 = vmatprep.subr.bf16.mxu0 0
    %2385 = vmatpush1.bf16.msra.mxu0 %v1973
    %2386 = vmatprep.subr.bf16.mxu0 0
    %2387 = vmatpush1.bf16.msra.mxu0 %v1976
    %2388 = vmatprep.subr.bf16.mxu0 0
    %2389 = vmatpush1.bf16.msra.mxu0 %v1979
    %2390 = vmatprep.subr.bf16.mxu0 0
    %2391 = vmatpush1.bf16.msra.mxu0 %v1982
    %2392 = vmatprep.subr.bf16.mxu0 0
    %2393 = vmatpush1.bf16.msra.mxu0 %v1985
    %2394 = vmatprep.subr.bf16.mxu0 0
    %2395 = vmatpush1.bf16.msra.mxu0 %v1988
    %2396 = vmatprep.subr.bf16.mxu0 0
    %2397 = vmatpush1.bf16.msra.mxu0 %v1991
    %2398 = vmatprep.subr.bf16.mxu0 0
    %2399 = vmatpush1.bf16.msra.mxu0 %v1994
    %2400 = vmatprep.subr.bf16.mxu0 0
    %2401 = vmatpush1.bf16.msra.mxu0 %v1997
    %2402 = vmatprep.subr.bf16.mxu0 0
    %2403 = vmatpush1.bf16.msra.mxu0 %v2000
    %2404 = vmatprep.subr.bf16.mxu0 0
    %2405 = vmatpush1.bf16.msra.mxu0 %v2003
    %2406 = vmatprep.subr.bf16.mxu0 0
    %2407 = vmatpush1.bf16.msra.mxu0 %v2006
    %2408 = vmatprep.mubr.bf16.mxu0 %v70
    %2409 = vmatmul.mubr.bf16.gmra.mrb[0].mxu0 %v69
    %v2410 = vpop.f32.mrb[0].mxu0
    %v2411 = vadd.f32 0.0, %v2410
    %v2412 = vpop.f32.mrb[0].mxu0
    %v2413 = vpop.f32.mrb[0].mxu0
    %v2414 = vadd.f32 0.0, %v2413
    %v2415 = vpop.f32.mrb[0].mxu0
    %2416 = vdwg.mxu0
    %2417 = vmatprep.subr.bf16.mxu0 0
    %2418 = vmatpush1.bf16.msra.mxu0 %v2009
    %2419 = vmatprep.subr.bf16.mxu0 0
    %2420 = vmatpush1.bf16.msra.mxu0 %v2012
    %2421 = vmatprep.subr.bf16.mxu0 0
    %2422 = vmatpush1.bf16.msra.mxu0 %v2015
    %2423 = vmatprep.subr.bf16.mxu0 0
    %2424 = vmatpush1.bf16.msra.mxu0 %v2018
    %2425 = vmatprep.subr.bf16.mxu0 0
    %2426 = vmatpush1.bf16.msra.mxu0 %v2021
    %2427 = vmatprep.subr.bf16.mxu0 0
    %2428 = vmatpush1.bf16.msra.mxu0 %v2024
    %2429 = vmatprep.subr.bf16.mxu0 0
    %2430 = vmatpush1.bf16.msra.mxu0 %v2027
    %2431 = vmatprep.subr.bf16.mxu0 0
    %2432 = vmatpush1.bf16.msra.mxu0 %v2030
    %2433 = vmatprep.subr.bf16.mxu0 0
    %2434 = vmatpush1.bf16.msra.mxu0 %v2033
    %2435 = vmatprep.subr.bf16.mxu0 0
    %2436 = vmatpush1.bf16.msra.mxu0 %v2036
    %2437 = vmatprep.subr.bf16.mxu0 0
    %2438 = vmatpush1.bf16.msra.mxu0 %v2039
    %2439 = vmatprep.subr.bf16.mxu0 0
    %2440 = vmatpush1.bf16.msra.mxu0 %v2042
    %2441 = vmatprep.subr.bf16.mxu0 0
    %2442 = vmatpush1.bf16.msra.mxu0 %v2045
    %2443 = vmatprep.subr.bf16.mxu0 0
    %2444 = vmatpush1.bf16.msra.mxu0 %v2048
    %2445 = vmatprep.subr.bf16.mxu0 0
    %2446 = vmatpush1.bf16.msra.mxu0 %v2051
    %2447 = vmatprep.subr.bf16.mxu0 0
    %2448 = vmatpush1.bf16.msra.mxu0 %v2054
    %2449 = vmatprep.mubr.bf16.mxu0 %v72
    %2450 = vmatmul.mubr.bf16.gmra.mrb[0].mxu0 %v71
    %v2451 = vpop.f32.mrb[0].mxu0
    %v2452 = vadd.f32 %v2411, %v2451
    %v2453 = vpop.f32.mrb[0].mxu0
    %v2454 = vpop.f32.mrb[0].mxu0
    %v2455 = vadd.f32 %v2414, %v2454
    %v2456 = vpop.f32.mrb[0].mxu0
    %2457 = vdwg.mxu0
    %2458 = vmatprep.subr.bf16.mxu0 0
    %2459 = vmatpush1.bf16.msra.mxu0 %v2057
    %2460 = vmatprep.subr.bf16.mxu0 0
    %2461 = vmatpush1.bf16.msra.mxu0 %v2060
    %2462 = vmatprep.subr.bf16.mxu0 0
    %2463 = vmatpush1.bf16.msra.mxu0 %v2063
    %2464 = vmatprep.subr.bf16.mxu0 0
    %2465 = vmatpush1.bf16.msra.mxu0 %v2066
    %2466 = vmatprep.subr.bf16.mxu0 0
    %2467 = vmatpush1.bf16.msra.mxu0 %v2069
    %2468 = vmatprep.subr.bf16.mxu0 0
    %2469 = vmatpush1.bf16.msra.mxu0 %v2072
    %2470 = vmatprep.subr.bf16.mxu0 0
    %2471 = vmatpush1.bf16.msra.mxu0 %v2075
    %2472 = vmatprep.subr.bf16.mxu0 0
    %2473 = vmatpush1.bf16.msra.mxu0 %v2078
    %2474 = vmatprep.subr.bf16.mxu0 0
    %2475 = vmatpush1.bf16.msra.mxu0 %v2081
    %2476 = vmatprep.subr.bf16.mxu0 0
    %2477 = vmatpush1.bf16.msra.mxu0 %v2084
    %2478 = vmatprep.subr.bf16.mxu0 0
    %2479 = vmatpush1.bf16.msra.mxu0 %v2087
    %2480 = vmatprep.subr.bf16.mxu0 0
    %2481 = vmatpush1.bf16.msra.mxu0 %v2090
    %2482 = vmatprep.subr.bf16.mxu0 0
    %2483 = vmatpush1.bf16.msra.mxu0 %v2093
    %2484 = vmatprep.subr.bf16.mxu0 0
    %2485 = vmatpush1.bf16.msra.mxu0 %v2096
    %2486 = vmatprep.subr.bf16.mxu0 0
    %2487 = vmatpush1.bf16.msra.mxu0 %v2099
    %2488 = vmatprep.subr.bf16.mxu0 0
    %2489 = vmatpush1.bf16.msra.mxu0 %v2102
    %2490 = vmatprep.mubr.bf16.mxu0 %v74
    %2491 = vmatmul.mubr.bf16.gmra.mrb[0].mxu0 %v73
    %v2492 = vpop.f32.mrb[0].mxu0
    %v2493 = vadd.f32 %v2452, %v2492
    %v2494 = vpop.f32.mrb[0].mxu0
    %v2495 = vpop.f32.mrb[0].mxu0
    %v2496 = vadd.f32 %v2455, %v2495
    %v2497 = vpop.f32.mrb[0].mxu0
    %2498 = vdwg.mxu0
    %v2499 = vmul.f32 %v1156, 0.5
    %v2500 = vmul.f32 %v1158, 0.5
    %v2501 = vmul.f32 %v1281, 0.5
    %v2502 = vmul.f32 %v1160, 0.5
    %v2503 = vmul.f32 %v1162, 0.5
    %v2504 = vmul.f32 %v1284, 0.5
    %v2505 = vmul.f32 %v1156, 0.70710677
    %v2506 = vmul.f32 %v1158, 0.70710677
    %v2507 = vmul.f32 %v1281, 0.70710677
    %v2508 = vmul.f32 %v1160, 0.70710677
    %v2509 = vmul.f32 %v1162, 0.70710677
    %v2510 = vmul.f32 %v1284, 0.70710677
    %v2511 = verf.f32.pop %v2505
    %v2512 = verf.f32.pop %v2506
    %v2513 = verf.f32.pop %v2507
    %v2514 = verf.f32.pop %v2508
    %v2515 = verf.f32.pop %v2509
    %v2516 = verf.f32.pop %v2510
    %v2517 = vadd.f32 %v2511, 1.0
    %v2518 = vadd.f32 %v2512, 1.0
    %v2519 = vadd.f32 %v2513, 1.0
    %v2520 = vadd.f32 %v2514, 1.0
    %v2521 = vadd.f32 %v2515, 1.0
    %v2522 = vadd.f32 %v2516, 1.0
    %v2523 = vmul.f32 %v2499, %v2517
    %v2524 = vmul.f32 %v2500, %v2518
    %v2525 = vmul.f32 %v2501, %v2519
    %v2526 = vmul.f32 %v2502, %v2520
    %v2527 = vmul.f32 %v2503, %v2521
    %v2528 = vmul.f32 %v2504, %v2522
    %v2529 = vmul.f32 %v2523, %v2368
    %v2530 = vmul.f32 %v2524, %v2370
    %v2531 = vmul.f32 %v2525, %v2493
    %v2532 = vmul.f32 %v2526, %v2372
    %v2533 = vmul.f32 %v2527, %v2374
    %v2534 = vmul.f32 %v2528, %v2496
    %v2535 = vpack.c.bf16 %v2532, %v2529
    %v2536 = vpack.c.bf16 %v2533, %v2530
    %v2537 = vpack.c.bf16 %v2534, %v2531
    %v2538 = vld [vmem:[#allocation7] sm:$0xff]
    %v2539 = vld [vmem:[#allocation7 + $0x8] sm:$0xff]
    %v2540 = vld [vmem:[#allocation7 + $0x10] sm:$0xff]
    %v2541 = vld [vmem:[#allocation7 + $0x18] sm:$0xff]
    %v2542 = vld [vmem:[#allocation7 + $0x20] sm:$0xff]
    %v2543 = vld [vmem:[#allocation7 + $0x28] sm:$0xff]
    %v2544 = vld [vmem:[#allocation7 + $0x30] sm:$0xff]
    %v2545 = vld [vmem:[#allocation7 + $0x38] sm:$0xff]
    %v2546 = vld [vmem:[#allocation7 + $0x40] sm:$0xff]
    %v2547 = vld [vmem:[#allocation7 + $0x48] sm:$0xff]
    %v2548 = vld [vmem:[#allocation7 + $0x50] sm:$0xff]
    %v2549 = vld [vmem:[#allocation7 + $0x58] sm:$0xff]
    %v2550 = vld [vmem:[#allocation7 + $0x60] sm:$0xff]
    %v2551 = vld [vmem:[#allocation7 + $0x68] sm:$0xff]
    %v2552 = vld [vmem:[#allocation7 + $0x70] sm:$0xff]
    %v2553 = vld [vmem:[#allocation7 + $0x78] sm:$0xff]
    %v2554 = vld [vmem:[#allocation7 + $0x80] sm:$0xff]
    %v2555 = vld [vmem:[#allocation7 + $0x88] sm:$0xff]
    %v2556 = vld [vmem:[#allocation7 + $0x90] sm:$0xff]
    %v2557 = vld [vmem:[#allocation7 + $0x98] sm:$0xff]
    %v2558 = vld [vmem:[#allocation7 + $0xa0] sm:$0xff]
    %v2559 = vld [vmem:[#allocation7 + $0xa8] sm:$0xff]
    %v2560 = vld [vmem:[#allocation7 + $0xb0] sm:$0xff]
    %v2561 = vld [vmem:[#allocation7 + $0xb8] sm:$0xff]
    %v2562 = vld [vmem:[#allocation7 + $0xc0] sm:$0xff]
    %v2563 = vld [vmem:[#allocation7 + $0xc8] sm:$0xff]
    %v2564 = vld [vmem:[#allocation7 + $0xd0] sm:$0xff]
    %v2565 = vld [vmem:[#allocation7 + $0xd8] sm:$0xff]
    %v2566 = vld [vmem:[#allocation7 + $0xe0] sm:$0xff]
    %v2567 = vld [vmem:[#allocation7 + $0xe8] sm:$0xff]
    %v2568 = vld [vmem:[#allocation7 + $0xf0] sm:$0xff]
    %v2569 = vld [vmem:[#allocation7 + $0xf8] sm:$0xff]
    %v2570 = vld [vmem:[#allocation7 + $0x100] sm:$0xff]
    %v2571 = vld [vmem:[#allocation7 + $0x108] sm:$0xff]
    %v2572 = vld [vmem:[#allocation7 + $0x110] sm:$0xff]
    %v2573 = vld [vmem:[#allocation7 + $0x118] sm:$0xff]
    %v2574 = vld [vmem:[#allocation7 + $0x120] sm:$0xff]
    %v2575 = vld [vmem:[#allocation7 + $0x128] sm:$0xff]
    %v2576 = vld [vmem:[#allocation7 + $0x130] sm:$0xff]
    %v2577 = vld [vmem:[#allocation7 + $0x138] sm:$0xff]
    %v2578 = vld [vmem:[#allocation7 + $0x140] sm:$0xff]
    %v2579 = vld [vmem:[#allocation7 + $0x148] sm:$0xff]
    %v2580 = vld [vmem:[#allocation7 + $0x150] sm:$0xff]
    %v2581 = vld [vmem:[#allocation7 + $0x158] sm:$0xff]
    %v2582 = vld [vmem:[#allocation7 + $0x160] sm:$0xff]
    %v2583 = vld [vmem:[#allocation7 + $0x168] sm:$0xff]
    %v2584 = vld [vmem:[#allocation7 + $0x170] sm:$0xff]
    %v2585 = vld [vmem:[#allocation7 + $0x178] sm:$0xff]
    %v2586 = vld [vmem:[#allocation7 + $0x180] sm:$0xff]
    %v2587 = vld [vmem:[#allocation7 + $0x188] sm:$0xff]
    %v2588 = vld [vmem:[#allocation7 + $0x190] sm:$0xff]
    %v2589 = vld [vmem:[#allocation7 + $0x198] sm:$0xff]
    %v2590 = vld [vmem:[#allocation7 + $0x1a0] sm:$0xff]
    %v2591 = vld [vmem:[#allocation7 + $0x1a8] sm:$0xff]
    %v2592 = vld [vmem:[#allocation7 + $0x1b0] sm:$0xff]
    %v2593 = vld [vmem:[#allocation7 + $0x1b8] sm:$0xff]
    %v2594 = vld [vmem:[#allocation7 + $0x1c0] sm:$0xff]
    %v2595 = vld [vmem:[#allocation7 + $0x1c8] sm:$0xff]
    %v2596 = vld [vmem:[#allocation7 + $0x1d0] sm:$0xff]
    %v2597 = vld [vmem:[#allocation7 + $0x1d8] sm:$0xff]
    %v2598 = vld [vmem:[#allocation7 + $0x1e0] sm:$0xff]
    %v2599 = vld [vmem:[#allocation7 + $0x1e8] sm:$0xff]
    %v2600 = vld [vmem:[#allocation7 + $0x1f0] sm:$0xff]
    %v2601 = vld [vmem:[#allocation7 + $0x1f8] sm:$0xff]
    %v2602 = vld [vmem:[#allocation7 + $0x200] sm:$0xff]
    %v2603 = vld [vmem:[#allocation7 + $0x208] sm:$0xff]
    %v2604 = vld [vmem:[#allocation7 + $0x210] sm:$0xff]
    %v2605 = vld [vmem:[#allocation7 + $0x218] sm:$0xff]
    %v2606 = vld [vmem:[#allocation7 + $0x220] sm:$0xff]
    %v2607 = vld [vmem:[#allocation7 + $0x228] sm:$0xff]
    %v2608 = vld [vmem:[#allocation7 + $0x230] sm:$0xff]
    %v2609 = vld [vmem:[#allocation7 + $0x238] sm:$0xff]
    %v2610 = vld [vmem:[#allocation7 + $0x240] sm:$0xff]
    %v2611 = vld [vmem:[#allocation7 + $0x248] sm:$0xff]
    %v2612 = vld [vmem:[#allocation7 + $0x250] sm:$0xff]
    %v2613 = vld [vmem:[#allocation7 + $0x258] sm:$0xff]
    %v2614 = vld [vmem:[#allocation7 + $0x260] sm:$0xff]
    %v2615 = vld [vmem:[#allocation7 + $0x268] sm:$0xff]
    %v2616 = vld [vmem:[#allocation7 + $0x270] sm:$0xff]
    %v2617 = vld [vmem:[#allocation7 + $0x278] sm:$0xff]
    %v2618 = vld [vmem:[#allocation7 + $0x280] sm:$0xff]
    %v2619 = vld [vmem:[#allocation7 + $0x288] sm:$0xff]
    %v2620 = vld [vmem:[#allocation7 + $0x290] sm:$0xff]
    %v2621 = vld [vmem:[#allocation7 + $0x298] sm:$0xff]
    %v2622 = vld [vmem:[#allocation7 + $0x2a0] sm:$0xff]
    %v2623 = vld [vmem:[#allocation7 + $0x2a8] sm:$0xff]
    %v2624 = vld [vmem:[#allocation7 + $0x2b0] sm:$0xff]
    %v2625 = vld [vmem:[#allocation7 + $0x2b8] sm:$0xff]
    %v2626 = vld [vmem:[#allocation7 + $0x2c0] sm:$0xff]
    %v2627 = vld [vmem:[#allocation7 + $0x2c8] sm:$0xff]
    %v2628 = vld [vmem:[#allocation7 + $0x2d0] sm:$0xff]
    %v2629 = vld [vmem:[#allocation7 + $0x2d8] sm:$0xff]
    %v2630 = vld [vmem:[#allocation7 + $0x2e0] sm:$0xff]
    %v2631 = vld [vmem:[#allocation7 + $0x2e8] sm:$0xff]
    %v2632 = vld [vmem:[#allocation7 + $0x2f0] sm:$0xff]
    %v2633 = vld [vmem:[#allocation7 + $0x2f8] sm:$0xff]
    %v2634 = vld [vmem:[#allocation7 + $0x300] sm:$0xff]
    %v2635 = vld [vmem:[#allocation7 + $0x308] sm:$0xff]
    %v2636 = vld [vmem:[#allocation7 + $0x310] sm:$0xff]
    %v2637 = vld [vmem:[#allocation7 + $0x318] sm:$0xff]
    %v2638 = vld [vmem:[#allocation7 + $0x320] sm:$0xff]
    %v2639 = vld [vmem:[#allocation7 + $0x328] sm:$0xff]
    %v2640 = vld [vmem:[#allocation7 + $0x330] sm:$0xff]
    %v2641 = vld [vmem:[#allocation7 + $0x338] sm:$0xff]
    %v2642 = vld [vmem:[#allocation7 + $0x340] sm:$0xff]
    %v2643 = vld [vmem:[#allocation7 + $0x348] sm:$0xff]
    %v2644 = vld [vmem:[#allocation7 + $0x350] sm:$0xff]
    %v2645 = vld [vmem:[#allocation7 + $0x358] sm:$0xff]
    %v2646 = vld [vmem:[#allocation7 + $0x360] sm:$0xff]
    %v2647 = vld [vmem:[#allocation7 + $0x368] sm:$0xff]
    %v2648 = vld [vmem:[#allocation7 + $0x370] sm:$0xff]
    %v2649 = vld [vmem:[#allocation7 + $0x378] sm:$0xff]
    %v2650 = vld [vmem:[#allocation7 + $0x380] sm:$0xff]
    %v2651 = vld [vmem:[#allocation7 + $0x388] sm:$0xff]
    %v2652 = vld [vmem:[#allocation7 + $0x390] sm:$0xff]
    %v2653 = vld [vmem:[#allocation7 + $0x398] sm:$0xff]
    %v2654 = vld [vmem:[#allocation7 + $0x3a0] sm:$0xff]
    %v2655 = vld [vmem:[#allocation7 + $0x3a8] sm:$0xff]
    %v2656 = vld [vmem:[#allocation7 + $0x3b0] sm:$0xff]
    %v2657 = vld [vmem:[#allocation7 + $0x3b8] sm:$0xff]
    %v2658 = vld [vmem:[#allocation7 + $0x3c0] sm:$0xff]
    %v2659 = vld [vmem:[#allocation7 + $0x3c8] sm:$0xff]
    %v2660 = vld [vmem:[#allocation7 + $0x3d0] sm:$0xff]
    %v2661 = vld [vmem:[#allocation7 + $0x3d8] sm:$0xff]
    %v2662 = vld [vmem:[#allocation7 + $0x3e0] sm:$0xff]
    %v2663 = vld [vmem:[#allocation7 + $0x3e8] sm:$0xff]
    %v2664 = vld [vmem:[#allocation7 + $0x3f0] sm:$0xff]
    %v2665 = vld [vmem:[#allocation7 + $0x3f8] sm:$0xff]
    %v2666 = vld [vmem:[#allocation7 + $0x400] sm:$0xff]
    %v2667 = vld [vmem:[#allocation7 + $0x408] sm:$0xff]
    %v2668 = vld [vmem:[#allocation7 + $0x410] sm:$0xff]
    %v2669 = vld [vmem:[#allocation7 + $0x418] sm:$0xff]
    %v2670 = vld [vmem:[#allocation7 + $0x420] sm:$0xff]
    %v2671 = vld [vmem:[#allocation7 + $0x428] sm:$0xff]
    %v2672 = vld [vmem:[#allocation7 + $0x430] sm:$0xff]
    %v2673 = vld [vmem:[#allocation7 + $0x438] sm:$0xff]
    %v2674 = vld [vmem:[#allocation7 + $0x440] sm:$0xff]
    %v2675 = vld [vmem:[#allocation7 + $0x448] sm:$0xff]
    %v2676 = vld [vmem:[#allocation7 + $0x450] sm:$0xff]
    %v2677 = vld [vmem:[#allocation7 + $0x458] sm:$0xff]
    %v2678 = vld [vmem:[#allocation7 + $0x460] sm:$0xff]
    %v2679 = vld [vmem:[#allocation7 + $0x468] sm:$0xff]
    %v2680 = vld [vmem:[#allocation7 + $0x470] sm:$0xff]
    %v2681 = vld [vmem:[#allocation7 + $0x478] sm:$0xff]
    %v2682 = vld [vmem:[#allocation5 + $0xc] sm:$0xff]
    %v2683 = vld [vmem:[#allocation5 + $0x14] sm:$0xf]
    %v2684 = vld [vmem:[#allocation5 + $0x54] sm:$0xff]
    %v2685 = vld [vmem:[#allocation5 + $0x5c] sm:$0xf]
    %v2686 = vld [vmem:[#allocation5 + $0x9c] sm:$0xff]
    %v2687 = vld [vmem:[#allocation5 + $0xa4] sm:$0xf]
    %v2688 = vld [vmem:[#allocation5 + $0xe4] sm:$0xff]
    %v2689 = vld [vmem:[#allocation5 + $0xec] sm:$0xf]
    %v2690 = vld [vmem:[#allocation5 + $0x12c] sm:$0xff]
    %v2691 = vld [vmem:[#allocation5 + $0x134] sm:$0xf]
    %v2692 = vld [vmem:[#allocation5 + $0x174] sm:$0xff]
    %v2693 = vld [vmem:[#allocation5 + $0x17c] sm:$0xf]
    %v2694 = vld [vmem:[#allocation5 + $0x1bc] sm:$0xff]
    %v2695 = vld [vmem:[#allocation5 + $0x1c4] sm:$0xf]
    %v2696 = vld [vmem:[#allocation5 + $0x204] sm:$0xff]
    %v2697 = vld [vmem:[#allocation5 + $0x20c] sm:$0xf]
    %v2698 = vld [vmem:[#allocation5 + $0x24c] sm:$0xff]
    %v2699 = vld [vmem:[#allocation5 + $0x254] sm:$0xf]
    %v2700 = vld [vmem:[#allocation5 + $0x294] sm:$0xff]
    %v2701 = vld [vmem:[#allocation5 + $0x29c] sm:$0xf]
    %v2702 = vld [vmem:[#allocation5 + $0x2dc] sm:$0xff]
    %v2703 = vld [vmem:[#allocation5 + $0x2e4] sm:$0xf]
    %v2704 = vld [vmem:[#allocation5 + $0x324] sm:$0xff]
    %v2705 = vld [vmem:[#allocation5 + $0x32c] sm:$0xf]
    %v2706 = vld [vmem:[#allocation5 + $0x36c] sm:$0xff]
    %v2707 = vld [vmem:[#allocation5 + $0x374] sm:$0xf]
    %v2708 = vld [vmem:[#allocation5 + $0x3b4] sm:$0xff]
    %v2709 = vld [vmem:[#allocation5 + $0x3bc] sm:$0xf]
    %v2710 = vld [vmem:[#allocation5 + $0x3fc] sm:$0xff]
    %v2711 = vld [vmem:[#allocation5 + $0x404] sm:$0xf]
    %v2712 = vld [vmem:[#allocation5 + $0x444] sm:$0xff]
    %v2713 = vld [vmem:[#allocation5 + $0x44c] sm:$0xf]
    %v2714 = vld [vmem:[#allocation5 + $0x48c] sm:$0xff]
    %v2715 = vld [vmem:[#allocation5 + $0x494] sm:$0xf]
    %v2716 = vld [vmem:[#allocation5 + $0x4d4] sm:$0xff]
    %v2717 = vld [vmem:[#allocation5 + $0x4dc] sm:$0xf]
    %v2718 = vld [vmem:[#allocation5 + $0x51c] sm:$0xff]
    %v2719 = vld [vmem:[#allocation5 + $0x524] sm:$0xf]
    %v2720 = vld [vmem:[#allocation5 + $0x564] sm:$0xff]
    %v2721 = vld [vmem:[#allocation5 + $0x56c] sm:$0xf]
    %v2722 = vld [vmem:[#allocation5 + $0x5ac] sm:$0xff]
    %v2723 = vld [vmem:[#allocation5 + $0x5b4] sm:$0xf]
    %v2724 = vld [vmem:[#allocation5 + $0x5f4] sm:$0xff]
    %v2725 = vld [vmem:[#allocation5 + $0x5fc] sm:$0xf]
    %v2726 = vld [vmem:[#allocation5 + $0x63c] sm:$0xff]
    %v2727 = vld [vmem:[#allocation5 + $0x644] sm:$0xf]
    %v2728 = vld [vmem:[#allocation5 + $0x684] sm:$0xff]
    %v2729 = vld [vmem:[#allocation5 + $0x68c] sm:$0xf]
    %v2730 = vld [vmem:[#allocation5 + $0x6cc] sm:$0xff]
    %v2731 = vld [vmem:[#allocation5 + $0x6d4] sm:$0xf]
    %v2732 = vld [vmem:[#allocation5 + $0x714] sm:$0xff]
    %v2733 = vld [vmem:[#allocation5 + $0x71c] sm:$0xf]
    %v2734 = vld [vmem:[#allocation5 + $0x75c] sm:$0xff]
    %v2735 = vld [vmem:[#allocation5 + $0x764] sm:$0xf]
    %v2736 = vld [vmem:[#allocation5 + $0x7a4] sm:$0xff]
    %v2737 = vld [vmem:[#allocation5 + $0x7ac] sm:$0xf]
    %v2738 = vld [vmem:[#allocation5 + $0x7ec] sm:$0xff]
    %v2739 = vld [vmem:[#allocation5 + $0x7f4] sm:$0xf]
    %v2740 = vld [vmem:[#allocation5 + $0x834] sm:$0xff]
    %v2741 = vld [vmem:[#allocation5 + $0x83c] sm:$0xf]
    %v2742 = vld [vmem:[#allocation5 + $0x87c] sm:$0xff]
    %v2743 = vld [vmem:[#allocation5 + $0x884] sm:$0xf]
    %v2744 = vld [vmem:[#allocation5 + $0x8c4] sm:$0xff]
    %v2745 = vld [vmem:[#allocation5 + $0x8cc] sm:$0xf]
    %v2746 = vld [vmem:[#allocation5 + $0x90c] sm:$0xff]
    %v2747 = vld [vmem:[#allocation5 + $0x914] sm:$0xf]
    %v2748 = vld [vmem:[#allocation5 + $0x954] sm:$0xff]
    %v2749 = vld [vmem:[#allocation5 + $0x95c] sm:$0xf]
    %v2750 = vld [vmem:[#allocation5 + $0x99c] sm:$0xff]
    %v2751 = vld [vmem:[#allocation5 + $0x9a4] sm:$0xf]
    %v2752 = vld [vmem:[#allocation5 + $0x9e4] sm:$0xff]
    %v2753 = vld [vmem:[#allocation5 + $0x9ec] sm:$0xf]
    %v2754 = vld [vmem:[#allocation5 + $0xa2c] sm:$0xff]
    %v2755 = vld [vmem:[#allocation5 + $0xa34] sm:$0xf]
    %v2756 = vld [vmem:[#allocation5 + $0xa74] sm:$0xff]
    %v2757 = vld [vmem:[#allocation5 + $0xa7c] sm:$0xf]
    %v2758 = vld [vmem:[#allocation5 + $0xabc] sm:$0xff]
    %v2759 = vld [vmem:[#allocation5 + $0xac4] sm:$0xf]
    %v2760 = vld [vmem:[#allocation5 + $0xb04] sm:$0xff]
    %v2761 = vld [vmem:[#allocation5 + $0xb0c] sm:$0xf]
    %v2762 = vld [vmem:[#allocation5 + $0xb4c] sm:$0xff]
    %v2763 = vld [vmem:[#allocation5 + $0xb54] sm:$0xf]
    %v2764 = vld [vmem:[#allocation5 + $0xb94] sm:$0xff]
    %v2765 = vld [vmem:[#allocation5 + $0xb9c] sm:$0xf]
    %v2766 = vld [vmem:[#allocation5 + $0xbdc] sm:$0xff]
    %v2767 = vld [vmem:[#allocation5 + $0xbe4] sm:$0xf]
    %v2768 = vld [vmem:[#allocation5 + $0xc24] sm:$0xff]
    %v2769 = vld [vmem:[#allocation5 + $0xc2c] sm:$0xf]
    %v2770 = vld [vmem:[#allocation5 + $0xc6c] sm:$0xff]
    %v2771 = vld [vmem:[#allocation5 + $0xc74] sm:$0xf]
    %v2772 = vld [vmem:[#allocation5 + $0xcb4] sm:$0xff]
    %v2773 = vld [vmem:[#allocation5 + $0xcbc] sm:$0xf]
    %v2774 = vld [vmem:[#allocation5 + $0xcfc] sm:$0xff]
    %v2775 = vld [vmem:[#allocation5 + $0xd04] sm:$0xf]
    %v2776 = vld [vmem:[#allocation5 + $0xd44] sm:$0xff]
    %v2777 = vld [vmem:[#allocation5 + $0xd4c] sm:$0xf]
    %v2778 = vld [vmem:[#allocation5 + $0xd8c] sm:$0xff]
    %v2779 = vld [vmem:[#allocation5 + $0xd94] sm:$0xf]
    %v2780 = vld [vmem:[#allocation5 + $0xdd4] sm:$0xff]
    %v2781 = vld [vmem:[#allocation5 + $0xddc] sm:$0xf]
    %v2782 = vld [vmem:[#allocation5 + $0xe1c] sm:$0xff]
    %v2783 = vld [vmem:[#allocation5 + $0xe24] sm:$0xf]
    %v2784 = vld [vmem:[#allocation5 + $0xe64] sm:$0xff]
    %v2785 = vld [vmem:[#allocation5 + $0xe6c] sm:$0xf]
    %v2786 = vld [vmem:[#allocation5 + $0xeac] sm:$0xff]
    %v2787 = vld [vmem:[#allocation5 + $0xeb4] sm:$0xf]
    %v2788 = vld [vmem:[#allocation5 + $0xef4] sm:$0xff]
    %v2789 = vld [vmem:[#allocation5 + $0xefc] sm:$0xf]
    %v2790 = vld [vmem:[#allocation5 + $0xf3c] sm:$0xff]
    %v2791 = vld [vmem:[#allocation5 + $0xf44] sm:$0xf]
    %v2792 = vld [vmem:[#allocation5 + $0xf84] sm:$0xff]
    %v2793 = vld [vmem:[#allocation5 + $0xf8c] sm:$0xf]
    %v2794 = vld [vmem:[#allocation5 + $0xfcc] sm:$0xff]
    %v2795 = vld [vmem:[#allocation5 + $0xfd4] sm:$0xf]
    %v2796 = vld [vmem:[#allocation5 + $0x1014] sm:$0xff]
    %v2797 = vld [vmem:[#allocation5 + $0x101c] sm:$0xf]
    %v2798 = vld [vmem:[#allocation5 + $0x105c] sm:$0xff]
    %v2799 = vld [vmem:[#allocation5 + $0x1064] sm:$0xf]
    %v2800 = vld [vmem:[#allocation5 + $0x10a4] sm:$0xff]
    %v2801 = vld [vmem:[#allocation5 + $0x10ac] sm:$0xf]
    %v2802 = vld [vmem:[#allocation5 + $0x10ec] sm:$0xff]
    %v2803 = vld [vmem:[#allocation5 + $0x10f4] sm:$0xf]
    %v2804 = vld [vmem:[#allocation5 + $0x1134] sm:$0xff]
    %v2805 = vld [vmem:[#allocation5 + $0x113c] sm:$0xf]
    %v2806 = vld [vmem:[#allocation5 + $0x117c] sm:$0xff]
    %v2807 = vld [vmem:[#allocation5 + $0x1184] sm:$0xf]
    %v2808 = vld [vmem:[#allocation5 + $0x11c4] sm:$0xff]
    %v2809 = vld [vmem:[#allocation5 + $0x11cc] sm:$0xf]
    %v2810 = vld [vmem:[#allocation5 + $0x120c] sm:$0xff]
    %v2811 = vld [vmem:[#allocation5 + $0x1214] sm:$0xf]
    %v2812 = vld [vmem:[#allocation5 + $0x1254] sm:$0xff]
    %v2813 = vld [vmem:[#allocation5 + $0x125c] sm:$0xf]
    %v2814 = vld [vmem:[#allocation5 + $0x129c] sm:$0xff]
    %v2815 = vld [vmem:[#allocation5 + $0x12a4] sm:$0xf]
    %v2816 = vld [vmem:[#allocation5 + $0x12e4] sm:$0xff]
    %v2817 = vld [vmem:[#allocation5 + $0x12ec] sm:$0xf]
    %v2818 = vld [vmem:[#allocation5 + $0x132c] sm:$0xff]
    %v2819 = vld [vmem:[#allocation5 + $0x1334] sm:$0xf]
    %v2820 = vld [vmem:[#allocation5 + $0x1374] sm:$0xff]
    %v2821 = vld [vmem:[#allocation5 + $0x137c] sm:$0xf]
    %v2822 = vld [vmem:[#allocation5 + $0x13bc] sm:$0xff]
    %v2823 = vld [vmem:[#allocation5 + $0x13c4] sm:$0xf]
    %v2824 = vld [vmem:[#allocation5 + $0x1404] sm:$0xff]
    %v2825 = vld [vmem:[#allocation5 + $0x140c] sm:$0xf]
    %v2826 = vld [vmem:[#allocation5 + $0x144c] sm:$0xff]
    %v2827 = vld [vmem:[#allocation5 + $0x1454] sm:$0xf]
    %v2828 = vld [vmem:[#allocation5 + $0x1494] sm:$0xff]
    %v2829 = vld [vmem:[#allocation5 + $0x149c] sm:$0xf]
    %v2830 = vld [vmem:[#allocation5 + $0x14dc] sm:$0xff]
    %v2831 = vld [vmem:[#allocation5 + $0x14e4] sm:$0xf]
    %v2832 = vld [vmem:[#allocation5 + $0x1524] sm:$0xff]
    %v2833 = vld [vmem:[#allocation5 + $0x152c] sm:$0xf]
    %v2834 = vld [vmem:[#allocation5 + $0x156c] sm:$0xff]
    %v2835 = vld [vmem:[#allocation5 + $0x1574] sm:$0xf]
    %v2836 = vld [vmem:[#allocation5 + $0x15b4] sm:$0xff]
    %v2837 = vld [vmem:[#allocation5 + $0x15bc] sm:$0xf]
    %v2838 = vld [vmem:[#allocation5 + $0x15fc] sm:$0xff]
    %v2839 = vld [vmem:[#allocation5 + $0x1604] sm:$0xf]
    %v2840 = vld [vmem:[#allocation5 + $0x1644] sm:$0xff]
    %v2841 = vld [vmem:[#allocation5 + $0x164c] sm:$0xf]
    %v2842 = vld [vmem:[#allocation5 + $0x168c] sm:$0xff]
    %v2843 = vld [vmem:[#allocation5 + $0x1694] sm:$0xf]
    %v2844 = vld [vmem:[#allocation5 + $0x16d4] sm:$0xff]
    %v2845 = vld [vmem:[#allocation5 + $0x16dc] sm:$0xf]
    %v2846 = vld [vmem:[#allocation5 + $0x171c] sm:$0xff]
    %v2847 = vld [vmem:[#allocation5 + $0x1724] sm:$0xf]
    %v2848 = vld [vmem:[#allocation5 + $0x1764] sm:$0xff]
    %v2849 = vld [vmem:[#allocation5 + $0x176c] sm:$0xf]
    %v2850 = vld [vmem:[#allocation5 + $0x17ac] sm:$0xff]
    %v2851 = vld [vmem:[#allocation5 + $0x17b4] sm:$0xf]
    %v2852 = vld [vmem:[#allocation5 + $0x17f4] sm:$0xff]
    %v2853 = vld [vmem:[#allocation5 + $0x17fc] sm:$0xf]
    %v2854 = vld [vmem:[#allocation5 + $0x183c] sm:$0xff]
    %v2855 = vld [vmem:[#allocation5 + $0x1844] sm:$0xf]
    %v2856 = vld [vmem:[#allocation5 + $0x1884] sm:$0xff]
    %v2857 = vld [vmem:[#allocation5 + $0x188c] sm:$0xf]
    %v2858 = vld [vmem:[#allocation5 + $0x18cc] sm:$0xff]
    %v2859 = vld [vmem:[#allocation5 + $0x18d4] sm:$0xf]
    %v2860 = vld [vmem:[#allocation5 + $0x1914] sm:$0xff]
    %v2861 = vld [vmem:[#allocation5 + $0x191c] sm:$0xf]
    %v2862 = vld [vmem:[#allocation5 + $0x195c] sm:$0xff]
    %v2863 = vld [vmem:[#allocation5 + $0x1964] sm:$0xf]
    %v2864 = vld [vmem:[#allocation5 + $0x19a4] sm:$0xff]
    %v2865 = vld [vmem:[#allocation5 + $0x19ac] sm:$0xf]
    %v2866 = vld [vmem:[#allocation5 + $0x19ec] sm:$0xff]
    %v2867 = vld [vmem:[#allocation5 + $0x19f4] sm:$0xf]
    %v2868 = vld [vmem:[#allocation5 + $0x1a34] sm:$0xff]
    %v2869 = vld [vmem:[#allocation5 + $0x1a3c] sm:$0xf]
    %v2870 = vld [vmem:[#allocation5 + $0x1a7c] sm:$0xff]
    %v2871 = vld [vmem:[#allocation5 + $0x1a84] sm:$0xf]
    %v2872 = vld [vmem:[#allocation5 + $0x1ac4] sm:$0xff]
    %v2873 = vld [vmem:[#allocation5 + $0x1acc] sm:$0xf]
    %v3066 = vunpack.c.l.b16 %v2682
    %v3067 = vunpack.c.h.b16 %v2682
    %v3068 = vunpack.c.l.b16 %v2683
    %v3069 = vunpack.c.l.b16 %v2684
    %v3070 = vunpack.c.h.b16 %v2684
    %v3071 = vunpack.c.l.b16 %v2685
    %v3072 = vunpack.c.l.b16 %v2686
    %v3073 = vunpack.c.h.b16 %v2686
    %v3074 = vunpack.c.l.b16 %v2687
    %v3075 = vunpack.c.l.b16 %v2688
    %v3076 = vunpack.c.h.b16 %v2688
    %v3077 = vunpack.c.l.b16 %v2689
    %v3078 = vunpack.c.l.b16 %v2690
    %v3079 = vunpack.c.h.b16 %v2690
    %v3080 = vunpack.c.l.b16 %v2691
    %v3081 = vunpack.c.l.b16 %v2692
    %v3082 = vunpack.c.h.b16 %v2692
    %v3083 = vunpack.c.l.b16 %v2693
    %v3084 = vunpack.c.l.b16 %v2694
    %v3085 = vunpack.c.h.b16 %v2694
    %v3086 = vunpack.c.l.b16 %v2695
    %v3087 = vunpack.c.l.b16 %v2696
    %v3088 = vunpack.c.h.b16 %v2696
    %v3089 = vunpack.c.l.b16 %v2697
    %v3090 = vunpack.c.l.b16 %v2698
    %v3091 = vunpack.c.h.b16 %v2698
    %v3092 = vunpack.c.l.b16 %v2699
    %v3093 = vunpack.c.l.b16 %v2700
    %v3094 = vunpack.c.h.b16 %v2700
    %v3095 = vunpack.c.l.b16 %v2701
    %v3096 = vunpack.c.l.b16 %v2702
    %v3097 = vunpack.c.h.b16 %v2702
    %v3098 = vunpack.c.l.b16 %v2703
    %v3099 = vunpack.c.l.b16 %v2704
    %v3100 = vunpack.c.h.b16 %v2704
    %v3101 = vunpack.c.l.b16 %v2705
    %v3102 = vunpack.c.l.b16 %v2706
    %v3103 = vunpack.c.h.b16 %v2706
    %v3104 = vunpack.c.l.b16 %v2707
    %v3105 = vunpack.c.l.b16 %v2708
    %v3106 = vunpack.c.h.b16 %v2708
    %v3107 = vunpack.c.l.b16 %v2709
    %v3108 = vunpack.c.l.b16 %v2710
    %v3109 = vunpack.c.h.b16 %v2710
    %v3110 = vunpack.c.l.b16 %v2711
    %v3111 = vunpack.c.l.b16 %v2712
    %v3112 = vunpack.c.h.b16 %v2712
    %v3113 = vunpack.c.l.b16 %v2713
    %v3114 = vunpack.c.l.b16 %v2714
    %v3115 = vunpack.c.h.b16 %v2714
    %v3116 = vunpack.c.l.b16 %v2715
    %v3117 = vunpack.c.l.b16 %v2716
    %v3118 = vunpack.c.h.b16 %v2716
    %v3119 = vunpack.c.l.b16 %v2717
    %v3120 = vunpack.c.l.b16 %v2718
    %v3121 = vunpack.c.h.b16 %v2718
    %v3122 = vunpack.c.l.b16 %v2719
    %v3123 = vunpack.c.l.b16 %v2720
    %v3124 = vunpack.c.h.b16 %v2720
    %v3125 = vunpack.c.l.b16 %v2721
    %v3126 = vunpack.c.l.b16 %v2722
    %v3127 = vunpack.c.h.b16 %v2722
    %v3128 = vunpack.c.l.b16 %v2723
    %v3129 = vunpack.c.l.b16 %v2724
    %v3130 = vunpack.c.h.b16 %v2724
    %v3131 = vunpack.c.l.b16 %v2725
    %v3132 = vunpack.c.l.b16 %v2726
    %v3133 = vunpack.c.h.b16 %v2726
    %v3134 = vunpack.c.l.b16 %v2727
    %v3135 = vunpack.c.l.b16 %v2728
    %v3136 = vunpack.c.h.b16 %v2728
    %v3137 = vunpack.c.l.b16 %v2729
    %v3138 = vunpack.c.l.b16 %v2730
    %v3139 = vunpack.c.h.b16 %v2730
    %v3140 = vunpack.c.l.b16 %v2731
    %v3141 = vunpack.c.l.b16 %v2732
    %v3142 = vunpack.c.h.b16 %v2732
    %v3143 = vunpack.c.l.b16 %v2733
    %v3144 = vunpack.c.l.b16 %v2734
    %v3145 = vunpack.c.h.b16 %v2734
    %v3146 = vunpack.c.l.b16 %v2735
    %v3147 = vunpack.c.l.b16 %v2736
    %v3148 = vunpack.c.h.b16 %v2736
    %v3149 = vunpack.c.l.b16 %v2737
    %v3150 = vunpack.c.l.b16 %v2738
    %v3151 = vunpack.c.h.b16 %v2738
    %v3152 = vunpack.c.l.b16 %v2739
    %v3153 = vunpack.c.l.b16 %v2740
    %v3154 = vunpack.c.h.b16 %v2740
    %v3155 = vunpack.c.l.b16 %v2741
    %v3156 = vunpack.c.l.b16 %v2742
    %v3157 = vunpack.c.h.b16 %v2742
    %v3158 = vunpack.c.l.b16 %v2743
    %v3159 = vunpack.c.l.b16 %v2744
    %v3160 = vunpack.c.h.b16 %v2744
    %v3161 = vunpack.c.l.b16 %v2745
    %v3162 = vunpack.c.l.b16 %v2746
    %v3163 = vunpack.c.h.b16 %v2746
    %v3164 = vunpack.c.l.b16 %v2747
    %v3165 = vunpack.c.l.b16 %v2748
    %v3166 = vunpack.c.h.b16 %v2748
    %v3167 = vunpack.c.l.b16 %v2749
    %v3168 = vunpack.c.l.b16 %v2750
    %v3169 = vunpack.c.h.b16 %v2750
    %v3170 = vunpack.c.l.b16 %v2751
    %v3171 = vunpack.c.l.b16 %v2752
    %v3172 = vunpack.c.h.b16 %v2752
    %v3173 = vunpack.c.l.b16 %v2753
    %v3174 = vunpack.c.l.b16 %v2754
    %v3175 = vunpack.c.h.b16 %v2754
    %v3176 = vunpack.c.l.b16 %v2755
    %v3177 = vunpack.c.l.b16 %v2756
    %v3178 = vunpack.c.h.b16 %v2756
    %v3179 = vunpack.c.l.b16 %v2757
    %v3180 = vunpack.c.l.b16 %v2758
    %v3181 = vunpack.c.h.b16 %v2758
    %v3182 = vunpack.c.l.b16 %v2759
    %v3183 = vunpack.c.l.b16 %v2760
    %v3184 = vunpack.c.h.b16 %v2760
    %v3185 = vunpack.c.l.b16 %v2761
    %v3186 = vunpack.c.l.b16 %v2762
    %v3187 = vunpack.c.h.b16 %v2762
    %v3188 = vunpack.c.l.b16 %v2763
    %v3189 = vunpack.c.l.b16 %v2764
    %v3190 = vunpack.c.h.b16 %v2764
    %v3191 = vunpack.c.l.b16 %v2765
    %v3192 = vunpack.c.l.b16 %v2766
    %v3193 = vunpack.c.h.b16 %v2766
    %v3194 = vunpack.c.l.b16 %v2767
    %v3195 = vunpack.c.l.b16 %v2768
    %v3196 = vunpack.c.h.b16 %v2768
    %v3197 = vunpack.c.l.b16 %v2769
    %v3198 = vunpack.c.l.b16 %v2770
    %v3199 = vunpack.c.h.b16 %v2770
    %v3200 = vunpack.c.l.b16 %v2771
    %v3201 = vunpack.c.l.b16 %v2772
    %v3202 = vunpack.c.h.b16 %v2772
    %v3203 = vunpack.c.l.b16 %v2773
    %v3204 = vunpack.c.l.b16 %v2774
    %v3205 = vunpack.c.h.b16 %v2774
    %v3206 = vunpack.c.l.b16 %v2775
    %v3207 = vunpack.c.l.b16 %v2776
    %v3208 = vunpack.c.h.b16 %v2776
    %v3209 = vunpack.c.l.b16 %v2777
    %v3210 = vunpack.c.l.b16 %v2778
    %v3211 = vunpack.c.h.b16 %v2778
    %v3212 = vunpack.c.l.b16 %v2779
    %v3213 = vunpack.c.l.b16 %v2780
    %v3214 = vunpack.c.h.b16 %v2780
    %v3215 = vunpack.c.l.b16 %v2781
    %v3216 = vunpack.c.l.b16 %v2782
    %v3217 = vunpack.c.h.b16 %v2782
    %v3218 = vunpack.c.l.b16 %v2783
    %v3219 = vunpack.c.l.b16 %v2784
    %v3220 = vunpack.c.h.b16 %v2784
    %v3221 = vunpack.c.l.b16 %v2785
    %v3222 = vunpack.c.l.b16 %v2786
    %v3223 = vunpack.c.h.b16 %v2786
    %v3224 = vunpack.c.l.b16 %v2787
    %v3225 = vunpack.c.l.b16 %v2788
    %v3226 = vunpack.c.h.b16 %v2788
    %v3227 = vunpack.c.l.b16 %v2789
    %v3228 = vunpack.c.l.b16 %v2790
    %v3229 = vunpack.c.h.b16 %v2790
    %v3230 = vunpack.c.l.b16 %v2791
    %v3231 = vunpack.c.l.b16 %v2792
    %v3232 = vunpack.c.h.b16 %v2792
    %v3233 = vunpack.c.l.b16 %v2793
    %v3234 = vunpack.c.l.b16 %v2794
    %v3235 = vunpack.c.h.b16 %v2794
    %v3236 = vunpack.c.l.b16 %v2795
    %v3237 = vunpack.c.l.b16 %v2796
    %v3238 = vunpack.c.h.b16 %v2796
    %v3239 = vunpack.c.l.b16 %v2797
    %v3240 = vunpack.c.l.b16 %v2798
    %v3241 = vunpack.c.h.b16 %v2798
    %v3242 = vunpack.c.l.b16 %v2799
    %v3243 = vunpack.c.l.b16 %v2800
    %v3244 = vunpack.c.h.b16 %v2800
    %v3245 = vunpack.c.l.b16 %v2801
    %v3246 = vunpack.c.l.b16 %v2802
    %v3247 = vunpack.c.h.b16 %v2802
    %v3248 = vunpack.c.l.b16 %v2803
    %v3249 = vunpack.c.l.b16 %v2804
    %v3250 = vunpack.c.h.b16 %v2804
    %v3251 = vunpack.c.l.b16 %v2805
    %v3252 = vunpack.c.l.b16 %v2806
    %v3253 = vunpack.c.h.b16 %v2806
    %v3254 = vunpack.c.l.b16 %v2807
    %v3255 = vunpack.c.l.b16 %v2808
    %v3256 = vunpack.c.h.b16 %v2808
    %v3257 = vunpack.c.l.b16 %v2809
    %v3258 = vunpack.c.l.b16 %v2810
    %v3259 = vunpack.c.h.b16 %v2810
    %v3260 = vunpack.c.l.b16 %v2811
    %v3261 = vunpack.c.l.b16 %v2812
    %v3262 = vunpack.c.h.b16 %v2812
    %v3263 = vunpack.c.l.b16 %v2813
    %v3264 = vunpack.c.l.b16 %v2814
    %v3265 = vunpack.c.h.b16 %v2814
    %v3266 = vunpack.c.l.b16 %v2815
    %v3267 = vunpack.c.l.b16 %v2816
    %v3268 = vunpack.c.h.b16 %v2816
    %v3269 = vunpack.c.l.b16 %v2817
    %v3270 = vunpack.c.l.b16 %v2818
    %v3271 = vunpack.c.h.b16 %v2818
    %v3272 = vunpack.c.l.b16 %v2819
    %v3273 = vunpack.c.l.b16 %v2820
    %v3274 = vunpack.c.h.b16 %v2820
    %v3275 = vunpack.c.l.b16 %v2821
    %v3276 = vunpack.c.l.b16 %v2822
    %v3277 = vunpack.c.h.b16 %v2822
    %v3278 = vunpack.c.l.b16 %v2823
    %v3279 = vunpack.c.l.b16 %v2824
    %v3280 = vunpack.c.h.b16 %v2824
    %v3281 = vunpack.c.l.b16 %v2825
    %v3282 = vunpack.c.l.b16 %v2826
    %v3283 = vunpack.c.h.b16 %v2826
    %v3284 = vunpack.c.l.b16 %v2827
    %v3285 = vunpack.c.l.b16 %v2828
    %v3286 = vunpack.c.h.b16 %v2828
    %v3287 = vunpack.c.l.b16 %v2829
    %v3288 = vunpack.c.l.b16 %v2830
    %v3289 = vunpack.c.h.b16 %v2830
    %v3290 = vunpack.c.l.b16 %v2831
    %v3291 = vunpack.c.l.b16 %v2832
    %v3292 = vunpack.c.h.b16 %v2832
    %v3293 = vunpack.c.l.b16 %v2833
    %v3294 = vunpack.c.l.b16 %v2834
    %v3295 = vunpack.c.h.b16 %v2834
    %v3296 = vunpack.c.l.b16 %v2835
    %v3297 = vunpack.c.l.b16 %v2836
    %v3298 = vunpack.c.h.b16 %v2836
    %v3299 = vunpack.c.l.b16 %v2837
    %v3300 = vunpack.c.l.b16 %v2838
    %v3301 = vunpack.c.h.b16 %v2838
    %v3302 = vunpack.c.l.b16 %v2839
    %v3303 = vunpack.c.l.b16 %v2840
    %v3304 = vunpack.c.h.b16 %v2840
    %v3305 = vunpack.c.l.b16 %v2841
    %v3306 = vunpack.c.l.b16 %v2842
    %v3307 = vunpack.c.h.b16 %v2842
    %v3308 = vunpack.c.l.b16 %v2843
    %v3309 = vunpack.c.l.b16 %v2844
    %v3310 = vunpack.c.h.b16 %v2844
    %v3311 = vunpack.c.l.b16 %v2845
    %v3312 = vunpack.c.l.b16 %v2846
    %v3313 = vunpack.c.h.b16 %v2846
    %v3314 = vunpack.c.l.b16 %v2847
    %v3315 = vunpack.c.l.b16 %v2848
    %v3316 = vunpack.c.h.b16 %v2848
    %v3317 = vunpack.c.l.b16 %v2849
    %v3318 = vunpack.c.l.b16 %v2850
    %v3319 = vunpack.c.h.b16 %v2850
    %v3320 = vunpack.c.l.b16 %v2851
    %v3321 = vunpack.c.l.b16 %v2852
    %v3322 = vunpack.c.h.b16 %v2852
    %v3323 = vunpack.c.l.b16 %v2853
    %v3324 = vunpack.c.l.b16 %v2854
    %v3325 = vunpack.c.h.b16 %v2854
    %v3326 = vunpack.c.l.b16 %v2855
    %v3327 = vunpack.c.l.b16 %v2856
    %v3328 = vunpack.c.h.b16 %v2856
    %v3329 = vunpack.c.l.b16 %v2857
    %v3330 = vunpack.c.l.b16 %v2858
    %v3331 = vunpack.c.h.b16 %v2858
    %v3332 = vunpack.c.l.b16 %v2859
    %v3333 = vunpack.c.l.b16 %v2860
    %v3334 = vunpack.c.h.b16 %v2860
    %v3335 = vunpack.c.l.b16 %v2861
    %v3336 = vunpack.c.l.b16 %v2862
    %v3337 = vunpack.c.h.b16 %v2862
    %v3338 = vunpack.c.l.b16 %v2863
    %v3339 = vunpack.c.l.b16 %v2864
    %v3340 = vunpack.c.h.b16 %v2864
    %v3341 = vunpack.c.l.b16 %v2865
    %v3342 = vunpack.c.l.b16 %v2866
    %v3343 = vunpack.c.h.b16 %v2866
    %v3344 = vunpack.c.l.b16 %v2867
    %v3345 = vunpack.c.l.b16 %v2868
    %v3346 = vunpack.c.h.b16 %v2868
    %v3347 = vunpack.c.l.b16 %v2869
    %v3348 = vunpack.c.l.b16 %v2870
    %v3349 = vunpack.c.h.b16 %v2870
    %v3350 = vunpack.c.l.b16 %v2871
    %v3351 = vunpack.c.l.b16 %v2872
    %v3352 = vunpack.c.h.b16 %v2872
    %v3353 = vunpack.c.l.b16 %v2873
    %v3354 = vpack.c.b16 %v3069, %v3066
    %v3355 = vpack.c.b16 %v3070, %v3067
    %v3356 = vpack.c.b16 %v3071, %v3068
    %v3357 = vpack.c.b16 %v3075, %v3072
    %v3358 = vpack.c.b16 %v3076, %v3073
    %v3359 = vpack.c.b16 %v3077, %v3074
    %v3360 = vpack.c.b16 %v3081, %v3078
    %v3361 = vpack.c.b16 %v3082, %v3079
    %v3362 = vpack.c.b16 %v3083, %v3080
    %v3363 = vpack.c.b16 %v3087, %v3084
    %v3364 = vpack.c.b16 %v3088, %v3085
    %v3365 = vpack.c.b16 %v3089, %v3086
    %v3366 = vpack.c.b16 %v3093, %v3090
    %v3367 = vpack.c.b16 %v3094, %v3091
    %v3368 = vpack.c.b16 %v3095, %v3092
    %v3369 = vpack.c.b16 %v3099, %v3096
    %v3370 = vpack.c.b16 %v3100, %v3097
    %v3371 = vpack.c.b16 %v3101, %v3098
    %v3372 = vpack.c.b16 %v3105, %v3102
    %v3373 = vpack.c.b16 %v3106, %v3103
    %v3374 = vpack.c.b16 %v3107, %v3104
    %v3375 = vpack.c.b16 %v3111, %v3108
    %v3376 = vpack.c.b16 %v3112, %v3109
    %v3377 = vpack.c.b16 %v3113, %v3110
    %v3378 = vpack.c.b16 %v3117, %v3114
    %v3379 = vpack.c.b16 %v3118, %v3115
    %v3380 = vpack.c.b16 %v3119, %v3116
    %v3381 = vpack.c.b16 %v3123, %v3120
    %v3382 = vpack.c.b16 %v3124, %v3121
    %v3383 = vpack.c.b16 %v3125, %v3122
    %v3384 = vpack.c.b16 %v3129, %v3126
    %v3385 = vpack.c.b16 %v3130, %v3127
    %v3386 = vpack.c.b16 %v3131, %v3128
    %v3387 = vpack.c.b16 %v3135, %v3132
    %v3388 = vpack.c.b16 %v3136, %v3133
    %v3389 = vpack.c.b16 %v3137, %v3134
    %v3390 = vpack.c.b16 %v3141, %v3138
    %v3391 = vpack.c.b16 %v3142, %v3139
    %v3392 = vpack.c.b16 %v3143, %v3140
    %v3393 = vpack.c.b16 %v3147, %v3144
    %v3394 = vpack.c.b16 %v3148, %v3145
    %v3395 = vpack.c.b16 %v3149, %v3146
    %v3396 = vpack.c.b16 %v3153, %v3150
    %v3397 = vpack.c.b16 %v3154, %v3151
    %v3398 = vpack.c.b16 %v3155, %v3152
    %v3399 = vpack.c.b16 %v3159, %v3156
    %v3400 = vpack.c.b16 %v3160, %v3157
    %v3401 = vpack.c.b16 %v3161, %v3158
    %v3402 = vpack.c.b16 %v3165, %v3162
    %v3403 = vpack.c.b16 %v3166, %v3163
    %v3404 = vpack.c.b16 %v3167, %v3164
    %v3405 = vpack.c.b16 %v3171, %v3168
    %v3406 = vpack.c.b16 %v3172, %v3169
    %v3407 = vpack.c.b16 %v3173, %v3170
    %v3408 = vpack.c.b16 %v3177, %v3174
    %v3409 = vpack.c.b16 %v3178, %v3175
    %v3410 = vpack.c.b16 %v3179, %v3176
    %v3411 = vpack.c.b16 %v3183, %v3180
    %v3412 = vpack.c.b16 %v3184, %v3181
    %v3413 = vpack.c.b16 %v3185, %v3182
    %v3414 = vpack.c.b16 %v3189, %v3186
    %v3415 = vpack.c.b16 %v3190, %v3187
    %v3416 = vpack.c.b16 %v3191, %v3188
    %v3417 = vpack.c.b16 %v3195, %v3192
    %v3418 = vpack.c.b16 %v3196, %v3193
    %v3419 = vpack.c.b16 %v3197, %v3194
    %v3420 = vpack.c.b16 %v3201, %v3198
    %v3421 = vpack.c.b16 %v3202, %v3199
    %v3422 = vpack.c.b16 %v3203, %v3200
    %v3423 = vpack.c.b16 %v3207, %v3204
    %v3424 = vpack.c.b16 %v3208, %v3205
    %v3425 = vpack.c.b16 %v3209, %v3206
    %v3426 = vpack.c.b16 %v3213, %v3210
    %v3427 = vpack.c.b16 %v3214, %v3211
    %v3428 = vpack.c.b16 %v3215, %v3212
    %v3429 = vpack.c.b16 %v3219, %v3216
    %v3430 = vpack.c.b16 %v3220, %v3217
    %v3431 = vpack.c.b16 %v3221, %v3218
    %v3432 = vpack.c.b16 %v3225, %v3222
    %v3433 = vpack.c.b16 %v3226, %v3223
    %v3434 = vpack.c.b16 %v3227, %v3224
    %v3435 = vpack.c.b16 %v3231, %v3228
    %v3436 = vpack.c.b16 %v3232, %v3229
    %v3437 = vpack.c.b16 %v3233, %v3230
    %v3438 = vpack.c.b16 %v3237, %v3234
    %v3439 = vpack.c.b16 %v3238, %v3235
    %v3440 = vpack.c.b16 %v3239, %v3236
    %v3441 = vpack.c.b16 %v3243, %v3240
    %v3442 = vpack.c.b16 %v3244, %v3241
    %v3443 = vpack.c.b16 %v3245, %v3242
    %v3444 = vpack.c.b16 %v3249, %v3246
    %v3445 = vpack.c.b16 %v3250, %v3247
    %v3446 = vpack.c.b16 %v3251, %v3248
    %v3447 = vpack.c.b16 %v3255, %v3252
    %v3448 = vpack.c.b16 %v3256, %v3253
    %v3449 = vpack.c.b16 %v3257, %v3254
    %v3450 = vpack.c.b16 %v3261, %v3258
    %v3451 = vpack.c.b16 %v3262, %v3259
    %v3452 = vpack.c.b16 %v3263, %v3260
    %v3453 = vpack.c.b16 %v3267, %v3264
    %v3454 = vpack.c.b16 %v3268, %v3265
    %v3455 = vpack.c.b16 %v3269, %v3266
    %v3456 = vpack.c.b16 %v3273, %v3270
    %v3457 = vpack.c.b16 %v3274, %v3271
    %v3458 = vpack.c.b16 %v3275, %v3272
    %v3459 = vpack.c.b16 %v3279, %v3276
    %v3460 = vpack.c.b16 %v3280, %v3277
    %v3461 = vpack.c.b16 %v3281, %v3278
    %v3462 = vpack.c.b16 %v3285, %v3282
    %v3463 = vpack.c.b16 %v3286, %v3283
    %v3464 = vpack.c.b16 %v3287, %v3284
    %v3465 = vpack.c.b16 %v3291, %v3288
    %v3466 = vpack.c.b16 %v3292, %v3289
    %v3467 = vpack.c.b16 %v3293, %v3290
    %v3468 = vpack.c.b16 %v3297, %v3294
    %v3469 = vpack.c.b16 %v3298, %v3295
    %v3470 = vpack.c.b16 %v3299, %v3296
    %v3471 = vpack.c.b16 %v3303, %v3300
    %v3472 = vpack.c.b16 %v3304, %v3301
    %v3473 = vpack.c.b16 %v3305, %v3302
    %v3474 = vpack.c.b16 %v3309, %v3306
    %v3475 = vpack.c.b16 %v3310, %v3307
    %v3476 = vpack.c.b16 %v3311, %v3308
    %v3477 = vpack.c.b16 %v3315, %v3312
    %v3478 = vpack.c.b16 %v3316, %v3313
    %v3479 = vpack.c.b16 %v3317, %v3314
    %v3480 = vpack.c.b16 %v3321, %v3318
    %v3481 = vpack.c.b16 %v3322, %v3319
    %v3482 = vpack.c.b16 %v3323, %v3320
    %v3483 = vpack.c.b16 %v3327, %v3324
    %v3484 = vpack.c.b16 %v3328, %v3325
    %v3485 = vpack.c.b16 %v3329, %v3326
    %v3486 = vpack.c.b16 %v3333, %v3330
    %v3487 = vpack.c.b16 %v3334, %v3331
    %v3488 = vpack.c.b16 %v3335, %v3332
    %v3489 = vpack.c.b16 %v3339, %v3336
    %v3490 = vpack.c.b16 %v3340, %v3337
    %v3491 = vpack.c.b16 %v3341, %v3338
    %v3492 = vpack.c.b16 %v3345, %v3342
    %v3493 = vpack.c.b16 %v3346, %v3343
    %v3494 = vpack.c.b16 %v3347, %v3344
    %v3495 = vpack.c.b16 %v3351, %v3348
    %v3496 = vpack.c.b16 %v3352, %v3349
    %v3497 = vpack.c.b16 %v3353, %v3350
    %3642 = vmatprep.subr.bf16.mxu0 %v3355
    %3643 = vmatpush1.bf16.msra.mxu0 %v3354
    %3644 = vmatprep.subr.bf16.mxu0 %v3358
    %3645 = vmatpush1.bf16.msra.mxu0 %v3357
    %3646 = vmatprep.subr.bf16.mxu0 %v3361
    %3647 = vmatpush1.bf16.msra.mxu0 %v3360
    %3648 = vmatprep.subr.bf16.mxu0 %v3364
    %3649 = vmatpush1.bf16.msra.mxu0 %v3363
    %3650 = vmatprep.subr.bf16.mxu0 %v3367
    %3651 = vmatpush1.bf16.msra.mxu0 %v3366
    %3652 = vmatprep.subr.bf16.mxu0 %v3370
    %3653 = vmatpush1.bf16.msra.mxu0 %v3369
    %3654 = vmatprep.subr.bf16.mxu0 %v3373
    %3655 = vmatpush1.bf16.msra.mxu0 %v3372
    %3656 = vmatprep.subr.bf16.mxu0 %v3376
    %3657 = vmatpush1.bf16.msra.mxu0 %v3375
    %3658 = vmatprep.subr.bf16.mxu0 %v3379
    %3659 = vmatpush1.bf16.msra.mxu0 %v3378
    %3660 = vmatprep.subr.bf16.mxu0 %v3382
    %3661 = vmatpush1.bf16.msra.mxu0 %v3381
    %3662 = vmatprep.subr.bf16.mxu0 %v3385
    %3663 = vmatpush1.bf16.msra.mxu0 %v3384
    %3664 = vmatprep.subr.bf16.mxu0 %v3388
    %3665 = vmatpush1.bf16.msra.mxu0 %v3387
    %3666 = vmatprep.subr.bf16.mxu0 %v3391
    %3667 = vmatpush1.bf16.msra.mxu0 %v3390
    %3668 = vmatprep.subr.bf16.mxu0 %v3394
    %3669 = vmatpush1.bf16.msra.mxu0 %v3393
    %3670 = vmatprep.subr.bf16.mxu0 %v3397
    %3671 = vmatpush1.bf16.msra.mxu0 %v3396
    %3672 = vmatprep.subr.bf16.mxu0 %v3400
    %3673 = vmatpush1.bf16.msra.mxu0 %v3399
    %3674 = vmatprep.mubr.bf16.mxu0 %v70
    %3675 = vmatmul.mubr.bf16.gmra.mrb[0].mxu0 %v69
    %v3676 = vpop.f32.mrb[0].mxu0
    %v3677 = vadd.f32 0.0, %v3676
    %v3678 = vpop.f32.mrb[0].mxu0
    %v3679 = vadd.f32 0.0, %v3678
    %v3680 = vpop.f32.mrb[0].mxu0
    %v3681 = vadd.f32 0.0, %v3680
    %v3682 = vpop.f32.mrb[0].mxu0
    %v3683 = vadd.f32 0.0, %v3682
    %3684 = vdwg.mxu0
    %3685 = vmatprep.subr.bf16.mxu0 %v3403
    %3686 = vmatpush1.bf16.msra.mxu0 %v3402
    %3687 = vmatprep.subr.bf16.mxu0 %v3406
    %3688 = vmatpush1.bf16.msra.mxu0 %v3405
    %3689 = vmatprep.subr.bf16.mxu0 %v3409
    %3690 = vmatpush1.bf16.msra.mxu0 %v3408
    %3691 = vmatprep.subr.bf16.mxu0 %v3412
    %3692 = vmatpush1.bf16.msra.mxu0 %v3411
    %3693 = vmatprep.subr.bf16.mxu0 %v3415
    %3694 = vmatpush1.bf16.msra.mxu0 %v3414
    %3695 = vmatprep.subr.bf16.mxu0 %v3418
    %3696 = vmatpush1.bf16.msra.mxu0 %v3417
    %3697 = vmatprep.subr.bf16.mxu0 %v3421
    %3698 = vmatpush1.bf16.msra.mxu0 %v3420
    %3699 = vmatprep.subr.bf16.mxu0 %v3424
    %3700 = vmatpush1.bf16.msra.mxu0 %v3423
    %3701 = vmatprep.subr.bf16.mxu0 %v3427
    %3702 = vmatpush1.bf16.msra.mxu0 %v3426
    %3703 = vmatprep.subr.bf16.mxu0 %v3430
    %3704 = vmatpush1.bf16.msra.mxu0 %v3429
    %3705 = vmatprep.subr.bf16.mxu0 %v3433
    %3706 = vmatpush1.bf16.msra.mxu0 %v3432
    %3707 = vmatprep.subr.bf16.mxu0 %v3436
    %3708 = vmatpush1.bf16.msra.mxu0 %v3435
    %3709 = vmatprep.subr.bf16.mxu0 %v3439
    %3710 = vmatpush1.bf16.msra.mxu0 %v3438
    %3711 = vmatprep.subr.bf16.mxu0 %v3442
    %3712 = vmatpush1.bf16.msra.mxu0 %v3441
    %3713 = vmatprep.subr.bf16.mxu0 %v3445
    %3714 = vmatpush1.bf16.msra.mxu0 %v3444
    %3715 = vmatprep.subr.bf16.mxu0 %v3448
    %3716 = vmatpush1.bf16.msra.mxu0 %v3447
    %3717 = vmatprep.mubr.bf16.mxu0 %v72
    %3718 = vmatmul.mubr.bf16.gmra.mrb[0].mxu0 %v71
    %v3719 = vpop.f32.mrb[0].mxu0
    %v3720 = vadd.f32 %v3677, %v3719
    %v3721 = vpop.f32.mrb[0].mxu0
    %v3722 = vadd.f32 %v3679, %v3721
    %v3723 = vpop.f32.mrb[0].mxu0
    %v3724 = vadd.f32 %v3681, %v3723
    %v3725 = vpop.f32.mrb[0].mxu0
    %v3726 = vadd.f32 %v3683, %v3725
    %3727 = vdwg.mxu0
    %3728 = vmatprep.subr.bf16.mxu0 %v3451
    %3729 = vmatpush1.bf16.msra.mxu0 %v3450
    %3730 = vmatprep.subr.bf16.mxu0 %v3454
    %3731 = vmatpush1.bf16.msra.mxu0 %v3453
    %3732 = vmatprep.subr.bf16.mxu0 %v3457
    %3733 = vmatpush1.bf16.msra.mxu0 %v3456
    %3734 = vmatprep.subr.bf16.mxu0 %v3460
    %3735 = vmatpush1.bf16.msra.mxu0 %v3459
    %3736 = vmatprep.subr.bf16.mxu0 %v3463
    %3737 = vmatpush1.bf16.msra.mxu0 %v3462
    %3738 = vmatprep.subr.bf16.mxu0 %v3466
    %3739 = vmatpush1.bf16.msra.mxu0 %v3465
    %3740 = vmatprep.subr.bf16.mxu0 %v3469
    %3741 = vmatpush1.bf16.msra.mxu0 %v3468
    %3742 = vmatprep.subr.bf16.mxu0 %v3472
    %3743 = vmatpush1.bf16.msra.mxu0 %v3471
    %3744 = vmatprep.subr.bf16.mxu0 %v3475
    %3745 = vmatpush1.bf16.msra.mxu0 %v3474
    %3746 = vmatprep.subr.bf16.mxu0 %v3478
    %3747 = vmatpush1.bf16.msra.mxu0 %v3477
    %3748 = vmatprep.subr.bf16.mxu0 %v3481
    %3749 = vmatpush1.bf16.msra.mxu0 %v3480
    %3750 = vmatprep.subr.bf16.mxu0 %v3484
    %3751 = vmatpush1.bf16.msra.mxu0 %v3483
    %3752 = vmatprep.subr.bf16.mxu0 %v3487
    %3753 = vmatpush1.bf16.msra.mxu0 %v3486
    %3754 = vmatprep.subr.bf16.mxu0 %v3490
    %3755 = vmatpush1.bf16.msra.mxu0 %v3489
    %3756 = vmatprep.subr.bf16.mxu0 %v3493
    %3757 = vmatpush1.bf16.msra.mxu0 %v3492
    %3758 = vmatprep.subr.bf16.mxu0 %v3496
    %3759 = vmatpush1.bf16.msra.mxu0 %v3495
    %3760 = vmatprep.mubr.bf16.mxu0 %v74
    %3761 = vmatmul.mubr.bf16.gmra.mrb[0].mxu0 %v73
    %v3762 = vpop.f32.mrb[0].mxu0
    %v3763 = vadd.f32 %v3720, %v3762
    %v3764 = vpop.f32.mrb[0].mxu0
    %v3765 = vadd.f32 %v3722, %v3764
    %v3766 = vpop.f32.mrb[0].mxu0
    %v3767 = vadd.f32 %v3724, %v3766
    %v3768 = vpop.f32.mrb[0].mxu0
    %v3769 = vadd.f32 %v3726, %v3768
    %3770 = vdwg.mxu0
    %3771 = vmatprep.subr.bf16.mxu0 0
    %3772 = vmatpush1.bf16.msra.mxu0 %v3356
    %3773 = vmatprep.subr.bf16.mxu0 0
    %3774 = vmatpush1.bf16.msra.mxu0 %v3359
    %3775 = vmatprep.subr.bf16.mxu0 0
    %3776 = vmatpush1.bf16.msra.mxu0 %v3362
    %3777 = vmatprep.subr.bf16.mxu0 0
    %3778 = vmatpush1.bf16.msra.mxu0 %v3365
    %3779 = vmatprep.subr.bf16.mxu0 0
    %3780 = vmatpush1.bf16.msra.mxu0 %v3368
    %3781 = vmatprep.subr.bf16.mxu0 0
    %3782 = vmatpush1.bf16.msra.mxu0 %v3371
    %3783 = vmatprep.subr.bf16.mxu0 0
    %3784 = vmatpush1.bf16.msra.mxu0 %v3374
    %3785 = vmatprep.subr.bf16.mxu0 0
    %3786 = vmatpush1.bf16.msra.mxu0 %v3377
    %3787 = vmatprep.subr.bf16.mxu0 0
    %3788 = vmatpush1.bf16.msra.mxu0 %v3380
    %3789 = vmatprep.subr.bf16.mxu0 0
    %3790 = vmatpush1.bf16.msra.mxu0 %v3383
    %3791 = vmatprep.subr.bf16.mxu0 0
    %3792 = vmatpush1.bf16.msra.mxu0 %v3386
    %3793 = vmatprep.subr.bf16.mxu0 0
    %3794 = vmatpush1.bf16.msra.mxu0 %v3389
    %3795 = vmatprep.subr.bf16.mxu0 0
    %3796 = vmatpush1.bf16.msra.mxu0 %v3392
    %3797 = vmatprep.subr.bf16.mxu0 0
    %3798 = vmatpush1.bf16.msra.mxu0 %v3395
    %3799 = vmatprep.subr.bf16.mxu0 0
    %3800 = vmatpush1.bf16.msra.mxu0 %v3398
    %3801 = vmatprep.subr.bf16.mxu0 0
    %3802 = vmatpush1.bf16.msra.mxu0 %v3401
    %3803 = vmatprep.mubr.bf16.mxu0 %v70
    %3804 = vmatmul.mubr.bf16.gmra.mrb[0].mxu0 %v69
    %v3805 = vpop.f32.mrb[0].mxu0
    %v3806 = vadd.f32 0.0, %v3805
    %v3807 = vpop.f32.mrb[0].mxu0
    %v3808 = vpop.f32.mrb[0].mxu0
    %v3809 = vadd.f32 0.0, %v3808
    %v3810 = vpop.f32.mrb[0].mxu0
    %3811 = vdwg.mxu0
    %3812 = vmatprep.subr.bf16.mxu0 0
    %3813 = vmatpush1.bf16.msra.mxu0 %v3404
    %3814 = vmatprep.subr.bf16.mxu0 0
    %3815 = vmatpush1.bf16.msra.mxu0 %v3407
    %3816 = vmatprep.subr.bf16.mxu0 0
    %3817 = vmatpush1.bf16.msra.mxu0 %v3410
    %3818 = vmatprep.subr.bf16.mxu0 0
    %3819 = vmatpush1.bf16.msra.mxu0 %v3413
    %3820 = vmatprep.subr.bf16.mxu0 0
    %3821 = vmatpush1.bf16.msra.mxu0 %v3416
    %3822 = vmatprep.subr.bf16.mxu0 0
    %3823 = vmatpush1.bf16.msra.mxu0 %v3419
    %3824 = vmatprep.subr.bf16.mxu0 0
    %3825 = vmatpush1.bf16.msra.mxu0 %v3422
    %3826 = vmatprep.subr.bf16.mxu0 0
    %3827 = vmatpush1.bf16.msra.mxu0 %v3425
    %3828 = vmatprep.subr.bf16.mxu0 0
    %3829 = vmatpush1.bf16.msra.mxu0 %v3428
    %3830 = vmatprep.subr.bf16.mxu0 0
    %3831 = vmatpush1.bf16.msra.mxu0 %v3431
    %3832 = vmatprep.subr.bf16.mxu0 0
    %3833 = vmatpush1.bf16.msra.mxu0 %v3434
    %3834 = vmatprep.subr.bf16.mxu0 0
    %3835 = vmatpush1.bf16.msra.mxu0 %v3437
    %3836 = vmatprep.subr.bf16.mxu0 0
    %3837 = vmatpush1.bf16.msra.mxu0 %v3440
    %3838 = vmatprep.subr.bf16.mxu0 0
    %3839 = vmatpush1.bf16.msra.mxu0 %v3443
    %3840 = vmatprep.subr.bf16.mxu0 0
    %3841 = vmatpush1.bf16.msra.mxu0 %v3446
    %3842 = vmatprep.subr.bf16.mxu0 0
    %3843 = vmatpush1.bf16.msra.mxu0 %v3449
    %3844 = vmatprep.mubr.bf16.mxu0 %v72
    %3845 = vmatmul.mubr.bf16.gmra.mrb[0].mxu0 %v71
    %v3846 = vpop.f32.mrb[0].mxu0
    %v3847 = vadd.f32 %v3806, %v3846
    %v3848 = vpop.f32.mrb[0].mxu0
    %v3849 = vpop.f32.mrb[0].mxu0
    %v3850 = vadd.f32 %v3809, %v3849
    %v3851 = vpop.f32.mrb[0].mxu0
    %3852 = vdwg.mxu0
    %3853 = vmatprep.subr.bf16.mxu0 0
    %3854 = vmatpush1.bf16.msra.mxu0 %v3452
    %3855 = vmatprep.subr.bf16.mxu0 0
    %3856 = vmatpush1.bf16.msra.mxu0 %v3455
    %3857 = vmatprep.subr.bf16.mxu0 0
    %3858 = vmatpush1.bf16.msra.mxu0 %v3458
    %3859 = vmatprep.subr.bf16.mxu0 0
    %3860 = vmatpush1.bf16.msra.mxu0 %v3461
    %3861 = vmatprep.subr.bf16.mxu0 0
    %3862 = vmatpush1.bf16.msra.mxu0 %v3464
    %3863 = vmatprep.subr.bf16.mxu0 0
    %3864 = vmatpush1.bf16.msra.mxu0 %v3467
    %3865 = vmatprep.subr.bf16.mxu0 0
    %3866 = vmatpush1.bf16.msra.mxu0 %v3470
    %3867 = vmatprep.subr.bf16.mxu0 0
    %3868 = vmatpush1.bf16.msra.mxu0 %v3473
    %3869 = vmatprep.subr.bf16.mxu0 0
    %3870 = vmatpush1.bf16.msra.mxu0 %v3476
    %3871 = vmatprep.subr.bf16.mxu0 0
    %3872 = vmatpush1.bf16.msra.mxu0 %v3479
    %3873 = vmatprep.subr.bf16.mxu0 0
    %3874 = vmatpush1.bf16.msra.mxu0 %v3482
    %3875 = vmatprep.subr.bf16.mxu0 0
    %3876 = vmatpush1.bf16.msra.mxu0 %v3485
    %3877 = vmatprep.subr.bf16.mxu0 0
    %3878 = vmatpush1.bf16.msra.mxu0 %v3488
    %3879 = vmatprep.subr.bf16.mxu0 0
    %3880 = vmatpush1.bf16.msra.mxu0 %v3491
    %3881 = vmatprep.subr.bf16.mxu0 0
    %3882 = vmatpush1.bf16.msra.mxu0 %v3494
    %3883 = vmatprep.subr.bf16.mxu0 0
    %3884 = vmatpush1.bf16.msra.mxu0 %v3497
    %3885 = vmatprep.mubr.bf16.mxu0 %v74
    %3886 = vmatmul.mubr.bf16.gmra.mrb[0].mxu0 %v73
    %v3887 = vpop.f32.mrb[0].mxu0
    %v3888 = vadd.f32 %v3847, %v3887
    %v3889 = vpop.f32.mrb[0].mxu0
    %v3890 = vpop.f32.mrb[0].mxu0
    %v3891 = vadd.f32 %v3850, %v3890
    %v3892 = vpop.f32.mrb[0].mxu0
    %3893 = vdwg.mxu0
    %v3894 = vld [vmem:[#allocation5 + $0x30] sm:$0xff]
    %v3895 = vld [vmem:[#allocation5 + $0x38] sm:$0xf]
    %v3896 = vld [vmem:[#allocation5 + $0x78] sm:$0xff]
    %v3897 = vld [vmem:[#allocation5 + $0x80] sm:$0xf]
    %v3898 = vld [vmem:[#allocation5 + $0xc0] sm:$0xff]
    %v3899 = vld [vmem:[#allocation5 + $0xc8] sm:$0xf]
    %v3900 = vld [vmem:[#allocation5 + $0x108] sm:$0xff]
    %v3901 = vld [vmem:[#allocation5 + $0x110] sm:$0xf]
    %v3902 = vld [vmem:[#allocation5 + $0x150] sm:$0xff]
    %v3903 = vld [vmem:[#allocation5 + $0x158] sm:$0xf]
    %v3904 = vld [vmem:[#allocation5 + $0x198] sm:$0xff]
    %v3905 = vld [vmem:[#allocation5 + $0x1a0] sm:$0xf]
    %v3906 = vld [vmem:[#allocation5 + $0x1e0] sm:$0xff]
    %v3907 = vld [vmem:[#allocation5 + $0x1e8] sm:$0xf]
    %v3908 = vld [vmem:[#allocation5 + $0x228] sm:$0xff]
    %v3909 = vld [vmem:[#allocation5 + $0x230] sm:$0xf]
    %v3910 = vld [vmem:[#allocation5 + $0x270] sm:$0xff]
    %v3911 = vld [vmem:[#allocation5 + $0x278] sm:$0xf]
    %v3912 = vld [vmem:[#allocation5 + $0x2b8] sm:$0xff]
    %v3913 = vld [vmem:[#allocation5 + $0x2c0] sm:$0xf]
    %v3914 = vld [vmem:[#allocation5 + $0x300] sm:$0xff]
    %v3915 = vld [vmem:[#allocation5 + $0x308] sm:$0xf]
    %v3916 = vld [vmem:[#allocation5 + $0x348] sm:$0xff]
    %v3917 = vld [vmem:[#allocation5 + $0x350] sm:$0xf]
    %v3918 = vld [vmem:[#allocation5 + $0x390] sm:$0xff]
    %v3919 = vld [vmem:[#allocation5 + $0x398] sm:$0xf]
    %v3920 = vld [vmem:[#allocation5 + $0x3d8] sm:$0xff]
    %v3921 = vld [vmem:[#allocation5 + $0x3e0] sm:$0xf]
    %v3922 = vld [vmem:[#allocation5 + $0x420] sm:$0xff]
    %v3923 = vld [vmem:[#allocation5 + $0x428] sm:$0xf]
    %v3924 = vld [vmem:[#allocation5 + $0x468] sm:$0xff]
    %v3925 = vld [vmem:[#allocation5 + $0x470] sm:$0xf]
    %v3926 = vld [vmem:[#allocation5 + $0x4b0] sm:$0xff]
    %v3927 = vld [vmem:[#allocation5 + $0x4b8] sm:$0xf]
    %v3928 = vld [vmem:[#allocation5 + $0x4f8] sm:$0xff]
    %v3929 = vld [vmem:[#allocation5 + $0x500] sm:$0xf]
    %v3930 = vld [vmem:[#allocation5 + $0x540] sm:$0xff]
    %v3931 = vld [vmem:[#allocation5 + $0x548] sm:$0xf]
    %v3932 = vld [vmem:[#allocation5 + $0x588] sm:$0xff]
    %v3933 = vld [vmem:[#allocation5 + $0x590] sm:$0xf]
    %v3934 = vld [vmem:[#allocation5 + $0x5d0] sm:$0xff]
    %v3935 = vld [vmem:[#allocation5 + $0x5d8] sm:$0xf]
    %v3936 = vld [vmem:[#allocation5 + $0x618] sm:$0xff]
    %v3937 = vld [vmem:[#allocation5 + $0x620] sm:$0xf]
    %v3938 = vld [vmem:[#allocation5 + $0x660] sm:$0xff]
    %v3939 = vld [vmem:[#allocation5 + $0x668] sm:$0xf]
    %v3940 = vld [vmem:[#allocation5 + $0x6a8] sm:$0xff]
    %v3941 = vld [vmem:[#allocation5 + $0x6b0] sm:$0xf]
    %v3942 = vld [vmem:[#allocation5 + $0x6f0] sm:$0xff]
    %v3943 = vld [vmem:[#allocation5 + $0x6f8] sm:$0xf]
    %v3944 = vld [vmem:[#allocation5 + $0x738] sm:$0xff]
    %v3945 = vld [vmem:[#allocation5 + $0x740] sm:$0xf]
    %v3946 = vld [vmem:[#allocation5 + $0x780] sm:$0xff]
    %v3947 = vld [vmem:[#allocation5 + $0x788] sm:$0xf]
    %v3948 = vld [vmem:[#allocation5 + $0x7c8] sm:$0xff]
    %v3949 = vld [vmem:[#allocation5 + $0x7d0] sm:$0xf]
    %v3950 = vld [vmem:[#allocation5 + $0x810] sm:$0xff]
    %v3951 = vld [vmem:[#allocation5 + $0x818] sm:$0xf]
    %v3952 = vld [vmem:[#allocation5 + $0x858] sm:$0xff]
    %v3953 = vld [vmem:[#allocation5 + $0x860] sm:$0xf]
    %v3954 = vld [vmem:[#allocation5 + $0x8a0] sm:$0xff]
    %v3955 = vld [vmem:[#allocation5 + $0x8a8] sm:$0xf]
    %v3956 = vld [vmem:[#allocation5 + $0x8e8] sm:$0xff]
    %v3957 = vld [vmem:[#allocation5 + $0x8f0] sm:$0xf]
    %v3958 = vld [vmem:[#allocation5 + $0x930] sm:$0xff]
    %v3959 = vld [vmem:[#allocation5 + $0x938] sm:$0xf]
    %v3960 = vld [vmem:[#allocation5 + $0x978] sm:$0xff]
    %v3961 = vld [vmem:[#allocation5 + $0x980] sm:$0xf]
    %v3962 = vld [vmem:[#allocation5 + $0x9c0] sm:$0xff]
    %v3963 = vld [vmem:[#allocation5 + $0x9c8] sm:$0xf]
    %v3964 = vld [vmem:[#allocation5 + $0xa08] sm:$0xff]
    %v3965 = vld [vmem:[#allocation5 + $0xa10] sm:$0xf]
    %v3966 = vld [vmem:[#allocation5 + $0xa50] sm:$0xff]
    %v3967 = vld [vmem:[#allocation5 + $0xa58] sm:$0xf]
    %v3968 = vld [vmem:[#allocation5 + $0xa98] sm:$0xff]
    %v3969 = vld [vmem:[#allocation5 + $0xaa0] sm:$0xf]
    %v3970 = vld [vmem:[#allocation5 + $0xae0] sm:$0xff]
    %v3971 = vld [vmem:[#allocation5 + $0xae8] sm:$0xf]
    %v3972 = vld [vmem:[#allocation5 + $0xb28] sm:$0xff]
    %v3973 = vld [vmem:[#allocation5 + $0xb30] sm:$0xf]
    %v3974 = vld [vmem:[#allocation5 + $0xb70] sm:$0xff]
    %v3975 = vld [vmem:[#allocation5 + $0xb78] sm:$0xf]
    %v3976 = vld [vmem:[#allocation5 + $0xbb8] sm:$0xff]
    %v3977 = vld [vmem:[#allocation5 + $0xbc0] sm:$0xf]
    %v3978 = vld [vmem:[#allocation5 + $0xc00] sm:$0xff]
    %v3979 = vld [vmem:[#allocation5 + $0xc08] sm:$0xf]
    %v3980 = vld [vmem:[#allocation5 + $0xc48] sm:$0xff]
    %v3981 = vld [vmem:[#allocation5 + $0xc50] sm:$0xf]
    %v3982 = vld [vmem:[#allocation5 + $0xc90] sm:$0xff]
    %v3983 = vld [vmem:[#allocation5 + $0xc98] sm:$0xf]
    %v3984 = vld [vmem:[#allocation5 + $0xcd8] sm:$0xff]
    %v3985 = vld [vmem:[#allocation5 + $0xce0] sm:$0xf]
    %v3986 = vld [vmem:[#allocation5 + $0xd20] sm:$0xff]
    %v3987 = vld [vmem:[#allocation5 + $0xd28] sm:$0xf]
    %v3988 = vld [vmem:[#allocation5 + $0xd68] sm:$0xff]
    %v3989 = vld [vmem:[#allocation5 + $0xd70] sm:$0xf]
    %v3990 = vld [vmem:[#allocation5 + $0xdb0] sm:$0xff]
    %v3991 = vld [vmem:[#allocation5 + $0xdb8] sm:$0xf]
    %v3992 = vld [vmem:[#allocation5 + $0xdf8] sm:$0xff]
    %v3993 = vld [vmem:[#allocation5 + $0xe00] sm:$0xf]
    %v3994 = vld [vmem:[#allocation5 + $0xe40] sm:$0xff]
    %v3995 = vld [vmem:[#allocation5 + $0xe48] sm:$0xf]
    %v3996 = vld [vmem:[#allocation5 + $0xe88] sm:$0xff]
    %v3997 = vld [vmem:[#allocation5 + $0xe90] sm:$0xf]
    %v3998 = vld [vmem:[#allocation5 + $0xed0] sm:$0xff]
    %v3999 = vld [vmem:[#allocation5 + $0xed8] sm:$0xf]
    %v4000 = vld [vmem:[#allocation5 + $0xf18] sm:$0xff]
    %v4001 = vld [vmem:[#allocation5 + $0xf20] sm:$0xf]
    %v4002 = vld [vmem:[#allocation5 + $0xf60] sm:$0xff]
    %v4003 = vld [vmem:[#allocation5 + $0xf68] sm:$0xf]
    %v4004 = vld [vmem:[#allocation5 + $0xfa8] sm:$0xff]
    %v4005 = vld [vmem:[#allocation5 + $0xfb0] sm:$0xf]
    %v4006 = vld [vmem:[#allocation5 + $0xff0] sm:$0xff]
    %v4007 = vld [vmem:[#allocation5 + $0xff8] sm:$0xf]
    %v4008 = vld [vmem:[#allocation5 + $0x1038] sm:$0xff]
    %v4009 = vld [vmem:[#allocation5 + $0x1040] sm:$0xf]
    %v4010 = vld [vmem:[#allocation5 + $0x1080] sm:$0xff]
    %v4011 = vld [vmem:[#allocation5 + $0x1088] sm:$0xf]
    %v4012 = vld [vmem:[#allocation5 + $0x10c8] sm:$0xff]
    %v4013 = vld [vmem:[#allocation5 + $0x10d0] sm:$0xf]
    %v4014 = vld [vmem:[#allocation5 + $0x1110] sm:$0xff]
    %v4015 = vld [vmem:[#allocation5 + $0x1118] sm:$0xf]
    %v4016 = vld [vmem:[#allocation5 + $0x1158] sm:$0xff]
    %v4017 = vld [vmem:[#allocation5 + $0x1160] sm:$0xf]
    %v4018 = vld [vmem:[#allocation5 + $0x11a0] sm:$0xff]
    %v4019 = vld [vmem:[#allocation5 + $0x11a8] sm:$0xf]
    %v4020 = vld [vmem:[#allocation5 + $0x11e8] sm:$0xff]
    %v4021 = vld [vmem:[#allocation5 + $0x11f0] sm:$0xf]
    %v4022 = vld [vmem:[#allocation5 + $0x1230] sm:$0xff]
    %v4023 = vld [vmem:[#allocation5 + $0x1238] sm:$0xf]
    %v4024 = vld [vmem:[#allocation5 + $0x1278] sm:$0xff]
    %v4025 = vld [vmem:[#allocation5 + $0x1280] sm:$0xf]
    %v4026 = vld [vmem:[#allocation5 + $0x12c0] sm:$0xff]
    %v4027 = vld [vmem:[#allocation5 + $0x12c8] sm:$0xf]
    %v4028 = vld [vmem:[#allocation5 + $0x1308] sm:$0xff]
    %v4029 = vld [vmem:[#allocation5 + $0x1310] sm:$0xf]
    %v4030 = vld [vmem:[#allocation5 + $0x1350] sm:$0xff]
    %v4031 = vld [vmem:[#allocation5 + $0x1358] sm:$0xf]
    %v4032 = vld [vmem:[#allocation5 + $0x1398] sm:$0xff]
    %v4033 = vld [vmem:[#allocation5 + $0x13a0] sm:$0xf]
    %v4034 = vld [vmem:[#allocation5 + $0x13e0] sm:$0xff]
    %v4035 = vld [vmem:[#allocation5 + $0x13e8] sm:$0xf]
    %v4036 = vld [vmem:[#allocation5 + $0x1428] sm:$0xff]
    %v4037 = vld [vmem:[#allocation5 + $0x1430] sm:$0xf]
    %v4038 = vld [vmem:[#allocation5 + $0x1470] sm:$0xff]
    %v4039 = vld [vmem:[#allocation5 + $0x1478] sm:$0xf]
    %v4040 = vld [vmem:[#allocation5 + $0x14b8] sm:$0xff]
    %v4041 = vld [vmem:[#allocation5 + $0x14c0] sm:$0xf]
    %v4042 = vld [vmem:[#allocation5 + $0x1500] sm:$0xff]
    %v4043 = vld [vmem:[#allocation5 + $0x1508] sm:$0xf]
    %v4044 = vld [vmem:[#allocation5 + $0x1548] sm:$0xff]
    %v4045 = vld [vmem:[#allocation5 + $0x1550] sm:$0xf]
    %v4046 = vld [vmem:[#allocation5 + $0x1590] sm:$0xff]
    %v4047 = vld [vmem:[#allocation5 + $0x1598] sm:$0xf]
    %v4048 = vld [vmem:[#allocation5 + $0x15d8] sm:$0xff]
    %v4049 = vld [vmem:[#allocation5 + $0x15e0] sm:$0xf]
    %v4050 = vld [vmem:[#allocation5 + $0x1620] sm:$0xff]
    %v4051 = vld [vmem:[#allocation5 + $0x1628] sm:$0xf]
    %v4052 = vld [vmem:[#allocation5 + $0x1668] sm:$0xff]
    %v4053 = vld [vmem:[#allocation5 + $0x1670] sm:$0xf]
    %v4054 = vld [vmem:[#allocation5 + $0x16b0] sm:$0xff]
    %v4055 = vld [vmem:[#allocation5 + $0x16b8] sm:$0xf]
    %v4056 = vld [vmem:[#allocation5 + $0x16f8] sm:$0xff]
    %v4057 = vld [vmem:[#allocation5 + $0x1700] sm:$0xf]
    %v4058 = vld [vmem:[#allocation5 + $0x1740] sm:$0xff]
    %v4059 = vld [vmem:[#allocation5 + $0x1748] sm:$0xf]
    %v4060 = vld [vmem:[#allocation5 + $0x1788] sm:$0xff]
    %v4061 = vld [vmem:[#allocation5 + $0x1790] sm:$0xf]
    %v4062 = vld [vmem:[#allocation5 + $0x17d0] sm:$0xff]
    %v4063 = vld [vmem:[#allocation5 + $0x17d8] sm:$0xf]
    %v4064 = vld [vmem:[#allocation5 + $0x1818] sm:$0xff]
    %v4065 = vld [vmem:[#allocation5 + $0x1820] sm:$0xf]
    %v4066 = vld [vmem:[#allocation5 + $0x1860] sm:$0xff]
    %v4067 = vld [vmem:[#allocation5 + $0x1868] sm:$0xf]
    %v4068 = vld [vmem:[#allocation5 + $0x18a8] sm:$0xff]
    %v4069 = vld [vmem:[#allocation5 + $0x18b0] sm:$0xf]
    %v4070 = vld [vmem:[#allocation5 + $0x18f0] sm:$0xff]
    %v4071 = vld [vmem:[#allocation5 + $0x18f8] sm:$0xf]
    %v4072 = vld [vmem:[#allocation5 + $0x1938] sm:$0xff]
    %v4073 = vld [vmem:[#allocation5 + $0x1940] sm:$0xf]
    %v4074 = vld [vmem:[#allocation5 + $0x1980] sm:$0xff]
    %v4075 = vld [vmem:[#allocation5 + $0x1988] sm:$0xf]
    %v4076 = vld [vmem:[#allocation5 + $0x19c8] sm:$0xff]
    %v4077 = vld [vmem:[#allocation5 + $0x19d0] sm:$0xf]
    %v4078 = vld [vmem:[#allocation5 + $0x1a10] sm:$0xff]
    %v4079 = vld [vmem:[#allocation5 + $0x1a18] sm:$0xf]
    %v4080 = vld [vmem:[#allocation5 + $0x1a58] sm:$0xff]
    %v4081 = vld [vmem:[#allocation5 + $0x1a60] sm:$0xf]
    %v4082 = vld [vmem:[#allocation5 + $0x1aa0] sm:$0xff]
    %v4083 = vld [vmem:[#allocation5 + $0x1aa8] sm:$0xf]
    %v4084 = vld [vmem:[#allocation5 + $0x1ae8] sm:$0xff]
    %v4085 = vld [vmem:[#allocation5 + $0x1af0] sm:$0xf]
    %v4278 = vunpack.c.l.b16 %v3894
    %v4279 = vunpack.c.h.b16 %v3894
    %v4280 = vunpack.c.l.b16 %v3895
    %v4281 = vunpack.c.l.b16 %v3896
    %v4282 = vunpack.c.h.b16 %v3896
    %v4283 = vunpack.c.l.b16 %v3897
    %v4284 = vunpack.c.l.b16 %v3898
    %v4285 = vunpack.c.h.b16 %v3898
    %v4286 = vunpack.c.l.b16 %v3899
    %v4287 = vunpack.c.l.b16 %v3900
    %v4288 = vunpack.c.h.b16 %v3900
    %v4289 = vunpack.c.l.b16 %v3901
    %v4290 = vunpack.c.l.b16 %v3902
    %v4291 = vunpack.c.h.b16 %v3902
    %v4292 = vunpack.c.l.b16 %v3903
    %v4293 = vunpack.c.l.b16 %v3904
    %v4294 = vunpack.c.h.b16 %v3904
    %v4295 = vunpack.c.l.b16 %v3905
    %v4296 = vunpack.c.l.b16 %v3906
    %v4297 = vunpack.c.h.b16 %v3906
    %v4298 = vunpack.c.l.b16 %v3907
    %v4299 = vunpack.c.l.b16 %v3908
    %v4300 = vunpack.c.h.b16 %v3908
    %v4301 = vunpack.c.l.b16 %v3909
    %v4302 = vunpack.c.l.b16 %v3910
    %v4303 = vunpack.c.h.b16 %v3910
    %v4304 = vunpack.c.l.b16 %v3911
    %v4305 = vunpack.c.l.b16 %v3912
    %v4306 = vunpack.c.h.b16 %v3912
    %v4307 = vunpack.c.l.b16 %v3913
    %v4308 = vunpack.c.l.b16 %v3914
    %v4309 = vunpack.c.h.b16 %v3914
    %v4310 = vunpack.c.l.b16 %v3915
    %v4311 = vunpack.c.l.b16 %v3916
    %v4312 = vunpack.c.h.b16 %v3916
    %v4313 = vunpack.c.l.b16 %v3917
    %v4314 = vunpack.c.l.b16 %v3918
    %v4315 = vunpack.c.h.b16 %v3918
    %v4316 = vunpack.c.l.b16 %v3919
    %v4317 = vunpack.c.l.b16 %v3920
    %v4318 = vunpack.c.h.b16 %v3920
    %v4319 = vunpack.c.l.b16 %v3921
    %v4320 = vunpack.c.l.b16 %v3922
    %v4321 = vunpack.c.h.b16 %v3922
    %v4322 = vunpack.c.l.b16 %v3923
    %v4323 = vunpack.c.l.b16 %v3924
    %v4324 = vunpack.c.h.b16 %v3924
    %v4325 = vunpack.c.l.b16 %v3925
    %v4326 = vunpack.c.l.b16 %v3926
    %v4327 = vunpack.c.h.b16 %v3926
    %v4328 = vunpack.c.l.b16 %v3927
    %v4329 = vunpack.c.l.b16 %v3928
    %v4330 = vunpack.c.h.b16 %v3928
    %v4331 = vunpack.c.l.b16 %v3929
    %v4332 = vunpack.c.l.b16 %v3930
    %v4333 = vunpack.c.h.b16 %v3930
    %v4334 = vunpack.c.l.b16 %v3931
    %v4335 = vunpack.c.l.b16 %v3932
    %v4336 = vunpack.c.h.b16 %v3932
    %v4337 = vunpack.c.l.b16 %v3933
    %v4338 = vunpack.c.l.b16 %v3934
    %v4339 = vunpack.c.h.b16 %v3934
    %v4340 = vunpack.c.l.b16 %v3935
    %v4341 = vunpack.c.l.b16 %v3936
    %v4342 = vunpack.c.h.b16 %v3936
    %v4343 = vunpack.c.l.b16 %v3937
    %v4344 = vunpack.c.l.b16 %v3938
    %v4345 = vunpack.c.h.b16 %v3938
    %v4346 = vunpack.c.l.b16 %v3939
    %v4347 = vunpack.c.l.b16 %v3940
    %v4348 = vunpack.c.h.b16 %v3940
    %v4349 = vunpack.c.l.b16 %v3941
    %v4350 = vunpack.c.l.b16 %v3942
    %v4351 = vunpack.c.h.b16 %v3942
    %v4352 = vunpack.c.l.b16 %v3943
    %v4353 = vunpack.c.l.b16 %v3944
    %v4354 = vunpack.c.h.b16 %v3944
    %v4355 = vunpack.c.l.b16 %v3945
    %v4356 = vunpack.c.l.b16 %v3946
    %v4357 = vunpack.c.h.b16 %v3946
    %v4358 = vunpack.c.l.b16 %v3947
    %v4359 = vunpack.c.l.b16 %v3948
    %v4360 = vunpack.c.h.b16 %v3948
    %v4361 = vunpack.c.l.b16 %v3949
    %v4362 = vunpack.c.l.b16 %v3950
    %v4363 = vunpack.c.h.b16 %v3950
    %v4364 = vunpack.c.l.b16 %v3951
    %v4365 = vunpack.c.l.b16 %v3952
    %v4366 = vunpack.c.h.b16 %v3952
    %v4367 = vunpack.c.l.b16 %v3953
    %v4368 = vunpack.c.l.b16 %v3954
    %v4369 = vunpack.c.h.b16 %v3954
    %v4370 = vunpack.c.l.b16 %v3955
    %v4371 = vunpack.c.l.b16 %v3956
    %v4372 = vunpack.c.h.b16 %v3956
    %v4373 = vunpack.c.l.b16 %v3957
    %v4374 = vunpack.c.l.b16 %v3958
    %v4375 = vunpack.c.h.b16 %v3958
    %v4376 = vunpack.c.l.b16 %v3959
    %v4377 = vunpack.c.l.b16 %v3960
    %v4378 = vunpack.c.h.b16 %v3960
    %v4379 = vunpack.c.l.b16 %v3961
    %v4380 = vunpack.c.l.b16 %v3962
    %v4381 = vunpack.c.h.b16 %v3962
    %v4382 = vunpack.c.l.b16 %v3963
    %v4383 = vunpack.c.l.b16 %v3964
    %v4384 = vunpack.c.h.b16 %v3964
    %v4385 = vunpack.c.l.b16 %v3965
    %v4386 = vunpack.c.l.b16 %v3966
    %v4387 = vunpack.c.h.b16 %v3966
    %v4388 = vunpack.c.l.b16 %v3967
    %v4389 = vunpack.c.l.b16 %v3968
    %v4390 = vunpack.c.h.b16 %v3968
    %v4391 = vunpack.c.l.b16 %v3969
    %v4392 = vunpack.c.l.b16 %v3970
    %v4393 = vunpack.c.h.b16 %v3970
    %v4394 = vunpack.c.l.b16 %v3971
    %v4395 = vunpack.c.l.b16 %v3972
    %v4396 = vunpack.c.h.b16 %v3972
    %v4397 = vunpack.c.l.b16 %v3973
    %v4398 = vunpack.c.l.b16 %v3974
    %v4399 = vunpack.c.h.b16 %v3974
    %v4400 = vunpack.c.l.b16 %v3975
    %v4401 = vunpack.c.l.b16 %v3976
    %v4402 = vunpack.c.h.b16 %v3976
    %v4403 = vunpack.c.l.b16 %v3977
    %v4404 = vunpack.c.l.b16 %v3978
    %v4405 = vunpack.c.h.b16 %v3978
    %v4406 = vunpack.c.l.b16 %v3979
    %v4407 = vunpack.c.l.b16 %v3980
    %v4408 = vunpack.c.h.b16 %v3980
    %v4409 = vunpack.c.l.b16 %v3981
    %v4410 = vunpack.c.l.b16 %v3982
    %v4411 = vunpack.c.h.b16 %v3982
    %v4412 = vunpack.c.l.b16 %v3983
    %v4413 = vunpack.c.l.b16 %v3984
    %v4414 = vunpack.c.h.b16 %v3984
    %v4415 = vunpack.c.l.b16 %v3985
    %v4416 = vunpack.c.l.b16 %v3986
    %v4417 = vunpack.c.h.b16 %v3986
    %v4418 = vunpack.c.l.b16 %v3987
    %v4419 = vunpack.c.l.b16 %v3988
    %v4420 = vunpack.c.h.b16 %v3988
    %v4421 = vunpack.c.l.b16 %v3989
    %v4422 = vunpack.c.l.b16 %v3990
    %v4423 = vunpack.c.h.b16 %v3990
    %v4424 = vunpack.c.l.b16 %v3991
    %v4425 = vunpack.c.l.b16 %v3992
    %v4426 = vunpack.c.h.b16 %v3992
    %v4427 = vunpack.c.l.b16 %v3993
    %v4428 = vunpack.c.l.b16 %v3994
    %v4429 = vunpack.c.h.b16 %v3994
    %v4430 = vunpack.c.l.b16 %v3995
    %v4431 = vunpack.c.l.b16 %v3996
    %v4432 = vunpack.c.h.b16 %v3996
    %v4433 = vunpack.c.l.b16 %v3997
    %v4434 = vunpack.c.l.b16 %v3998
    %v4435 = vunpack.c.h.b16 %v3998
    %v4436 = vunpack.c.l.b16 %v3999
    %v4437 = vunpack.c.l.b16 %v4000
    %v4438 = vunpack.c.h.b16 %v4000
    %v4439 = vunpack.c.l.b16 %v4001
    %v4440 = vunpack.c.l.b16 %v4002
    %v4441 = vunpack.c.h.b16 %v4002
    %v4442 = vunpack.c.l.b16 %v4003
    %v4443 = vunpack.c.l.b16 %v4004
    %v4444 = vunpack.c.h.b16 %v4004
    %v4445 = vunpack.c.l.b16 %v4005
    %v4446 = vunpack.c.l.b16 %v4006
    %v4447 = vunpack.c.h.b16 %v4006
    %v4448 = vunpack.c.l.b16 %v4007
    %v4449 = vunpack.c.l.b16 %v4008
    %v4450 = vunpack.c.h.b16 %v4008
    %v4451 = vunpack.c.l.b16 %v4009
    %v4452 = vunpack.c.l.b16 %v4010
    %v4453 = vunpack.c.h.b16 %v4010
    %v4454 = vunpack.c.l.b16 %v4011
    %v4455 = vunpack.c.l.b16 %v4012
    %v4456 = vunpack.c.h.b16 %v4012
    %v4457 = vunpack.c.l.b16 %v4013
    %v4458 = vunpack.c.l.b16 %v4014
    %v4459 = vunpack.c.h.b16 %v4014
    %v4460 = vunpack.c.l.b16 %v4015
    %v4461 = vunpack.c.l.b16 %v4016
    %v4462 = vunpack.c.h.b16 %v4016
    %v4463 = vunpack.c.l.b16 %v4017
    %v4464 = vunpack.c.l.b16 %v4018
    %v4465 = vunpack.c.h.b16 %v4018
    %v4466 = vunpack.c.l.b16 %v4019
    %v4467 = vunpack.c.l.b16 %v4020
    %v4468 = vunpack.c.h.b16 %v4020
    %v4469 = vunpack.c.l.b16 %v4021
    %v4470 = vunpack.c.l.b16 %v4022
    %v4471 = vunpack.c.h.b16 %v4022
    %v4472 = vunpack.c.l.b16 %v4023
    %v4473 = vunpack.c.l.b16 %v4024
    %v4474 = vunpack.c.h.b16 %v4024
    %v4475 = vunpack.c.l.b16 %v4025
    %v4476 = vunpack.c.l.b16 %v4026
    %v4477 = vunpack.c.h.b16 %v4026
    %v4478 = vunpack.c.l.b16 %v4027
    %v4479 = vunpack.c.l.b16 %v4028
    %v4480 = vunpack.c.h.b16 %v4028
    %v4481 = vunpack.c.l.b16 %v4029
    %v4482 = vunpack.c.l.b16 %v4030
    %v4483 = vunpack.c.h.b16 %v4030
    %v4484 = vunpack.c.l.b16 %v4031
    %v4485 = vunpack.c.l.b16 %v4032
    %v4486 = vunpack.c.h.b16 %v4032
    %v4487 = vunpack.c.l.b16 %v4033
    %v4488 = vunpack.c.l.b16 %v4034
    %v4489 = vunpack.c.h.b16 %v4034
    %v4490 = vunpack.c.l.b16 %v4035
    %v4491 = vunpack.c.l.b16 %v4036
    %v4492 = vunpack.c.h.b16 %v4036
    %v4493 = vunpack.c.l.b16 %v4037
    %v4494 = vunpack.c.l.b16 %v4038
    %v4495 = vunpack.c.h.b16 %v4038
    %v4496 = vunpack.c.l.b16 %v4039
    %v4497 = vunpack.c.l.b16 %v4040
    %v4498 = vunpack.c.h.b16 %v4040
    %v4499 = vunpack.c.l.b16 %v4041
    %v4500 = vunpack.c.l.b16 %v4042
    %v4501 = vunpack.c.h.b16 %v4042
    %v4502 = vunpack.c.l.b16 %v4043
    %v4503 = vunpack.c.l.b16 %v4044
    %v4504 = vunpack.c.h.b16 %v4044
    %v4505 = vunpack.c.l.b16 %v4045
    %v4506 = vunpack.c.l.b16 %v4046
    %v4507 = vunpack.c.h.b16 %v4046
    %v4508 = vunpack.c.l.b16 %v4047
    %v4509 = vunpack.c.l.b16 %v4048
    %v4510 = vunpack.c.h.b16 %v4048
    %v4511 = vunpack.c.l.b16 %v4049
    %v4512 = vunpack.c.l.b16 %v4050
    %v4513 = vunpack.c.h.b16 %v4050
    %v4514 = vunpack.c.l.b16 %v4051
    %v4515 = vunpack.c.l.b16 %v4052
    %v4516 = vunpack.c.h.b16 %v4052
    %v4517 = vunpack.c.l.b16 %v4053
    %v4518 = vunpack.c.l.b16 %v4054
    %v4519 = vunpack.c.h.b16 %v4054
    %v4520 = vunpack.c.l.b16 %v4055
    %v4521 = vunpack.c.l.b16 %v4056
    %v4522 = vunpack.c.h.b16 %v4056
    %v4523 = vunpack.c.l.b16 %v4057
    %v4524 = vunpack.c.l.b16 %v4058
    %v4525 = vunpack.c.h.b16 %v4058
    %v4526 = vunpack.c.l.b16 %v4059
    %v4527 = vunpack.c.l.b16 %v4060
    %v4528 = vunpack.c.h.b16 %v4060
    %v4529 = vunpack.c.l.b16 %v4061
    %v4530 = vunpack.c.l.b16 %v4062
    %v4531 = vunpack.c.h.b16 %v4062
    %v4532 = vunpack.c.l.b16 %v4063
    %v4533 = vunpack.c.l.b16 %v4064
    %v4534 = vunpack.c.h.b16 %v4064
    %v4535 = vunpack.c.l.b16 %v4065
    %v4536 = vunpack.c.l.b16 %v4066
    %v4537 = vunpack.c.h.b16 %v4066
    %v4538 = vunpack.c.l.b16 %v4067
    %v4539 = vunpack.c.l.b16 %v4068
    %v4540 = vunpack.c.h.b16 %v4068
    %v4541 = vunpack.c.l.b16 %v4069
    %v4542 = vunpack.c.l.b16 %v4070
    %v4543 = vunpack.c.h.b16 %v4070
    %v4544 = vunpack.c.l.b16 %v4071
    %v4545 = vunpack.c.l.b16 %v4072
    %v4546 = vunpack.c.h.b16 %v4072
    %v4547 = vunpack.c.l.b16 %v4073
    %v4548 = vunpack.c.l.b16 %v4074
    %v4549 = vunpack.c.h.b16 %v4074
    %v4550 = vunpack.c.l.b16 %v4075
    %v4551 = vunpack.c.l.b16 %v4076
    %v4552 = vunpack.c.h.b16 %v4076
    %v4553 = vunpack.c.l.b16 %v4077
    %v4554 = vunpack.c.l.b16 %v4078
    %v4555 = vunpack.c.h.b16 %v4078
    %v4556 = vunpack.c.l.b16 %v4079
    %v4557 = vunpack.c.l.b16 %v4080
    %v4558 = vunpack.c.h.b16 %v4080
    %v4559 = vunpack.c.l.b16 %v4081
    %v4560 = vunpack.c.l.b16 %v4082
    %v4561 = vunpack.c.h.b16 %v4082
    %v4562 = vunpack.c.l.b16 %v4083
    %v4563 = vunpack.c.l.b16 %v4084
    %v4564 = vunpack.c.h.b16 %v4084
    %v4565 = vunpack.c.l.b16 %v4085
    %v4566 = vpack.c.b16 %v4281, %v4278
    %v4567 = vpack.c.b16 %v4282, %v4279
    %v4568 = vpack.c.b16 %v4283, %v4280
    %v4569 = vpack.c.b16 %v4287, %v4284
    %v4570 = vpack.c.b16 %v4288, %v4285
    %v4571 = vpack.c.b16 %v4289, %v4286
    %v4572 = vpack.c.b16 %v4293, %v4290
    %v4573 = vpack.c.b16 %v4294, %v4291
    %v4574 = vpack.c.b16 %v4295, %v4292
    %v4575 = vpack.c.b16 %v4299, %v4296
    %v4576 = vpack.c.b16 %v4300, %v4297
    %v4577 = vpack.c.b16 %v4301, %v4298
    %v4578 = vpack.c.b16 %v4305, %v4302
    %v4579 = vpack.c.b16 %v4306, %v4303
    %v4580 = vpack.c.b16 %v4307, %v4304
    %v4581 = vpack.c.b16 %v4311, %v4308
    %v4582 = vpack.c.b16 %v4312, %v4309
    %v4583 = vpack.c.b16 %v4313, %v4310
    %v4584 = vpack.c.b16 %v4317, %v4314
    %v4585 = vpack.c.b16 %v4318, %v4315
    %v4586 = vpack.c.b16 %v4319, %v4316
    %v4587 = vpack.c.b16 %v4323, %v4320
    %v4588 = vpack.c.b16 %v4324, %v4321
    %v4589 = vpack.c.b16 %v4325, %v4322
    %v4590 = vpack.c.b16 %v4329, %v4326
    %v4591 = vpack.c.b16 %v4330, %v4327
    %v4592 = vpack.c.b16 %v4331, %v4328
    %v4593 = vpack.c.b16 %v4335, %v4332
    %v4594 = vpack.c.b16 %v4336, %v4333
    %v4595 = vpack.c.b16 %v4337, %v4334
    %v4596 = vpack.c.b16 %v4341, %v4338
    %v4597 = vpack.c.b16 %v4342, %v4339
    %v4598 = vpack.c.b16 %v4343, %v4340
    %v4599 = vpack.c.b16 %v4347, %v4344
    %v4600 = vpack.c.b16 %v4348, %v4345
    %v4601 = vpack.c.b16 %v4349, %v4346
    %v4602 = vpack.c.b16 %v4353, %v4350
    %v4603 = vpack.c.b16 %v4354, %v4351
    %v4604 = vpack.c.b16 %v4355, %v4352
    %v4605 = vpack.c.b16 %v4359, %v4356
    %v4606 = vpack.c.b16 %v4360, %v4357
    %v4607 = vpack.c.b16 %v4361, %v4358
    %v4608 = vpack.c.b16 %v4365, %v4362
    %v4609 = vpack.c.b16 %v4366, %v4363
    %v4610 = vpack.c.b16 %v4367, %v4364
    %v4611 = vpack.c.b16 %v4371, %v4368
    %v4612 = vpack.c.b16 %v4372, %v4369
    %v4613 = vpack.c.b16 %v4373, %v4370
    %v4614 = vpack.c.b16 %v4377, %v4374
    %v4615 = vpack.c.b16 %v4378, %v4375
    %v4616 = vpack.c.b16 %v4379, %v4376
    %v4617 = vpack.c.b16 %v4383, %v4380
    %v4618 = vpack.c.b16 %v4384, %v4381
    %v4619 = vpack.c.b16 %v4385, %v4382
    %v4620 = vpack.c.b16 %v4389, %v4386
    %v4621 = vpack.c.b16 %v4390, %v4387
    %v4622 = vpack.c.b16 %v4391, %v4388
    %v4623 = vpack.c.b16 %v4395, %v4392
    %v4624 = vpack.c.b16 %v4396, %v4393
    %v4625 = vpack.c.b16 %v4397, %v4394
    %v4626 = vpack.c.b16 %v4401, %v4398
    %v4627 = vpack.c.b16 %v4402, %v4399
    %v4628 = vpack.c.b16 %v4403, %v4400
    %v4629 = vpack.c.b16 %v4407, %v4404
    %v4630 = vpack.c.b16 %v4408, %v4405
    %v4631 = vpack.c.b16 %v4409, %v4406
    %v4632 = vpack.c.b16 %v4413, %v4410
    %v4633 = vpack.c.b16 %v4414, %v4411
    %v4634 = vpack.c.b16 %v4415, %v4412
    %v4635 = vpack.c.b16 %v4419, %v4416
    %v4636 = vpack.c.b16 %v4420, %v4417
    %v4637 = vpack.c.b16 %v4421, %v4418
    %v4638 = vpack.c.b16 %v4425, %v4422
    %v4639 = vpack.c.b16 %v4426, %v4423
    %v4640 = vpack.c.b16 %v4427, %v4424
    %v4641 = vpack.c.b16 %v4431, %v4428
    %v4642 = vpack.c.b16 %v4432, %v4429
    %v4643 = vpack.c.b16 %v4433, %v4430
    %v4644 = vpack.c.b16 %v4437, %v4434
    %v4645 = vpack.c.b16 %v4438, %v4435
    %v4646 = vpack.c.b16 %v4439, %v4436
    %v4647 = vpack.c.b16 %v4443, %v4440
    %v4648 = vpack.c.b16 %v4444, %v4441
    %v4649 = vpack.c.b16 %v4445, %v4442
    %v4650 = vpack.c.b16 %v4449, %v4446
    %v4651 = vpack.c.b16 %v4450, %v4447
    %v4652 = vpack.c.b16 %v4451, %v4448
    %v4653 = vpack.c.b16 %v4455, %v4452
    %v4654 = vpack.c.b16 %v4456, %v4453
    %v4655 = vpack.c.b16 %v4457, %v4454
    %v4656 = vpack.c.b16 %v4461, %v4458
    %v4657 = vpack.c.b16 %v4462, %v4459
    %v4658 = vpack.c.b16 %v4463, %v4460
    %v4659 = vpack.c.b16 %v4467, %v4464
    %v4660 = vpack.c.b16 %v4468, %v4465
    %v4661 = vpack.c.b16 %v4469, %v4466
    %v4662 = vpack.c.b16 %v4473, %v4470
    %v4663 = vpack.c.b16 %v4474, %v4471
    %v4664 = vpack.c.b16 %v4475, %v4472
    %v4665 = vpack.c.b16 %v4479, %v4476
    %v4666 = vpack.c.b16 %v4480, %v4477
    %v4667 = vpack.c.b16 %v4481, %v4478
    %v4668 = vpack.c.b16 %v4485, %v4482
    %v4669 = vpack.c.b16 %v4486, %v4483
    %v4670 = vpack.c.b16 %v4487, %v4484
    %v4671 = vpack.c.b16 %v4491, %v4488
    %v4672 = vpack.c.b16 %v4492, %v4489
    %v4673 = vpack.c.b16 %v4493, %v4490
    %v4674 = vpack.c.b16 %v4497, %v4494
    %v4675 = vpack.c.b16 %v4498, %v4495
    %v4676 = vpack.c.b16 %v4499, %v4496
    %v4677 = vpack.c.b16 %v4503, %v4500
    %v4678 = vpack.c.b16 %v4504, %v4501
    %v4679 = vpack.c.b16 %v4505, %v4502
    %v4680 = vpack.c.b16 %v4509, %v4506
    %v4681 = vpack.c.b16 %v4510, %v4507
    %v4682 = vpack.c.b16 %v4511, %v4508
    %v4683 = vpack.c.b16 %v4515, %v4512
    %v4684 = vpack.c.b16 %v4516, %v4513
    %v4685 = vpack.c.b16 %v4517, %v4514
    %v4686 = vpack.c.b16 %v4521, %v4518
    %v4687 = vpack.c.b16 %v4522, %v4519
    %v4688 = vpack.c.b16 %v4523, %v4520
    %v4689 = vpack.c.b16 %v4527, %v4524
    %v4690 = vpack.c.b16 %v4528, %v4525
    %v4691 = vpack.c.b16 %v4529, %v4526
    %v4692 = vpack.c.b16 %v4533, %v4530
    %v4693 = vpack.c.b16 %v4534, %v4531
    %v4694 = vpack.c.b16 %v4535, %v4532
    %v4695 = vpack.c.b16 %v4539, %v4536
    %v4696 = vpack.c.b16 %v4540, %v4537
    %v4697 = vpack.c.b16 %v4541, %v4538
    %v4698 = vpack.c.b16 %v4545, %v4542
    %v4699 = vpack.c.b16 %v4546, %v4543
    %v4700 = vpack.c.b16 %v4547, %v4544
    %v4701 = vpack.c.b16 %v4551, %v4548
    %v4702 = vpack.c.b16 %v4552, %v4549
    %v4703 = vpack.c.b16 %v4553, %v4550
    %v4704 = vpack.c.b16 %v4557, %v4554
    %v4705 = vpack.c.b16 %v4558, %v4555
    %v4706 = vpack.c.b16 %v4559, %v4556
    %v4707 = vpack.c.b16 %v4563, %v4560
    %v4708 = vpack.c.b16 %v4564, %v4561
    %v4709 = vpack.c.b16 %v4565, %v4562
    %4854 = vmatprep.subr.bf16.mxu0 %v4567
    %4855 = vmatpush1.bf16.msra.mxu0 %v4566
    %4856 = vmatprep.subr.bf16.mxu0 %v4570
    %4857 = vmatpush1.bf16.msra.mxu0 %v4569
    %4858 = vmatprep.subr.bf16.mxu0 %v4573
    %4859 = vmatpush1.bf16.msra.mxu0 %v4572
    %4860 = vmatprep.subr.bf16.mxu0 %v4576
    %4861 = vmatpush1.bf16.msra.mxu0 %v4575
    %4862 = vmatprep.subr.bf16.mxu0 %v4579
    %4863 = vmatpush1.bf16.msra.mxu0 %v4578
    %4864 = vmatprep.subr.bf16.mxu0 %v4582
    %4865 = vmatpush1.bf16.msra.mxu0 %v4581
    %4866 = vmatprep.subr.bf16.mxu0 %v4585
    %4867 = vmatpush1.bf16.msra.mxu0 %v4584
    %4868 = vmatprep.subr.bf16.mxu0 %v4588
    %4869 = vmatpush1.bf16.msra.mxu0 %v4587
    %4870 = vmatprep.subr.bf16.mxu0 %v4591
    %4871 = vmatpush1.bf16.msra.mxu0 %v4590
    %4872 = vmatprep.subr.bf16.mxu0 %v4594
    %4873 = vmatpush1.bf16.msra.mxu0 %v4593
    %4874 = vmatprep.subr.bf16.mxu0 %v4597
    %4875 = vmatpush1.bf16.msra.mxu0 %v4596
    %4876 = vmatprep.subr.bf16.mxu0 %v4600
    %4877 = vmatpush1.bf16.msra.mxu0 %v4599
    %4878 = vmatprep.subr.bf16.mxu0 %v4603
    %4879 = vmatpush1.bf16.msra.mxu0 %v4602
    %4880 = vmatprep.subr.bf16.mxu0 %v4606
    %4881 = vmatpush1.bf16.msra.mxu0 %v4605
    %4882 = vmatprep.subr.bf16.mxu0 %v4609
    %4883 = vmatpush1.bf16.msra.mxu0 %v4608
    %4884 = vmatprep.subr.bf16.mxu0 %v4612
    %4885 = vmatpush1.bf16.msra.mxu0 %v4611
    %4886 = vmatprep.mubr.bf16.mxu0 %v70
    %4887 = vmatmul.mubr.bf16.gmra.mrb[0].mxu0 %v69
    %v4888 = vpop.f32.mrb[0].mxu0
    %v4889 = vadd.f32 0.0, %v4888
    %v4890 = vpop.f32.mrb[0].mxu0
    %v4891 = vadd.f32 0.0, %v4890
    %v4892 = vpop.f32.mrb[0].mxu0
    %v4893 = vadd.f32 0.0, %v4892
    %v4894 = vpop.f32.mrb[0].mxu0
    %v4895 = vadd.f32 0.0, %v4894
    %4896 = vdwg.mxu0
    %4897 = vmatprep.subr.bf16.mxu0 %v4615
    %4898 = vmatpush1.bf16.msra.mxu0 %v4614
    %4899 = vmatprep.subr.bf16.mxu0 %v4618
    %4900 = vmatpush1.bf16.msra.mxu0 %v4617
    %4901 = vmatprep.subr.bf16.mxu0 %v4621
    %4902 = vmatpush1.bf16.msra.mxu0 %v4620
    %4903 = vmatprep.subr.bf16.mxu0 %v4624
    %4904 = vmatpush1.bf16.msra.mxu0 %v4623
    %4905 = vmatprep.subr.bf16.mxu0 %v4627
    %4906 = vmatpush1.bf16.msra.mxu0 %v4626
    %4907 = vmatprep.subr.bf16.mxu0 %v4630
    %4908 = vmatpush1.bf16.msra.mxu0 %v4629
    %4909 = vmatprep.subr.bf16.mxu0 %v4633
    %4910 = vmatpush1.bf16.msra.mxu0 %v4632
    %4911 = vmatprep.subr.bf16.mxu0 %v4636
    %4912 = vmatpush1.bf16.msra.mxu0 %v4635
    %4913 = vmatprep.subr.bf16.mxu0 %v4639
    %4914 = vmatpush1.bf16.msra.mxu0 %v4638
    %4915 = vmatprep.subr.bf16.mxu0 %v4642
    %4916 = vmatpush1.bf16.msra.mxu0 %v4641
    %4917 = vmatprep.subr.bf16.mxu0 %v4645
    %4918 = vmatpush1.bf16.msra.mxu0 %v4644
    %4919 = vmatprep.subr.bf16.mxu0 %v4648
    %4920 = vmatpush1.bf16.msra.mxu0 %v4647
    %4921 = vmatprep.subr.bf16.mxu0 %v4651
    %4922 = vmatpush1.bf16.msra.mxu0 %v4650
    %4923 = vmatprep.subr.bf16.mxu0 %v4654
    %4924 = vmatpush1.bf16.msra.mxu0 %v4653
    %4925 = vmatprep.subr.bf16.mxu0 %v4657
    %4926 = vmatpush1.bf16.msra.mxu0 %v4656
    %4927 = vmatprep.subr.bf16.mxu0 %v4660
    %4928 = vmatpush1.bf16.msra.mxu0 %v4659
    %4929 = vmatprep.mubr.bf16.mxu0 %v72
    %4930 = vmatmul.mubr.bf16.gmra.mrb[0].mxu0 %v71
    %v4931 = vpop.f32.mrb[0].mxu0
    %v4932 = vadd.f32 %v4889, %v4931
    %v4933 = vpop.f32.mrb[0].mxu0
    %v4934 = vadd.f32 %v4891, %v4933
    %v4935 = vpop.f32.mrb[0].mxu0
    %v4936 = vadd.f32 %v4893, %v4935
    %v4937 = vpop.f32.mrb[0].mxu0
    %v4938 = vadd.f32 %v4895, %v4937
    %4939 = vdwg.mxu0
    %4940 = vmatprep.subr.bf16.mxu0 %v4663
    %4941 = vmatpush1.bf16.msra.mxu0 %v4662
    %4942 = vmatprep.subr.bf16.mxu0 %v4666
    %4943 = vmatpush1.bf16.msra.mxu0 %v4665
    %4944 = vmatprep.subr.bf16.mxu0 %v4669
    %4945 = vmatpush1.bf16.msra.mxu0 %v4668
    %4946 = vmatprep.subr.bf16.mxu0 %v4672
    %4947 = vmatpush1.bf16.msra.mxu0 %v4671
    %4948 = vmatprep.subr.bf16.mxu0 %v4675
    %4949 = vmatpush1.bf16.msra.mxu0 %v4674
    %4950 = vmatprep.subr.bf16.mxu0 %v4678
    %4951 = vmatpush1.bf16.msra.mxu0 %v4677
    %4952 = vmatprep.subr.bf16.mxu0 %v4681
    %4953 = vmatpush1.bf16.msra.mxu0 %v4680
    %4954 = vmatprep.subr.bf16.mxu0 %v4684
    %4955 = vmatpush1.bf16.msra.mxu0 %v4683
    %4956 = vmatprep.subr.bf16.mxu0 %v4687
    %4957 = vmatpush1.bf16.msra.mxu0 %v4686
    %4958 = vmatprep.subr.bf16.mxu0 %v4690
    %4959 = vmatpush1.bf16.msra.mxu0 %v4689
    %4960 = vmatprep.subr.bf16.mxu0 %v4693
    %4961 = vmatpush1.bf16.msra.mxu0 %v4692
    %4962 = vmatprep.subr.bf16.mxu0 %v4696
    %4963 = vmatpush1.bf16.msra.mxu0 %v4695
    %4964 = vmatprep.subr.bf16.mxu0 %v4699
    %4965 = vmatpush1.bf16.msra.mxu0 %v4698
    %4966 = vmatprep.subr.bf16.mxu0 %v4702
    %4967 = vmatpush1.bf16.msra.mxu0 %v4701
    %4968 = vmatprep.subr.bf16.mxu0 %v4705
    %4969 = vmatpush1.bf16.msra.mxu0 %v4704
    %4970 = vmatprep.subr.bf16.mxu0 %v4708
    %4971 = vmatpush1.bf16.msra.mxu0 %v4707
    %4972 = vmatprep.mubr.bf16.mxu0 %v74
    %4973 = vmatmul.mubr.bf16.gmra.mrb[0].mxu0 %v73
    %v4974 = vpop.f32.mrb[0].mxu0
    %v4975 = vadd.f32 %v4932, %v4974
    %v4976 = vpop.f32.mrb[0].mxu0
    %v4977 = vadd.f32 %v4934, %v4976
    %v4978 = vpop.f32.mrb[0].mxu0
    %v4979 = vadd.f32 %v4936, %v4978
    %v4980 = vpop.f32.mrb[0].mxu0
    %v4981 = vadd.f32 %v4938, %v4980
    %4982 = vdwg.mxu0
    %4983 = vmatprep.subr.bf16.mxu0 0
    %4984 = vmatpush1.bf16.msra.mxu0 %v4568
    %4985 = vmatprep.subr.bf16.mxu0 0
    %4986 = vmatpush1.bf16.msra.mxu0 %v4571
    %4987 = vmatprep.subr.bf16.mxu0 0
    %4988 = vmatpush1.bf16.msra.mxu0 %v4574
    %4989 = vmatprep.subr.bf16.mxu0 0
    %4990 = vmatpush1.bf16.msra.mxu0 %v4577
    %4991 = vmatprep.subr.bf16.mxu0 0
    %4992 = vmatpush1.bf16.msra.mxu0 %v4580
    %4993 = vmatprep.subr.bf16.mxu0 0
    %4994 = vmatpush1.bf16.msra.mxu0 %v4583
    %4995 = vmatprep.subr.bf16.mxu0 0
    %4996 = vmatpush1.bf16.msra.mxu0 %v4586
    %4997 = vmatprep.subr.bf16.mxu0 0
    %4998 = vmatpush1.bf16.msra.mxu0 %v4589
    %4999 = vmatprep.subr.bf16.mxu0 0
    %5000 = vmatpush1.bf16.msra.mxu0 %v4592
    %5001 = vmatprep.subr.bf16.mxu0 0
    %5002 = vmatpush1.bf16.msra.mxu0 %v4595
    %5003 = vmatprep.subr.bf16.mxu0 0
    %5004 = vmatpush1.bf16.msra.mxu0 %v4598
    %5005 = vmatprep.subr.bf16.mxu0 0
    %5006 = vmatpush1.bf16.msra.mxu0 %v4601
    %5007 = vmatprep.subr.bf16.mxu0 0
    %5008 = vmatpush1.bf16.msra.mxu0 %v4604
    %5009 = vmatprep.subr.bf16.mxu0 0
    %5010 = vmatpush1.bf16.msra.mxu0 %v4607
    %5011 = vmatprep.subr.bf16.mxu0 0
    %5012 = vmatpush1.bf16.msra.mxu0 %v4610
    %5013 = vmatprep.subr.bf16.mxu0 0
    %5014 = vmatpush1.bf16.msra.mxu0 %v4613
    %5015 = vmatprep.mubr.bf16.mxu0 %v70
    %5016 = vmatmul.mubr.bf16.gmra.mrb[0].mxu0 %v69
    %v5017 = vpop.f32.mrb[0].mxu0
    %v5018 = vadd.f32 0.0, %v5017
    %v5019 = vpop.f32.mrb[0].mxu0
    %v5020 = vpop.f32.mrb[0].mxu0
    %v5021 = vadd.f32 0.0, %v5020
    %v5022 = vpop.f32.mrb[0].mxu0
    %5023 = vdwg.mxu0
    %5024 = vmatprep.subr.bf16.mxu0 0
    %5025 = vmatpush1.bf16.msra.mxu0 %v4616
    %5026 = vmatprep.subr.bf16.mxu0 0
    %5027 = vmatpush1.bf16.msra.mxu0 %v4619
    %5028 = vmatprep.subr.bf16.mxu0 0
    %5029 = vmatpush1.bf16.msra.mxu0 %v4622
    %5030 = vmatprep.subr.bf16.mxu0 0
    %5031 = vmatpush1.bf16.msra.mxu0 %v4625
    %5032 = vmatprep.subr.bf16.mxu0 0
    %5033 = vmatpush1.bf16.msra.mxu0 %v4628
    %5034 = vmatprep.subr.bf16.mxu0 0
    %5035 = vmatpush1.bf16.msra.mxu0 %v4631
    %5036 = vmatprep.subr.bf16.mxu0 0
    %5037 = vmatpush1.bf16.msra.mxu0 %v4634
    %5038 = vmatprep.subr.bf16.mxu0 0
    %5039 = vmatpush1.bf16.msra.mxu0 %v4637
    %5040 = vmatprep.subr.bf16.mxu0 0
    %5041 = vmatpush1.bf16.msra.mxu0 %v4640
    %5042 = vmatprep.subr.bf16.mxu0 0
    %5043 = vmatpush1.bf16.msra.mxu0 %v4643
    %5044 = vmatprep.subr.bf16.mxu0 0
    %5045 = vmatpush1.bf16.msra.mxu0 %v4646
    %5046 = vmatprep.subr.bf16.mxu0 0
    %5047 = vmatpush1.bf16.msra.mxu0 %v4649
    %5048 = vmatprep.subr.bf16.mxu0 0
    %5049 = vmatpush1.bf16.msra.mxu0 %v4652
    %5050 = vmatprep.subr.bf16.mxu0 0
    %5051 = vmatpush1.bf16.msra.mxu0 %v4655
    %5052 = vmatprep.subr.bf16.mxu0 0
    %5053 = vmatpush1.bf16.msra.mxu0 %v4658
    %5054 = vmatprep.subr.bf16.mxu0 0
    %5055 = vmatpush1.bf16.msra.mxu0 %v4661
    %5056 = vmatprep.mubr.bf16.mxu0 %v72
    %5057 = vmatmul.mubr.bf16.gmra.mrb[0].mxu0 %v71
    %v5058 = vpop.f32.mrb[0].mxu0
    %v5059 = vadd.f32 %v5018, %v5058
    %v5060 = vpop.f32.mrb[0].mxu0
    %v5061 = vpop.f32.mrb[0].mxu0
    %v5062 = vadd.f32 %v5021, %v5061
    %v5063 = vpop.f32.mrb[0].mxu0
    %5064 = vdwg.mxu0
    %5065 = vmatprep.subr.bf16.mxu0 0
    %5066 = vmatpush1.bf16.msra.mxu0 %v4664
    %5067 = vmatprep.subr.bf16.mxu0 0
    %5068 = vmatpush1.bf16.msra.mxu0 %v4667
    %5069 = vmatprep.subr.bf16.mxu0 0
    %5070 = vmatpush1.bf16.msra.mxu0 %v4670
    %5071 = vmatprep.subr.bf16.mxu0 0
    %5072 = vmatpush1.bf16.msra.mxu0 %v4673
    %5073 = vmatprep.subr.bf16.mxu0 0
    %5074 = vmatpush1.bf16.msra.mxu0 %v4676
    %5075 = vmatprep.subr.bf16.mxu0 0
    %5076 = vmatpush1.bf16.msra.mxu0 %v4679
    %5077 = vmatprep.subr.bf16.mxu0 0
    %5078 = vmatpush1.bf16.msra.mxu0 %v4682
    %5079 = vmatprep.subr.bf16.mxu0 0
    %5080 = vmatpush1.bf16.msra.mxu0 %v4685
    %5081 = vmatprep.subr.bf16.mxu0 0
    %5082 = vmatpush1.bf16.msra.mxu0 %v4688
    %5083 = vmatprep.subr.bf16.mxu0 0
    %5084 = vmatpush1.bf16.msra.mxu0 %v4691
    %5085 = vmatprep.subr.bf16.mxu0 0
    %5086 = vmatpush1.bf16.msra.mxu0 %v4694
    %5087 = vmatprep.subr.bf16.mxu0 0
    %5088 = vmatpush1.bf16.msra.mxu0 %v4697
    %5089 = vmatprep.subr.bf16.mxu0 0
    %5090 = vmatpush1.bf16.msra.mxu0 %v4700
    %5091 = vmatprep.subr.bf16.mxu0 0
    %5092 = vmatpush1.bf16.msra.mxu0 %v4703
    %5093 = vmatprep.subr.bf16.mxu0 0
    %5094 = vmatpush1.bf16.msra.mxu0 %v4706
    %5095 = vmatprep.subr.bf16.mxu0 0
    %5096 = vmatpush1.bf16.msra.mxu0 %v4709
    %5097 = vmatprep.mubr.bf16.mxu0 %v74
    %5098 = vmatmul.mubr.bf16.gmra.mrb[0].mxu0 %v73
    %v5099 = vpop.f32.mrb[0].mxu0
    %v5100 = vadd.f32 %v5059, %v5099
    %v5101 = vpop.f32.mrb[0].mxu0
    %v5102 = vpop.f32.mrb[0].mxu0
    %v5103 = vadd.f32 %v5062, %v5102
    %v5104 = vpop.f32.mrb[0].mxu0
    %5105 = vdwg.mxu0
    %v5106 = vmul.f32 %v3763, 0.5
    %v5107 = vmul.f32 %v3765, 0.5
    %v5108 = vmul.f32 %v3888, 0.5
    %v5109 = vmul.f32 %v3767, 0.5
    %v5110 = vmul.f32 %v3769, 0.5
    %v5111 = vmul.f32 %v3891, 0.5
    %v5112 = vmul.f32 %v3763, 0.70710677
    %v5113 = vmul.f32 %v3765, 0.70710677
    %v5114 = vmul.f32 %v3888, 0.70710677
    %v5115 = vmul.f32 %v3767, 0.70710677
    %v5116 = vmul.f32 %v3769, 0.70710677
    %v5117 = vmul.f32 %v3891, 0.70710677
    %v5118 = verf.f32.pop %v5112
    %v5119 = verf.f32.pop %v5113
    %v5120 = verf.f32.pop %v5114
    %v5121 = verf.f32.pop %v5115
    %v5122 = verf.f32.pop %v5116
    %v5123 = verf.f32.pop %v5117
    %v5124 = vadd.f32 %v5118, 1.0
    %v5125 = vadd.f32 %v5119, 1.0
    %v5126 = vadd.f32 %v5120, 1.0
    %v5127 = vadd.f32 %v5121, 1.0
    %v5128 = vadd.f32 %v5122, 1.0
    %v5129 = vadd.f32 %v5123, 1.0
    %v5130 = vmul.f32 %v5106, %v5124
    %v5131 = vmul.f32 %v5107, %v5125
    %v5132 = vmul.f32 %v5108, %v5126
    %v5133 = vmul.f32 %v5109, %v5127
    %v5134 = vmul.f32 %v5110, %v5128
    %v5135 = vmul.f32 %v5111, %v5129
    %v5136 = vmul.f32 %v5130, %v4975
    %v5137 = vmul.f32 %v5131, %v4977
    %v5138 = vmul.f32 %v5132, %v5100
    %v5139 = vmul.f32 %v5133, %v4979
    %v5140 = vmul.f32 %v5134, %v4981
    %v5141 = vmul.f32 %v5135, %v5103
    %v5142 = vpack.c.bf16 %v5139, %v5136
    %v5143 = vpack.c.bf16 %v5140, %v5137
    %v5144 = vpack.c.bf16 %v5141, %v5138
    %v5145 = vld [vmem:[#allocation7 + $0x480] sm:$0xff]
    %v5146 = vld [vmem:[#allocation7 + $0x488] sm:$0xff]
    %v5147 = vld [vmem:[#allocation7 + $0x490] sm:$0xff]
    %v5148 = vld [vmem:[#allocation7 + $0x498] sm:$0xff]
    %v5149 = vld [vmem:[#allocation7 + $0x4a0] sm:$0xff]
    %v5150 = vld [vmem:[#allocation7 + $0x4a8] sm:$0xff]
    %v5151 = vld [vmem:[#allocation7 + $0x4b0] sm:$0xff]
    %v5152 = vld [vmem:[#allocation7 + $0x4b8] sm:$0xff]
    %v5153 = vld [vmem:[#allocation7 + $0x4c0] sm:$0xff]
    %v5154 = vld [vmem:[#allocation7 + $0x4c8] sm:$0xff]
    %v5155 = vld [vmem:[#allocation7 + $0x4d0] sm:$0xff]
    %v5156 = vld [vmem:[#allocation7 + $0x4d8] sm:$0xff]
    %v5157 = vld [vmem:[#allocation7 + $0x4e0] sm:$0xff]
    %v5158 = vld [vmem:[#allocation7 + $0x4e8] sm:$0xff]
    %v5159 = vld [vmem:[#allocation7 + $0x4f0] sm:$0xff]
    %v5160 = vld [vmem:[#allocation7 + $0x4f8] sm:$0xff]
    %v5161 = vld [vmem:[#allocation7 + $0x500] sm:$0xff]
    %v5162 = vld [vmem:[#allocation7 + $0x508] sm:$0xff]
    %v5163 = vld [vmem:[#allocation7 + $0x510] sm:$0xff]
    %v5164 = vld [vmem:[#allocation7 + $0x518] sm:$0xff]
    %v5165 = vld [vmem:[#allocation7 + $0x520] sm:$0xff]
    %v5166 = vld [vmem:[#allocation7 + $0x528] sm:$0xff]
    %v5167 = vld [vmem:[#allocation7 + $0x530] sm:$0xff]
    %v5168 = vld [vmem:[#allocation7 + $0x538] sm:$0xff]
    %v5169 = vld [vmem:[#allocation7 + $0x540] sm:$0xff]
    %v5170 = vld [vmem:[#allocation7 + $0x548] sm:$0xff]
    %v5171 = vld [vmem:[#allocation7 + $0x550] sm:$0xff]
    %v5172 = vld [vmem:[#allocation7 + $0x558] sm:$0xff]
    %v5173 = vld [vmem:[#allocation7 + $0x560] sm:$0xff]
    %v5174 = vld [vmem:[#allocation7 + $0x568] sm:$0xff]
    %v5175 = vld [vmem:[#allocation7 + $0x570] sm:$0xff]
    %v5176 = vld [vmem:[#allocation7 + $0x578] sm:$0xff]
    %v5177 = vld [vmem:[#allocation7 + $0x580] sm:$0xff]
    %v5178 = vld [vmem:[#allocation7 + $0x588] sm:$0xff]
    %v5179 = vld [vmem:[#allocation7 + $0x590] sm:$0xff]
    %v5180 = vld [vmem:[#allocation7 + $0x598] sm:$0xff]
    %v5181 = vld [vmem:[#allocation7 + $0x5a0] sm:$0xff]
    %v5182 = vld [vmem:[#allocation7 + $0x5a8] sm:$0xff]
    %v5183 = vld [vmem:[#allocation7 + $0x5b0] sm:$0xff]
    %v5184 = vld [vmem:[#allocation7 + $0x5b8] sm:$0xff]
    %v5185 = vld [vmem:[#allocation7 + $0x5c0] sm:$0xff]
    %v5186 = vld [vmem:[#allocation7 + $0x5c8] sm:$0xff]
    %v5187 = vld [vmem:[#allocation7 + $0x5d0] sm:$0xff]
    %v5188 = vld [vmem:[#allocation7 + $0x5d8] sm:$0xff]
    %v5189 = vld [vmem:[#allocation7 + $0x5e0] sm:$0xff]
    %v5190 = vld [vmem:[#allocation7 + $0x5e8] sm:$0xff]
    %v5191 = vld [vmem:[#allocation7 + $0x5f0] sm:$0xff]
    %v5192 = vld [vmem:[#allocation7 + $0x5f8] sm:$0xff]
    %v5193 = vld [vmem:[#allocation7 + $0x600] sm:$0xff]
    %v5194 = vld [vmem:[#allocation7 + $0x608] sm:$0xff]
    %v5195 = vld [vmem:[#allocation7 + $0x610] sm:$0xff]
    %v5196 = vld [vmem:[#allocation7 + $0x618] sm:$0xff]
    %v5197 = vld [vmem:[#allocation7 + $0x620] sm:$0xff]
    %v5198 = vld [vmem:[#allocation7 + $0x628] sm:$0xff]
    %v5199 = vld [vmem:[#allocation7 + $0x630] sm:$0xff]
    %v5200 = vld [vmem:[#allocation7 + $0x638] sm:$0xff]
    %v5201 = vld [vmem:[#allocation7 + $0x640] sm:$0xff]
    %v5202 = vld [vmem:[#allocation7 + $0x648] sm:$0xff]
    %v5203 = vld [vmem:[#allocation7 + $0x650] sm:$0xff]
    %v5204 = vld [vmem:[#allocation7 + $0x658] sm:$0xff]
    %v5205 = vld [vmem:[#allocation7 + $0x660] sm:$0xff]
    %v5206 = vld [vmem:[#allocation7 + $0x668] sm:$0xff]
    %v5207 = vld [vmem:[#allocation7 + $0x670] sm:$0xff]
    %v5208 = vld [vmem:[#allocation7 + $0x678] sm:$0xff]
    %v5209 = vld [vmem:[#allocation7 + $0x680] sm:$0xff]
    %v5210 = vld [vmem:[#allocation7 + $0x688] sm:$0xff]
    %v5211 = vld [vmem:[#allocation7 + $0x690] sm:$0xff]
    %v5212 = vld [vmem:[#allocation7 + $0x698] sm:$0xff]
    %v5213 = vld [vmem:[#allocation7 + $0x6a0] sm:$0xff]
    %v5214 = vld [vmem:[#allocation7 + $0x6a8] sm:$0xff]
    %v5215 = vld [vmem:[#allocation7 + $0x6b0] sm:$0xff]
    %v5216 = vld [vmem:[#allocation7 + $0x6b8] sm:$0xff]
    %v5217 = vld [vmem:[#allocation7 + $0x6c0] sm:$0xff]
    %v5218 = vld [vmem:[#allocation7 + $0x6c8] sm:$0xff]
    %v5219 = vld [vmem:[#allocation7 + $0x6d0] sm:$0xff]
    %v5220 = vld [vmem:[#allocation7 + $0x6d8] sm:$0xff]
    %v5221 = vld [vmem:[#allocation7 + $0x6e0] sm:$0xff]
    %v5222 = vld [vmem:[#allocation7 + $0x6e8] sm:$0xff]
    %v5223 = vld [vmem:[#allocation7 + $0x6f0] sm:$0xff]
    %v5224 = vld [vmem:[#allocation7 + $0x6f8] sm:$0xff]
    %v5225 = vld [vmem:[#allocation7 + $0x700] sm:$0xff]
    %v5226 = vld [vmem:[#allocation7 + $0x708] sm:$0xff]
    %v5227 = vld [vmem:[#allocation7 + $0x710] sm:$0xff]
    %v5228 = vld [vmem:[#allocation7 + $0x718] sm:$0xff]
    %v5229 = vld [vmem:[#allocation7 + $0x720] sm:$0xff]
    %v5230 = vld [vmem:[#allocation7 + $0x728] sm:$0xff]
    %v5231 = vld [vmem:[#allocation7 + $0x730] sm:$0xff]
    %v5232 = vld [vmem:[#allocation7 + $0x738] sm:$0xff]
    %v5233 = vld [vmem:[#allocation7 + $0x740] sm:$0xff]
    %v5234 = vld [vmem:[#allocation7 + $0x748] sm:$0xff]
    %v5235 = vld [vmem:[#allocation7 + $0x750] sm:$0xff]
    %v5236 = vld [vmem:[#allocation7 + $0x758] sm:$0xff]
    %v5237 = vld [vmem:[#allocation7 + $0x760] sm:$0xff]
    %v5238 = vld [vmem:[#allocation7 + $0x768] sm:$0xff]
    %v5239 = vld [vmem:[#allocation7 + $0x770] sm:$0xff]
    %v5240 = vld [vmem:[#allocation7 + $0x778] sm:$0xff]
    %v5241 = vld [vmem:[#allocation7 + $0x780] sm:$0xff]
    %v5242 = vld [vmem:[#allocation7 + $0x788] sm:$0xff]
    %v5243 = vld [vmem:[#allocation7 + $0x790] sm:$0xff]
    %v5244 = vld [vmem:[#allocation7 + $0x798] sm:$0xff]
    %v5245 = vld [vmem:[#allocation7 + $0x7a0] sm:$0xff]
    %v5246 = vld [vmem:[#allocation7 + $0x7a8] sm:$0xff]
    %v5247 = vld [vmem:[#allocation7 + $0x7b0] sm:$0xff]
    %v5248 = vld [vmem:[#allocation7 + $0x7b8] sm:$0xff]
    %v5249 = vld [vmem:[#allocation7 + $0x7c0] sm:$0xff]
    %v5250 = vld [vmem:[#allocation7 + $0x7c8] sm:$0xff]
    %v5251 = vld [vmem:[#allocation7 + $0x7d0] sm:$0xff]
    %v5252 = vld [vmem:[#allocation7 + $0x7d8] sm:$0xff]
    %v5253 = vld [vmem:[#allocation7 + $0x7e0] sm:$0xff]
    %v5254 = vld [vmem:[#allocation7 + $0x7e8] sm:$0xff]
    %v5255 = vld [vmem:[#allocation7 + $0x7f0] sm:$0xff]
    %v5256 = vld [vmem:[#allocation7 + $0x7f8] sm:$0xff]
    %v5257 = vld [vmem:[#allocation7 + $0x800] sm:$0xff]
    %v5258 = vld [vmem:[#allocation7 + $0x808] sm:$0xff]
    %v5259 = vld [vmem:[#allocation7 + $0x810] sm:$0xff]
    %v5260 = vld [vmem:[#allocation7 + $0x818] sm:$0xff]
    %v5261 = vld [vmem:[#allocation7 + $0x820] sm:$0xff]
    %v5262 = vld [vmem:[#allocation7 + $0x828] sm:$0xff]
    %v5263 = vld [vmem:[#allocation7 + $0x830] sm:$0xff]
    %v5264 = vld [vmem:[#allocation7 + $0x838] sm:$0xff]
    %v5265 = vld [vmem:[#allocation7 + $0x840] sm:$0xff]
    %v5266 = vld [vmem:[#allocation7 + $0x848] sm:$0xff]
    %v5267 = vld [vmem:[#allocation7 + $0x850] sm:$0xff]
    %v5268 = vld [vmem:[#allocation7 + $0x858] sm:$0xff]
    %v5269 = vld [vmem:[#allocation7 + $0x860] sm:$0xff]
    %v5270 = vld [vmem:[#allocation7 + $0x868] sm:$0xff]
    %v5271 = vld [vmem:[#allocation7 + $0x870] sm:$0xff]
    %v5272 = vld [vmem:[#allocation7 + $0x878] sm:$0xff]
    %v5273 = vld [vmem:[#allocation7 + $0x880] sm:$0xff]
    %v5274 = vld [vmem:[#allocation7 + $0x888] sm:$0xff]
    %v5275 = vld [vmem:[#allocation7 + $0x890] sm:$0xff]
    %v5276 = vld [vmem:[#allocation7 + $0x898] sm:$0xff]
    %v5277 = vld [vmem:[#allocation7 + $0x8a0] sm:$0xff]
    %v5278 = vld [vmem:[#allocation7 + $0x8a8] sm:$0xff]
    %v5279 = vld [vmem:[#allocation7 + $0x8b0] sm:$0xff]
    %v5280 = vld [vmem:[#allocation7 + $0x8b8] sm:$0xff]
    %v5281 = vld [vmem:[#allocation7 + $0x8c0] sm:$0xff]
    %v5282 = vld [vmem:[#allocation7 + $0x8c8] sm:$0xff]
    %v5283 = vld [vmem:[#allocation7 + $0x8d0] sm:$0xff]
    %v5284 = vld [vmem:[#allocation7 + $0x8d8] sm:$0xff]
    %v5285 = vld [vmem:[#allocation7 + $0x8e0] sm:$0xff]
    %v5286 = vld [vmem:[#allocation7 + $0x8e8] sm:$0xff]
    %v5287 = vld [vmem:[#allocation7 + $0x8f0] sm:$0xff]
    %v5288 = vld [vmem:[#allocation7 + $0x8f8] sm:$0xff]
    %v5433 = vunpack.c.l.b16 %v5145
    %v5434 = vunpack.c.h.b16 %v5145
    %v5435 = vunpack.c.l.b16 %v5146
    %v5436 = vunpack.c.h.b16 %v5146
    %v5437 = vunpack.c.l.b16 %v5147
    %v5438 = vunpack.c.h.b16 %v5147
    %v5439 = vunpack.c.l.b16 %v5148
    %v5440 = vunpack.c.h.b16 %v5148
    %v5441 = vunpack.c.l.b16 %v5149
    %v5442 = vunpack.c.h.b16 %v5149
    %v5443 = vunpack.c.l.b16 %v5150
    %v5444 = vunpack.c.h.b16 %v5150
    %v5445 = vunpack.c.l.b16 %v5151
    %v5446 = vunpack.c.h.b16 %v5151
    %v5447 = vunpack.c.l.b16 %v5152
    %v5448 = vunpack.c.h.b16 %v5152
    %v5449 = vunpack.c.l.b16 %v5153
    %v5450 = vunpack.c.h.b16 %v5153
    %v5451 = vunpack.c.l.b16 %v5154
    %v5452 = vunpack.c.h.b16 %v5154
    %v5453 = vunpack.c.l.b16 %v5155
    %v5454 = vunpack.c.h.b16 %v5155
    %v5455 = vunpack.c.l.b16 %v5156
    %v5456 = vunpack.c.h.b16 %v5156
    %v5457 = vunpack.c.l.b16 %v5157
    %v5458 = vunpack.c.h.b16 %v5157
    %v5459 = vunpack.c.l.b16 %v5158
    %v5460 = vunpack.c.h.b16 %v5158
    %v5461 = vunpack.c.l.b16 %v5159
    %v5462 = vunpack.c.h.b16 %v5159
    %v5463 = vunpack.c.l.b16 %v5160
    %v5464 = vunpack.c.h.b16 %v5160
    %v5465 = vunpack.c.l.b16 %v5161
    %v5466 = vunpack.c.h.b16 %v5161
    %v5467 = vunpack.c.l.b16 %v5162
    %v5468 = vunpack.c.h.b16 %v5162
    %v5469 = vunpack.c.l.b16 %v5163
    %v5470 = vunpack.c.h.b16 %v5163
    %v5471 = vunpack.c.l.b16 %v5164
    %v5472 = vunpack.c.h.b16 %v5164
    %v5473 = vunpack.c.l.b16 %v5165
    %v5474 = vunpack.c.h.b16 %v5165
    %v5475 = vunpack.c.l.b16 %v5166
    %v5476 = vunpack.c.h.b16 %v5166
    %v5477 = vunpack.c.l.b16 %v5167
    %v5478 = vunpack.c.h.b16 %v5167
    %v5479 = vunpack.c.l.b16 %v5168
    %v5480 = vunpack.c.h.b16 %v5168
    %v5481 = vunpack.c.l.b16 %v5169
    %v5482 = vunpack.c.h.b16 %v5169
    %v5483 = vunpack.c.l.b16 %v5170
    %v5484 = vunpack.c.h.b16 %v5170
    %v5485 = vunpack.c.l.b16 %v5171
    %v5486 = vunpack.c.h.b16 %v5171
    %v5487 = vunpack.c.l.b16 %v5172
    %v5488 = vunpack.c.h.b16 %v5172
    %v5489 = vunpack.c.l.b16 %v5173
    %v5490 = vunpack.c.h.b16 %v5173
    %v5491 = vunpack.c.l.b16 %v5174
    %v5492 = vunpack.c.h.b16 %v5174
    %v5493 = vunpack.c.l.b16 %v5175
    %v5494 = vunpack.c.h.b16 %v5175
    %v5495 = vunpack.c.l.b16 %v5176
    %v5496 = vunpack.c.h.b16 %v5176
    %v5497 = vunpack.c.l.b16 %v5177
    %v5498 = vunpack.c.h.b16 %v5177
    %v5499 = vunpack.c.l.b16 %v5178
    %v5500 = vunpack.c.h.b16 %v5178
    %v5501 = vunpack.c.l.b16 %v5179
    %v5502 = vunpack.c.h.b16 %v5179
    %v5503 = vunpack.c.l.b16 %v5180
    %v5504 = vunpack.c.h.b16 %v5180
    %v5505 = vunpack.c.l.b16 %v5181
    %v5506 = vunpack.c.h.b16 %v5181
    %v5507 = vunpack.c.l.b16 %v5182
    %v5508 = vunpack.c.h.b16 %v5182
    %v5509 = vunpack.c.l.b16 %v5183
    %v5510 = vunpack.c.h.b16 %v5183
    %v5511 = vunpack.c.l.b16 %v5184
    %v5512 = vunpack.c.h.b16 %v5184
    %v5513 = vunpack.c.l.b16 %v5185
    %v5514 = vunpack.c.h.b16 %v5185
    %v5515 = vunpack.c.l.b16 %v5186
    %v5516 = vunpack.c.h.b16 %v5186
    %v5517 = vunpack.c.l.b16 %v5187
    %v5518 = vunpack.c.h.b16 %v5187
    %v5519 = vunpack.c.l.b16 %v5188
    %v5520 = vunpack.c.h.b16 %v5188
    %v5521 = vunpack.c.l.b16 %v5189
    %v5522 = vunpack.c.h.b16 %v5189
    %v5523 = vunpack.c.l.b16 %v5190
    %v5524 = vunpack.c.h.b16 %v5190
    %v5525 = vunpack.c.l.b16 %v5191
    %v5526 = vunpack.c.h.b16 %v5191
    %v5527 = vunpack.c.l.b16 %v5192
    %v5528 = vunpack.c.h.b16 %v5192
    %v5529 = vunpack.c.l.b16 %v5193
    %v5530 = vunpack.c.h.b16 %v5193
    %v5531 = vunpack.c.l.b16 %v5194
    %v5532 = vunpack.c.h.b16 %v5194
    %v5533 = vunpack.c.l.b16 %v5195
    %v5534 = vunpack.c.h.b16 %v5195
    %v5535 = vunpack.c.l.b16 %v5196
    %v5536 = vunpack.c.h.b16 %v5196
    %v5537 = vunpack.c.l.b16 %v5197
    %v5538 = vunpack.c.h.b16 %v5197
    %v5539 = vunpack.c.l.b16 %v5198
    %v5540 = vunpack.c.h.b16 %v5198
    %v5541 = vunpack.c.l.b16 %v5199
    %v5542 = vunpack.c.h.b16 %v5199
    %v5543 = vunpack.c.l.b16 %v5200
    %v5544 = vunpack.c.h.b16 %v5200
    %v5545 = vunpack.c.l.b16 %v5201
    %v5546 = vunpack.c.h.b16 %v5201
    %v5547 = vunpack.c.l.b16 %v5202
    %v5548 = vunpack.c.h.b16 %v5202
    %v5549 = vunpack.c.l.b16 %v5203
    %v5550 = vunpack.c.h.b16 %v5203
    %v5551 = vunpack.c.l.b16 %v5204
    %v5552 = vunpack.c.h.b16 %v5204
    %v5553 = vunpack.c.l.b16 %v5205
    %v5554 = vunpack.c.h.b16 %v5205
    %v5555 = vunpack.c.l.b16 %v5206
    %v5556 = vunpack.c.h.b16 %v5206
    %v5557 = vunpack.c.l.b16 %v5207
    %v5558 = vunpack.c.h.b16 %v5207
    %v5559 = vunpack.c.l.b16 %v5208
    %v5560 = vunpack.c.h.b16 %v5208
    %v5561 = vunpack.c.l.b16 %v5209
    %v5562 = vunpack.c.h.b16 %v5209
    %v5563 = vunpack.c.l.b16 %v5210
    %v5564 = vunpack.c.h.b16 %v5210
    %v5565 = vunpack.c.l.b16 %v5211
    %v5566 = vunpack.c.h.b16 %v5211
    %v5567 = vunpack.c.l.b16 %v5212
    %v5568 = vunpack.c.h.b16 %v5212
    %v5569 = vunpack.c.l.b16 %v5213
    %v5570 = vunpack.c.h.b16 %v5213
    %v5571 = vunpack.c.l.b16 %v5214
    %v5572 = vunpack.c.h.b16 %v5214
    %v5573 = vunpack.c.l.b16 %v5215
    %v5574 = vunpack.c.h.b16 %v5215
    %v5575 = vunpack.c.l.b16 %v5216
    %v5576 = vunpack.c.h.b16 %v5216
    %v5577 = vunpack.c.l.b16 %v5217
    %v5578 = vunpack.c.h.b16 %v5217
    %v5579 = vunpack.c.l.b16 %v5218
    %v5580 = vunpack.c.h.b16 %v5218
    %v5581 = vunpack.c.l.b16 %v5219
    %v5582 = vunpack.c.h.b16 %v5219
    %v5583 = vunpack.c.l.b16 %v5220
    %v5584 = vunpack.c.h.b16 %v5220
    %v5585 = vunpack.c.l.b16 %v5221
    %v5586 = vunpack.c.h.b16 %v5221
    %v5587 = vunpack.c.l.b16 %v5222
    %v5588 = vunpack.c.h.b16 %v5222
    %v5589 = vunpack.c.l.b16 %v5223
    %v5590 = vunpack.c.h.b16 %v5223
    %v5591 = vunpack.c.l.b16 %v5224
    %v5592 = vunpack.c.h.b16 %v5224
    %v5593 = vunpack.c.l.b16 %v5225
    %v5594 = vunpack.c.h.b16 %v5225
    %v5595 = vunpack.c.l.b16 %v5226
    %v5596 = vunpack.c.h.b16 %v5226
    %v5597 = vunpack.c.l.b16 %v5227
    %v5598 = vunpack.c.h.b16 %v5227
    %v5599 = vunpack.c.l.b16 %v5228
    %v5600 = vunpack.c.h.b16 %v5228
    %v5601 = vunpack.c.l.b16 %v5229
    %v5602 = vunpack.c.h.b16 %v5229
    %v5603 = vunpack.c.l.b16 %v5230
    %v5604 = vunpack.c.h.b16 %v5230
    %v5605 = vunpack.c.l.b16 %v5231
    %v5606 = vunpack.c.h.b16 %v5231
    %v5607 = vunpack.c.l.b16 %v5232
    %v5608 = vunpack.c.h.b16 %v5232
    %v5609 = vunpack.c.l.b16 %v5233
    %v5610 = vunpack.c.h.b16 %v5233
    %v5611 = vunpack.c.l.b16 %v5234
    %v5612 = vunpack.c.h.b16 %v5234
    %v5613 = vunpack.c.l.b16 %v5235
    %v5614 = vunpack.c.h.b16 %v5235
    %v5615 = vunpack.c.l.b16 %v5236
    %v5616 = vunpack.c.h.b16 %v5236
    %v5617 = vunpack.c.l.b16 %v5237
    %v5618 = vunpack.c.h.b16 %v5237
    %v5619 = vunpack.c.l.b16 %v5238
    %v5620 = vunpack.c.h.b16 %v5238
    %v5621 = vunpack.c.l.b16 %v5239
    %v5622 = vunpack.c.h.b16 %v5239
    %v5623 = vunpack.c.l.b16 %v5240
    %v5624 = vunpack.c.h.b16 %v5240
    %v5625 = vunpack.c.l.b16 %v5241
    %v5626 = vunpack.c.h.b16 %v5241
    %v5627 = vunpack.c.l.b16 %v5242
    %v5628 = vunpack.c.h.b16 %v5242
    %v5629 = vunpack.c.l.b16 %v5243
    %v5630 = vunpack.c.h.b16 %v5243
    %v5631 = vunpack.c.l.b16 %v5244
    %v5632 = vunpack.c.h.b16 %v5244
    %v5633 = vunpack.c.l.b16 %v5245
    %v5634 = vunpack.c.h.b16 %v5245
    %v5635 = vunpack.c.l.b16 %v5246
    %v5636 = vunpack.c.h.b16 %v5246
    %v5637 = vunpack.c.l.b16 %v5247
    %v5638 = vunpack.c.h.b16 %v5247
    %v5639 = vunpack.c.l.b16 %v5248
    %v5640 = vunpack.c.h.b16 %v5248
    %v5641 = vunpack.c.l.b16 %v5249
    %v5642 = vunpack.c.h.b16 %v5249
    %v5643 = vunpack.c.l.b16 %v5250
    %v5644 = vunpack.c.h.b16 %v5250
    %v5645 = vunpack.c.l.b16 %v5251
    %v5646 = vunpack.c.h.b16 %v5251
    %v5647 = vunpack.c.l.b16 %v5252
    %v5648 = vunpack.c.h.b16 %v5252
    %v5649 = vunpack.c.l.b16 %v5253
    %v5650 = vunpack.c.h.b16 %v5253
    %v5651 = vunpack.c.l.b16 %v5254
    %v5652 = vunpack.c.h.b16 %v5254
    %v5653 = vunpack.c.l.b16 %v5255
    %v5654 = vunpack.c.h.b16 %v5255
    %v5655 = vunpack.c.l.b16 %v5256
    %v5656 = vunpack.c.h.b16 %v5256
    %v5657 = vunpack.c.l.b16 %v5257
    %v5658 = vunpack.c.h.b16 %v5257
    %v5659 = vunpack.c.l.b16 %v5258
    %v5660 = vunpack.c.h.b16 %v5258
    %v5661 = vunpack.c.l.b16 %v5259
    %v5662 = vunpack.c.h.b16 %v5259
    %v5663 = vunpack.c.l.b16 %v5260
    %v5664 = vunpack.c.h.b16 %v5260
    %v5665 = vunpack.c.l.b16 %v5261
    %v5666 = vunpack.c.h.b16 %v5261
    %v5667 = vunpack.c.l.b16 %v5262
    %v5668 = vunpack.c.h.b16 %v5262
    %v5669 = vunpack.c.l.b16 %v5263
    %v5670 = vunpack.c.h.b16 %v5263
    %v5671 = vunpack.c.l.b16 %v5264
    %v5672 = vunpack.c.h.b16 %v5264
    %v5673 = vunpack.c.l.b16 %v5265
    %v5674 = vunpack.c.h.b16 %v5265
    %v5675 = vunpack.c.l.b16 %v5266
    %v5676 = vunpack.c.h.b16 %v5266
    %v5677 = vunpack.c.l.b16 %v5267
    %v5678 = vunpack.c.h.b16 %v5267
    %v5679 = vunpack.c.l.b16 %v5268
    %v5680 = vunpack.c.h.b16 %v5268
    %v5681 = vunpack.c.l.b16 %v5269
    %v5682 = vunpack.c.h.b16 %v5269
    %v5683 = vunpack.c.l.b16 %v5270
    %v5684 = vunpack.c.h.b16 %v5270
    %v5685 = vunpack.c.l.b16 %v5271
    %v5686 = vunpack.c.h.b16 %v5271
    %v5687 = vunpack.c.l.b16 %v5272
    %v5688 = vunpack.c.h.b16 %v5272
    %v5689 = vunpack.c.l.b16 %v5273
    %v5690 = vunpack.c.h.b16 %v5273
    %v5691 = vunpack.c.l.b16 %v5274
    %v5692 = vunpack.c.h.b16 %v5274
    %v5693 = vunpack.c.l.b16 %v5275
    %v5694 = vunpack.c.h.b16 %v5275
    %v5695 = vunpack.c.l.b16 %v5276
    %v5696 = vunpack.c.h.b16 %v5276
    %v5697 = vunpack.c.l.b16 %v5277
    %v5698 = vunpack.c.h.b16 %v5277
    %v5699 = vunpack.c.l.b16 %v5278
    %v5700 = vunpack.c.h.b16 %v5278
    %v5701 = vunpack.c.l.b16 %v5279
    %v5702 = vunpack.c.h.b16 %v5279
    %v5703 = vunpack.c.l.b16 %v5280
    %v5704 = vunpack.c.h.b16 %v5280
    %v5705 = vunpack.c.l.b16 %v5281
    %v5706 = vunpack.c.h.b16 %v5281
    %v5707 = vunpack.c.l.b16 %v5282
    %v5708 = vunpack.c.h.b16 %v5282
    %v5709 = vunpack.c.l.b16 %v5283
    %v5710 = vunpack.c.h.b16 %v5283
    %v5711 = vunpack.c.l.b16 %v5284
    %v5712 = vunpack.c.h.b16 %v5284
    %v5713 = vunpack.c.l.b16 %v5285
    %v5714 = vunpack.c.h.b16 %v5285
    %v5715 = vunpack.c.l.b16 %v5286
    %v5716 = vunpack.c.h.b16 %v5286
    %v5717 = vunpack.c.l.b16 %v5287
    %v5718 = vunpack.c.h.b16 %v5287
    %v5719 = vunpack.c.l.b16 %v5288
    %v5720 = vunpack.c.h.b16 %v5288
    %v5721 = vpack.c.b16 %v5439, %v5433
    %v5722 = vpack.c.b16 %v5440, %v5434
    %v5723 = vpack.c.b16 %v5441, %v5435
    %v5724 = vpack.c.b16 %v5442, %v5436
    %v5725 = vpack.c.b16 %v5443, %v5437
    %v5726 = vpack.c.b16 %v5444, %v5438
    %v5727 = vpack.c.b16 %v5451, %v5445
    %v5728 = vpack.c.b16 %v5452, %v5446
    %v5729 = vpack.c.b16 %v5453, %v5447
    %v5730 = vpack.c.b16 %v5454, %v5448
    %v5731 = vpack.c.b16 %v5455, %v5449
    %v5732 = vpack.c.b16 %v5456, %v5450
    %v5733 = vpack.c.b16 %v5463, %v5457
    %v5734 = vpack.c.b16 %v5464, %v5458
    %v5735 = vpack.c.b16 %v5465, %v5459
    %v5736 = vpack.c.b16 %v5466, %v5460
    %v5737 = vpack.c.b16 %v5467, %v5461
    %v5738 = vpack.c.b16 %v5468, %v5462
    %v5739 = vpack.c.b16 %v5475, %v5469
    %v5740 = vpack.c.b16 %v5476, %v5470
    %v5741 = vpack.c.b16 %v5477, %v5471
    %v5742 = vpack.c.b16 %v5478, %v5472
    %v5743 = vpack.c.b16 %v5479, %v5473
    %v5744 = vpack.c.b16 %v5480, %v5474
    %v5745 = vpack.c.b16 %v5487, %v5481
    %v5746 = vpack.c.b16 %v5488, %v5482
    %v5747 = vpack.c.b16 %v5489, %v5483
    %v5748 = vpack.c.b16 %v5490, %v5484
    %v5749 = vpack.c.b16 %v5491, %v5485
    %v5750 = vpack.c.b16 %v5492, %v5486
    %v5751 = vpack.c.b16 %v5499, %v5493
    %v5752 = vpack.c.b16 %v5500, %v5494
    %v5753 = vpack.c.b16 %v5501, %v5495
    %v5754 = vpack.c.b16 %v5502, %v5496
    %v5755 = vpack.c.b16 %v5503, %v5497
    %v5756 = vpack.c.b16 %v5504, %v5498
    %v5757 = vpack.c.b16 %v5511, %v5505
    %v5758 = vpack.c.b16 %v5512, %v5506
    %v5759 = vpack.c.b16 %v5513, %v5507
    %v5760 = vpack.c.b16 %v5514, %v5508
    %v5761 = vpack.c.b16 %v5515, %v5509
    %v5762 = vpack.c.b16 %v5516, %v5510
    %v5763 = vpack.c.b16 %v5523, %v5517
    %v5764 = vpack.c.b16 %v5524, %v5518
    %v5765 = vpack.c.b16 %v5525, %v5519
    %v5766 = vpack.c.b16 %v5526, %v5520
    %v5767 = vpack.c.b16 %v5527, %v5521
    %v5768 = vpack.c.b16 %v5528, %v5522
    %v5769 = vpack.c.b16 %v5535, %v5529
    %v5770 = vpack.c.b16 %v5536, %v5530
    %v5771 = vpack.c.b16 %v5537, %v5531
    %v5772 = vpack.c.b16 %v5538, %v5532
    %v5773 = vpack.c.b16 %v5539, %v5533
    %v5774 = vpack.c.b16 %v5540, %v5534
    %v5775 = vpack.c.b16 %v5547, %v5541
    %v5776 = vpack.c.b16 %v5548, %v5542
    %v5777 = vpack.c.b16 %v5549, %v5543
    %v5778 = vpack.c.b16 %v5550, %v5544
    %v5779 = vpack.c.b16 %v5551, %v5545
    %v5780 = vpack.c.b16 %v5552, %v5546
    %v5781 = vpack.c.b16 %v5559, %v5553
    %v5782 = vpack.c.b16 %v5560, %v5554
    %v5783 = vpack.c.b16 %v5561, %v5555
    %v5784 = vpack.c.b16 %v5562, %v5556
    %v5785 = vpack.c.b16 %v5563, %v5557
    %v5786 = vpack.c.b16 %v5564, %v5558
    %v5787 = vpack.c.b16 %v5571, %v5565
    %v5788 = vpack.c.b16 %v5572, %v5566
    %v5789 = vpack.c.b16 %v5573, %v5567
    %v5790 = vpack.c.b16 %v5574, %v5568
    %v5791 = vpack.c.b16 %v5575, %v5569
    %v5792 = vpack.c.b16 %v5576, %v5570
    %v5793 = vpack.c.b16 %v5583, %v5577
    %v5794 = vpack.c.b16 %v5584, %v5578
    %v5795 = vpack.c.b16 %v5585, %v5579
    %v5796 = vpack.c.b16 %v5586, %v5580
    %v5797 = vpack.c.b16 %v5587, %v5581
    %v5798 = vpack.c.b16 %v5588, %v5582
    %v5799 = vpack.c.b16 %v5595, %v5589
    %v5800 = vpack.c.b16 %v5596, %v5590
    %v5801 = vpack.c.b16 %v5597, %v5591
    %v5802 = vpack.c.b16 %v5598, %v5592
    %v5803 = vpack.c.b16 %v5599, %v5593
    %v5804 = vpack.c.b16 %v5600, %v5594
    %v5805 = vpack.c.b16 %v5607, %v5601
    %v5806 = vpack.c.b16 %v5608, %v5602
    %v5807 = vpack.c.b16 %v5609, %v5603
    %v5808 = vpack.c.b16 %v5610, %v5604
    %v5809 = vpack.c.b16 %v5611, %v5605
    %v5810 = vpack.c.b16 %v5612, %v5606
    %v5811 = vpack.c.b16 %v5619, %v5613
    %v5812 = vpack.c.b16 %v5620, %v5614
    %v5813 = vpack.c.b16 %v5621, %v5615
    %v5814 = vpack.c.b16 %v5622, %v5616
    %v5815 = vpack.c.b16 %v5623, %v5617
    %v5816 = vpack.c.b16 %v5624, %v5618
    %v5817 = vpack.c.b16 %v5631, %v5625
    %v5818 = vpack.c.b16 %v5632, %v5626
    %v5819 = vpack.c.b16 %v5633, %v5627
    %v5820 = vpack.c.b16 %v5634, %v5628
    %v5821 = vpack.c.b16 %v5635, %v5629
    %v5822 = vpack.c.b16 %v5636, %v5630
    %v5823 = vpack.c.b16 %v5643, %v5637
    %v5824 = vpack.c.b16 %v5644, %v5638
    %v5825 = vpack.c.b16 %v5645, %v5639
    %v5826 = vpack.c.b16 %v5646, %v5640
    %v5827 = vpack.c.b16 %v5647, %v5641
    %v5828 = vpack.c.b16 %v5648, %v5642
    %v5829 = vpack.c.b16 %v5655, %v5649
    %v5830 = vpack.c.b16 %v5656, %v5650
    %v5831 = vpack.c.b16 %v5657, %v5651
    %v5832 = vpack.c.b16 %v5658, %v5652
    %v5833 = vpack.c.b16 %v5659, %v5653
    %v5834 = vpack.c.b16 %v5660, %v5654
    %v5835 = vpack.c.b16 %v5667, %v5661
    %v5836 = vpack.c.b16 %v5668, %v5662
    %v5837 = vpack.c.b16 %v5669, %v5663
    %v5838 = vpack.c.b16 %v5670, %v5664
    %v5839 = vpack.c.b16 %v5671, %v5665
    %v5840 = vpack.c.b16 %v5672, %v5666
    %v5841 = vpack.c.b16 %v5679, %v5673
    %v5842 = vpack.c.b16 %v5680, %v5674
    %v5843 = vpack.c.b16 %v5681, %v5675
    %v5844 = vpack.c.b16 %v5682, %v5676
    %v5845 = vpack.c.b16 %v5683, %v5677
    %v5846 = vpack.c.b16 %v5684, %v5678
    %v5847 = vpack.c.b16 %v5691, %v5685
    %v5848 = vpack.c.b16 %v5692, %v5686
    %v5849 = vpack.c.b16 %v5693, %v5687
    %v5850 = vpack.c.b16 %v5694, %v5688
    %v5851 = vpack.c.b16 %v5695, %v5689
    %v5852 = vpack.c.b16 %v5696, %v5690
    %v5853 = vpack.c.b16 %v5703, %v5697
    %v5854 = vpack.c.b16 %v5704, %v5698
    %v5855 = vpack.c.b16 %v5705, %v5699
    %v5856 = vpack.c.b16 %v5706, %v5700
    %v5857 = vpack.c.b16 %v5707, %v5701
    %v5858 = vpack.c.b16 %v5708, %v5702
    %v5859 = vpack.c.b16 %v5715, %v5709
    %v5860 = vpack.c.b16 %v5716, %v5710
    %v5861 = vpack.c.b16 %v5717, %v5711
    %v5862 = vpack.c.b16 %v5718, %v5712
    %v5863 = vpack.c.b16 %v5719, %v5713
    %v5864 = vpack.c.b16 %v5720, %v5714
    %6009 = vmatprep.subr.bf16.mxu0 %v5722
    %6010 = vmatpush1.bf16.msra.mxu0 %v5721
    %6011 = vmatprep.subr.bf16.mxu0 %v5728
    %6012 = vmatpush1.bf16.msra.mxu0 %v5727
    %6013 = vmatprep.subr.bf16.mxu0 %v5734
    %6014 = vmatpush1.bf16.msra.mxu0 %v5733
    %6015 = vmatprep.subr.bf16.mxu0 %v5740
    %6016 = vmatpush1.bf16.msra.mxu0 %v5739
    %6017 = vmatprep.subr.bf16.mxu0 %v5746
    %6018 = vmatpush1.bf16.msra.mxu0 %v5745
    %6019 = vmatprep.subr.bf16.mxu0 %v5752
    %6020 = vmatpush1.bf16.msra.mxu0 %v5751
    %6021 = vmatprep.subr.bf16.mxu0 %v5758
    %6022 = vmatpush1.bf16.msra.mxu0 %v5757
    %6023 = vmatprep.subr.bf16.mxu0 %v5764
    %6024 = vmatpush1.bf16.msra.mxu0 %v5763
    %6025 = vmatprep.subr.bf16.mxu0 %v5770
    %6026 = vmatpush1.bf16.msra.mxu0 %v5769
    %6027 = vmatprep.subr.bf16.mxu0 %v5776
    %6028 = vmatpush1.bf16.msra.mxu0 %v5775
    %6029 = vmatprep.subr.bf16.mxu0 %v5782
    %6030 = vmatpush1.bf16.msra.mxu0 %v5781
    %6031 = vmatprep.subr.bf16.mxu0 %v5788
    %6032 = vmatpush1.bf16.msra.mxu0 %v5787
    %6033 = vmatprep.subr.bf16.mxu0 %v5794
    %6034 = vmatpush1.bf16.msra.mxu0 %v5793
    %6035 = vmatprep.subr.bf16.mxu0 %v5800
    %6036 = vmatpush1.bf16.msra.mxu0 %v5799
    %6037 = vmatprep.subr.bf16.mxu0 %v5806
    %6038 = vmatpush1.bf16.msra.mxu0 %v5805
    %6039 = vmatprep.subr.bf16.mxu0 %v5812
    %6040 = vmatpush1.bf16.msra.mxu0 %v5811
    %6041 = vmatprep.mubr.bf16.mxu0 %v5143
    %6042 = vmatmul.mubr.bf16.gmra.mrb[0].mxu0 %v5142
    %v6043 = vpop.f32.mrb[0].mxu0
    %v6044 = vadd.f32 0.0, %v6043
    %v6045 = vpop.f32.mrb[0].mxu0
    %v6046 = vadd.f32 0.0, %v6045
    %v6047 = vpop.f32.mrb[0].mxu0
    %v6048 = vadd.f32 0.0, %v6047
    %v6049 = vpop.f32.mrb[0].mxu0
    %v6050 = vadd.f32 0.0, %v6049
    %6051 = vdwg.mxu0
    %6052 = vmatprep.subr.bf16.mxu0 %v5818
    %6053 = vmatpush1.bf16.msra.mxu0 %v5817
    %6054 = vmatprep.subr.bf16.mxu0 %v5824
    %6055 = vmatpush1.bf16.msra.mxu0 %v5823
    %6056 = vmatprep.subr.bf16.mxu0 %v5830
    %6057 = vmatpush1.bf16.msra.mxu0 %v5829
    %6058 = vmatprep.subr.bf16.mxu0 %v5836
    %6059 = vmatpush1.bf16.msra.mxu0 %v5835
    %6060 = vmatprep.subr.bf16.mxu0 %v5842
    %6061 = vmatpush1.bf16.msra.mxu0 %v5841
    %6062 = vmatprep.subr.bf16.mxu0 %v5848
    %6063 = vmatpush1.bf16.msra.mxu0 %v5847
    %6064 = vmatprep.subr.bf16.mxu0 %v5854
    %6065 = vmatpush1.bf16.msra.mxu0 %v5853
    %6066 = vmatprep.subr.bf16.mxu0 %v5860
    %6067 = vmatpush1.bf16.msra.mxu0 %v5859
    %6068 = vmatprep.subr.bf16.mxu0 0
    %6069 = vmatpush1.bf16.msra.mxu0 0
    %6070 = vmatprep.subr.bf16.mxu0 0
    %6071 = vmatpush1.bf16.msra.mxu0 0
    %6072 = vmatprep.subr.bf16.mxu0 0
    %6073 = vmatpush1.bf16.msra.mxu0 0
    %6074 = vmatprep.subr.bf16.mxu0 0
    %6075 = vmatpush1.bf16.msra.mxu0 0
    %6076 = vmatprep.subr.bf16.mxu0 0
    %6077 = vmatpush1.bf16.msra.mxu0 0
    %6078 = vmatprep.subr.bf16.mxu0 0
    %6079 = vmatpush1.bf16.msra.mxu0 0
    %6080 = vmatprep.subr.bf16.mxu0 0
    %6081 = vmatpush1.bf16.msra.mxu0 0
    %6082 = vmatprep.subr.bf16.mxu0 0
    %6083 = vmatpush1.bf16.msra.mxu0 0
    %6084 = vmatprep.mubr.bf16.mxu0 0
    %6085 = vmatmul.mubr.bf16.gmra.mrb[0].mxu0 %v5144
    %v6086 = vpop.f32.mrb[0].mxu0
    %v6087 = vadd.f32 %v6044, %v6086
    %v6088 = vpop.f32.mrb[0].mxu0
    %v6089 = vadd.f32 %v6046, %v6088
    %v6090 = vpop.f32.mrb[0].mxu0
    %v6091 = vadd.f32 %v6048, %v6090
    %v6092 = vpop.f32.mrb[0].mxu0
    %v6093 = vadd.f32 %v6050, %v6092
    %6094 = vdwg.mxu0
    %6095 = vmatprep.subr.bf16.mxu0 %v5724
    %6096 = vmatpush1.bf16.msra.mxu0 %v5723
    %6097 = vmatprep.subr.bf16.mxu0 %v5730
    %6098 = vmatpush1.bf16.msra.mxu0 %v5729
    %6099 = vmatprep.subr.bf16.mxu0 %v5736
    %6100 = vmatpush1.bf16.msra.mxu0 %v5735
    %6101 = vmatprep.subr.bf16.mxu0 %v5742
    %6102 = vmatpush1.bf16.msra.mxu0 %v5741
    %6103 = vmatprep.subr.bf16.mxu0 %v5748
    %6104 = vmatpush1.bf16.msra.mxu0 %v5747
    %6105 = vmatprep.subr.bf16.mxu0 %v5754
    %6106 = vmatpush1.bf16.msra.mxu0 %v5753
    %6107 = vmatprep.subr.bf16.mxu0 %v5760
    %6108 = vmatpush1.bf16.msra.mxu0 %v5759
    %6109 = vmatprep.subr.bf16.mxu0 %v5766
    %6110 = vmatpush1.bf16.msra.mxu0 %v5765
    %6111 = vmatprep.subr.bf16.mxu0 %v5772
    %6112 = vmatpush1.bf16.msra.mxu0 %v5771
    %6113 = vmatprep.subr.bf16.mxu0 %v5778
    %6114 = vmatpush1.bf16.msra.mxu0 %v5777
    %6115 = vmatprep.subr.bf16.mxu0 %v5784
    %6116 = vmatpush1.bf16.msra.mxu0 %v5783
    %6117 = vmatprep.subr.bf16.mxu0 %v5790
    %6118 = vmatpush1.bf16.msra.mxu0 %v5789
    %6119 = vmatprep.subr.bf16.mxu0 %v5796
    %6120 = vmatpush1.bf16.msra.mxu0 %v5795
    %6121 = vmatprep.subr.bf16.mxu0 %v5802
    %6122 = vmatpush1.bf16.msra.mxu0 %v5801
    %6123 = vmatprep.subr.bf16.mxu0 %v5808
    %6124 = vmatpush1.bf16.msra.mxu0 %v5807
    %6125 = vmatprep.subr.bf16.mxu0 %v5814
    %6126 = vmatpush1.bf16.msra.mxu0 %v5813
    %6127 = vmatprep.mubr.bf16.mxu0 %v5143
    %6128 = vmatmul.mubr.bf16.gmra.mrb[0].mxu0 %v5142
    %v6129 = vpop.f32.mrb[0].mxu0
    %v6130 = vadd.f32 0.0, %v6129
    %v6131 = vpop.f32.mrb[0].mxu0
    %v6132 = vadd.f32 0.0, %v6131
    %v6133 = vpop.f32.mrb[0].mxu0
    %v6134 = vadd.f32 0.0, %v6133
    %v6135 = vpop.f32.mrb[0].mxu0
    %v6136 = vadd.f32 0.0, %v6135
    %6137 = vdwg.mxu0
    %6138 = vmatprep.subr.bf16.mxu0 %v5820
    %6139 = vmatpush1.bf16.msra.mxu0 %v5819
    %6140 = vmatprep.subr.bf16.mxu0 %v5826
    %6141 = vmatpush1.bf16.msra.mxu0 %v5825
    %6142 = vmatprep.subr.bf16.mxu0 %v5832
    %6143 = vmatpush1.bf16.msra.mxu0 %v5831
    %6144 = vmatprep.subr.bf16.mxu0 %v5838
    %6145 = vmatpush1.bf16.msra.mxu0 %v5837
    %6146 = vmatprep.subr.bf16.mxu0 %v5844
    %6147 = vmatpush1.bf16.msra.mxu0 %v5843
    %6148 = vmatprep.subr.bf16.mxu0 %v5850
    %6149 = vmatpush1.bf16.msra.mxu0 %v5849
    %6150 = vmatprep.subr.bf16.mxu0 %v5856
    %6151 = vmatpush1.bf16.msra.mxu0 %v5855
    %6152 = vmatprep.subr.bf16.mxu0 %v5862
    %6153 = vmatpush1.bf16.msra.mxu0 %v5861
    %6154 = vmatprep.subr.bf16.mxu0 0
    %6155 = vmatpush1.bf16.msra.mxu0 0
    %6156 = vmatprep.subr.bf16.mxu0 0
    %6157 = vmatpush1.bf16.msra.mxu0 0
    %6158 = vmatprep.subr.bf16.mxu0 0
    %6159 = vmatpush1.bf16.msra.mxu0 0
    %6160 = vmatprep.subr.bf16.mxu0 0
    %6161 = vmatpush1.bf16.msra.mxu0 0
    %6162 = vmatprep.subr.bf16.mxu0 0
    %6163 = vmatpush1.bf16.msra.mxu0 0
    %6164 = vmatprep.subr.bf16.mxu0 0
    %6165 = vmatpush1.bf16.msra.mxu0 0
    %6166 = vmatprep.subr.bf16.mxu0 0
    %6167 = vmatpush1.bf16.msra.mxu0 0
    %6168 = vmatprep.subr.bf16.mxu0 0
    %6169 = vmatpush1.bf16.msra.mxu0 0
    %6170 = vmatprep.mubr.bf16.mxu0 0
    %6171 = vmatmul.mubr.bf16.gmra.mrb[0].mxu0 %v5144
    %v6172 = vpop.f32.mrb[0].mxu0
    %v6173 = vadd.f32 %v6130, %v6172
    %v6174 = vpop.f32.mrb[0].mxu0
    %v6175 = vadd.f32 %v6132, %v6174
    %v6176 = vpop.f32.mrb[0].mxu0
    %v6177 = vadd.f32 %v6134, %v6176
    %v6178 = vpop.f32.mrb[0].mxu0
    %v6179 = vadd.f32 %v6136, %v6178
    %6180 = vdwg.mxu0
    %6181 = vmatprep.subr.bf16.mxu0 %v5726
    %6182 = vmatpush1.bf16.msra.mxu0 %v5725
    %6183 = vmatprep.subr.bf16.mxu0 %v5732
    %6184 = vmatpush1.bf16.msra.mxu0 %v5731
    %6185 = vmatprep.subr.bf16.mxu0 %v5738
    %6186 = vmatpush1.bf16.msra.mxu0 %v5737
    %6187 = vmatprep.subr.bf16.mxu0 %v5744
    %6188 = vmatpush1.bf16.msra.mxu0 %v5743
    %6189 = vmatprep.subr.bf16.mxu0 %v5750
    %6190 = vmatpush1.bf16.msra.mxu0 %v5749
    %6191 = vmatprep.subr.bf16.mxu0 %v5756
    %6192 = vmatpush1.bf16.msra.mxu0 %v5755
    %6193 = vmatprep.subr.bf16.mxu0 %v5762
    %6194 = vmatpush1.bf16.msra.mxu0 %v5761
    %6195 = vmatprep.subr.bf16.mxu0 %v5768
    %6196 = vmatpush1.bf16.msra.mxu0 %v5767
    %6197 = vmatprep.subr.bf16.mxu0 %v5774
    %6198 = vmatpush1.bf16.msra.mxu0 %v5773
    %6199 = vmatprep.subr.bf16.mxu0 %v5780
    %6200 = vmatpush1.bf16.msra.mxu0 %v5779
    %6201 = vmatprep.subr.bf16.mxu0 %v5786
    %6202 = vmatpush1.bf16.msra.mxu0 %v5785
    %6203 = vmatprep.subr.bf16.mxu0 %v5792
    %6204 = vmatpush1.bf16.msra.mxu0 %v5791
    %6205 = vmatprep.subr.bf16.mxu0 %v5798
    %6206 = vmatpush1.bf16.msra.mxu0 %v5797
    %6207 = vmatprep.subr.bf16.mxu0 %v5804
    %6208 = vmatpush1.bf16.msra.mxu0 %v5803
    %6209 = vmatprep.subr.bf16.mxu0 %v5810
    %6210 = vmatpush1.bf16.msra.mxu0 %v5809
    %6211 = vmatprep.subr.bf16.mxu0 %v5816
    %6212 = vmatpush1.bf16.msra.mxu0 %v5815
    %6213 = vmatprep.mubr.bf16.mxu0 %v5143
    %6214 = vmatmul.mubr.bf16.gmra.mrb[0].mxu0 %v5142
    %v6215 = vpop.f32.mrb[0].mxu0
    %v6216 = vadd.f32 0.0, %v6215
    %v6217 = vpop.f32.mrb[0].mxu0
    %v6218 = vadd.f32 0.0, %v6217
    %v6219 = vpop.f32.mrb[0].mxu0
    %v6220 = vadd.f32 0.0, %v6219
    %v6221 = vpop.f32.mrb[0].mxu0
    %v6222 = vadd.f32 0.0, %v6221
    %6223 = vdwg.mxu0
    %6224 = vmatprep.subr.bf16.mxu0 %v5822
    %6225 = vmatpush1.bf16.msra.mxu0 %v5821
    %6226 = vmatprep.subr.bf16.mxu0 %v5828
    %6227 = vmatpush1.bf16.msra.mxu0 %v5827
    %6228 = vmatprep.subr.bf16.mxu0 %v5834
    %6229 = vmatpush1.bf16.msra.mxu0 %v5833
    %6230 = vmatprep.subr.bf16.mxu0 %v5840
    %6231 = vmatpush1.bf16.msra.mxu0 %v5839
    %6232 = vmatprep.subr.bf16.mxu0 %v5846
    %6233 = vmatpush1.bf16.msra.mxu0 %v5845
    %6234 = vmatprep.subr.bf16.mxu0 %v5852
    %6235 = vmatpush1.bf16.msra.mxu0 %v5851
    %6236 = vmatprep.subr.bf16.mxu0 %v5858
    %6237 = vmatpush1.bf16.msra.mxu0 %v5857
    %6238 = vmatprep.subr.bf16.mxu0 %v5864
    %6239 = vmatpush1.bf16.msra.mxu0 %v5863
    %6240 = vmatprep.subr.bf16.mxu0 0
    %6241 = vmatpush1.bf16.msra.mxu0 0
    %6242 = vmatprep.subr.bf16.mxu0 0
    %6243 = vmatpush1.bf16.msra.mxu0 0
    %6244 = vmatprep.subr.bf16.mxu0 0
    %6245 = vmatpush1.bf16.msra.mxu0 0
    %6246 = vmatprep.subr.bf16.mxu0 0
    %6247 = vmatpush1.bf16.msra.mxu0 0
    %6248 = vmatprep.subr.bf16.mxu0 0
    %6249 = vmatpush1.bf16.msra.mxu0 0
    %6250 = vmatprep.subr.bf16.mxu0 0
    %6251 = vmatpush1.bf16.msra.mxu0 0
    %6252 = vmatprep.subr.bf16.mxu0 0
    %6253 = vmatpush1.bf16.msra.mxu0 0
    %6254 = vmatprep.subr.bf16.mxu0 0
    %6255 = vmatpush1.bf16.msra.mxu0 0
    %6256 = vmatprep.mubr.bf16.mxu0 0
    %6257 = vmatmul.mubr.bf16.gmra.mrb[0].mxu0 %v5144
    %v6258 = vpop.f32.mrb[0].mxu0
    %v6259 = vadd.f32 %v6216, %v6258
    %v6260 = vpop.f32.mrb[0].mxu0
    %v6261 = vadd.f32 %v6218, %v6260
    %v6262 = vpop.f32.mrb[0].mxu0
    %v6263 = vadd.f32 %v6220, %v6262
    %v6264 = vpop.f32.mrb[0].mxu0
    %v6265 = vadd.f32 %v6222, %v6264
    %6266 = vdwg.mxu0
    %v6411 = vunpack.c.l.b16 %v2538
    %v6412 = vunpack.c.h.b16 %v2538
    %v6413 = vunpack.c.l.b16 %v2539
    %v6414 = vunpack.c.h.b16 %v2539
    %v6415 = vunpack.c.l.b16 %v2540
    %v6416 = vunpack.c.h.b16 %v2540
    %v6417 = vunpack.c.l.b16 %v2541
    %v6418 = vunpack.c.h.b16 %v2541
    %v6419 = vunpack.c.l.b16 %v2542
    %v6420 = vunpack.c.h.b16 %v2542
    %v6421 = vunpack.c.l.b16 %v2543
    %v6422 = vunpack.c.h.b16 %v2543
    %v6423 = vunpack.c.l.b16 %v2544
    %v6424 = vunpack.c.h.b16 %v2544
    %v6425 = vunpack.c.l.b16 %v2545
    %v6426 = vunpack.c.h.b16 %v2545
    %v6427 = vunpack.c.l.b16 %v2546
    %v6428 = vunpack.c.h.b16 %v2546
    %v6429 = vunpack.c.l.b16 %v2547
    %v6430 = vunpack.c.h.b16 %v2547
    %v6431 = vunpack.c.l.b16 %v2548
    %v6432 = vunpack.c.h.b16 %v2548
    %v6433 = vunpack.c.l.b16 %v2549
    %v6434 = vunpack.c.h.b16 %v2549
    %v6435 = vunpack.c.l.b16 %v2550
    %v6436 = vunpack.c.h.b16 %v2550
    %v6437 = vunpack.c.l.b16 %v2551
    %v6438 = vunpack.c.h.b16 %v2551
    %v6439 = vunpack.c.l.b16 %v2552
    %v6440 = vunpack.c.h.b16 %v2552
    %v6441 = vunpack.c.l.b16 %v2553
    %v6442 = vunpack.c.h.b16 %v2553
    %v6443 = vunpack.c.l.b16 %v2554
    %v6444 = vunpack.c.h.b16 %v2554
    %v6445 = vunpack.c.l.b16 %v2555
    %v6446 = vunpack.c.h.b16 %v2555
    %v6447 = vunpack.c.l.b16 %v2556
    %v6448 = vunpack.c.h.b16 %v2556
    %v6449 = vunpack.c.l.b16 %v2557
    %v6450 = vunpack.c.h.b16 %v2557
    %v6451 = vunpack.c.l.b16 %v2558
    %v6452 = vunpack.c.h.b16 %v2558
    %v6453 = vunpack.c.l.b16 %v2559
    %v6454 = vunpack.c.h.b16 %v2559
    %v6455 = vunpack.c.l.b16 %v2560
    %v6456 = vunpack.c.h.b16 %v2560
    %v6457 = vunpack.c.l.b16 %v2561
    %v6458 = vunpack.c.h.b16 %v2561
    %v6459 = vunpack.c.l.b16 %v2562
    %v6460 = vunpack.c.h.b16 %v2562
    %v6461 = vunpack.c.l.b16 %v2563
    %v6462 = vunpack.c.h.b16 %v2563
    %v6463 = vunpack.c.l.b16 %v2564
    %v6464 = vunpack.c.h.b16 %v2564
    %v6465 = vunpack.c.l.b16 %v2565
    %v6466 = vunpack.c.h.b16 %v2565
    %v6467 = vunpack.c.l.b16 %v2566
    %v6468 = vunpack.c.h.b16 %v2566
    %v6469 = vunpack.c.l.b16 %v2567
    %v6470 = vunpack.c.h.b16 %v2567
    %v6471 = vunpack.c.l.b16 %v2568
    %v6472 = vunpack.c.h.b16 %v2568
    %v6473 = vunpack.c.l.b16 %v2569
    %v6474 = vunpack.c.h.b16 %v2569
    %v6475 = vunpack.c.l.b16 %v2570
    %v6476 = vunpack.c.h.b16 %v2570
    %v6477 = vunpack.c.l.b16 %v2571
    %v6478 = vunpack.c.h.b16 %v2571
    %v6479 = vunpack.c.l.b16 %v2572
    %v6480 = vunpack.c.h.b16 %v2572
    %v6481 = vunpack.c.l.b16 %v2573
    %v6482 = vunpack.c.h.b16 %v2573
    %v6483 = vunpack.c.l.b16 %v2574
    %v6484 = vunpack.c.h.b16 %v2574
    %v6485 = vunpack.c.l.b16 %v2575
    %v6486 = vunpack.c.h.b16 %v2575
    %v6487 = vunpack.c.l.b16 %v2576
    %v6488 = vunpack.c.h.b16 %v2576
    %v6489 = vunpack.c.l.b16 %v2577
    %v6490 = vunpack.c.h.b16 %v2577
    %v6491 = vunpack.c.l.b16 %v2578
    %v6492 = vunpack.c.h.b16 %v2578
    %v6493 = vunpack.c.l.b16 %v2579
    %v6494 = vunpack.c.h.b16 %v2579
    %v6495 = vunpack.c.l.b16 %v2580
    %v6496 = vunpack.c.h.b16 %v2580
    %v6497 = vunpack.c.l.b16 %v2581
    %v6498 = vunpack.c.h.b16 %v2581
    %v6499 = vunpack.c.l.b16 %v2582
    %v6500 = vunpack.c.h.b16 %v2582
    %v6501 = vunpack.c.l.b16 %v2583
    %v6502 = vunpack.c.h.b16 %v2583
    %v6503 = vunpack.c.l.b16 %v2584
    %v6504 = vunpack.c.h.b16 %v2584
    %v6505 = vunpack.c.l.b16 %v2585
    %v6506 = vunpack.c.h.b16 %v2585
    %v6507 = vunpack.c.l.b16 %v2586
    %v6508 = vunpack.c.h.b16 %v2586
    %v6509 = vunpack.c.l.b16 %v2587
    %v6510 = vunpack.c.h.b16 %v2587
    %v6511 = vunpack.c.l.b16 %v2588
    %v6512 = vunpack.c.h.b16 %v2588
    %v6513 = vunpack.c.l.b16 %v2589
    %v6514 = vunpack.c.h.b16 %v2589
    %v6515 = vunpack.c.l.b16 %v2590
    %v6516 = vunpack.c.h.b16 %v2590
    %v6517 = vunpack.c.l.b16 %v2591
    %v6518 = vunpack.c.h.b16 %v2591
    %v6519 = vunpack.c.l.b16 %v2592
    %v6520 = vunpack.c.h.b16 %v2592
    %v6521 = vunpack.c.l.b16 %v2593
    %v6522 = vunpack.c.h.b16 %v2593
    %v6523 = vunpack.c.l.b16 %v2594
    %v6524 = vunpack.c.h.b16 %v2594
    %v6525 = vunpack.c.l.b16 %v2595
    %v6526 = vunpack.c.h.b16 %v2595
    %v6527 = vunpack.c.l.b16 %v2596
    %v6528 = vunpack.c.h.b16 %v2596
    %v6529 = vunpack.c.l.b16 %v2597
    %v6530 = vunpack.c.h.b16 %v2597
    %v6531 = vunpack.c.l.b16 %v2598
    %v6532 = vunpack.c.h.b16 %v2598
    %v6533 = vunpack.c.l.b16 %v2599
    %v6534 = vunpack.c.h.b16 %v2599
    %v6535 = vunpack.c.l.b16 %v2600
    %v6536 = vunpack.c.h.b16 %v2600
    %v6537 = vunpack.c.l.b16 %v2601
    %v6538 = vunpack.c.h.b16 %v2601
    %v6539 = vunpack.c.l.b16 %v2602
    %v6540 = vunpack.c.h.b16 %v2602
    %v6541 = vunpack.c.l.b16 %v2603
    %v6542 = vunpack.c.h.b16 %v2603
    %v6543 = vunpack.c.l.b16 %v2604
    %v6544 = vunpack.c.h.b16 %v2604
    %v6545 = vunpack.c.l.b16 %v2605
    %v6546 = vunpack.c.h.b16 %v2605
    %v6547 = vunpack.c.l.b16 %v2606
    %v6548 = vunpack.c.h.b16 %v2606
    %v6549 = vunpack.c.l.b16 %v2607
    %v6550 = vunpack.c.h.b16 %v2607
    %v6551 = vunpack.c.l.b16 %v2608
    %v6552 = vunpack.c.h.b16 %v2608
    %v6553 = vunpack.c.l.b16 %v2609
    %v6554 = vunpack.c.h.b16 %v2609
    %v6555 = vunpack.c.l.b16 %v2610
    %v6556 = vunpack.c.h.b16 %v2610
    %v6557 = vunpack.c.l.b16 %v2611
    %v6558 = vunpack.c.h.b16 %v2611
    %v6559 = vunpack.c.l.b16 %v2612
    %v6560 = vunpack.c.h.b16 %v2612
    %v6561 = vunpack.c.l.b16 %v2613
    %v6562 = vunpack.c.h.b16 %v2613
    %v6563 = vunpack.c.l.b16 %v2614
    %v6564 = vunpack.c.h.b16 %v2614
    %v6565 = vunpack.c.l.b16 %v2615
    %v6566 = vunpack.c.h.b16 %v2615
    %v6567 = vunpack.c.l.b16 %v2616
    %v6568 = vunpack.c.h.b16 %v2616
    %v6569 = vunpack.c.l.b16 %v2617
    %v6570 = vunpack.c.h.b16 %v2617
    %v6571 = vunpack.c.l.b16 %v2618
    %v6572 = vunpack.c.h.b16 %v2618
    %v6573 = vunpack.c.l.b16 %v2619
    %v6574 = vunpack.c.h.b16 %v2619
    %v6575 = vunpack.c.l.b16 %v2620
    %v6576 = vunpack.c.h.b16 %v2620
    %v6577 = vunpack.c.l.b16 %v2621
    %v6578 = vunpack.c.h.b16 %v2621
    %v6579 = vunpack.c.l.b16 %v2622
    %v6580 = vunpack.c.h.b16 %v2622
    %v6581 = vunpack.c.l.b16 %v2623
    %v6582 = vunpack.c.h.b16 %v2623
    %v6583 = vunpack.c.l.b16 %v2624
    %v6584 = vunpack.c.h.b16 %v2624
    %v6585 = vunpack.c.l.b16 %v2625
    %v6586 = vunpack.c.h.b16 %v2625
    %v6587 = vunpack.c.l.b16 %v2626
    %v6588 = vunpack.c.h.b16 %v2626
    %v6589 = vunpack.c.l.b16 %v2627
    %v6590 = vunpack.c.h.b16 %v2627
    %v6591 = vunpack.c.l.b16 %v2628
    %v6592 = vunpack.c.h.b16 %v2628
    %v6593 = vunpack.c.l.b16 %v2629
    %v6594 = vunpack.c.h.b16 %v2629
    %v6595 = vunpack.c.l.b16 %v2630
    %v6596 = vunpack.c.h.b16 %v2630
    %v6597 = vunpack.c.l.b16 %v2631
    %v6598 = vunpack.c.h.b16 %v2631
    %v6599 = vunpack.c.l.b16 %v2632
    %v6600 = vunpack.c.h.b16 %v2632
    %v6601 = vunpack.c.l.b16 %v2633
    %v6602 = vunpack.c.h.b16 %v2633
    %v6603 = vunpack.c.l.b16 %v2634
    %v6604 = vunpack.c.h.b16 %v2634
    %v6605 = vunpack.c.l.b16 %v2635
    %v6606 = vunpack.c.h.b16 %v2635
    %v6607 = vunpack.c.l.b16 %v2636
    %v6608 = vunpack.c.h.b16 %v2636
    %v6609 = vunpack.c.l.b16 %v2637
    %v6610 = vunpack.c.h.b16 %v2637
    %v6611 = vunpack.c.l.b16 %v2638
    %v6612 = vunpack.c.h.b16 %v2638
    %v6613 = vunpack.c.l.b16 %v2639
    %v6614 = vunpack.c.h.b16 %v2639
    %v6615 = vunpack.c.l.b16 %v2640
    %v6616 = vunpack.c.h.b16 %v2640
    %v6617 = vunpack.c.l.b16 %v2641
    %v6618 = vunpack.c.h.b16 %v2641
    %v6619 = vunpack.c.l.b16 %v2642
    %v6620 = vunpack.c.h.b16 %v2642
    %v6621 = vunpack.c.l.b16 %v2643
    %v6622 = vunpack.c.h.b16 %v2643
    %v6623 = vunpack.c.l.b16 %v2644
    %v6624 = vunpack.c.h.b16 %v2644
    %v6625 = vunpack.c.l.b16 %v2645
    %v6626 = vunpack.c.h.b16 %v2645
    %v6627 = vunpack.c.l.b16 %v2646
    %v6628 = vunpack.c.h.b16 %v2646
    %v6629 = vunpack.c.l.b16 %v2647
    %v6630 = vunpack.c.h.b16 %v2647
    %v6631 = vunpack.c.l.b16 %v2648
    %v6632 = vunpack.c.h.b16 %v2648
    %v6633 = vunpack.c.l.b16 %v2649
    %v6634 = vunpack.c.h.b16 %v2649
    %v6635 = vunpack.c.l.b16 %v2650
    %v6636 = vunpack.c.h.b16 %v2650
    %v6637 = vunpack.c.l.b16 %v2651
    %v6638 = vunpack.c.h.b16 %v2651
    %v6639 = vunpack.c.l.b16 %v2652
    %v6640 = vunpack.c.h.b16 %v2652
    %v6641 = vunpack.c.l.b16 %v2653
    %v6642 = vunpack.c.h.b16 %v2653
    %v6643 = vunpack.c.l.b16 %v2654
    %v6644 = vunpack.c.h.b16 %v2654
    %v6645 = vunpack.c.l.b16 %v2655
    %v6646 = vunpack.c.h.b16 %v2655
    %v6647 = vunpack.c.l.b16 %v2656
    %v6648 = vunpack.c.h.b16 %v2656
    %v6649 = vunpack.c.l.b16 %v2657
    %v6650 = vunpack.c.h.b16 %v2657
    %v6651 = vunpack.c.l.b16 %v2658
    %v6652 = vunpack.c.h.b16 %v2658
    %v6653 = vunpack.c.l.b16 %v2659
    %v6654 = vunpack.c.h.b16 %v2659
    %v6655 = vunpack.c.l.b16 %v2660
    %v6656 = vunpack.c.h.b16 %v2660
    %v6657 = vunpack.c.l.b16 %v2661
    %v6658 = vunpack.c.h.b16 %v2661
    %v6659 = vunpack.c.l.b16 %v2662
    %v6660 = vunpack.c.h.b16 %v2662
    %v6661 = vunpack.c.l.b16 %v2663
    %v6662 = vunpack.c.h.b16 %v2663
    %v6663 = vunpack.c.l.b16 %v2664
    %v6664 = vunpack.c.h.b16 %v2664
    %v6665 = vunpack.c.l.b16 %v2665
    %v6666 = vunpack.c.h.b16 %v2665
    %v6667 = vunpack.c.l.b16 %v2666
    %v6668 = vunpack.c.h.b16 %v2666
    %v6669 = vunpack.c.l.b16 %v2667
    %v6670 = vunpack.c.h.b16 %v2667
    %v6671 = vunpack.c.l.b16 %v2668
    %v6672 = vunpack.c.h.b16 %v2668
    %v6673 = vunpack.c.l.b16 %v2669
    %v6674 = vunpack.c.h.b16 %v2669
    %v6675 = vunpack.c.l.b16 %v2670
    %v6676 = vunpack.c.h.b16 %v2670
    %v6677 = vunpack.c.l.b16 %v2671
    %v6678 = vunpack.c.h.b16 %v2671
    %v6679 = vunpack.c.l.b16 %v2672
    %v6680 = vunpack.c.h.b16 %v2672
    %v6681 = vunpack.c.l.b16 %v2673
    %v6682 = vunpack.c.h.b16 %v2673
    %v6683 = vunpack.c.l.b16 %v2674
    %v6684 = vunpack.c.h.b16 %v2674
    %v6685 = vunpack.c.l.b16 %v2675
    %v6686 = vunpack.c.h.b16 %v2675
    %v6687 = vunpack.c.l.b16 %v2676
    %v6688 = vunpack.c.h.b16 %v2676
    %v6689 = vunpack.c.l.b16 %v2677
    %v6690 = vunpack.c.h.b16 %v2677
    %v6691 = vunpack.c.l.b16 %v2678
    %v6692 = vunpack.c.h.b16 %v2678
    %v6693 = vunpack.c.l.b16 %v2679
    %v6694 = vunpack.c.h.b16 %v2679
    %v6695 = vunpack.c.l.b16 %v2680
    %v6696 = vunpack.c.h.b16 %v2680
    %v6697 = vunpack.c.l.b16 %v2681
    %v6698 = vunpack.c.h.b16 %v2681
    %v6699 = vpack.c.b16 %v6417, %v6411
    %v6700 = vpack.c.b16 %v6418, %v6412
    %v6701 = vpack.c.b16 %v6419, %v6413
    %v6702 = vpack.c.b16 %v6420, %v6414
    %v6703 = vpack.c.b16 %v6421, %v6415
    %v6704 = vpack.c.b16 %v6422, %v6416
    %v6705 = vpack.c.b16 %v6429, %v6423
    %v6706 = vpack.c.b16 %v6430, %v6424
    %v6707 = vpack.c.b16 %v6431, %v6425
    %v6708 = vpack.c.b16 %v6432, %v6426
    %v6709 = vpack.c.b16 %v6433, %v6427
    %v6710 = vpack.c.b16 %v6434, %v6428
    %v6711 = vpack.c.b16 %v6441, %v6435
    %v6712 = vpack.c.b16 %v6442, %v6436
    %v6713 = vpack.c.b16 %v6443, %v6437
    %v6714 = vpack.c.b16 %v6444, %v6438
    %v6715 = vpack.c.b16 %v6445, %v6439
    %v6716 = vpack.c.b16 %v6446, %v6440
    %v6717 = vpack.c.b16 %v6453, %v6447
    %v6718 = vpack.c.b16 %v6454, %v6448
    %v6719 = vpack.c.b16 %v6455, %v6449
    %v6720 = vpack.c.b16 %v6456, %v6450
    %v6721 = vpack.c.b16 %v6457, %v6451
    %v6722 = vpack.c.b16 %v6458, %v6452
    %v6723 = vpack.c.b16 %v6465, %v6459
    %v6724 = vpack.c.b16 %v6466, %v6460
    %v6725 = vpack.c.b16 %v6467, %v6461
    %v6726 = vpack.c.b16 %v6468, %v6462
    %v6727 = vpack.c.b16 %v6469, %v6463
    %v6728 = vpack.c.b16 %v6470, %v6464
    %v6729 = vpack.c.b16 %v6477, %v6471
    %v6730 = vpack.c.b16 %v6478, %v6472
    %v6731 = vpack.c.b16 %v6479, %v6473
    %v6732 = vpack.c.b16 %v6480, %v6474
    %v6733 = vpack.c.b16 %v6481, %v6475
    %v6734 = vpack.c.b16 %v6482, %v6476
    %v6735 = vpack.c.b16 %v6489, %v6483
    %v6736 = vpack.c.b16 %v6490, %v6484
    %v6737 = vpack.c.b16 %v6491, %v6485
    %v6738 = vpack.c.b16 %v6492, %v6486
    %v6739 = vpack.c.b16 %v6493, %v6487
    %v6740 = vpack.c.b16 %v6494, %v6488
    %v6741 = vpack.c.b16 %v6501, %v6495
    %v6742 = vpack.c.b16 %v6502, %v6496
    %v6743 = vpack.c.b16 %v6503, %v6497
    %v6744 = vpack.c.b16 %v6504, %v6498
    %v6745 = vpack.c.b16 %v6505, %v6499
    %v6746 = vpack.c.b16 %v6506, %v6500
    %v6747 = vpack.c.b16 %v6513, %v6507
    %v6748 = vpack.c.b16 %v6514, %v6508
    %v6749 = vpack.c.b16 %v6515, %v6509
    %v6750 = vpack.c.b16 %v6516, %v6510
    %v6751 = vpack.c.b16 %v6517, %v6511
    %v6752 = vpack.c.b16 %v6518, %v6512
    %v6753 = vpack.c.b16 %v6525, %v6519
    %v6754 = vpack.c.b16 %v6526, %v6520
    %v6755 = vpack.c.b16 %v6527, %v6521
    %v6756 = vpack.c.b16 %v6528, %v6522
    %v6757 = vpack.c.b16 %v6529, %v6523
    %v6758 = vpack.c.b16 %v6530, %v6524
    %v6759 = vpack.c.b16 %v6537, %v6531
    %v6760 = vpack.c.b16 %v6538, %v6532
    %v6761 = vpack.c.b16 %v6539, %v6533
    %v6762 = vpack.c.b16 %v6540, %v6534
    %v6763 = vpack.c.b16 %v6541, %v6535
    %v6764 = vpack.c.b16 %v6542, %v6536
    %v6765 = vpack.c.b16 %v6549, %v6543
    %v6766 = vpack.c.b16 %v6550, %v6544
    %v6767 = vpack.c.b16 %v6551, %v6545
    %v6768 = vpack.c.b16 %v6552, %v6546
    %v6769 = vpack.c.b16 %v6553, %v6547
    %v6770 = vpack.c.b16 %v6554, %v6548
    %v6771 = vpack.c.b16 %v6561, %v6555
    %v6772 = vpack.c.b16 %v6562, %v6556
    %v6773 = vpack.c.b16 %v6563, %v6557
    %v6774 = vpack.c.b16 %v6564, %v6558
    %v6775 = vpack.c.b16 %v6565, %v6559
    %v6776 = vpack.c.b16 %v6566, %v6560
    %v6777 = vpack.c.b16 %v6573, %v6567
    %v6778 = vpack.c.b16 %v6574, %v6568
    %v6779 = vpack.c.b16 %v6575, %v6569
    %v6780 = vpack.c.b16 %v6576, %v6570
    %v6781 = vpack.c.b16 %v6577, %v6571
    %v6782 = vpack.c.b16 %v6578, %v6572
    %v6783 = vpack.c.b16 %v6585, %v6579
    %v6784 = vpack.c.b16 %v6586, %v6580
    %v6785 = vpack.c.b16 %v6587, %v6581
    %v6786 = vpack.c.b16 %v6588, %v6582
    %v6787 = vpack.c.b16 %v6589, %v6583
    %v6788 = vpack.c.b16 %v6590, %v6584
    %v6789 = vpack.c.b16 %v6597, %v6591
    %v6790 = vpack.c.b16 %v6598, %v6592
    %v6791 = vpack.c.b16 %v6599, %v6593
    %v6792 = vpack.c.b16 %v6600, %v6594
    %v6793 = vpack.c.b16 %v6601, %v6595
    %v6794 = vpack.c.b16 %v6602, %v6596
    %v6795 = vpack.c.b16 %v6609, %v6603
    %v6796 = vpack.c.b16 %v6610, %v6604
    %v6797 = vpack.c.b16 %v6611, %v6605
    %v6798 = vpack.c.b16 %v6612, %v6606
    %v6799 = vpack.c.b16 %v6613, %v6607
    %v6800 = vpack.c.b16 %v6614, %v6608
    %v6801 = vpack.c.b16 %v6621, %v6615
    %v6802 = vpack.c.b16 %v6622, %v6616
    %v6803 = vpack.c.b16 %v6623, %v6617
    %v6804 = vpack.c.b16 %v6624, %v6618
    %v6805 = vpack.c.b16 %v6625, %v6619
    %v6806 = vpack.c.b16 %v6626, %v6620
    %v6807 = vpack.c.b16 %v6633, %v6627
    %v6808 = vpack.c.b16 %v6634, %v6628
    %v6809 = vpack.c.b16 %v6635, %v6629
    %v6810 = vpack.c.b16 %v6636, %v6630
    %v6811 = vpack.c.b16 %v6637, %v6631
    %v6812 = vpack.c.b16 %v6638, %v6632
    %v6813 = vpack.c.b16 %v6645, %v6639
    %v6814 = vpack.c.b16 %v6646, %v6640
    %v6815 = vpack.c.b16 %v6647, %v6641
    %v6816 = vpack.c.b16 %v6648, %v6642
    %v6817 = vpack.c.b16 %v6649, %v6643
    %v6818 = vpack.c.b16 %v6650, %v6644
    %v6819 = vpack.c.b16 %v6657, %v6651
    %v6820 = vpack.c.b16 %v6658, %v6652
    %v6821 = vpack.c.b16 %v6659, %v6653
    %v6822 = vpack.c.b16 %v6660, %v6654
    %v6823 = vpack.c.b16 %v6661, %v6655
    %v6824 = vpack.c.b16 %v6662, %v6656
    %v6825 = vpack.c.b16 %v6669, %v6663
    %v6826 = vpack.c.b16 %v6670, %v6664
    %v6827 = vpack.c.b16 %v6671, %v6665
    %v6828 = vpack.c.b16 %v6672, %v6666
    %v6829 = vpack.c.b16 %v6673, %v6667
    %v6830 = vpack.c.b16 %v6674, %v6668
    %v6831 = vpack.c.b16 %v6681, %v6675
    %v6832 = vpack.c.b16 %v6682, %v6676
    %v6833 = vpack.c.b16 %v6683, %v6677
    %v6834 = vpack.c.b16 %v6684, %v6678
    %v6835 = vpack.c.b16 %v6685, %v6679
    %v6836 = vpack.c.b16 %v6686, %v6680
    %v6837 = vpack.c.b16 %v6693, %v6687
    %v6838 = vpack.c.b16 %v6694, %v6688
    %v6839 = vpack.c.b16 %v6695, %v6689
    %v6840 = vpack.c.b16 %v6696, %v6690
    %v6841 = vpack.c.b16 %v6697, %v6691
    %v6842 = vpack.c.b16 %v6698, %v6692
    %6987 = vmatprep.subr.bf16.mxu0 %v6700
    %6988 = vmatpush1.bf16.msra.mxu0 %v6699
    %6989 = vmatprep.subr.bf16.mxu0 %v6706
    %6990 = vmatpush1.bf16.msra.mxu0 %v6705
    %6991 = vmatprep.subr.bf16.mxu0 %v6712
    %6992 = vmatpush1.bf16.msra.mxu0 %v6711
    %6993 = vmatprep.subr.bf16.mxu0 %v6718
    %6994 = vmatpush1.bf16.msra.mxu0 %v6717
    %6995 = vmatprep.subr.bf16.mxu0 %v6724
    %6996 = vmatpush1.bf16.msra.mxu0 %v6723
    %6997 = vmatprep.subr.bf16.mxu0 %v6730
    %6998 = vmatpush1.bf16.msra.mxu0 %v6729
    %6999 = vmatprep.subr.bf16.mxu0 %v6736
    %7000 = vmatpush1.bf16.msra.mxu0 %v6735
    %7001 = vmatprep.subr.bf16.mxu0 %v6742
    %7002 = vmatpush1.bf16.msra.mxu0 %v6741
    %7003 = vmatprep.subr.bf16.mxu0 %v6748
    %7004 = vmatpush1.bf16.msra.mxu0 %v6747
    %7005 = vmatprep.subr.bf16.mxu0 %v6754
    %7006 = vmatpush1.bf16.msra.mxu0 %v6753
    %7007 = vmatprep.subr.bf16.mxu0 %v6760
    %7008 = vmatpush1.bf16.msra.mxu0 %v6759
    %7009 = vmatprep.subr.bf16.mxu0 %v6766
    %7010 = vmatpush1.bf16.msra.mxu0 %v6765
    %7011 = vmatprep.subr.bf16.mxu0 %v6772
    %7012 = vmatpush1.bf16.msra.mxu0 %v6771
    %7013 = vmatprep.subr.bf16.mxu0 %v6778
    %7014 = vmatpush1.bf16.msra.mxu0 %v6777
    %7015 = vmatprep.subr.bf16.mxu0 %v6784
    %7016 = vmatpush1.bf16.msra.mxu0 %v6783
    %7017 = vmatprep.subr.bf16.mxu0 %v6790
    %7018 = vmatpush1.bf16.msra.mxu0 %v6789
    %7019 = vmatprep.mubr.bf16.mxu0 %v2536
    %7020 = vmatmul.mubr.bf16.gmra.mrb[0].mxu0 %v2535
    %v7021 = vpop.f32.mrb[0].mxu0
    %v7022 = vadd.f32 %v6087, %v7021
    %v7023 = vpop.f32.mrb[0].mxu0
    %v7024 = vadd.f32 %v6089, %v7023
    %v7025 = vpop.f32.mrb[0].mxu0
    %v7026 = vadd.f32 %v6091, %v7025
    %v7027 = vpop.f32.mrb[0].mxu0
    %v7028 = vadd.f32 %v6093, %v7027
    %7029 = vdwg.mxu0
    %7030 = vmatprep.subr.bf16.mxu0 %v6796
    %7031 = vmatpush1.bf16.msra.mxu0 %v6795
    %7032 = vmatprep.subr.bf16.mxu0 %v6802
    %7033 = vmatpush1.bf16.msra.mxu0 %v6801
    %7034 = vmatprep.subr.bf16.mxu0 %v6808
    %7035 = vmatpush1.bf16.msra.mxu0 %v6807
    %7036 = vmatprep.subr.bf16.mxu0 %v6814
    %7037 = vmatpush1.bf16.msra.mxu0 %v6813
    %7038 = vmatprep.subr.bf16.mxu0 %v6820
    %7039 = vmatpush1.bf16.msra.mxu0 %v6819
    %7040 = vmatprep.subr.bf16.mxu0 %v6826
    %7041 = vmatpush1.bf16.msra.mxu0 %v6825
    %7042 = vmatprep.subr.bf16.mxu0 %v6832
    %7043 = vmatpush1.bf16.msra.mxu0 %v6831
    %7044 = vmatprep.subr.bf16.mxu0 %v6838
    %7045 = vmatpush1.bf16.msra.mxu0 %v6837
    %7046 = vmatprep.subr.bf16.mxu0 0
    %7047 = vmatpush1.bf16.msra.mxu0 0
    %7048 = vmatprep.subr.bf16.mxu0 0
    %7049 = vmatpush1.bf16.msra.mxu0 0
    %7050 = vmatprep.subr.bf16.mxu0 0
    %7051 = vmatpush1.bf16.msra.mxu0 0
    %7052 = vmatprep.subr.bf16.mxu0 0
    %7053 = vmatpush1.bf16.msra.mxu0 0
    %7054 = vmatprep.subr.bf16.mxu0 0
    %7055 = vmatpush1.bf16.msra.mxu0 0
    %7056 = vmatprep.subr.bf16.mxu0 0
    %7057 = vmatpush1.bf16.msra.mxu0 0
    %7058 = vmatprep.subr.bf16.mxu0 0
    %7059 = vmatpush1.bf16.msra.mxu0 0
    %7060 = vmatprep.subr.bf16.mxu0 0
    %7061 = vmatpush1.bf16.msra.mxu0 0
    %7062 = vmatprep.mubr.bf16.mxu0 0
    %7063 = vmatmul.mubr.bf16.gmra.mrb[0].mxu0 %v2537
    %v7064 = vpop.f32.mrb[0].mxu0
    %v7065 = vadd.f32 %v7022, %v7064
    %v7066 = vpop.f32.mrb[0].mxu0
    %v7067 = vadd.f32 %v7024, %v7066
    %v7068 = vpop.f32.mrb[0].mxu0
    %v7069 = vadd.f32 %v7026, %v7068
    %v7070 = vpop.f32.mrb[0].mxu0
    %v7071 = vadd.f32 %v7028, %v7070
    %7072 = vdwg.mxu0
    %7073 = vmatprep.subr.bf16.mxu0 %v6702
    %7074 = vmatpush1.bf16.msra.mxu0 %v6701
    %7075 = vmatprep.subr.bf16.mxu0 %v6708
    %7076 = vmatpush1.bf16.msra.mxu0 %v6707
    %7077 = vmatprep.subr.bf16.mxu0 %v6714
    %7078 = vmatpush1.bf16.msra.mxu0 %v6713
    %7079 = vmatprep.subr.bf16.mxu0 %v6720
    %7080 = vmatpush1.bf16.msra.mxu0 %v6719
    %7081 = vmatprep.subr.bf16.mxu0 %v6726
    %7082 = vmatpush1.bf16.msra.mxu0 %v6725
    %7083 = vmatprep.subr.bf16.mxu0 %v6732
    %7084 = vmatpush1.bf16.msra.mxu0 %v6731
    %7085 = vmatprep.subr.bf16.mxu0 %v6738
    %7086 = vmatpush1.bf16.msra.mxu0 %v6737
    %7087 = vmatprep.subr.bf16.mxu0 %v6744
    %7088 = vmatpush1.bf16.msra.mxu0 %v6743
    %7089 = vmatprep.subr.bf16.mxu0 %v6750
    %7090 = vmatpush1.bf16.msra.mxu0 %v6749
    %7091 = vmatprep.subr.bf16.mxu0 %v6756
    %7092 = vmatpush1.bf16.msra.mxu0 %v6755
    %7093 = vmatprep.subr.bf16.mxu0 %v6762
    %7094 = vmatpush1.bf16.msra.mxu0 %v6761
    %7095 = vmatprep.subr.bf16.mxu0 %v6768
    %7096 = vmatpush1.bf16.msra.mxu0 %v6767
    %7097 = vmatprep.subr.bf16.mxu0 %v6774
    %7098 = vmatpush1.bf16.msra.mxu0 %v6773
    %7099 = vmatprep.subr.bf16.mxu0 %v6780
    %7100 = vmatpush1.bf16.msra.mxu0 %v6779
    %7101 = vmatprep.subr.bf16.mxu0 %v6786
    %7102 = vmatpush1.bf16.msra.mxu0 %v6785
    %7103 = vmatprep.subr.bf16.mxu0 %v6792
    %7104 = vmatpush1.bf16.msra.mxu0 %v6791
    %7105 = vmatprep.mubr.bf16.mxu0 %v2536
    %7106 = vmatmul.mubr.bf16.gmra.mrb[0].mxu0 %v2535
    %v7107 = vpop.f32.mrb[0].mxu0
    %v7108 = vadd.f32 %v6173, %v7107
    %v7109 = vpop.f32.mrb[0].mxu0
    %v7110 = vadd.f32 %v6175, %v7109
    %v7111 = vpop.f32.mrb[0].mxu0
    %v7112 = vadd.f32 %v6177, %v7111
    %v7113 = vpop.f32.mrb[0].mxu0
    %v7114 = vadd.f32 %v6179, %v7113
    %7115 = vdwg.mxu0
    %7116 = vmatprep.subr.bf16.mxu0 %v6798
    %7117 = vmatpush1.bf16.msra.mxu0 %v6797
    %7118 = vmatprep.subr.bf16.mxu0 %v6804
    %7119 = vmatpush1.bf16.msra.mxu0 %v6803
    %7120 = vmatprep.subr.bf16.mxu0 %v6810
    %7121 = vmatpush1.bf16.msra.mxu0 %v6809
    %7122 = vmatprep.subr.bf16.mxu0 %v6816
    %7123 = vmatpush1.bf16.msra.mxu0 %v6815
    %7124 = vmatprep.subr.bf16.mxu0 %v6822
    %7125 = vmatpush1.bf16.msra.mxu0 %v6821
    %7126 = vmatprep.subr.bf16.mxu0 %v6828
    %7127 = vmatpush1.bf16.msra.mxu0 %v6827
    %7128 = vmatprep.subr.bf16.mxu0 %v6834
    %7129 = vmatpush1.bf16.msra.mxu0 %v6833
    %7130 = vmatprep.subr.bf16.mxu0 %v6840
    %7131 = vmatpush1.bf16.msra.mxu0 %v6839
    %7132 = vmatprep.subr.bf16.mxu0 0
    %7133 = vmatpush1.bf16.msra.mxu0 0
    %7134 = vmatprep.subr.bf16.mxu0 0
    %7135 = vmatpush1.bf16.msra.mxu0 0
    %7136 = vmatprep.subr.bf16.mxu0 0
    %7137 = vmatpush1.bf16.msra.mxu0 0
    %7138 = vmatprep.subr.bf16.mxu0 0
    %7139 = vmatpush1.bf16.msra.mxu0 0
    %7140 = vmatprep.subr.bf16.mxu0 0
    %7141 = vmatpush1.bf16.msra.mxu0 0
    %7142 = vmatprep.subr.bf16.mxu0 0
    %7143 = vmatpush1.bf16.msra.mxu0 0
    %7144 = vmatprep.subr.bf16.mxu0 0
    %7145 = vmatpush1.bf16.msra.mxu0 0
    %7146 = vmatprep.subr.bf16.mxu0 0
    %7147 = vmatpush1.bf16.msra.mxu0 0
    %7148 = vmatprep.mubr.bf16.mxu0 0
    %7149 = vmatmul.mubr.bf16.gmra.mrb[0].mxu0 %v2537
    %v7150 = vpop.f32.mrb[0].mxu0
    %v7151 = vadd.f32 %v7108, %v7150
    %v7152 = vpop.f32.mrb[0].mxu0
    %v7153 = vadd.f32 %v7110, %v7152
    %v7154 = vpop.f32.mrb[0].mxu0
    %v7155 = vadd.f32 %v7112, %v7154
    %v7156 = vpop.f32.mrb[0].mxu0
    %v7157 = vadd.f32 %v7114, %v7156
    %7158 = vdwg.mxu0
    %7159 = vmatprep.subr.bf16.mxu0 %v6704
    %7160 = vmatpush1.bf16.msra.mxu0 %v6703
    %7161 = vmatprep.subr.bf16.mxu0 %v6710
    %7162 = vmatpush1.bf16.msra.mxu0 %v6709
    %7163 = vmatprep.subr.bf16.mxu0 %v6716
    %7164 = vmatpush1.bf16.msra.mxu0 %v6715
    %7165 = vmatprep.subr.bf16.mxu0 %v6722
    %7166 = vmatpush1.bf16.msra.mxu0 %v6721
    %7167 = vmatprep.subr.bf16.mxu0 %v6728
    %7168 = vmatpush1.bf16.msra.mxu0 %v6727
    %7169 = vmatprep.subr.bf16.mxu0 %v6734
    %7170 = vmatpush1.bf16.msra.mxu0 %v6733
    %7171 = vmatprep.subr.bf16.mxu0 %v6740
    %7172 = vmatpush1.bf16.msra.mxu0 %v6739
    %7173 = vmatprep.subr.bf16.mxu0 %v6746
    %7174 = vmatpush1.bf16.msra.mxu0 %v6745
    %7175 = vmatprep.subr.bf16.mxu0 %v6752
    %7176 = vmatpush1.bf16.msra.mxu0 %v6751
    %7177 = vmatprep.subr.bf16.mxu0 %v6758
    %7178 = vmatpush1.bf16.msra.mxu0 %v6757
    %7179 = vmatprep.subr.bf16.mxu0 %v6764
    %7180 = vmatpush1.bf16.msra.mxu0 %v6763
    %7181 = vmatprep.subr.bf16.mxu0 %v6770
    %7182 = vmatpush1.bf16.msra.mxu0 %v6769
    %7183 = vmatprep.subr.bf16.mxu0 %v6776
    %7184 = vmatpush1.bf16.msra.mxu0 %v6775
    %7185 = vmatprep.subr.bf16.mxu0 %v6782
    %7186 = vmatpush1.bf16.msra.mxu0 %v6781
    %7187 = vmatprep.subr.bf16.mxu0 %v6788
    %7188 = vmatpush1.bf16.msra.mxu0 %v6787
    %7189 = vmatprep.subr.bf16.mxu0 %v6794
    %7190 = vmatpush1.bf16.msra.mxu0 %v6793
    %7191 = vmatprep.mubr.bf16.mxu0 %v2536
    %7192 = vmatmul.mubr.bf16.gmra.mrb[0].mxu0 %v2535
    %v7193 = vpop.f32.mrb[0].mxu0
    %v7194 = vadd.f32 %v6259, %v7193
    %v7195 = vpop.f32.mrb[0].mxu0
    %v7196 = vadd.f32 %v6261, %v7195
    %v7197 = vpop.f32.mrb[0].mxu0
    %v7198 = vadd.f32 %v6263, %v7197
    %v7199 = vpop.f32.mrb[0].mxu0
    %v7200 = vadd.f32 %v6265, %v7199
    %7201 = vdwg.mxu0
    %7202 = vmatprep.subr.bf16.mxu0 %v6800
    %7203 = vmatpush1.bf16.msra.mxu0 %v6799
    %7204 = vmatprep.subr.bf16.mxu0 %v6806
    %7205 = vmatpush1.bf16.msra.mxu0 %v6805
    %7206 = vmatprep.subr.bf16.mxu0 %v6812
    %7207 = vmatpush1.bf16.msra.mxu0 %v6811
    %7208 = vmatprep.subr.bf16.mxu0 %v6818
    %7209 = vmatpush1.bf16.msra.mxu0 %v6817
    %7210 = vmatprep.subr.bf16.mxu0 %v6824
    %7211 = vmatpush1.bf16.msra.mxu0 %v6823
    %7212 = vmatprep.subr.bf16.mxu0 %v6830
    %7213 = vmatpush1.bf16.msra.mxu0 %v6829
    %7214 = vmatprep.subr.bf16.mxu0 %v6836
    %7215 = vmatpush1.bf16.msra.mxu0 %v6835
    %7216 = vmatprep.subr.bf16.mxu0 %v6842
    %7217 = vmatpush1.bf16.msra.mxu0 %v6841
    %7218 = vmatprep.subr.bf16.mxu0 0
    %7219 = vmatpush1.bf16.msra.mxu0 0
    %7220 = vmatprep.subr.bf16.mxu0 0
    %7221 = vmatpush1.bf16.msra.mxu0 0
    %7222 = vmatprep.subr.bf16.mxu0 0
    %7223 = vmatpush1.bf16.msra.mxu0 0
    %7224 = vmatprep.subr.bf16.mxu0 0
    %7225 = vmatpush1.bf16.msra.mxu0 0
    %7226 = vmatprep.subr.bf16.mxu0 0
    %7227 = vmatpush1.bf16.msra.mxu0 0
    %7228 = vmatprep.subr.bf16.mxu0 0
    %7229 = vmatpush1.bf16.msra.mxu0 0
    %7230 = vmatprep.subr.bf16.mxu0 0
    %7231 = vmatpush1.bf16.msra.mxu0 0
    %7232 = vmatprep.subr.bf16.mxu0 0
    %7233 = vmatpush1.bf16.msra.mxu0 0
    %7234 = vmatprep.mubr.bf16.mxu0 0
    %7235 = vmatmul.mubr.bf16.gmra.mrb[0].mxu0 %v2537
    %v7236 = vpop.f32.mrb[0].mxu0
    %v7237 = vadd.f32 %v7194, %v7236
    %v7238 = vpop.f32.mrb[0].mxu0
    %v7239 = vadd.f32 %v7196, %v7238
    %v7240 = vpop.f32.mrb[0].mxu0
    %v7241 = vadd.f32 %v7198, %v7240
    %v7242 = vpop.f32.mrb[0].mxu0
    %v7243 = vadd.f32 %v7200, %v7242
    %7244 = vdwg.mxu0
    %v7245 = vld [vmem:[#allocation5 + $0x18] sm:$0xff]
    %v7246 = vld [vmem:[#allocation5 + $0x20] sm:$0xf]
    %v7247 = vld [vmem:[#allocation5 + $0x60] sm:$0xff]
    %v7248 = vld [vmem:[#allocation5 + $0x68] sm:$0xf]
    %v7249 = vld [vmem:[#allocation5 + $0xa8] sm:$0xff]
    %v7250 = vld [vmem:[#allocation5 + $0xb0] sm:$0xf]
    %v7251 = vld [vmem:[#allocation5 + $0xf0] sm:$0xff]
    %v7252 = vld [vmem:[#allocation5 + $0xf8] sm:$0xf]
    %v7253 = vld [vmem:[#allocation5 + $0x138] sm:$0xff]
    %v7254 = vld [vmem:[#allocation5 + $0x140] sm:$0xf]
    %v7255 = vld [vmem:[#allocation5 + $0x180] sm:$0xff]
    %v7256 = vld [vmem:[#allocation5 + $0x188] sm:$0xf]
    %v7257 = vld [vmem:[#allocation5 + $0x1c8] sm:$0xff]
    %v7258 = vld [vmem:[#allocation5 + $0x1d0] sm:$0xf]
    %v7259 = vld [vmem:[#allocation5 + $0x210] sm:$0xff]
    %v7260 = vld [vmem:[#allocation5 + $0x218] sm:$0xf]
    %v7261 = vld [vmem:[#allocation5 + $0x258] sm:$0xff]
    %v7262 = vld [vmem:[#allocation5 + $0x260] sm:$0xf]
    %v7263 = vld [vmem:[#allocation5 + $0x2a0] sm:$0xff]
    %v7264 = vld [vmem:[#allocation5 + $0x2a8] sm:$0xf]
    %v7265 = vld [vmem:[#allocation5 + $0x2e8] sm:$0xff]
    %v7266 = vld [vmem:[#allocation5 + $0x2f0] sm:$0xf]
    %v7267 = vld [vmem:[#allocation5 + $0x330] sm:$0xff]
    %v7268 = vld [vmem:[#allocation5 + $0x338] sm:$0xf]
    %v7269 = vld [vmem:[#allocation5 + $0x378] sm:$0xff]
    %v7270 = vld [vmem:[#allocation5 + $0x380] sm:$0xf]
    %v7271 = vld [vmem:[#allocation5 + $0x3c0] sm:$0xff]
    %v7272 = vld [vmem:[#allocation5 + $0x3c8] sm:$0xf]
    %v7273 = vld [vmem:[#allocation5 + $0x408] sm:$0xff]
    %v7274 = vld [vmem:[#allocation5 + $0x410] sm:$0xf]
    %v7275 = vld [vmem:[#allocation5 + $0x450] sm:$0xff]
    %v7276 = vld [vmem:[#allocation5 + $0x458] sm:$0xf]
    %v7277 = vld [vmem:[#allocation5 + $0x498] sm:$0xff]
    %v7278 = vld [vmem:[#allocation5 + $0x4a0] sm:$0xf]
    %v7279 = vld [vmem:[#allocation5 + $0x4e0] sm:$0xff]
    %v7280 = vld [vmem:[#allocation5 + $0x4e8] sm:$0xf]
    %v7281 = vld [vmem:[#allocation5 + $0x528] sm:$0xff]
    %v7282 = vld [vmem:[#allocation5 + $0x530] sm:$0xf]
    %v7283 = vld [vmem:[#allocation5 + $0x570] sm:$0xff]
    %v7284 = vld [vmem:[#allocation5 + $0x578] sm:$0xf]
    %v7285 = vld [vmem:[#allocation5 + $0x5b8] sm:$0xff]
    %v7286 = vld [vmem:[#allocation5 + $0x5c0] sm:$0xf]
    %v7287 = vld [vmem:[#allocation5 + $0x600] sm:$0xff]
    %v7288 = vld [vmem:[#allocation5 + $0x608] sm:$0xf]
    %v7289 = vld [vmem:[#allocation5 + $0x648] sm:$0xff]
    %v7290 = vld [vmem:[#allocation5 + $0x650] sm:$0xf]
    %v7291 = vld [vmem:[#allocation5 + $0x690] sm:$0xff]
    %v7292 = vld [vmem:[#allocation5 + $0x698] sm:$0xf]
    %v7293 = vld [vmem:[#allocation5 + $0x6d8] sm:$0xff]
    %v7294 = vld [vmem:[#allocation5 + $0x6e0] sm:$0xf]
    %v7295 = vld [vmem:[#allocation5 + $0x720] sm:$0xff]
    %v7296 = vld [vmem:[#allocation5 + $0x728] sm:$0xf]
    %v7297 = vld [vmem:[#allocation5 + $0x768] sm:$0xff]
    %v7298 = vld [vmem:[#allocation5 + $0x770] sm:$0xf]
    %v7299 = vld [vmem:[#allocation5 + $0x7b0] sm:$0xff]
    %v7300 = vld [vmem:[#allocation5 + $0x7b8] sm:$0xf]
    %v7301 = vld [vmem:[#allocation5 + $0x7f8] sm:$0xff]
    %v7302 = vld [vmem:[#allocation5 + $0x800] sm:$0xf]
    %v7303 = vld [vmem:[#allocation5 + $0x840] sm:$0xff]
    %v7304 = vld [vmem:[#allocation5 + $0x848] sm:$0xf]
    %v7305 = vld [vmem:[#allocation5 + $0x888] sm:$0xff]
    %v7306 = vld [vmem:[#allocation5 + $0x890] sm:$0xf]
    %v7307 = vld [vmem:[#allocation5 + $0x8d0] sm:$0xff]
    %v7308 = vld [vmem:[#allocation5 + $0x8d8] sm:$0xf]
    %v7309 = vld [vmem:[#allocation5 + $0x918] sm:$0xff]
    %v7310 = vld [vmem:[#allocation5 + $0x920] sm:$0xf]
    %v7311 = vld [vmem:[#allocation5 + $0x960] sm:$0xff]
    %v7312 = vld [vmem:[#allocation5 + $0x968] sm:$0xf]
    %v7313 = vld [vmem:[#allocation5 + $0x9a8] sm:$0xff]
    %v7314 = vld [vmem:[#allocation5 + $0x9b0] sm:$0xf]
    %v7315 = vld [vmem:[#allocation5 + $0x9f0] sm:$0xff]
    %v7316 = vld [vmem:[#allocation5 + $0x9f8] sm:$0xf]
    %v7317 = vld [vmem:[#allocation5 + $0xa38] sm:$0xff]
    %v7318 = vld [vmem:[#allocation5 + $0xa40] sm:$0xf]
    %v7319 = vld [vmem:[#allocation5 + $0xa80] sm:$0xff]
    %v7320 = vld [vmem:[#allocation5 + $0xa88] sm:$0xf]
    %v7321 = vld [vmem:[#allocation5 + $0xac8] sm:$0xff]
    %v7322 = vld [vmem:[#allocation5 + $0xad0] sm:$0xf]
    %v7323 = vld [vmem:[#allocation5 + $0xb10] sm:$0xff]
    %v7324 = vld [vmem:[#allocation5 + $0xb18] sm:$0xf]
    %v7325 = vld [vmem:[#allocation5 + $0xb58] sm:$0xff]
    %v7326 = vld [vmem:[#allocation5 + $0xb60] sm:$0xf]
    %v7327 = vld [vmem:[#allocation5 + $0xba0] sm:$0xff]
    %v7328 = vld [vmem:[#allocation5 + $0xba8] sm:$0xf]
    %v7329 = vld [vmem:[#allocation5 + $0xbe8] sm:$0xff]
    %v7330 = vld [vmem:[#allocation5 + $0xbf0] sm:$0xf]
    %v7331 = vld [vmem:[#allocation5 + $0xc30] sm:$0xff]
    %v7332 = vld [vmem:[#allocation5 + $0xc38] sm:$0xf]
    %v7333 = vld [vmem:[#allocation5 + $0xc78] sm:$0xff]
    %v7334 = vld [vmem:[#allocation5 + $0xc80] sm:$0xf]
    %v7335 = vld [vmem:[#allocation5 + $0xcc0] sm:$0xff]
    %v7336 = vld [vmem:[#allocation5 + $0xcc8] sm:$0xf]
    %v7337 = vld [vmem:[#allocation5 + $0xd08] sm:$0xff]
    %v7338 = vld [vmem:[#allocation5 + $0xd10] sm:$0xf]
    %v7339 = vld [vmem:[#allocation5 + $0xd50] sm:$0xff]
    %v7340 = vld [vmem:[#allocation5 + $0xd58] sm:$0xf]
    %v7341 = vld [vmem:[#allocation5 + $0xd98] sm:$0xff]
    %v7342 = vld [vmem:[#allocation5 + $0xda0] sm:$0xf]
    %v7343 = vld [vmem:[#allocation5 + $0xde0] sm:$0xff]
    %v7344 = vld [vmem:[#allocation5 + $0xde8] sm:$0xf]
    %v7345 = vld [vmem:[#allocation5 + $0xe28] sm:$0xff]
    %v7346 = vld [vmem:[#allocation5 + $0xe30] sm:$0xf]
    %v7347 = vld [vmem:[#allocation5 + $0xe70] sm:$0xff]
    %v7348 = vld [vmem:[#allocation5 + $0xe78] sm:$0xf]
    %v7349 = vld [vmem:[#allocation5 + $0xeb8] sm:$0xff]
    %v7350 = vld [vmem:[#allocation5 + $0xec0] sm:$0xf]
    %v7351 = vld [vmem:[#allocation5 + $0xf00] sm:$0xff]
    %v7352 = vld [vmem:[#allocation5 + $0xf08] sm:$0xf]
    %v7353 = vld [vmem:[#allocation5 + $0xf48] sm:$0xff]
    %v7354 = vld [vmem:[#allocation5 + $0xf50] sm:$0xf]
    %v7355 = vld [vmem:[#allocation5 + $0xf90] sm:$0xff]
    %v7356 = vld [vmem:[#allocation5 + $0xf98] sm:$0xf]
    %v7357 = vld [vmem:[#allocation5 + $0xfd8] sm:$0xff]
    %v7358 = vld [vmem:[#allocation5 + $0xfe0] sm:$0xf]
    %v7359 = vld [vmem:[#allocation5 + $0x1020] sm:$0xff]
    %v7360 = vld [vmem:[#allocation5 + $0x1028] sm:$0xf]
    %v7361 = vld [vmem:[#allocation5 + $0x1068] sm:$0xff]
    %v7362 = vld [vmem:[#allocation5 + $0x1070] sm:$0xf]
    %v7363 = vld [vmem:[#allocation5 + $0x10b0] sm:$0xff]
    %v7364 = vld [vmem:[#allocation5 + $0x10b8] sm:$0xf]
    %v7365 = vld [vmem:[#allocation5 + $0x10f8] sm:$0xff]
    %v7366 = vld [vmem:[#allocation5 + $0x1100] sm:$0xf]
    %v7367 = vld [vmem:[#allocation5 + $0x1140] sm:$0xff]
    %v7368 = vld [vmem:[#allocation5 + $0x1148] sm:$0xf]
    %v7369 = vld [vmem:[#allocation5 + $0x1188] sm:$0xff]
    %v7370 = vld [vmem:[#allocation5 + $0x1190] sm:$0xf]
    %v7371 = vld [vmem:[#allocation5 + $0x11d0] sm:$0xff]
    %v7372 = vld [vmem:[#allocation5 + $0x11d8] sm:$0xf]
    %v7373 = vld [vmem:[#allocation5 + $0x1218] sm:$0xff]
    %v7374 = vld [vmem:[#allocation5 + $0x1220] sm:$0xf]
    %v7375 = vld [vmem:[#allocation5 + $0x1260] sm:$0xff]
    %v7376 = vld [vmem:[#allocation5 + $0x1268] sm:$0xf]
    %v7377 = vld [vmem:[#allocation5 + $0x12a8] sm:$0xff]
    %v7378 = vld [vmem:[#allocation5 + $0x12b0] sm:$0xf]
    %v7379 = vld [vmem:[#allocation5 + $0x12f0] sm:$0xff]
    %v7380 = vld [vmem:[#allocation5 + $0x12f8] sm:$0xf]
    %v7381 = vld [vmem:[#allocation5 + $0x1338] sm:$0xff]
    %v7382 = vld [vmem:[#allocation5 + $0x1340] sm:$0xf]
    %v7383 = vld [vmem:[#allocation5 + $0x1380] sm:$0xff]
    %v7384 = vld [vmem:[#allocation5 + $0x1388] sm:$0xf]
    %v7385 = vld [vmem:[#allocation5 + $0x13c8] sm:$0xff]
    %v7386 = vld [vmem:[#allocation5 + $0x13d0] sm:$0xf]
    %v7387 = vld [vmem:[#allocation5 + $0x1410] sm:$0xff]
    %v7388 = vld [vmem:[#allocation5 + $0x1418] sm:$0xf]
    %v7389 = vld [vmem:[#allocation5 + $0x1458] sm:$0xff]
    %v7390 = vld [vmem:[#allocation5 + $0x1460] sm:$0xf]
    %v7391 = vld [vmem:[#allocation5 + $0x14a0] sm:$0xff]
    %v7392 = vld [vmem:[#allocation5 + $0x14a8] sm:$0xf]
    %v7393 = vld [vmem:[#allocation5 + $0x14e8] sm:$0xff]
    %v7394 = vld [vmem:[#allocation5 + $0x14f0] sm:$0xf]
    %v7395 = vld [vmem:[#allocation5 + $0x1530] sm:$0xff]
    %v7396 = vld [vmem:[#allocation5 + $0x1538] sm:$0xf]
    %v7397 = vld [vmem:[#allocation5 + $0x1578] sm:$0xff]
    %v7398 = vld [vmem:[#allocation5 + $0x1580] sm:$0xf]
    %v7399 = vld [vmem:[#allocation5 + $0x15c0] sm:$0xff]
    %v7400 = vld [vmem:[#allocation5 + $0x15c8] sm:$0xf]
    %v7401 = vld [vmem:[#allocation5 + $0x1608] sm:$0xff]
    %v7402 = vld [vmem:[#allocation5 + $0x1610] sm:$0xf]
    %v7403 = vld [vmem:[#allocation5 + $0x1650] sm:$0xff]
    %v7404 = vld [vmem:[#allocation5 + $0x1658] sm:$0xf]
    %v7405 = vld [vmem:[#allocation5 + $0x1698] sm:$0xff]
    %v7406 = vld [vmem:[#allocation5 + $0x16a0] sm:$0xf]
    %v7407 = vld [vmem:[#allocation5 + $0x16e0] sm:$0xff]
    %v7408 = vld [vmem:[#allocation5 + $0x16e8] sm:$0xf]
    %v7409 = vld [vmem:[#allocation5 + $0x1728] sm:$0xff]
    %v7410 = vld [vmem:[#allocation5 + $0x1730] sm:$0xf]
    %v7411 = vld [vmem:[#allocation5 + $0x1770] sm:$0xff]
    %v7412 = vld [vmem:[#allocation5 + $0x1778] sm:$0xf]
    %v7413 = vld [vmem:[#allocation5 + $0x17b8] sm:$0xff]
    %v7414 = vld [vmem:[#allocation5 + $0x17c0] sm:$0xf]
    %v7415 = vld [vmem:[#allocation5 + $0x1800] sm:$0xff]
    %v7416 = vld [vmem:[#allocation5 + $0x1808] sm:$0xf]
    %v7417 = vld [vmem:[#allocation5 + $0x1848] sm:$0xff]
    %v7418 = vld [vmem:[#allocation5 + $0x1850] sm:$0xf]
    %v7419 = vld [vmem:[#allocation5 + $0x1890] sm:$0xff]
    %v7420 = vld [vmem:[#allocation5 + $0x1898] sm:$0xf]
    %v7421 = vld [vmem:[#allocation5 + $0x18d8] sm:$0xff]
    %v7422 = vld [vmem:[#allocation5 + $0x18e0] sm:$0xf]
    %v7423 = vld [vmem:[#allocation5 + $0x1920] sm:$0xff]
    %v7424 = vld [vmem:[#allocation5 + $0x1928] sm:$0xf]
    %v7425 = vld [vmem:[#allocation5 + $0x1968] sm:$0xff]
    %v7426 = vld [vmem:[#allocation5 + $0x1970] sm:$0xf]
    %v7427 = vld [vmem:[#allocation5 + $0x19b0] sm:$0xff]
    %v7428 = vld [vmem:[#allocation5 + $0x19b8] sm:$0xf]
    %v7429 = vld [vmem:[#allocation5 + $0x19f8] sm:$0xff]
    %v7430 = vld [vmem:[#allocation5 + $0x1a00] sm:$0xf]
    %v7431 = vld [vmem:[#allocation5 + $0x1a40] sm:$0xff]
    %v7432 = vld [vmem:[#allocation5 + $0x1a48] sm:$0xf]
    %v7433 = vld [vmem:[#allocation5 + $0x1a88] sm:$0xff]
    %v7434 = vld [vmem:[#allocation5 + $0x1a90] sm:$0xf]
    %v7435 = vld [vmem:[#allocation5 + $0x1ad0] sm:$0xff]
    %v7436 = vld [vmem:[#allocation5 + $0x1ad8] sm:$0xf]
    %v7629 = vunpack.c.l.b16 %v7245
    %v7630 = vunpack.c.h.b16 %v7245
    %v7631 = vunpack.c.l.b16 %v7246
    %v7632 = vunpack.c.l.b16 %v7247
    %v7633 = vunpack.c.h.b16 %v7247
    %v7634 = vunpack.c.l.b16 %v7248
    %v7635 = vunpack.c.l.b16 %v7249
    %v7636 = vunpack.c.h.b16 %v7249
    %v7637 = vunpack.c.l.b16 %v7250
    %v7638 = vunpack.c.l.b16 %v7251
    %v7639 = vunpack.c.h.b16 %v7251
    %v7640 = vunpack.c.l.b16 %v7252
    %v7641 = vunpack.c.l.b16 %v7253
    %v7642 = vunpack.c.h.b16 %v7253
    %v7643 = vunpack.c.l.b16 %v7254
    %v7644 = vunpack.c.l.b16 %v7255
    %v7645 = vunpack.c.h.b16 %v7255
    %v7646 = vunpack.c.l.b16 %v7256
    %v7647 = vunpack.c.l.b16 %v7257
    %v7648 = vunpack.c.h.b16 %v7257
    %v7649 = vunpack.c.l.b16 %v7258
    %v7650 = vunpack.c.l.b16 %v7259
    %v7651 = vunpack.c.h.b16 %v7259
    %v7652 = vunpack.c.l.b16 %v7260
    %v7653 = vunpack.c.l.b16 %v7261
    %v7654 = vunpack.c.h.b16 %v7261
    %v7655 = vunpack.c.l.b16 %v7262
    %v7656 = vunpack.c.l.b16 %v7263
    %v7657 = vunpack.c.h.b16 %v7263
    %v7658 = vunpack.c.l.b16 %v7264
    %v7659 = vunpack.c.l.b16 %v7265
    %v7660 = vunpack.c.h.b16 %v7265
    %v7661 = vunpack.c.l.b16 %v7266
    %v7662 = vunpack.c.l.b16 %v7267
    %v7663 = vunpack.c.h.b16 %v7267
    %v7664 = vunpack.c.l.b16 %v7268
    %v7665 = vunpack.c.l.b16 %v7269
    %v7666 = vunpack.c.h.b16 %v7269
    %v7667 = vunpack.c.l.b16 %v7270
    %v7668 = vunpack.c.l.b16 %v7271
    %v7669 = vunpack.c.h.b16 %v7271
    %v7670 = vunpack.c.l.b16 %v7272
    %v7671 = vunpack.c.l.b16 %v7273
    %v7672 = vunpack.c.h.b16 %v7273
    %v7673 = vunpack.c.l.b16 %v7274
    %v7674 = vunpack.c.l.b16 %v7275
    %v7675 = vunpack.c.h.b16 %v7275
    %v7676 = vunpack.c.l.b16 %v7276
    %v7677 = vunpack.c.l.b16 %v7277
    %v7678 = vunpack.c.h.b16 %v7277
    %v7679 = vunpack.c.l.b16 %v7278
    %v7680 = vunpack.c.l.b16 %v7279
    %v7681 = vunpack.c.h.b16 %v7279
    %v7682 = vunpack.c.l.b16 %v7280
    %v7683 = vunpack.c.l.b16 %v7281
    %v7684 = vunpack.c.h.b16 %v7281
    %v7685 = vunpack.c.l.b16 %v7282
    %v7686 = vunpack.c.l.b16 %v7283
    %v7687 = vunpack.c.h.b16 %v7283
    %v7688 = vunpack.c.l.b16 %v7284
    %v7689 = vunpack.c.l.b16 %v7285
    %v7690 = vunpack.c.h.b16 %v7285
    %v7691 = vunpack.c.l.b16 %v7286
    %v7692 = vunpack.c.l.b16 %v7287
    %v7693 = vunpack.c.h.b16 %v7287
    %v7694 = vunpack.c.l.b16 %v7288
    %v7695 = vunpack.c.l.b16 %v7289
    %v7696 = vunpack.c.h.b16 %v7289
    %v7697 = vunpack.c.l.b16 %v7290
    %v7698 = vunpack.c.l.b16 %v7291
    %v7699 = vunpack.c.h.b16 %v7291
    %v7700 = vunpack.c.l.b16 %v7292
    %v7701 = vunpack.c.l.b16 %v7293
    %v7702 = vunpack.c.h.b16 %v7293
    %v7703 = vunpack.c.l.b16 %v7294
    %v7704 = vunpack.c.l.b16 %v7295
    %v7705 = vunpack.c.h.b16 %v7295
    %v7706 = vunpack.c.l.b16 %v7296
    %v7707 = vunpack.c.l.b16 %v7297
    %v7708 = vunpack.c.h.b16 %v7297
    %v7709 = vunpack.c.l.b16 %v7298
    %v7710 = vunpack.c.l.b16 %v7299
    %v7711 = vunpack.c.h.b16 %v7299
    %v7712 = vunpack.c.l.b16 %v7300
    %v7713 = vunpack.c.l.b16 %v7301
    %v7714 = vunpack.c.h.b16 %v7301
    %v7715 = vunpack.c.l.b16 %v7302
    %v7716 = vunpack.c.l.b16 %v7303
    %v7717 = vunpack.c.h.b16 %v7303
    %v7718 = vunpack.c.l.b16 %v7304
    %v7719 = vunpack.c.l.b16 %v7305
    %v7720 = vunpack.c.h.b16 %v7305
    %v7721 = vunpack.c.l.b16 %v7306
    %v7722 = vunpack.c.l.b16 %v7307
    %v7723 = vunpack.c.h.b16 %v7307
    %v7724 = vunpack.c.l.b16 %v7308
    %v7725 = vunpack.c.l.b16 %v7309
    %v7726 = vunpack.c.h.b16 %v7309
    %v7727 = vunpack.c.l.b16 %v7310
    %v7728 = vunpack.c.l.b16 %v7311
    %v7729 = vunpack.c.h.b16 %v7311
    %v7730 = vunpack.c.l.b16 %v7312
    %v7731 = vunpack.c.l.b16 %v7313
    %v7732 = vunpack.c.h.b16 %v7313
    %v7733 = vunpack.c.l.b16 %v7314
    %v7734 = vunpack.c.l.b16 %v7315
    %v7735 = vunpack.c.h.b16 %v7315
    %v7736 = vunpack.c.l.b16 %v7316
    %v7737 = vunpack.c.l.b16 %v7317
    %v7738 = vunpack.c.h.b16 %v7317
    %v7739 = vunpack.c.l.b16 %v7318
    %v7740 = vunpack.c.l.b16 %v7319
    %v7741 = vunpack.c.h.b16 %v7319
    %v7742 = vunpack.c.l.b16 %v7320
    %v7743 = vunpack.c.l.b16 %v7321
    %v7744 = vunpack.c.h.b16 %v7321
    %v7745 = vunpack.c.l.b16 %v7322
    %v7746 = vunpack.c.l.b16 %v7323
    %v7747 = vunpack.c.h.b16 %v7323
    %v7748 = vunpack.c.l.b16 %v7324
    %v7749 = vunpack.c.l.b16 %v7325
    %v7750 = vunpack.c.h.b16 %v7325
    %v7751 = vunpack.c.l.b16 %v7326
    %v7752 = vunpack.c.l.b16 %v7327
    %v7753 = vunpack.c.h.b16 %v7327
    %v7754 = vunpack.c.l.b16 %v7328
    %v7755 = vunpack.c.l.b16 %v7329
    %v7756 = vunpack.c.h.b16 %v7329
    %v7757 = vunpack.c.l.b16 %v7330
    %v7758 = vunpack.c.l.b16 %v7331
    %v7759 = vunpack.c.h.b16 %v7331
    %v7760 = vunpack.c.l.b16 %v7332
    %v7761 = vunpack.c.l.b16 %v7333
    %v7762 = vunpack.c.h.b16 %v7333
    %v7763 = vunpack.c.l.b16 %v7334
    %v7764 = vunpack.c.l.b16 %v7335
    %v7765 = vunpack.c.h.b16 %v7335
    %v7766 = vunpack.c.l.b16 %v7336
    %v7767 = vunpack.c.l.b16 %v7337
    %v7768 = vunpack.c.h.b16 %v7337
    %v7769 = vunpack.c.l.b16 %v7338
    %v7770 = vunpack.c.l.b16 %v7339
    %v7771 = vunpack.c.h.b16 %v7339
    %v7772 = vunpack.c.l.b16 %v7340
    %v7773 = vunpack.c.l.b16 %v7341
    %v7774 = vunpack.c.h.b16 %v7341
    %v7775 = vunpack.c.l.b16 %v7342
    %v7776 = vunpack.c.l.b16 %v7343
    %v7777 = vunpack.c.h.b16 %v7343
    %v7778 = vunpack.c.l.b16 %v7344
    %v7779 = vunpack.c.l.b16 %v7345
    %v7780 = vunpack.c.h.b16 %v7345
    %v7781 = vunpack.c.l.b16 %v7346
    %v7782 = vunpack.c.l.b16 %v7347
    %v7783 = vunpack.c.h.b16 %v7347
    %v7784 = vunpack.c.l.b16 %v7348
    %v7785 = vunpack.c.l.b16 %v7349
    %v7786 = vunpack.c.h.b16 %v7349
    %v7787 = vunpack.c.l.b16 %v7350
    %v7788 = vunpack.c.l.b16 %v7351
    %v7789 = vunpack.c.h.b16 %v7351
    %v7790 = vunpack.c.l.b16 %v7352
    %v7791 = vunpack.c.l.b16 %v7353
    %v7792 = vunpack.c.h.b16 %v7353
    %v7793 = vunpack.c.l.b16 %v7354
    %v7794 = vunpack.c.l.b16 %v7355
    %v7795 = vunpack.c.h.b16 %v7355
    %v7796 = vunpack.c.l.b16 %v7356
    %v7797 = vunpack.c.l.b16 %v7357
    %v7798 = vunpack.c.h.b16 %v7357
    %v7799 = vunpack.c.l.b16 %v7358
    %v7800 = vunpack.c.l.b16 %v7359
    %v7801 = vunpack.c.h.b16 %v7359
    %v7802 = vunpack.c.l.b16 %v7360
    %v7803 = vunpack.c.l.b16 %v7361
    %v7804 = vunpack.c.h.b16 %v7361
    %v7805 = vunpack.c.l.b16 %v7362
    %v7806 = vunpack.c.l.b16 %v7363
    %v7807 = vunpack.c.h.b16 %v7363
    %v7808 = vunpack.c.l.b16 %v7364
    %v7809 = vunpack.c.l.b16 %v7365
    %v7810 = vunpack.c.h.b16 %v7365
    %v7811 = vunpack.c.l.b16 %v7366
    %v7812 = vunpack.c.l.b16 %v7367
    %v7813 = vunpack.c.h.b16 %v7367
    %v7814 = vunpack.c.l.b16 %v7368
    %v7815 = vunpack.c.l.b16 %v7369
    %v7816 = vunpack.c.h.b16 %v7369
    %v7817 = vunpack.c.l.b16 %v7370
    %v7818 = vunpack.c.l.b16 %v7371
    %v7819 = vunpack.c.h.b16 %v7371
    %v7820 = vunpack.c.l.b16 %v7372
    %v7821 = vunpack.c.l.b16 %v7373
    %v7822 = vunpack.c.h.b16 %v7373
    %v7823 = vunpack.c.l.b16 %v7374
    %v7824 = vunpack.c.l.b16 %v7375
    %v7825 = vunpack.c.h.b16 %v7375
    %v7826 = vunpack.c.l.b16 %v7376
    %v7827 = vunpack.c.l.b16 %v7377
    %v7828 = vunpack.c.h.b16 %v7377
    %v7829 = vunpack.c.l.b16 %v7378
    %v7830 = vunpack.c.l.b16 %v7379
    %v7831 = vunpack.c.h.b16 %v7379
    %v7832 = vunpack.c.l.b16 %v7380
    %v7833 = vunpack.c.l.b16 %v7381
    %v7834 = vunpack.c.h.b16 %v7381
    %v7835 = vunpack.c.l.b16 %v7382
    %v7836 = vunpack.c.l.b16 %v7383
    %v7837 = vunpack.c.h.b16 %v7383
    %v7838 = vunpack.c.l.b16 %v7384
    %v7839 = vunpack.c.l.b16 %v7385
    %v7840 = vunpack.c.h.b16 %v7385
    %v7841 = vunpack.c.l.b16 %v7386
    %v7842 = vunpack.c.l.b16 %v7387
    %v7843 = vunpack.c.h.b16 %v7387
    %v7844 = vunpack.c.l.b16 %v7388
    %v7845 = vunpack.c.l.b16 %v7389
    %v7846 = vunpack.c.h.b16 %v7389
    %v7847 = vunpack.c.l.b16 %v7390
    %v7848 = vunpack.c.l.b16 %v7391
    %v7849 = vunpack.c.h.b16 %v7391
    %v7850 = vunpack.c.l.b16 %v7392
    %v7851 = vunpack.c.l.b16 %v7393
    %v7852 = vunpack.c.h.b16 %v7393
    %v7853 = vunpack.c.l.b16 %v7394
    %v7854 = vunpack.c.l.b16 %v7395
    %v7855 = vunpack.c.h.b16 %v7395
    %v7856 = vunpack.c.l.b16 %v7396
    %v7857 = vunpack.c.l.b16 %v7397
    %v7858 = vunpack.c.h.b16 %v7397
    %v7859 = vunpack.c.l.b16 %v7398
    %v7860 = vunpack.c.l.b16 %v7399
    %v7861 = vunpack.c.h.b16 %v7399
    %v7862 = vunpack.c.l.b16 %v7400
    %v7863 = vunpack.c.l.b16 %v7401
    %v7864 = vunpack.c.h.b16 %v7401
    %v7865 = vunpack.c.l.b16 %v7402
    %v7866 = vunpack.c.l.b16 %v7403
    %v7867 = vunpack.c.h.b16 %v7403
    %v7868 = vunpack.c.l.b16 %v7404
    %v7869 = vunpack.c.l.b16 %v7405
    %v7870 = vunpack.c.h.b16 %v7405
    %v7871 = vunpack.c.l.b16 %v7406
    %v7872 = vunpack.c.l.b16 %v7407
    %v7873 = vunpack.c.h.b16 %v7407
    %v7874 = vunpack.c.l.b16 %v7408
    %v7875 = vunpack.c.l.b16 %v7409
    %v7876 = vunpack.c.h.b16 %v7409
    %v7877 = vunpack.c.l.b16 %v7410
    %v7878 = vunpack.c.l.b16 %v7411
    %v7879 = vunpack.c.h.b16 %v7411
    %v7880 = vunpack.c.l.b16 %v7412
    %v7881 = vunpack.c.l.b16 %v7413
    %v7882 = vunpack.c.h.b16 %v7413
    %v7883 = vunpack.c.l.b16 %v7414
    %v7884 = vunpack.c.l.b16 %v7415
    %v7885 = vunpack.c.h.b16 %v7415
    %v7886 = vunpack.c.l.b16 %v7416
    %v7887 = vunpack.c.l.b16 %v7417
    %v7888 = vunpack.c.h.b16 %v7417
    %v7889 = vunpack.c.l.b16 %v7418
    %v7890 = vunpack.c.l.b16 %v7419
    %v7891 = vunpack.c.h.b16 %v7419
    %v7892 = vunpack.c.l.b16 %v7420
    %v7893 = vunpack.c.l.b16 %v7421
    %v7894 = vunpack.c.h.b16 %v7421
    %v7895 = vunpack.c.l.b16 %v7422
    %v7896 = vunpack.c.l.b16 %v7423
    %v7897 = vunpack.c.h.b16 %v7423
    %v7898 = vunpack.c.l.b16 %v7424
    %v7899 = vunpack.c.l.b16 %v7425
    %v7900 = vunpack.c.h.b16 %v7425
    %v7901 = vunpack.c.l.b16 %v7426
    %v7902 = vunpack.c.l.b16 %v7427
    %v7903 = vunpack.c.h.b16 %v7427
    %v7904 = vunpack.c.l.b16 %v7428
    %v7905 = vunpack.c.l.b16 %v7429
    %v7906 = vunpack.c.h.b16 %v7429
    %v7907 = vunpack.c.l.b16 %v7430
    %v7908 = vunpack.c.l.b16 %v7431
    %v7909 = vunpack.c.h.b16 %v7431
    %v7910 = vunpack.c.l.b16 %v7432
    %v7911 = vunpack.c.l.b16 %v7433
    %v7912 = vunpack.c.h.b16 %v7433
    %v7913 = vunpack.c.l.b16 %v7434
    %v7914 = vunpack.c.l.b16 %v7435
    %v7915 = vunpack.c.h.b16 %v7435
    %v7916 = vunpack.c.l.b16 %v7436
    %v7917 = vpack.c.b16 %v7632, %v7629
    %v7918 = vpack.c.b16 %v7633, %v7630
    %v7919 = vpack.c.b16 %v7634, %v7631
    %v7920 = vpack.c.b16 %v7638, %v7635
    %v7921 = vpack.c.b16 %v7639, %v7636
    %v7922 = vpack.c.b16 %v7640, %v7637
    %v7923 = vpack.c.b16 %v7644, %v7641
    %v7924 = vpack.c.b16 %v7645, %v7642
    %v7925 = vpack.c.b16 %v7646, %v7643
    %v7926 = vpack.c.b16 %v7650, %v7647
    %v7927 = vpack.c.b16 %v7651, %v7648
    %v7928 = vpack.c.b16 %v7652, %v7649
    %v7929 = vpack.c.b16 %v7656, %v7653
    %v7930 = vpack.c.b16 %v7657, %v7654
    %v7931 = vpack.c.b16 %v7658, %v7655
    %v7932 = vpack.c.b16 %v7662, %v7659
    %v7933 = vpack.c.b16 %v7663, %v7660
    %v7934 = vpack.c.b16 %v7664, %v7661
    %v7935 = vpack.c.b16 %v7668, %v7665
    %v7936 = vpack.c.b16 %v7669, %v7666
    %v7937 = vpack.c.b16 %v7670, %v7667
    %v7938 = vpack.c.b16 %v7674, %v7671
    %v7939 = vpack.c.b16 %v7675, %v7672
    %v7940 = vpack.c.b16 %v7676, %v7673
    %v7941 = vpack.c.b16 %v7680, %v7677
    %v7942 = vpack.c.b16 %v7681, %v7678
    %v7943 = vpack.c.b16 %v7682, %v7679
    %v7944 = vpack.c.b16 %v7686, %v7683
    %v7945 = vpack.c.b16 %v7687, %v7684
    %v7946 = vpack.c.b16 %v7688, %v7685
    %v7947 = vpack.c.b16 %v7692, %v7689
    %v7948 = vpack.c.b16 %v7693, %v7690
    %v7949 = vpack.c.b16 %v7694, %v7691
    %v7950 = vpack.c.b16 %v7698, %v7695
    %v7951 = vpack.c.b16 %v7699, %v7696
    %v7952 = vpack.c.b16 %v7700, %v7697
    %v7953 = vpack.c.b16 %v7704, %v7701
    %v7954 = vpack.c.b16 %v7705, %v7702
    %v7955 = vpack.c.b16 %v7706, %v7703
    %v7956 = vpack.c.b16 %v7710, %v7707
    %v7957 = vpack.c.b16 %v7711, %v7708
    %v7958 = vpack.c.b16 %v7712, %v7709
    %v7959 = vpack.c.b16 %v7716, %v7713
    %v7960 = vpack.c.b16 %v7717, %v7714
    %v7961 = vpack.c.b16 %v7718, %v7715
    %v7962 = vpack.c.b16 %v7722, %v7719
    %v7963 = vpack.c.b16 %v7723, %v7720
    %v7964 = vpack.c.b16 %v7724, %v7721
    %v7965 = vpack.c.b16 %v7728, %v7725
    %v7966 = vpack.c.b16 %v7729, %v7726
    %v7967 = vpack.c.b16 %v7730, %v7727
    %v7968 = vpack.c.b16 %v7734, %v7731
    %v7969 = vpack.c.b16 %v7735, %v7732
    %v7970 = vpack.c.b16 %v7736, %v7733
    %v7971 = vpack.c.b16 %v7740, %v7737
    %v7972 = vpack.c.b16 %v7741, %v7738
    %v7973 = vpack.c.b16 %v7742, %v7739
    %v7974 = vpack.c.b16 %v7746, %v7743
    %v7975 = vpack.c.b16 %v7747, %v7744
    %v7976 = vpack.c.b16 %v7748, %v7745
    %v7977 = vpack.c.b16 %v7752, %v7749
    %v7978 = vpack.c.b16 %v7753, %v7750
    %v7979 = vpack.c.b16 %v7754, %v7751
    %v7980 = vpack.c.b16 %v7758, %v7755
    %v7981 = vpack.c.b16 %v7759, %v7756
    %v7982 = vpack.c.b16 %v7760, %v7757
    %v7983 = vpack.c.b16 %v7764, %v7761
    %v7984 = vpack.c.b16 %v7765, %v7762
    %v7985 = vpack.c.b16 %v7766, %v7763
    %v7986 = vpack.c.b16 %v7770, %v7767
    %v7987 = vpack.c.b16 %v7771, %v7768
    %v7988 = vpack.c.b16 %v7772, %v7769
    %v7989 = vpack.c.b16 %v7776, %v7773
    %v7990 = vpack.c.b16 %v7777, %v7774
    %v7991 = vpack.c.b16 %v7778, %v7775
    %v7992 = vpack.c.b16 %v7782, %v7779
    %v7993 = vpack.c.b16 %v7783, %v7780
    %v7994 = vpack.c.b16 %v7784, %v7781
    %v7995 = vpack.c.b16 %v7788, %v7785
    %v7996 = vpack.c.b16 %v7789, %v7786
    %v7997 = vpack.c.b16 %v7790, %v7787
    %v7998 = vpack.c.b16 %v7794, %v7791
    %v7999 = vpack.c.b16 %v7795, %v7792
    %v8000 = vpack.c.b16 %v7796, %v7793
    %v8001 = vpack.c.b16 %v7800, %v7797
    %v8002 = vpack.c.b16 %v7801, %v7798
    %v8003 = vpack.c.b16 %v7802, %v7799
    %v8004 = vpack.c.b16 %v7806, %v7803
    %v8005 = vpack.c.b16 %v7807, %v7804
    %v8006 = vpack.c.b16 %v7808, %v7805
    %v8007 = vpack.c.b16 %v7812, %v7809
    %v8008 = vpack.c.b16 %v7813, %v7810
    %v8009 = vpack.c.b16 %v7814, %v7811
    %v8010 = vpack.c.b16 %v7818, %v7815
    %v8011 = vpack.c.b16 %v7819, %v7816
    %v8012 = vpack.c.b16 %v7820, %v7817
    %v8013 = vpack.c.b16 %v7824, %v7821
    %v8014 = vpack.c.b16 %v7825, %v7822
    %v8015 = vpack.c.b16 %v7826, %v7823
    %v8016 = vpack.c.b16 %v7830, %v7827
    %v8017 = vpack.c.b16 %v7831, %v7828
    %v8018 = vpack.c.b16 %v7832, %v7829
    %v8019 = vpack.c.b16 %v7836, %v7833
    %v8020 = vpack.c.b16 %v7837, %v7834
    %v8021 = vpack.c.b16 %v7838, %v7835
    %v8022 = vpack.c.b16 %v7842, %v7839
    %v8023 = vpack.c.b16 %v7843, %v7840
    %v8024 = vpack.c.b16 %v7844, %v7841
    %v8025 = vpack.c.b16 %v7848, %v7845
    %v8026 = vpack.c.b16 %v7849, %v7846
    %v8027 = vpack.c.b16 %v7850, %v7847
    %v8028 = vpack.c.b16 %v7854, %v7851
    %v8029 = vpack.c.b16 %v7855, %v7852
    %v8030 = vpack.c.b16 %v7856, %v7853
    %v8031 = vpack.c.b16 %v7860, %v7857
    %v8032 = vpack.c.b16 %v7861, %v7858
    %v8033 = vpack.c.b16 %v7862, %v7859
    %v8034 = vpack.c.b16 %v7866, %v7863
    %v8035 = vpack.c.b16 %v7867, %v7864
    %v8036 = vpack.c.b16 %v7868, %v7865
    %v8037 = vpack.c.b16 %v7872, %v7869
    %v8038 = vpack.c.b16 %v7873, %v7870
    %v8039 = vpack.c.b16 %v7874, %v7871
    %v8040 = vpack.c.b16 %v7878, %v7875
    %v8041 = vpack.c.b16 %v7879, %v7876
    %v8042 = vpack.c.b16 %v7880, %v7877
    %v8043 = vpack.c.b16 %v7884, %v7881
    %v8044 = vpack.c.b16 %v7885, %v7882
    %v8045 = vpack.c.b16 %v7886, %v7883
    %v8046 = vpack.c.b16 %v7890, %v7887
    %v8047 = vpack.c.b16 %v7891, %v7888
    %v8048 = vpack.c.b16 %v7892, %v7889
    %v8049 = vpack.c.b16 %v7896, %v7893
    %v8050 = vpack.c.b16 %v7897, %v7894
    %v8051 = vpack.c.b16 %v7898, %v7895
    %v8052 = vpack.c.b16 %v7902, %v7899
    %v8053 = vpack.c.b16 %v7903, %v7900
    %v8054 = vpack.c.b16 %v7904, %v7901
    %v8055 = vpack.c.b16 %v7908, %v7905
    %v8056 = vpack.c.b16 %v7909, %v7906
    %v8057 = vpack.c.b16 %v7910, %v7907
    %v8058 = vpack.c.b16 %v7914, %v7911
    %v8059 = vpack.c.b16 %v7915, %v7912
    %v8060 = vpack.c.b16 %v7916, %v7913
    %8205 = vmatprep.subr.bf16.mxu0 %v7918
    %8206 = vmatpush1.bf16.msra.mxu0 %v7917
    %8207 = vmatprep.subr.bf16.mxu0 %v7921
    %8208 = vmatpush1.bf16.msra.mxu0 %v7920
    %8209 = vmatprep.subr.bf16.mxu0 %v7924
    %8210 = vmatpush1.bf16.msra.mxu0 %v7923
    %8211 = vmatprep.subr.bf16.mxu0 %v7927
    %8212 = vmatpush1.bf16.msra.mxu0 %v7926
    %8213 = vmatprep.subr.bf16.mxu0 %v7930
    %8214 = vmatpush1.bf16.msra.mxu0 %v7929
    %8215 = vmatprep.subr.bf16.mxu0 %v7933
    %8216 = vmatpush1.bf16.msra.mxu0 %v7932
    %8217 = vmatprep.subr.bf16.mxu0 %v7936
    %8218 = vmatpush1.bf16.msra.mxu0 %v7935
    %8219 = vmatprep.subr.bf16.mxu0 %v7939
    %8220 = vmatpush1.bf16.msra.mxu0 %v7938
    %8221 = vmatprep.subr.bf16.mxu0 %v7942
    %8222 = vmatpush1.bf16.msra.mxu0 %v7941
    %8223 = vmatprep.subr.bf16.mxu0 %v7945
    %8224 = vmatpush1.bf16.msra.mxu0 %v7944
    %8225 = vmatprep.subr.bf16.mxu0 %v7948
    %8226 = vmatpush1.bf16.msra.mxu0 %v7947
    %8227 = vmatprep.subr.bf16.mxu0 %v7951
    %8228 = vmatpush1.bf16.msra.mxu0 %v7950
    %8229 = vmatprep.subr.bf16.mxu0 %v7954
    %8230 = vmatpush1.bf16.msra.mxu0 %v7953
    %8231 = vmatprep.subr.bf16.mxu0 %v7957
    %8232 = vmatpush1.bf16.msra.mxu0 %v7956
    %8233 = vmatprep.subr.bf16.mxu0 %v7960
    %8234 = vmatpush1.bf16.msra.mxu0 %v7959
    %8235 = vmatprep.subr.bf16.mxu0 %v7963
    %8236 = vmatpush1.bf16.msra.mxu0 %v7962
    %8237 = vmatprep.mubr.bf16.mxu0 %v70
    %8238 = vmatmul.mubr.bf16.gmra.mrb[0].mxu0 %v69
    %v8239 = vpop.f32.mrb[0].mxu0
    %v8240 = vadd.f32 0.0, %v8239
    %v8241 = vpop.f32.mrb[0].mxu0
    %v8242 = vadd.f32 0.0, %v8241
    %v8243 = vpop.f32.mrb[0].mxu0
    %v8244 = vadd.f32 0.0, %v8243
    %v8245 = vpop.f32.mrb[0].mxu0
    %v8246 = vadd.f32 0.0, %v8245
    %8247 = vdwg.mxu0
    %8248 = vmatprep.subr.bf16.mxu0 %v7966
    %8249 = vmatpush1.bf16.msra.mxu0 %v7965
    %8250 = vmatprep.subr.bf16.mxu0 %v7969
    %8251 = vmatpush1.bf16.msra.mxu0 %v7968
    %8252 = vmatprep.subr.bf16.mxu0 %v7972
    %8253 = vmatpush1.bf16.msra.mxu0 %v7971
    %8254 = vmatprep.subr.bf16.mxu0 %v7975
    %8255 = vmatpush1.bf16.msra.mxu0 %v7974
    %8256 = vmatprep.subr.bf16.mxu0 %v7978
    %8257 = vmatpush1.bf16.msra.mxu0 %v7977
    %8258 = vmatprep.subr.bf16.mxu0 %v7981
    %8259 = vmatpush1.bf16.msra.mxu0 %v7980
    %8260 = vmatprep.subr.bf16.mxu0 %v7984
    %8261 = vmatpush1.bf16.msra.mxu0 %v7983
    %8262 = vmatprep.subr.bf16.mxu0 %v7987
    %8263 = vmatpush1.bf16.msra.mxu0 %v7986
    %8264 = vmatprep.subr.bf16.mxu0 %v7990
    %8265 = vmatpush1.bf16.msra.mxu0 %v7989
    %8266 = vmatprep.subr.bf16.mxu0 %v7993
    %8267 = vmatpush1.bf16.msra.mxu0 %v7992
    %8268 = vmatprep.subr.bf16.mxu0 %v7996
    %8269 = vmatpush1.bf16.msra.mxu0 %v7995
    %8270 = vmatprep.subr.bf16.mxu0 %v7999
    %8271 = vmatpush1.bf16.msra.mxu0 %v7998
    %8272 = vmatprep.subr.bf16.mxu0 %v8002
    %8273 = vmatpush1.bf16.msra.mxu0 %v8001
    %8274 = vmatprep.subr.bf16.mxu0 %v8005
    %8275 = vmatpush1.bf16.msra.mxu0 %v8004
    %8276 = vmatprep.subr.bf16.mxu0 %v8008
    %8277 = vmatpush1.bf16.msra.mxu0 %v8007
    %8278 = vmatprep.subr.bf16.mxu0 %v8011
    %8279 = vmatpush1.bf16.msra.mxu0 %v8010
    %8280 = vmatprep.mubr.bf16.mxu0 %v72
    %8281 = vmatmul.mubr.bf16.gmra.mrb[0].mxu0 %v71
    %v8282 = vpop.f32.mrb[0].mxu0
    %v8283 = vadd.f32 %v8240, %v8282
    %v8284 = vpop.f32.mrb[0].mxu0
    %v8285 = vadd.f32 %v8242, %v8284
    %v8286 = vpop.f32.mrb[0].mxu0
    %v8287 = vadd.f32 %v8244, %v8286
    %v8288 = vpop.f32.mrb[0].mxu0
    %v8289 = vadd.f32 %v8246, %v8288
    %8290 = vdwg.mxu0
    %8291 = vmatprep.subr.bf16.mxu0 %v8014
    %8292 = vmatpush1.bf16.msra.mxu0 %v8013
    %8293 = vmatprep.subr.bf16.mxu0 %v8017
    %8294 = vmatpush1.bf16.msra.mxu0 %v8016
    %8295 = vmatprep.subr.bf16.mxu0 %v8020
    %8296 = vmatpush1.bf16.msra.mxu0 %v8019
    %8297 = vmatprep.subr.bf16.mxu0 %v8023
    %8298 = vmatpush1.bf16.msra.mxu0 %v8022
    %8299 = vmatprep.subr.bf16.mxu0 %v8026
    %8300 = vmatpush1.bf16.msra.mxu0 %v8025
    %8301 = vmatprep.subr.bf16.mxu0 %v8029
    %8302 = vmatpush1.bf16.msra.mxu0 %v8028
    %8303 = vmatprep.subr.bf16.mxu0 %v8032
    %8304 = vmatpush1.bf16.msra.mxu0 %v8031
    %8305 = vmatprep.subr.bf16.mxu0 %v8035
    %8306 = vmatpush1.bf16.msra.mxu0 %v8034
    %8307 = vmatprep.subr.bf16.mxu0 %v8038
    %8308 = vmatpush1.bf16.msra.mxu0 %v8037
    %8309 = vmatprep.subr.bf16.mxu0 %v8041
    %8310 = vmatpush1.bf16.msra.mxu0 %v8040
    %8311 = vmatprep.subr.bf16.mxu0 %v8044
    %8312 = vmatpush1.bf16.msra.mxu0 %v8043
    %8313 = vmatprep.subr.bf16.mxu0 %v8047
    %8314 = vmatpush1.bf16.msra.mxu0 %v8046
    %8315 = vmatprep.subr.bf16.mxu0 %v8050
    %8316 = vmatpush1.bf16.msra.mxu0 %v8049
    %8317 = vmatprep.subr.bf16.mxu0 %v8053
    %8318 = vmatpush1.bf16.msra.mxu0 %v8052
    %8319 = vmatprep.subr.bf16.mxu0 %v8056
    %8320 = vmatpush1.bf16.msra.mxu0 %v8055
    %8321 = vmatprep.subr.bf16.mxu0 %v8059
    %8322 = vmatpush1.bf16.msra.mxu0 %v8058
    %8323 = vmatprep.mubr.bf16.mxu0 %v74
    %8324 = vmatmul.mubr.bf16.gmra.mrb[0].mxu0 %v73
    %v8325 = vpop.f32.mrb[0].mxu0
    %v8326 = vadd.f32 %v8283, %v8325
    %v8327 = vpop.f32.mrb[0].mxu0
    %v8328 = vadd.f32 %v8285, %v8327
    %v8329 = vpop.f32.mrb[0].mxu0
    %v8330 = vadd.f32 %v8287, %v8329
    %v8331 = vpop.f32.mrb[0].mxu0
    %v8332 = vadd.f32 %v8289, %v8331
    %8333 = vdwg.mxu0
    %8334 = vmatprep.subr.bf16.mxu0 0
    %8335 = vmatpush1.bf16.msra.mxu0 %v7919
    %8336 = vmatprep.subr.bf16.mxu0 0
    %8337 = vmatpush1.bf16.msra.mxu0 %v7922
    %8338 = vmatprep.subr.bf16.mxu0 0
    %8339 = vmatpush1.bf16.msra.mxu0 %v7925
    %8340 = vmatprep.subr.bf16.mxu0 0
    %8341 = vmatpush1.bf16.msra.mxu0 %v7928
    %8342 = vmatprep.subr.bf16.mxu0 0
    %8343 = vmatpush1.bf16.msra.mxu0 %v7931
    %8344 = vmatprep.subr.bf16.mxu0 0
    %8345 = vmatpush1.bf16.msra.mxu0 %v7934
    %8346 = vmatprep.subr.bf16.mxu0 0
    %8347 = vmatpush1.bf16.msra.mxu0 %v7937
    %8348 = vmatprep.subr.bf16.mxu0 0
    %8349 = vmatpush1.bf16.msra.mxu0 %v7940
    %8350 = vmatprep.subr.bf16.mxu0 0
    %8351 = vmatpush1.bf16.msra.mxu0 %v7943
    %8352 = vmatprep.subr.bf16.mxu0 0
    %8353 = vmatpush1.bf16.msra.mxu0 %v7946
    %8354 = vmatprep.subr.bf16.mxu0 0
    %8355 = vmatpush1.bf16.msra.mxu0 %v7949
    %8356 = vmatprep.subr.bf16.mxu0 0
    %8357 = vmatpush1.bf16.msra.mxu0 %v7952
    %8358 = vmatprep.subr.bf16.mxu0 0
    %8359 = vmatpush1.bf16.msra.mxu0 %v7955
    %8360 = vmatprep.subr.bf16.mxu0 0
    %8361 = vmatpush1.bf16.msra.mxu0 %v7958
    %8362 = vmatprep.subr.bf16.mxu0 0
    %8363 = vmatpush1.bf16.msra.mxu0 %v7961
    %8364 = vmatprep.subr.bf16.mxu0 0
    %8365 = vmatpush1.bf16.msra.mxu0 %v7964
    %8366 = vmatprep.mubr.bf16.mxu0 %v70
    %8367 = vmatmul.mubr.bf16.gmra.mrb[0].mxu0 %v69
    %v8368 = vpop.f32.mrb[0].mxu0
    %v8369 = vadd.f32 0.0, %v8368
    %v8370 = vpop.f32.mrb[0].mxu0
    %v8371 = vpop.f32.mrb[0].mxu0
    %v8372 = vadd.f32 0.0, %v8371
    %v8373 = vpop.f32.mrb[0].mxu0
    %8374 = vdwg.mxu0
    %8375 = vmatprep.subr.bf16.mxu0 0
    %8376 = vmatpush1.bf16.msra.mxu0 %v7967
    %8377 = vmatprep.subr.bf16.mxu0 0
    %8378 = vmatpush1.bf16.msra.mxu0 %v7970
    %8379 = vmatprep.subr.bf16.mxu0 0
    %8380 = vmatpush1.bf16.msra.mxu0 %v7973
    %8381 = vmatprep.subr.bf16.mxu0 0
    %8382 = vmatpush1.bf16.msra.mxu0 %v7976
    %8383 = vmatprep.subr.bf16.mxu0 0
    %8384 = vmatpush1.bf16.msra.mxu0 %v7979
    %8385 = vmatprep.subr.bf16.mxu0 0
    %8386 = vmatpush1.bf16.msra.mxu0 %v7982
    %8387 = vmatprep.subr.bf16.mxu0 0
    %8388 = vmatpush1.bf16.msra.mxu0 %v7985
    %8389 = vmatprep.subr.bf16.mxu0 0
    %8390 = vmatpush1.bf16.msra.mxu0 %v7988
    %8391 = vmatprep.subr.bf16.mxu0 0
    %8392 = vmatpush1.bf16.msra.mxu0 %v7991
    %8393 = vmatprep.subr.bf16.mxu0 0
    %8394 = vmatpush1.bf16.msra.mxu0 %v7994
    %8395 = vmatprep.subr.bf16.mxu0 0
    %8396 = vmatpush1.bf16.msra.mxu0 %v7997
    %8397 = vmatprep.subr.bf16.mxu0 0
    %8398 = vmatpush1.bf16.msra.mxu0 %v8000
    %8399 = vmatprep.subr.bf16.mxu0 0
    %8400 = vmatpush1.bf16.msra.mxu0 %v8003
    %8401 = vmatprep.subr.bf16.mxu0 0
    %8402 = vmatpush1.bf16.msra.mxu0 %v8006
    %8403 = vmatprep.subr.bf16.mxu0 0
    %8404 = vmatpush1.bf16.msra.mxu0 %v8009
    %8405 = vmatprep.subr.bf16.mxu0 0
    %8406 = vmatpush1.bf16.msra.mxu0 %v8012
    %8407 = vmatprep.mubr.bf16.mxu0 %v72
    %8408 = vmatmul.mubr.bf16.gmra.mrb[0].mxu0 %v71
    %v8409 = vpop.f32.mrb[0].mxu0
    %v8410 = vadd.f32 %v8369, %v8409
    %v8411 = vpop.f32.mrb[0].mxu0
    %v8412 = vpop.f32.mrb[0].mxu0
    %v8413 = vadd.f32 %v8372, %v8412
    %v8414 = vpop.f32.mrb[0].mxu0
    %8415 = vdwg.mxu0
    %8416 = vmatprep.subr.bf16.mxu0 0
    %8417 = vmatpush1.bf16.msra.mxu0 %v8015
    %8418 = vmatprep.subr.bf16.mxu0 0
    %8419 = vmatpush1.bf16.msra.mxu0 %v8018
    %8420 = vmatprep.subr.bf16.mxu0 0
    %8421 = vmatpush1.bf16.msra.mxu0 %v8021
    %8422 = vmatprep.subr.bf16.mxu0 0
    %8423 = vmatpush1.bf16.msra.mxu0 %v8024
    %8424 = vmatprep.subr.bf16.mxu0 0
    %8425 = vmatpush1.bf16.msra.mxu0 %v8027
    %8426 = vmatprep.subr.bf16.mxu0 0
    %8427 = vmatpush1.bf16.msra.mxu0 %v8030
    %8428 = vmatprep.subr.bf16.mxu0 0
    %8429 = vmatpush1.bf16.msra.mxu0 %v8033
    %8430 = vmatprep.subr.bf16.mxu0 0
    %8431 = vmatpush1.bf16.msra.mxu0 %v8036
    %8432 = vmatprep.subr.bf16.mxu0 0
    %8433 = vmatpush1.bf16.msra.mxu0 %v8039
    %8434 = vmatprep.subr.bf16.mxu0 0
    %8435 = vmatpush1.bf16.msra.mxu0 %v8042
    %8436 = vmatprep.subr.bf16.mxu0 0
    %8437 = vmatpush1.bf16.msra.mxu0 %v8045
    %8438 = vmatprep.subr.bf16.mxu0 0
    %8439 = vmatpush1.bf16.msra.mxu0 %v8048
    %8440 = vmatprep.subr.bf16.mxu0 0
    %8441 = vmatpush1.bf16.msra.mxu0 %v8051
    %8442 = vmatprep.subr.bf16.mxu0 0
    %8443 = vmatpush1.bf16.msra.mxu0 %v8054
    %8444 = vmatprep.subr.bf16.mxu0 0
    %8445 = vmatpush1.bf16.msra.mxu0 %v8057
    %8446 = vmatprep.subr.bf16.mxu0 0
    %8447 = vmatpush1.bf16.msra.mxu0 %v8060
    %8448 = vmatprep.mubr.bf16.mxu0 %v74
    %8449 = vmatmul.mubr.bf16.gmra.mrb[0].mxu0 %v73
    %v8450 = vpop.f32.mrb[0].mxu0
    %v8451 = vadd.f32 %v8410, %v8450
    %v8452 = vpop.f32.mrb[0].mxu0
    %v8453 = vpop.f32.mrb[0].mxu0
    %v8454 = vadd.f32 %v8413, %v8453
    %v8455 = vpop.f32.mrb[0].mxu0
    %8456 = vdwg.mxu0
    %v8457 = vld [vmem:[#allocation5 + $0x3c] sm:$0xff]
    %v8458 = vld [vmem:[#allocation5 + $0x44] sm:$0xf]
    %v8459 = vld [vmem:[#allocation5 + $0x84] sm:$0xff]
    %v8460 = vld [vmem:[#allocation5 + $0x8c] sm:$0xf]
    %v8461 = vld [vmem:[#allocation5 + $0xcc] sm:$0xff]
    %v8462 = vld [vmem:[#allocation5 + $0xd4] sm:$0xf]
    %v8463 = vld [vmem:[#allocation5 + $0x114] sm:$0xff]
    %v8464 = vld [vmem:[#allocation5 + $0x11c] sm:$0xf]
    %v8465 = vld [vmem:[#allocation5 + $0x15c] sm:$0xff]
    %v8466 = vld [vmem:[#allocation5 + $0x164] sm:$0xf]
    %v8467 = vld [vmem:[#allocation5 + $0x1a4] sm:$0xff]
    %v8468 = vld [vmem:[#allocation5 + $0x1ac] sm:$0xf]
    %v8469 = vld [vmem:[#allocation5 + $0x1ec] sm:$0xff]
    %v8470 = vld [vmem:[#allocation5 + $0x1f4] sm:$0xf]
    %v8471 = vld [vmem:[#allocation5 + $0x234] sm:$0xff]
    %v8472 = vld [vmem:[#allocation5 + $0x23c] sm:$0xf]
    %v8473 = vld [vmem:[#allocation5 + $0x27c] sm:$0xff]
    %v8474 = vld [vmem:[#allocation5 + $0x284] sm:$0xf]
    %v8475 = vld [vmem:[#allocation5 + $0x2c4] sm:$0xff]
    %v8476 = vld [vmem:[#allocation5 + $0x2cc] sm:$0xf]
    %v8477 = vld [vmem:[#allocation5 + $0x30c] sm:$0xff]
    %v8478 = vld [vmem:[#allocation5 + $0x314] sm:$0xf]
    %v8479 = vld [vmem:[#allocation5 + $0x354] sm:$0xff]
    %v8480 = vld [vmem:[#allocation5 + $0x35c] sm:$0xf]
    %v8481 = vld [vmem:[#allocation5 + $0x39c] sm:$0xff]
    %v8482 = vld [vmem:[#allocation5 + $0x3a4] sm:$0xf]
    %v8483 = vld [vmem:[#allocation5 + $0x3e4] sm:$0xff]
    %v8484 = vld [vmem:[#allocation5 + $0x3ec] sm:$0xf]
    %v8485 = vld [vmem:[#allocation5 + $0x42c] sm:$0xff]
    %v8486 = vld [vmem:[#allocation5 + $0x434] sm:$0xf]
    %v8487 = vld [vmem:[#allocation5 + $0x474] sm:$0xff]
    %v8488 = vld [vmem:[#allocation5 + $0x47c] sm:$0xf]
    %v8489 = vld [vmem:[#allocation5 + $0x4bc] sm:$0xff]
    %v8490 = vld [vmem:[#allocation5 + $0x4c4] sm:$0xf]
    %v8491 = vld [vmem:[#allocation5 + $0x504] sm:$0xff]
    %v8492 = vld [vmem:[#allocation5 + $0x50c] sm:$0xf]
    %v8493 = vld [vmem:[#allocation5 + $0x54c] sm:$0xff]
    %v8494 = vld [vmem:[#allocation5 + $0x554] sm:$0xf]
    %v8495 = vld [vmem:[#allocation5 + $0x594] sm:$0xff]
    %v8496 = vld [vmem:[#allocation5 + $0x59c] sm:$0xf]
    %v8497 = vld [vmem:[#allocation5 + $0x5dc] sm:$0xff]
    %v8498 = vld [vmem:[#allocation5 + $0x5e4] sm:$0xf]
    %v8499 = vld [vmem:[#allocation5 + $0x624] sm:$0xff]
    %v8500 = vld [vmem:[#allocation5 + $0x62c] sm:$0xf]
    %v8501 = vld [vmem:[#allocation5 + $0x66c] sm:$0xff]
    %v8502 = vld [vmem:[#allocation5 + $0x674] sm:$0xf]
    %v8503 = vld [vmem:[#allocation5 + $0x6b4] sm:$0xff]
    %v8504 = vld [vmem:[#allocation5 + $0x6bc] sm:$0xf]
    %v8505 = vld [vmem:[#allocation5 + $0x6fc] sm:$0xff]
    %v8506 = vld [vmem:[#allocation5 + $0x704] sm:$0xf]
    %v8507 = vld [vmem:[#allocation5 + $0x744] sm:$0xff]
    %v8508 = vld [vmem:[#allocation5 + $0x74c] sm:$0xf]
    %v8509 = vld [vmem:[#allocation5 + $0x78c] sm:$0xff]
    %v8510 = vld [vmem:[#allocation5 + $0x794] sm:$0xf]
    %v8511 = vld [vmem:[#allocation5 + $0x7d4] sm:$0xff]
    %v8512 = vld [vmem:[#allocation5 + $0x7dc] sm:$0xf]
    %v8513 = vld [vmem:[#allocation5 + $0x81c] sm:$0xff]
    %v8514 = vld [vmem:[#allocation5 + $0x824] sm:$0xf]
    %v8515 = vld [vmem:[#allocation5 + $0x864] sm:$0xff]
    %v8516 = vld [vmem:[#allocation5 + $0x86c] sm:$0xf]
    %v8517 = vld [vmem:[#allocation5 + $0x8ac] sm:$0xff]
    %v8518 = vld [vmem:[#allocation5 + $0x8b4] sm:$0xf]
    %v8519 = vld [vmem:[#allocation5 + $0x8f4] sm:$0xff]
    %v8520 = vld [vmem:[#allocation5 + $0x8fc] sm:$0xf]
    %v8521 = vld [vmem:[#allocation5 + $0x93c] sm:$0xff]
    %v8522 = vld [vmem:[#allocation5 + $0x944] sm:$0xf]
    %v8523 = vld [vmem:[#allocation5 + $0x984] sm:$0xff]
    %v8524 = vld [vmem:[#allocation5 + $0x98c] sm:$0xf]
    %v8525 = vld [vmem:[#allocation5 + $0x9cc] sm:$0xff]
    %v8526 = vld [vmem:[#allocation5 + $0x9d4] sm:$0xf]
    %v8527 = vld [vmem:[#allocation5 + $0xa14] sm:$0xff]
    %v8528 = vld [vmem:[#allocation5 + $0xa1c] sm:$0xf]
    %v8529 = vld [vmem:[#allocation5 + $0xa5c] sm:$0xff]
    %v8530 = vld [vmem:[#allocation5 + $0xa64] sm:$0xf]
    %v8531 = vld [vmem:[#allocation5 + $0xaa4] sm:$0xff]
    %v8532 = vld [vmem:[#allocation5 + $0xaac] sm:$0xf]
    %v8533 = vld [vmem:[#allocation5 + $0xaec] sm:$0xff]
    %v8534 = vld [vmem:[#allocation5 + $0xaf4] sm:$0xf]
    %v8535 = vld [vmem:[#allocation5 + $0xb34] sm:$0xff]
    %v8536 = vld [vmem:[#allocation5 + $0xb3c] sm:$0xf]
    %v8537 = vld [vmem:[#allocation5 + $0xb7c] sm:$0xff]
    %v8538 = vld [vmem:[#allocation5 + $0xb84] sm:$0xf]
    %v8539 = vld [vmem:[#allocation5 + $0xbc4] sm:$0xff]
    %v8540 = vld [vmem:[#allocation5 + $0xbcc] sm:$0xf]
    %v8541 = vld [vmem:[#allocation5 + $0xc0c] sm:$0xff]
    %v8542 = vld [vmem:[#allocation5 + $0xc14] sm:$0xf]
    %v8543 = vld [vmem:[#allocation5 + $0xc54] sm:$0xff]
    %v8544 = vld [vmem:[#allocation5 + $0xc5c] sm:$0xf]
    %v8545 = vld [vmem:[#allocation5 + $0xc9c] sm:$0xff]
    %v8546 = vld [vmem:[#allocation5 + $0xca4] sm:$0xf]
    %v8547 = vld [vmem:[#allocation5 + $0xce4] sm:$0xff]
    %v8548 = vld [vmem:[#allocation5 + $0xcec] sm:$0xf]
    %v8549 = vld [vmem:[#allocation5 + $0xd2c] sm:$0xff]
    %v8550 = vld [vmem:[#allocation5 + $0xd34] sm:$0xf]
    %v8551 = vld [vmem:[#allocation5 + $0xd74] sm:$0xff]
    %v8552 = vld [vmem:[#allocation5 + $0xd7c] sm:$0xf]
    %v8553 = vld [vmem:[#allocation5 + $0xdbc] sm:$0xff]
    %v8554 = vld [vmem:[#allocation5 + $0xdc4] sm:$0xf]
    %v8555 = vld [vmem:[#allocation5 + $0xe04] sm:$0xff]
    %v8556 = vld [vmem:[#allocation5 + $0xe0c] sm:$0xf]
    %v8557 = vld [vmem:[#allocation5 + $0xe4c] sm:$0xff]
    %v8558 = vld [vmem:[#allocation5 + $0xe54] sm:$0xf]
    %v8559 = vld [vmem:[#allocation5 + $0xe94] sm:$0xff]
    %v8560 = vld [vmem:[#allocation5 + $0xe9c] sm:$0xf]
    %v8561 = vld [vmem:[#allocation5 + $0xedc] sm:$0xff]
    %v8562 = vld [vmem:[#allocation5 + $0xee4] sm:$0xf]
    %v8563 = vld [vmem:[#allocation5 + $0xf24] sm:$0xff]
    %v8564 = vld [vmem:[#allocation5 + $0xf2c] sm:$0xf]
    %v8565 = vld [vmem:[#allocation5 + $0xf6c] sm:$0xff]
    %v8566 = vld [vmem:[#allocation5 + $0xf74] sm:$0xf]
    %v8567 = vld [vmem:[#allocation5 + $0xfb4] sm:$0xff]
    %v8568 = vld [vmem:[#allocation5 + $0xfbc] sm:$0xf]
    %v8569 = vld [vmem:[#allocation5 + $0xffc] sm:$0xff]
    %v8570 = vld [vmem:[#allocation5 + $0x1004] sm:$0xf]
    %v8571 = vld [vmem:[#allocation5 + $0x1044] sm:$0xff]
    %v8572 = vld [vmem:[#allocation5 + $0x104c] sm:$0xf]
    %v8573 = vld [vmem:[#allocation5 + $0x108c] sm:$0xff]
    %v8574 = vld [vmem:[#allocation5 + $0x1094] sm:$0xf]
    %v8575 = vld [vmem:[#allocation5 + $0x10d4] sm:$0xff]
    %v8576 = vld [vmem:[#allocation5 + $0x10dc] sm:$0xf]
    %v8577 = vld [vmem:[#allocation5 + $0x111c] sm:$0xff]
    %v8578 = vld [vmem:[#allocation5 + $0x1124] sm:$0xf]
    %v8579 = vld [vmem:[#allocation5 + $0x1164] sm:$0xff]
    %v8580 = vld [vmem:[#allocation5 + $0x116c] sm:$0xf]
    %v8581 = vld [vmem:[#allocation5 + $0x11ac] sm:$0xff]
    %v8582 = vld [vmem:[#allocation5 + $0x11b4] sm:$0xf]
    %v8583 = vld [vmem:[#allocation5 + $0x11f4] sm:$0xff]
    %v8584 = vld [vmem:[#allocation5 + $0x11fc] sm:$0xf]
    %v8585 = vld [vmem:[#allocation5 + $0x123c] sm:$0xff]
    %v8586 = vld [vmem:[#allocation5 + $0x1244] sm:$0xf]
    %v8587 = vld [vmem:[#allocation5 + $0x1284] sm:$0xff]
    %v8588 = vld [vmem:[#allocation5 + $0x128c] sm:$0xf]
    %v8589 = vld [vmem:[#allocation5 + $0x12cc] sm:$0xff]
    %v8590 = vld [vmem:[#allocation5 + $0x12d4] sm:$0xf]
    %v8591 = vld [vmem:[#allocation5 + $0x1314] sm:$0xff]
    %v8592 = vld [vmem:[#allocation5 + $0x131c] sm:$0xf]
    %v8593 = vld [vmem:[#allocation5 + $0x135c] sm:$0xff]
    %v8594 = vld [vmem:[#allocation5 + $0x1364] sm:$0xf]
    %v8595 = vld [vmem:[#allocation5 + $0x13a4] sm:$0xff]
    %v8596 = vld [vmem:[#allocation5 + $0x13ac] sm:$0xf]
    %v8597 = vld [vmem:[#allocation5 + $0x13ec] sm:$0xff]
    %v8598 = vld [vmem:[#allocation5 + $0x13f4] sm:$0xf]
    %v8599 = vld [vmem:[#allocation5 + $0x1434] sm:$0xff]
    %v8600 = vld [vmem:[#allocation5 + $0x143c] sm:$0xf]
    %v8601 = vld [vmem:[#allocation5 + $0x147c] sm:$0xff]
    %v8602 = vld [vmem:[#allocation5 + $0x1484] sm:$0xf]
    %v8603 = vld [vmem:[#allocation5 + $0x14c4] sm:$0xff]
    %v8604 = vld [vmem:[#allocation5 + $0x14cc] sm:$0xf]
    %v8605 = vld [vmem:[#allocation5 + $0x150c] sm:$0xff]
    %v8606 = vld [vmem:[#allocation5 + $0x1514] sm:$0xf]
    %v8607 = vld [vmem:[#allocation5 + $0x1554] sm:$0xff]
    %v8608 = vld [vmem:[#allocation5 + $0x155c] sm:$0xf]
    %v8609 = vld [vmem:[#allocation5 + $0x159c] sm:$0xff]
    %v8610 = vld [vmem:[#allocation5 + $0x15a4] sm:$0xf]
    %v8611 = vld [vmem:[#allocation5 + $0x15e4] sm:$0xff]
    %v8612 = vld [vmem:[#allocation5 + $0x15ec] sm:$0xf]
    %v8613 = vld [vmem:[#allocation5 + $0x162c] sm:$0xff]
    %v8614 = vld [vmem:[#allocation5 + $0x1634] sm:$0xf]
    %v8615 = vld [vmem:[#allocation5 + $0x1674] sm:$0xff]
    %v8616 = vld [vmem:[#allocation5 + $0x167c] sm:$0xf]
    %v8617 = vld [vmem:[#allocation5 + $0x16bc] sm:$0xff]
    %v8618 = vld [vmem:[#allocation5 + $0x16c4] sm:$0xf]
    %v8619 = vld [vmem:[#allocation5 + $0x1704] sm:$0xff]
    %v8620 = vld [vmem:[#allocation5 + $0x170c] sm:$0xf]
    %v8621 = vld [vmem:[#allocation5 + $0x174c] sm:$0xff]
    %v8622 = vld [vmem:[#allocation5 + $0x1754] sm:$0xf]
    %v8623 = vld [vmem:[#allocation5 + $0x1794] sm:$0xff]
    %v8624 = vld [vmem:[#allocation5 + $0x179c] sm:$0xf]
    %v8625 = vld [vmem:[#allocation5 + $0x17dc] sm:$0xff]
    %v8626 = vld [vmem:[#allocation5 + $0x17e4] sm:$0xf]
    %v8627 = vld [vmem:[#allocation5 + $0x1824] sm:$0xff]
    %v8628 = vld [vmem:[#allocation5 + $0x182c] sm:$0xf]
    %v8629 = vld [vmem:[#allocation5 + $0x186c] sm:$0xff]
    %v8630 = vld [vmem:[#allocation5 + $0x1874] sm:$0xf]
    %v8631 = vld [vmem:[#allocation5 + $0x18b4] sm:$0xff]
    %v8632 = vld [vmem:[#allocation5 + $0x18bc] sm:$0xf]
    %v8633 = vld [vmem:[#allocation5 + $0x18fc] sm:$0xff]
    %v8634 = vld [vmem:[#allocation5 + $0x1904] sm:$0xf]
    %v8635 = vld [vmem:[#allocation5 + $0x1944] sm:$0xff]
    %v8636 = vld [vmem:[#allocation5 + $0x194c] sm:$0xf]
    %v8637 = vld [vmem:[#allocation5 + $0x198c] sm:$0xff]
    %v8638 = vld [vmem:[#allocation5 + $0x1994] sm:$0xf]
    %v8639 = vld [vmem:[#allocation5 + $0x19d4] sm:$0xff]
    %v8640 = vld [vmem:[#allocation5 + $0x19dc] sm:$0xf]
    %v8641 = vld [vmem:[#allocation5 + $0x1a1c] sm:$0xff]
    %v8642 = vld [vmem:[#allocation5 + $0x1a24] sm:$0xf]
    %v8643 = vld [vmem:[#allocation5 + $0x1a64] sm:$0xff]
    %v8644 = vld [vmem:[#allocation5 + $0x1a6c] sm:$0xf]
    %v8645 = vld [vmem:[#allocation5 + $0x1aac] sm:$0xff]
    %v8646 = vld [vmem:[#allocation5 + $0x1ab4] sm:$0xf]
    %v8647 = vld [vmem:[#allocation5 + $0x1af4] sm:$0xff]
    %v8648 = vld [vmem:[#allocation5 + $0x1afc] sm:$0xf]
    %v8841 = vunpack.c.l.b16 %v8457
    %v8842 = vunpack.c.h.b16 %v8457
    %v8843 = vunpack.c.l.b16 %v8458
    %v8844 = vunpack.c.l.b16 %v8459
    %v8845 = vunpack.c.h.b16 %v8459
    %v8846 = vunpack.c.l.b16 %v8460
    %v8847 = vunpack.c.l.b16 %v8461
    %v8848 = vunpack.c.h.b16 %v8461
    %v8849 = vunpack.c.l.b16 %v8462
    %v8850 = vunpack.c.l.b16 %v8463
    %v8851 = vunpack.c.h.b16 %v8463
    %v8852 = vunpack.c.l.b16 %v8464
    %v8853 = vunpack.c.l.b16 %v8465
    %v8854 = vunpack.c.h.b16 %v8465
    %v8855 = vunpack.c.l.b16 %v8466
    %v8856 = vunpack.c.l.b16 %v8467
    %v8857 = vunpack.c.h.b16 %v8467
    %v8858 = vunpack.c.l.b16 %v8468
    %v8859 = vunpack.c.l.b16 %v8469
    %v8860 = vunpack.c.h.b16 %v8469
    %v8861 = vunpack.c.l.b16 %v8470
    %v8862 = vunpack.c.l.b16 %v8471
    %v8863 = vunpack.c.h.b16 %v8471
    %v8864 = vunpack.c.l.b16 %v8472
    %v8865 = vunpack.c.l.b16 %v8473
    %v8866 = vunpack.c.h.b16 %v8473
    %v8867 = vunpack.c.l.b16 %v8474
    %v8868 = vunpack.c.l.b16 %v8475
    %v8869 = vunpack.c.h.b16 %v8475
    %v8870 = vunpack.c.l.b16 %v8476
    %v8871 = vunpack.c.l.b16 %v8477
    %v8872 = vunpack.c.h.b16 %v8477
    %v8873 = vunpack.c.l.b16 %v8478
    %v8874 = vunpack.c.l.b16 %v8479
    %v8875 = vunpack.c.h.b16 %v8479
    %v8876 = vunpack.c.l.b16 %v8480
    %v8877 = vunpack.c.l.b16 %v8481
    %v8878 = vunpack.c.h.b16 %v8481
    %v8879 = vunpack.c.l.b16 %v8482
    %v8880 = vunpack.c.l.b16 %v8483
    %v8881 = vunpack.c.h.b16 %v8483
    %v8882 = vunpack.c.l.b16 %v8484
    %v8883 = vunpack.c.l.b16 %v8485
    %v8884 = vunpack.c.h.b16 %v8485
    %v8885 = vunpack.c.l.b16 %v8486
    %v8886 = vunpack.c.l.b16 %v8487
    %v8887 = vunpack.c.h.b16 %v8487
    %v8888 = vunpack.c.l.b16 %v8488
    %v8889 = vunpack.c.l.b16 %v8489
    %v8890 = vunpack.c.h.b16 %v8489
    %v8891 = vunpack.c.l.b16 %v8490
    %v8892 = vunpack.c.l.b16 %v8491
    %v8893 = vunpack.c.h.b16 %v8491
    %v8894 = vunpack.c.l.b16 %v8492
    %v8895 = vunpack.c.l.b16 %v8493
    %v8896 = vunpack.c.h.b16 %v8493
    %v8897 = vunpack.c.l.b16 %v8494
    %v8898 = vunpack.c.l.b16 %v8495
    %v8899 = vunpack.c.h.b16 %v8495
    %v8900 = vunpack.c.l.b16 %v8496
    %v8901 = vunpack.c.l.b16 %v8497
    %v8902 = vunpack.c.h.b16 %v8497
    %v8903 = vunpack.c.l.b16 %v8498
    %v8904 = vunpack.c.l.b16 %v8499
    %v8905 = vunpack.c.h.b16 %v8499
    %v8906 = vunpack.c.l.b16 %v8500
    %v8907 = vunpack.c.l.b16 %v8501
    %v8908 = vunpack.c.h.b16 %v8501
    %v8909 = vunpack.c.l.b16 %v8502
    %v8910 = vunpack.c.l.b16 %v8503
    %v8911 = vunpack.c.h.b16 %v8503
    %v8912 = vunpack.c.l.b16 %v8504
    %v8913 = vunpack.c.l.b16 %v8505
    %v8914 = vunpack.c.h.b16 %v8505
    %v8915 = vunpack.c.l.b16 %v8506
    %v8916 = vunpack.c.l.b16 %v8507
    %v8917 = vunpack.c.h.b16 %v8507
    %v8918 = vunpack.c.l.b16 %v8508
    %v8919 = vunpack.c.l.b16 %v8509
    %v8920 = vunpack.c.h.b16 %v8509
    %v8921 = vunpack.c.l.b16 %v8510
    %v8922 = vunpack.c.l.b16 %v8511
    %v8923 = vunpack.c.h.b16 %v8511
    %v8924 = vunpack.c.l.b16 %v8512
    %v8925 = vunpack.c.l.b16 %v8513
    %v8926 = vunpack.c.h.b16 %v8513
    %v8927 = vunpack.c.l.b16 %v8514
    %v8928 = vunpack.c.l.b16 %v8515
    %v8929 = vunpack.c.h.b16 %v8515
    %v8930 = vunpack.c.l.b16 %v8516
    %v8931 = vunpack.c.l.b16 %v8517
    %v8932 = vunpack.c.h.b16 %v8517
    %v8933 = vunpack.c.l.b16 %v8518
    %v8934 = vunpack.c.l.b16 %v8519
    %v8935 = vunpack.c.h.b16 %v8519
    %v8936 = vunpack.c.l.b16 %v8520
    %v8937 = vunpack.c.l.b16 %v8521
    %v8938 = vunpack.c.h.b16 %v8521
    %v8939 = vunpack.c.l.b16 %v8522
    %v8940 = vunpack.c.l.b16 %v8523
    %v8941 = vunpack.c.h.b16 %v8523
    %v8942 = vunpack.c.l.b16 %v8524
    %v8943 = vunpack.c.l.b16 %v8525
    %v8944 = vunpack.c.h.b16 %v8525
    %v8945 = vunpack.c.l.b16 %v8526
    %v8946 = vunpack.c.l.b16 %v8527
    %v8947 = vunpack.c.h.b16 %v8527
    %v8948 = vunpack.c.l.b16 %v8528
    %v8949 = vunpack.c.l.b16 %v8529
    %v8950 = vunpack.c.h.b16 %v8529
    %v8951 = vunpack.c.l.b16 %v8530
    %v8952 = vunpack.c.l.b16 %v8531
    %v8953 = vunpack.c.h.b16 %v8531
    %v8954 = vunpack.c.l.b16 %v8532
    %v8955 = vunpack.c.l.b16 %v8533
    %v8956 = vunpack.c.h.b16 %v8533
    %v8957 = vunpack.c.l.b16 %v8534
    %v8958 = vunpack.c.l.b16 %v8535
    %v8959 = vunpack.c.h.b16 %v8535
    %v8960 = vunpack.c.l.b16 %v8536
    %v8961 = vunpack.c.l.b16 %v8537
    %v8962 = vunpack.c.h.b16 %v8537
    %v8963 = vunpack.c.l.b16 %v8538
    %v8964 = vunpack.c.l.b16 %v8539
    %v8965 = vunpack.c.h.b16 %v8539
    %v8966 = vunpack.c.l.b16 %v8540
    %v8967 = vunpack.c.l.b16 %v8541
    %v8968 = vunpack.c.h.b16 %v8541
    %v8969 = vunpack.c.l.b16 %v8542
    %v8970 = vunpack.c.l.b16 %v8543
    %v8971 = vunpack.c.h.b16 %v8543
    %v8972 = vunpack.c.l.b16 %v8544
    %v8973 = vunpack.c.l.b16 %v8545
    %v8974 = vunpack.c.h.b16 %v8545
    %v8975 = vunpack.c.l.b16 %v8546
    %v8976 = vunpack.c.l.b16 %v8547
    %v8977 = vunpack.c.h.b16 %v8547
    %v8978 = vunpack.c.l.b16 %v8548
    %v8979 = vunpack.c.l.b16 %v8549
    %v8980 = vunpack.c.h.b16 %v8549
    %v8981 = vunpack.c.l.b16 %v8550
    %v8982 = vunpack.c.l.b16 %v8551
    %v8983 = vunpack.c.h.b16 %v8551
    %v8984 = vunpack.c.l.b16 %v8552
    %v8985 = vunpack.c.l.b16 %v8553
    %v8986 = vunpack.c.h.b16 %v8553
    %v8987 = vunpack.c.l.b16 %v8554
    %v8988 = vunpack.c.l.b16 %v8555
    %v8989 = vunpack.c.h.b16 %v8555
    %v8990 = vunpack.c.l.b16 %v8556
    %v8991 = vunpack.c.l.b16 %v8557
    %v8992 = vunpack.c.h.b16 %v8557
    %v8993 = vunpack.c.l.b16 %v8558
    %v8994 = vunpack.c.l.b16 %v8559
    %v8995 = vunpack.c.h.b16 %v8559
    %v8996 = vunpack.c.l.b16 %v8560
    %v8997 = vunpack.c.l.b16 %v8561
    %v8998 = vunpack.c.h.b16 %v8561
    %v8999 = vunpack.c.l.b16 %v8562
    %v9000 = vunpack.c.l.b16 %v8563
    %v9001 = vunpack.c.h.b16 %v8563
    %v9002 = vunpack.c.l.b16 %v8564
    %v9003 = vunpack.c.l.b16 %v8565
    %v9004 = vunpack.c.h.b16 %v8565
    %v9005 = vunpack.c.l.b16 %v8566
    %v9006 = vunpack.c.l.b16 %v8567
    %v9007 = vunpack.c.h.b16 %v8567
    %v9008 = vunpack.c.l.b16 %v8568
    %v9009 = vunpack.c.l.b16 %v8569
    %v9010 = vunpack.c.h.b16 %v8569
    %v9011 = vunpack.c.l.b16 %v8570
    %v9012 = vunpack.c.l.b16 %v8571
    %v9013 = vunpack.c.h.b16 %v8571
    %v9014 = vunpack.c.l.b16 %v8572
    %v9015 = vunpack.c.l.b16 %v8573
    %v9016 = vunpack.c.h.b16 %v8573
    %v9017 = vunpack.c.l.b16 %v8574
    %v9018 = vunpack.c.l.b16 %v8575
    %v9019 = vunpack.c.h.b16 %v8575
    %v9020 = vunpack.c.l.b16 %v8576
    %v9021 = vunpack.c.l.b16 %v8577
    %v9022 = vunpack.c.h.b16 %v8577
    %v9023 = vunpack.c.l.b16 %v8578
    %v9024 = vunpack.c.l.b16 %v8579
    %v9025 = vunpack.c.h.b16 %v8579
    %v9026 = vunpack.c.l.b16 %v8580
    %v9027 = vunpack.c.l.b16 %v8581
    %v9028 = vunpack.c.h.b16 %v8581
    %v9029 = vunpack.c.l.b16 %v8582
    %v9030 = vunpack.c.l.b16 %v8583
    %v9031 = vunpack.c.h.b16 %v8583
    %v9032 = vunpack.c.l.b16 %v8584
    %v9033 = vunpack.c.l.b16 %v8585
    %v9034 = vunpack.c.h.b16 %v8585
    %v9035 = vunpack.c.l.b16 %v8586
    %v9036 = vunpack.c.l.b16 %v8587
    %v9037 = vunpack.c.h.b16 %v8587
    %v9038 = vunpack.c.l.b16 %v8588
    %v9039 = vunpack.c.l.b16 %v8589
    %v9040 = vunpack.c.h.b16 %v8589
    %v9041 = vunpack.c.l.b16 %v8590
    %v9042 = vunpack.c.l.b16 %v8591
    %v9043 = vunpack.c.h.b16 %v8591
    %v9044 = vunpack.c.l.b16 %v8592
    %v9045 = vunpack.c.l.b16 %v8593
    %v9046 = vunpack.c.h.b16 %v8593
    %v9047 = vunpack.c.l.b16 %v8594
    %v9048 = vunpack.c.l.b16 %v8595
    %v9049 = vunpack.c.h.b16 %v8595
    %v9050 = vunpack.c.l.b16 %v8596
    %v9051 = vunpack.c.l.b16 %v8597
    %v9052 = vunpack.c.h.b16 %v8597
    %v9053 = vunpack.c.l.b16 %v8598
    %v9054 = vunpack.c.l.b16 %v8599
    %v9055 = vunpack.c.h.b16 %v8599
    %v9056 = vunpack.c.l.b16 %v8600
    %v9057 = vunpack.c.l.b16 %v8601
    %v9058 = vunpack.c.h.b16 %v8601
    %v9059 = vunpack.c.l.b16 %v8602
    %v9060 = vunpack.c.l.b16 %v8603
    %v9061 = vunpack.c.h.b16 %v8603
    %v9062 = vunpack.c.l.b16 %v8604
    %v9063 = vunpack.c.l.b16 %v8605
    %v9064 = vunpack.c.h.b16 %v8605
    %v9065 = vunpack.c.l.b16 %v8606
    %v9066 = vunpack.c.l.b16 %v8607
    %v9067 = vunpack.c.h.b16 %v8607
    %v9068 = vunpack.c.l.b16 %v8608
    %v9069 = vunpack.c.l.b16 %v8609
    %v9070 = vunpack.c.h.b16 %v8609
    %v9071 = vunpack.c.l.b16 %v8610
    %v9072 = vunpack.c.l.b16 %v8611
    %v9073 = vunpack.c.h.b16 %v8611
    %v9074 = vunpack.c.l.b16 %v8612
    %v9075 = vunpack.c.l.b16 %v8613
    %v9076 = vunpack.c.h.b16 %v8613
    %v9077 = vunpack.c.l.b16 %v8614
    %v9078 = vunpack.c.l.b16 %v8615
    %v9079 = vunpack.c.h.b16 %v8615
    %v9080 = vunpack.c.l.b16 %v8616
    %v9081 = vunpack.c.l.b16 %v8617
    %v9082 = vunpack.c.h.b16 %v8617
    %v9083 = vunpack.c.l.b16 %v8618
    %v9084 = vunpack.c.l.b16 %v8619
    %v9085 = vunpack.c.h.b16 %v8619
    %v9086 = vunpack.c.l.b16 %v8620
    %v9087 = vunpack.c.l.b16 %v8621
    %v9088 = vunpack.c.h.b16 %v8621
    %v9089 = vunpack.c.l.b16 %v8622
    %v9090 = vunpack.c.l.b16 %v8623
    %v9091 = vunpack.c.h.b16 %v8623
    %v9092 = vunpack.c.l.b16 %v8624
    %v9093 = vunpack.c.l.b16 %v8625
    %v9094 = vunpack.c.h.b16 %v8625
    %v9095 = vunpack.c.l.b16 %v8626
    %v9096 = vunpack.c.l.b16 %v8627
    %v9097 = vunpack.c.h.b16 %v8627
    %v9098 = vunpack.c.l.b16 %v8628
    %v9099 = vunpack.c.l.b16 %v8629
    %v9100 = vunpack.c.h.b16 %v8629
    %v9101 = vunpack.c.l.b16 %v8630
    %v9102 = vunpack.c.l.b16 %v8631
    %v9103 = vunpack.c.h.b16 %v8631
    %v9104 = vunpack.c.l.b16 %v8632
    %v9105 = vunpack.c.l.b16 %v8633
    %v9106 = vunpack.c.h.b16 %v8633
    %v9107 = vunpack.c.l.b16 %v8634
    %v9108 = vunpack.c.l.b16 %v8635
    %v9109 = vunpack.c.h.b16 %v8635
    %v9110 = vunpack.c.l.b16 %v8636
    %v9111 = vunpack.c.l.b16 %v8637
    %v9112 = vunpack.c.h.b16 %v8637
    %v9113 = vunpack.c.l.b16 %v8638
    %v9114 = vunpack.c.l.b16 %v8639
    %v9115 = vunpack.c.h.b16 %v8639
    %v9116 = vunpack.c.l.b16 %v8640
    %v9117 = vunpack.c.l.b16 %v8641
    %v9118 = vunpack.c.h.b16 %v8641
    %v9119 = vunpack.c.l.b16 %v8642
    %v9120 = vunpack.c.l.b16 %v8643
    %v9121 = vunpack.c.h.b16 %v8643
    %v9122 = vunpack.c.l.b16 %v8644
    %v9123 = vunpack.c.l.b16 %v8645
    %v9124 = vunpack.c.h.b16 %v8645
    %v9125 = vunpack.c.l.b16 %v8646
    %v9126 = vunpack.c.l.b16 %v8647
    %v9127 = vunpack.c.h.b16 %v8647
    %v9128 = vunpack.c.l.b16 %v8648
    %v9129 = vpack.c.b16 %v8844, %v8841
    %v9130 = vpack.c.b16 %v8845, %v8842
    %v9131 = vpack.c.b16 %v8846, %v8843
    %v9132 = vpack.c.b16 %v8850, %v8847
    %v9133 = vpack.c.b16 %v8851, %v8848
    %v9134 = vpack.c.b16 %v8852, %v8849
    %v9135 = vpack.c.b16 %v8856, %v8853
    %v9136 = vpack.c.b16 %v8857, %v8854
    %v9137 = vpack.c.b16 %v8858, %v8855
    %v9138 = vpack.c.b16 %v8862, %v8859
    %v9139 = vpack.c.b16 %v8863, %v8860
    %v9140 = vpack.c.b16 %v8864, %v8861
    %v9141 = vpack.c.b16 %v8868, %v8865
    %v9142 = vpack.c.b16 %v8869, %v8866
    %v9143 = vpack.c.b16 %v8870, %v8867
    %v9144 = vpack.c.b16 %v8874, %v8871
    %v9145 = vpack.c.b16 %v8875, %v8872
    %v9146 = vpack.c.b16 %v8876, %v8873
    %v9147 = vpack.c.b16 %v8880, %v8877
    %v9148 = vpack.c.b16 %v8881, %v8878
    %v9149 = vpack.c.b16 %v8882, %v8879
    %v9150 = vpack.c.b16 %v8886, %v8883
    %v9151 = vpack.c.b16 %v8887, %v8884
    %v9152 = vpack.c.b16 %v8888, %v8885
    %v9153 = vpack.c.b16 %v8892, %v8889
    %v9154 = vpack.c.b16 %v8893, %v8890
    %v9155 = vpack.c.b16 %v8894, %v8891
    %v9156 = vpack.c.b16 %v8898, %v8895
    %v9157 = vpack.c.b16 %v8899, %v8896
    %v9158 = vpack.c.b16 %v8900, %v8897
    %v9159 = vpack.c.b16 %v8904, %v8901
    %v9160 = vpack.c.b16 %v8905, %v8902
    %v9161 = vpack.c.b16 %v8906, %v8903
    %v9162 = vpack.c.b16 %v8910, %v8907
    %v9163 = vpack.c.b16 %v8911, %v8908
    %v9164 = vpack.c.b16 %v8912, %v8909
    %v9165 = vpack.c.b16 %v8916, %v8913
    %v9166 = vpack.c.b16 %v8917, %v8914
    %v9167 = vpack.c.b16 %v8918, %v8915
    %v9168 = vpack.c.b16 %v8922, %v8919
    %v9169 = vpack.c.b16 %v8923, %v8920
    %v9170 = vpack.c.b16 %v8924, %v8921
    %v9171 = vpack.c.b16 %v8928, %v8925
    %v9172 = vpack.c.b16 %v8929, %v8926
    %v9173 = vpack.c.b16 %v8930, %v8927
    %v9174 = vpack.c.b16 %v8934, %v8931
    %v9175 = vpack.c.b16 %v8935, %v8932
    %v9176 = vpack.c.b16 %v8936, %v8933
    %v9177 = vpack.c.b16 %v8940, %v8937
    %v9178 = vpack.c.b16 %v8941, %v8938
    %v9179 = vpack.c.b16 %v8942, %v8939
    %v9180 = vpack.c.b16 %v8946, %v8943
    %v9181 = vpack.c.b16 %v8947, %v8944
    %v9182 = vpack.c.b16 %v8948, %v8945
    %v9183 = vpack.c.b16 %v8952, %v8949
    %v9184 = vpack.c.b16 %v8953, %v8950
    %v9185 = vpack.c.b16 %v8954, %v8951
    %v9186 = vpack.c.b16 %v8958, %v8955
    %v9187 = vpack.c.b16 %v8959, %v8956
    %v9188 = vpack.c.b16 %v8960, %v8957
    %v9189 = vpack.c.b16 %v8964, %v8961
    %v9190 = vpack.c.b16 %v8965, %v8962
    %v9191 = vpack.c.b16 %v8966, %v8963
    %v9192 = vpack.c.b16 %v8970, %v8967
    %v9193 = vpack.c.b16 %v8971, %v8968
    %v9194 = vpack.c.b16 %v8972, %v8969
    %v9195 = vpack.c.b16 %v8976, %v8973
    %v9196 = vpack.c.b16 %v8977, %v8974
    %v9197 = vpack.c.b16 %v8978, %v8975
    %v9198 = vpack.c.b16 %v8982, %v8979
    %v9199 = vpack.c.b16 %v8983, %v8980
    %v9200 = vpack.c.b16 %v8984, %v8981
    %v9201 = vpack.c.b16 %v8988, %v8985
    %v9202 = vpack.c.b16 %v8989, %v8986
    %v9203 = vpack.c.b16 %v8990, %v8987
    %v9204 = vpack.c.b16 %v8994, %v8991
    %v9205 = vpack.c.b16 %v8995, %v8992
    %v9206 = vpack.c.b16 %v8996, %v8993
    %v9207 = vpack.c.b16 %v9000, %v8997
    %v9208 = vpack.c.b16 %v9001, %v8998
    %v9209 = vpack.c.b16 %v9002, %v8999
    %v9210 = vpack.c.b16 %v9006, %v9003
    %v9211 = vpack.c.b16 %v9007, %v9004
    %v9212 = vpack.c.b16 %v9008, %v9005
    %v9213 = vpack.c.b16 %v9012, %v9009
    %v9214 = vpack.c.b16 %v9013, %v9010
    %v9215 = vpack.c.b16 %v9014, %v9011
    %v9216 = vpack.c.b16 %v9018, %v9015
    %v9217 = vpack.c.b16 %v9019, %v9016
    %v9218 = vpack.c.b16 %v9020, %v9017
    %v9219 = vpack.c.b16 %v9024, %v9021
    %v9220 = vpack.c.b16 %v9025, %v9022
    %v9221 = vpack.c.b16 %v9026, %v9023
    %v9222 = vpack.c.b16 %v9030, %v9027
    %v9223 = vpack.c.b16 %v9031, %v9028
    %v9224 = vpack.c.b16 %v9032, %v9029
    %v9225 = vpack.c.b16 %v9036, %v9033
    %v9226 = vpack.c.b16 %v9037, %v9034
    %v9227 = vpack.c.b16 %v9038, %v9035
    %v9228 = vpack.c.b16 %v9042, %v9039
    %v9229 = vpack.c.b16 %v9043, %v9040
    %v9230 = vpack.c.b16 %v9044, %v9041
    %v9231 = vpack.c.b16 %v9048, %v9045
    %v9232 = vpack.c.b16 %v9049, %v9046
    %v9233 = vpack.c.b16 %v9050, %v9047
    %v9234 = vpack.c.b16 %v9054, %v9051
    %v9235 = vpack.c.b16 %v9055, %v9052
    %v9236 = vpack.c.b16 %v9056, %v9053
    %v9237 = vpack.c.b16 %v9060, %v9057
    %v9238 = vpack.c.b16 %v9061, %v9058
    %v9239 = vpack.c.b16 %v9062, %v9059
    %v9240 = vpack.c.b16 %v9066, %v9063
    %v9241 = vpack.c.b16 %v9067, %v9064
    %v9242 = vpack.c.b16 %v9068, %v9065
    %v9243 = vpack.c.b16 %v9072, %v9069
    %v9244 = vpack.c.b16 %v9073, %v9070
    %v9245 = vpack.c.b16 %v9074, %v9071
    %v9246 = vpack.c.b16 %v9078, %v9075
    %v9247 = vpack.c.b16 %v9079, %v9076
    %v9248 = vpack.c.b16 %v9080, %v9077
    %v9249 = vpack.c.b16 %v9084, %v9081
    %v9250 = vpack.c.b16 %v9085, %v9082
    %v9251 = vpack.c.b16 %v9086, %v9083
    %v9252 = vpack.c.b16 %v9090, %v9087
    %v9253 = vpack.c.b16 %v9091, %v9088
    %v9254 = vpack.c.b16 %v9092, %v9089
    %v9255 = vpack.c.b16 %v9096, %v9093
    %v9256 = vpack.c.b16 %v9097, %v9094
    %v9257 = vpack.c.b16 %v9098, %v9095
    %v9258 = vpack.c.b16 %v9102, %v9099
    %v9259 = vpack.c.b16 %v9103, %v9100
    %v9260 = vpack.c.b16 %v9104, %v9101
    %v9261 = vpack.c.b16 %v9108, %v9105
    %v9262 = vpack.c.b16 %v9109, %v9106
    %v9263 = vpack.c.b16 %v9110, %v9107
    %v9264 = vpack.c.b16 %v9114, %v9111
    %v9265 = vpack.c.b16 %v9115, %v9112
    %v9266 = vpack.c.b16 %v9116, %v9113
    %v9267 = vpack.c.b16 %v9120, %v9117
    %v9268 = vpack.c.b16 %v9121, %v9118
    %v9269 = vpack.c.b16 %v9122, %v9119
    %v9270 = vpack.c.b16 %v9126, %v9123
    %v9271 = vpack.c.b16 %v9127, %v9124
    %v9272 = vpack.c.b16 %v9128, %v9125
    %9417 = vmatprep.subr.bf16.mxu0 %v9130
    %9418 = vmatpush1.bf16.msra.mxu0 %v9129
    %9419 = vmatprep.subr.bf16.mxu0 %v9133
    %9420 = vmatpush1.bf16.msra.mxu0 %v9132
    %9421 = vmatprep.subr.bf16.mxu0 %v9136
    %9422 = vmatpush1.bf16.msra.mxu0 %v9135
    %9423 = vmatprep.subr.bf16.mxu0 %v9139
    %9424 = vmatpush1.bf16.msra.mxu0 %v9138
    %9425 = vmatprep.subr.bf16.mxu0 %v9142
    %9426 = vmatpush1.bf16.msra.mxu0 %v9141
    %9427 = vmatprep.subr.bf16.mxu0 %v9145
    %9428 = vmatpush1.bf16.msra.mxu0 %v9144
    %9429 = vmatprep.subr.bf16.mxu0 %v9148
    %9430 = vmatpush1.bf16.msra.mxu0 %v9147
    %9431 = vmatprep.subr.bf16.mxu0 %v9151
    %9432 = vmatpush1.bf16.msra.mxu0 %v9150
    %9433 = vmatprep.subr.bf16.mxu0 %v9154
    %9434 = vmatpush1.bf16.msra.mxu0 %v9153
    %9435 = vmatprep.subr.bf16.mxu0 %v9157
    %9436 = vmatpush1.bf16.msra.mxu0 %v9156
    %9437 = vmatprep.subr.bf16.mxu0 %v9160
    %9438 = vmatpush1.bf16.msra.mxu0 %v9159
    %9439 = vmatprep.subr.bf16.mxu0 %v9163
    %9440 = vmatpush1.bf16.msra.mxu0 %v9162
    %9441 = vmatprep.subr.bf16.mxu0 %v9166
    %9442 = vmatpush1.bf16.msra.mxu0 %v9165
    %9443 = vmatprep.subr.bf16.mxu0 %v9169
    %9444 = vmatpush1.bf16.msra.mxu0 %v9168
    %9445 = vmatprep.subr.bf16.mxu0 %v9172
    %9446 = vmatpush1.bf16.msra.mxu0 %v9171
    %9447 = vmatprep.subr.bf16.mxu0 %v9175
    %9448 = vmatpush1.bf16.msra.mxu0 %v9174
    %9449 = vmatprep.mubr.bf16.mxu0 %v70
    %9450 = vmatmul.mubr.bf16.gmra.mrb[0].mxu0 %v69
    %v9451 = vpop.f32.mrb[0].mxu0
    %v9452 = vadd.f32 0.0, %v9451
    %v9453 = vpop.f32.mrb[0].mxu0
    %v9454 = vadd.f32 0.0, %v9453
    %v9455 = vpop.f32.mrb[0].mxu0
    %v9456 = vadd.f32 0.0, %v9455
    %v9457 = vpop.f32.mrb[0].mxu0
    %v9458 = vadd.f32 0.0, %v9457
    %9459 = vdwg.mxu0
    %9460 = vmatprep.subr.bf16.mxu0 %v9178
    %9461 = vmatpush1.bf16.msra.mxu0 %v9177
    %9462 = vmatprep.subr.bf16.mxu0 %v9181
    %9463 = vmatpush1.bf16.msra.mxu0 %v9180
    %9464 = vmatprep.subr.bf16.mxu0 %v9184
    %9465 = vmatpush1.bf16.msra.mxu0 %v9183
    %9466 = vmatprep.subr.bf16.mxu0 %v9187
    %9467 = vmatpush1.bf16.msra.mxu0 %v9186
    %9468 = vmatprep.subr.bf16.mxu0 %v9190
    %9469 = vmatpush1.bf16.msra.mxu0 %v9189
    %9470 = vmatprep.subr.bf16.mxu0 %v9193
    %9471 = vmatpush1.bf16.msra.mxu0 %v9192
    %9472 = vmatprep.subr.bf16.mxu0 %v9196
    %9473 = vmatpush1.bf16.msra.mxu0 %v9195
    %9474 = vmatprep.subr.bf16.mxu0 %v9199
    %9475 = vmatpush1.bf16.msra.mxu0 %v9198
    %9476 = vmatprep.subr.bf16.mxu0 %v9202
    %9477 = vmatpush1.bf16.msra.mxu0 %v9201
    %9478 = vmatprep.subr.bf16.mxu0 %v9205
    %9479 = vmatpush1.bf16.msra.mxu0 %v9204
    %9480 = vmatprep.subr.bf16.mxu0 %v9208
    %9481 = vmatpush1.bf16.msra.mxu0 %v9207
    %9482 = vmatprep.subr.bf16.mxu0 %v9211
    %9483 = vmatpush1.bf16.msra.mxu0 %v9210
    %9484 = vmatprep.subr.bf16.mxu0 %v9214
    %9485 = vmatpush1.bf16.msra.mxu0 %v9213
    %9486 = vmatprep.subr.bf16.mxu0 %v9217
    %9487 = vmatpush1.bf16.msra.mxu0 %v9216
    %9488 = vmatprep.subr.bf16.mxu0 %v9220
    %9489 = vmatpush1.bf16.msra.mxu0 %v9219
    %9490 = vmatprep.subr.bf16.mxu0 %v9223
    %9491 = vmatpush1.bf16.msra.mxu0 %v9222
    %9492 = vmatprep.mubr.bf16.mxu0 %v72
    %9493 = vmatmul.mubr.bf16.gmra.mrb[0].mxu0 %v71
    %v9494 = vpop.f32.mrb[0].mxu0
    %v9495 = vadd.f32 %v9452, %v9494
    %v9496 = vpop.f32.mrb[0].mxu0
    %v9497 = vadd.f32 %v9454, %v9496
    %v9498 = vpop.f32.mrb[0].mxu0
    %v9499 = vadd.f32 %v9456, %v9498
    %v9500 = vpop.f32.mrb[0].mxu0
    %v9501 = vadd.f32 %v9458, %v9500
    %9502 = vdwg.mxu0
    %9503 = vmatprep.subr.bf16.mxu0 %v9226
    %9504 = vmatpush1.bf16.msra.mxu0 %v9225
    %9505 = vmatprep.subr.bf16.mxu0 %v9229
    %9506 = vmatpush1.bf16.msra.mxu0 %v9228
    %9507 = vmatprep.subr.bf16.mxu0 %v9232
    %9508 = vmatpush1.bf16.msra.mxu0 %v9231
    %9509 = vmatprep.subr.bf16.mxu0 %v9235
    %9510 = vmatpush1.bf16.msra.mxu0 %v9234
    %9511 = vmatprep.subr.bf16.mxu0 %v9238
    %9512 = vmatpush1.bf16.msra.mxu0 %v9237
    %9513 = vmatprep.subr.bf16.mxu0 %v9241
    %9514 = vmatpush1.bf16.msra.mxu0 %v9240
    %9515 = vmatprep.subr.bf16.mxu0 %v9244
    %9516 = vmatpush1.bf16.msra.mxu0 %v9243
    %9517 = vmatprep.subr.bf16.mxu0 %v9247
    %9518 = vmatpush1.bf16.msra.mxu0 %v9246
    %9519 = vmatprep.subr.bf16.mxu0 %v9250
    %9520 = vmatpush1.bf16.msra.mxu0 %v9249
    %9521 = vmatprep.subr.bf16.mxu0 %v9253
    %9522 = vmatpush1.bf16.msra.mxu0 %v9252
    %9523 = vmatprep.subr.bf16.mxu0 %v9256
    %9524 = vmatpush1.bf16.msra.mxu0 %v9255
    %9525 = vmatprep.subr.bf16.mxu0 %v9259
    %9526 = vmatpush1.bf16.msra.mxu0 %v9258
    %9527 = vmatprep.subr.bf16.mxu0 %v9262
    %9528 = vmatpush1.bf16.msra.mxu0 %v9261
    %9529 = vmatprep.subr.bf16.mxu0 %v9265
    %9530 = vmatpush1.bf16.msra.mxu0 %v9264
    %9531 = vmatprep.subr.bf16.mxu0 %v9268
    %9532 = vmatpush1.bf16.msra.mxu0 %v9267
    %9533 = vmatprep.subr.bf16.mxu0 %v9271
    %9534 = vmatpush1.bf16.msra.mxu0 %v9270
    %9535 = vmatprep.mubr.bf16.mxu0 %v74
    %9536 = vmatmul.mubr.bf16.gmra.mrb[0].mxu0 %v73
    %v9537 = vpop.f32.mrb[0].mxu0
    %v9538 = vadd.f32 %v9495, %v9537
    %v9539 = vpop.f32.mrb[0].mxu0
    %v9540 = vadd.f32 %v9497, %v9539
    %v9541 = vpop.f32.mrb[0].mxu0
    %v9542 = vadd.f32 %v9499, %v9541
    %v9543 = vpop.f32.mrb[0].mxu0
    %v9544 = vadd.f32 %v9501, %v9543
    %9545 = vdwg.mxu0
    %9546 = vmatprep.subr.bf16.mxu0 0
    %9547 = vmatpush1.bf16.msra.mxu0 %v9131
    %9548 = vmatprep.subr.bf16.mxu0 0
    %9549 = vmatpush1.bf16.msra.mxu0 %v9134
    %9550 = vmatprep.subr.bf16.mxu0 0
    %9551 = vmatpush1.bf16.msra.mxu0 %v9137
    %9552 = vmatprep.subr.bf16.mxu0 0
    %9553 = vmatpush1.bf16.msra.mxu0 %v9140
    %9554 = vmatprep.subr.bf16.mxu0 0
    %9555 = vmatpush1.bf16.msra.mxu0 %v9143
    %9556 = vmatprep.subr.bf16.mxu0 0
    %9557 = vmatpush1.bf16.msra.mxu0 %v9146
    %9558 = vmatprep.subr.bf16.mxu0 0
    %9559 = vmatpush1.bf16.msra.mxu0 %v9149
    %9560 = vmatprep.subr.bf16.mxu0 0
    %9561 = vmatpush1.bf16.msra.mxu0 %v9152
    %9562 = vmatprep.subr.bf16.mxu0 0
    %9563 = vmatpush1.bf16.msra.mxu0 %v9155
    %9564 = vmatprep.subr.bf16.mxu0 0
    %9565 = vmatpush1.bf16.msra.mxu0 %v9158
    %9566 = vmatprep.subr.bf16.mxu0 0
    %9567 = vmatpush1.bf16.msra.mxu0 %v9161
    %9568 = vmatprep.subr.bf16.mxu0 0
    %9569 = vmatpush1.bf16.msra.mxu0 %v9164
    %9570 = vmatprep.subr.bf16.mxu0 0
    %9571 = vmatpush1.bf16.msra.mxu0 %v9167
    %9572 = vmatprep.subr.bf16.mxu0 0
    %9573 = vmatpush1.bf16.msra.mxu0 %v9170
    %9574 = vmatprep.subr.bf16.mxu0 0
    %9575 = vmatpush1.bf16.msra.mxu0 %v9173
    %9576 = vmatprep.subr.bf16.mxu0 0
    %9577 = vmatpush1.bf16.msra.mxu0 %v9176
    %9578 = vmatprep.mubr.bf16.mxu0 %v70
    %9579 = vmatmul.mubr.bf16.gmra.mrb[0].mxu0 %v69
    %v9580 = vpop.f32.mrb[0].mxu0
    %v9581 = vadd.f32 0.0, %v9580
    %v9582 = vpop.f32.mrb[0].mxu0
    %v9583 = vpop.f32.mrb[0].mxu0
    %v9584 = vadd.f32 0.0, %v9583
    %v9585 = vpop.f32.mrb[0].mxu0
    %9586 = vdwg.mxu0
    %9587 = vmatprep.subr.bf16.mxu0 0
    %9588 = vmatpush1.bf16.msra.mxu0 %v9179
    %9589 = vmatprep.subr.bf16.mxu0 0
    %9590 = vmatpush1.bf16.msra.mxu0 %v9182
    %9591 = vmatprep.subr.bf16.mxu0 0
    %9592 = vmatpush1.bf16.msra.mxu0 %v9185
    %9593 = vmatprep.subr.bf16.mxu0 0
    %9594 = vmatpush1.bf16.msra.mxu0 %v9188
    %9595 = vmatprep.subr.bf16.mxu0 0
    %9596 = vmatpush1.bf16.msra.mxu0 %v9191
    %9597 = vmatprep.subr.bf16.mxu0 0
    %9598 = vmatpush1.bf16.msra.mxu0 %v9194
    %9599 = vmatprep.subr.bf16.mxu0 0
    %9600 = vmatpush1.bf16.msra.mxu0 %v9197
    %9601 = vmatprep.subr.bf16.mxu0 0
    %9602 = vmatpush1.bf16.msra.mxu0 %v9200
    %9603 = vmatprep.subr.bf16.mxu0 0
    %9604 = vmatpush1.bf16.msra.mxu0 %v9203
    %9605 = vmatprep.subr.bf16.mxu0 0
    %9606 = vmatpush1.bf16.msra.mxu0 %v9206
    %9607 = vmatprep.subr.bf16.mxu0 0
    %9608 = vmatpush1.bf16.msra.mxu0 %v9209
    %9609 = vmatprep.subr.bf16.mxu0 0
    %9610 = vmatpush1.bf16.msra.mxu0 %v9212
    %9611 = vmatprep.subr.bf16.mxu0 0
    %9612 = vmatpush1.bf16.msra.mxu0 %v9215
    %9613 = vmatprep.subr.bf16.mxu0 0
    %9614 = vmatpush1.bf16.msra.mxu0 %v9218
    %9615 = vmatprep.subr.bf16.mxu0 0
    %9616 = vmatpush1.bf16.msra.mxu0 %v9221
    %9617 = vmatprep.subr.bf16.mxu0 0
    %9618 = vmatpush1.bf16.msra.mxu0 %v9224
    %9619 = vmatprep.mubr.bf16.mxu0 %v72
    %9620 = vmatmul.mubr.bf16.gmra.mrb[0].mxu0 %v71
    %v9621 = vpop.f32.mrb[0].mxu0
    %v9622 = vadd.f32 %v9581, %v9621
    %v9623 = vpop.f32.mrb[0].mxu0
    %v9624 = vpop.f32.mrb[0].mxu0
    %v9625 = vadd.f32 %v9584, %v9624
    %v9626 = vpop.f32.mrb[0].mxu0
    %9627 = vdwg.mxu0
    %9628 = vmatprep.subr.bf16.mxu0 0
    %9629 = vmatpush1.bf16.msra.mxu0 %v9227
    %9630 = vmatprep.subr.bf16.mxu0 0
    %9631 = vmatpush1.bf16.msra.mxu0 %v9230
    %9632 = vmatprep.subr.bf16.mxu0 0
    %9633 = vmatpush1.bf16.msra.mxu0 %v9233
    %9634 = vmatprep.subr.bf16.mxu0 0
    %9635 = vmatpush1.bf16.msra.mxu0 %v9236
    %9636 = vmatprep.subr.bf16.mxu0 0
    %9637 = vmatpush1.bf16.msra.mxu0 %v9239
    %9638 = vmatprep.subr.bf16.mxu0 0
    %9639 = vmatpush1.bf16.msra.mxu0 %v9242
    %9640 = vmatprep.subr.bf16.mxu0 0
    %9641 = vmatpush1.bf16.msra.mxu0 %v9245
    %9642 = vmatprep.subr.bf16.mxu0 0
    %9643 = vmatpush1.bf16.msra.mxu0 %v9248
    %9644 = vmatprep.subr.bf16.mxu0 0
    %9645 = vmatpush1.bf16.msra.mxu0 %v9251
    %9646 = vmatprep.subr.bf16.mxu0 0
    %9647 = vmatpush1.bf16.msra.mxu0 %v9254
    %9648 = vmatprep.subr.bf16.mxu0 0
    %9649 = vmatpush1.bf16.msra.mxu0 %v9257
    %9650 = vmatprep.subr.bf16.mxu0 0
    %9651 = vmatpush1.bf16.msra.mxu0 %v9260
    %9652 = vmatprep.subr.bf16.mxu0 0
    %9653 = vmatpush1.bf16.msra.mxu0 %v9263
    %9654 = vmatprep.subr.bf16.mxu0 0
    %9655 = vmatpush1.bf16.msra.mxu0 %v9266
    %9656 = vmatprep.subr.bf16.mxu0 0
    %9657 = vmatpush1.bf16.msra.mxu0 %v9269
    %9658 = vmatprep.subr.bf16.mxu0 0
    %9659 = vmatpush1.bf16.msra.mxu0 %v9272
    %9660 = vmatprep.mubr.bf16.mxu0 %v74
    %9661 = vmatmul.mubr.bf16.gmra.mrb[0].mxu0 %v73
    %v9662 = vpop.f32.mrb[0].mxu0
    %v9663 = vadd.f32 %v9622, %v9662
    %v9664 = vpop.f32.mrb[0].mxu0
    %v9665 = vpop.f32.mrb[0].mxu0
    %v9666 = vadd.f32 %v9625, %v9665
    %v9667 = vpop.f32.mrb[0].mxu0
    %9668 = vdwg.mxu0
    %v9669 = vmul.f32 %v8326, 0.5
    %v9670 = vmul.f32 %v8328, 0.5
    %v9671 = vmul.f32 %v8451, 0.5
    %v9672 = vmul.f32 %v8330, 0.5
    %v9673 = vmul.f32 %v8332, 0.5
    %v9674 = vmul.f32 %v8454, 0.5
    %v9675 = vmul.f32 %v8326, 0.70710677
    %v9676 = vmul.f32 %v8328, 0.70710677
    %v9677 = vmul.f32 %v8451, 0.70710677
    %v9678 = vmul.f32 %v8330, 0.70710677
    %v9679 = vmul.f32 %v8332, 0.70710677
    %v9680 = vmul.f32 %v8454, 0.70710677
    %v9681 = verf.f32.pop %v9675
    %v9682 = verf.f32.pop %v9676
    %v9683 = verf.f32.pop %v9677
    %v9684 = verf.f32.pop %v9678
    %v9685 = verf.f32.pop %v9679
    %v9686 = verf.f32.pop %v9680
    %v9687 = vadd.f32 %v9681, 1.0
    %v9688 = vadd.f32 %v9682, 1.0
    %v9689 = vadd.f32 %v9683, 1.0
    %v9690 = vadd.f32 %v9684, 1.0
    %v9691 = vadd.f32 %v9685, 1.0
    %v9692 = vadd.f32 %v9686, 1.0
    %v9693 = vmul.f32 %v9669, %v9687
    %v9694 = vmul.f32 %v9670, %v9688
    %v9695 = vmul.f32 %v9671, %v9689
    %v9696 = vmul.f32 %v9672, %v9690
    %v9697 = vmul.f32 %v9673, %v9691
    %v9698 = vmul.f32 %v9674, %v9692
    %v9699 = vmul.f32 %v9693, %v9538
    %v9700 = vmul.f32 %v9694, %v9540
    %v9701 = vmul.f32 %v9695, %v9663
    %v9702 = vmul.f32 %v9696, %v9542
    %v9703 = vmul.f32 %v9697, %v9544
    %v9704 = vmul.f32 %v9698, %v9666
    %v9705 = vpack.c.bf16 %v9702, %v9699
    %v9706 = vpack.c.bf16 %v9703, %v9700
    %v9707 = vpack.c.bf16 %v9704, %v9701
    %v9708 = vld [vmem:[#allocation7 + $0x900] sm:$0xff]
    %v9709 = vld [vmem:[#allocation7 + $0x908] sm:$0xff]
    %v9710 = vld [vmem:[#allocation7 + $0x910] sm:$0xff]
    %v9711 = vld [vmem:[#allocation7 + $0x918] sm:$0xff]
    %v9712 = vld [vmem:[#allocation7 + $0x920] sm:$0xff]
    %v9713 = vld [vmem:[#allocation7 + $0x928] sm:$0xff]
    %v9714 = vld [vmem:[#allocation7 + $0x930] sm:$0xff]
    %v9715 = vld [vmem:[#allocation7 + $0x938] sm:$0xff]
    %v9716 = vld [vmem:[#allocation7 + $0x940] sm:$0xff]
    %v9717 = vld [vmem:[#allocation7 + $0x948] sm:$0xff]
    %v9718 = vld [vmem:[#allocation7 + $0x950] sm:$0xff]
    %v9719 = vld [vmem:[#allocation7 + $0x958] sm:$0xff]
    %v9720 = vld [vmem:[#allocation7 + $0x960] sm:$0xff]
    %v9721 = vld [vmem:[#allocation7 + $0x968] sm:$0xff]
    %v9722 = vld [vmem:[#allocation7 + $0x970] sm:$0xff]
    %v9723 = vld [vmem:[#allocation7 + $0x978] sm:$0xff]
    %v9724 = vld [vmem:[#allocation7 + $0x980] sm:$0xff]
    %v9725 = vld [vmem:[#allocation7 + $0x988] sm:$0xff]
    %v9726 = vld [vmem:[#allocation7 + $0x990] sm:$0xff]
    %v9727 = vld [vmem:[#allocation7 + $0x998] sm:$0xff]
    %v9728 = vld [vmem:[#allocation7 + $0x9a0] sm:$0xff]
    %v9729 = vld [vmem:[#allocation7 + $0x9a8] sm:$0xff]
    %v9730 = vld [vmem:[#allocation7 + $0x9b0] sm:$0xff]
    %v9731 = vld [vmem:[#allocation7 + $0x9b8] sm:$0xff]
    %v9732 = vld [vmem:[#allocation7 + $0x9c0] sm:$0xff]
    %v9733 = vld [vmem:[#allocation7 + $0x9c8] sm:$0xff]
    %v9734 = vld [vmem:[#allocation7 + $0x9d0] sm:$0xff]
    %v9735 = vld [vmem:[#allocation7 + $0x9d8] sm:$0xff]
    %v9736 = vld [vmem:[#allocation7 + $0x9e0] sm:$0xff]
    %v9737 = vld [vmem:[#allocation7 + $0x9e8] sm:$0xff]
    %v9738 = vld [vmem:[#allocation7 + $0x9f0] sm:$0xff]
    %v9739 = vld [vmem:[#allocation7 + $0x9f8] sm:$0xff]
    %v9740 = vld [vmem:[#allocation7 + $0xa00] sm:$0xff]
    %v9741 = vld [vmem:[#allocation7 + $0xa08] sm:$0xff]
    %v9742 = vld [vmem:[#allocation7 + $0xa10] sm:$0xff]
    %v9743 = vld [vmem:[#allocation7 + $0xa18] sm:$0xff]
    %v9744 = vld [vmem:[#allocation7 + $0xa20] sm:$0xff]
    %v9745 = vld [vmem:[#allocation7 + $0xa28] sm:$0xff]
    %v9746 = vld [vmem:[#allocation7 + $0xa30] sm:$0xff]
    %v9747 = vld [vmem:[#allocation7 + $0xa38] sm:$0xff]
    %v9748 = vld [vmem:[#allocation7 + $0xa40] sm:$0xff]
    %v9749 = vld [vmem:[#allocation7 + $0xa48] sm:$0xff]
    %v9750 = vld [vmem:[#allocation7 + $0xa50] sm:$0xff]
    %v9751 = vld [vmem:[#allocation7 + $0xa58] sm:$0xff]
    %v9752 = vld [vmem:[#allocation7 + $0xa60] sm:$0xff]
    %v9753 = vld [vmem:[#allocation7 + $0xa68] sm:$0xff]
    %v9754 = vld [vmem:[#allocation7 + $0xa70] sm:$0xff]
    %v9755 = vld [vmem:[#allocation7 + $0xa78] sm:$0xff]
    %v9756 = vld [vmem:[#allocation7 + $0xa80] sm:$0xff]
    %v9757 = vld [vmem:[#allocation7 + $0xa88] sm:$0xff]
    %v9758 = vld [vmem:[#allocation7 + $0xa90] sm:$0xff]
    %v9759 = vld [vmem:[#allocation7 + $0xa98] sm:$0xff]
    %v9760 = vld [vmem:[#allocation7 + $0xaa0] sm:$0xff]
    %v9761 = vld [vmem:[#allocation7 + $0xaa8] sm:$0xff]
    %v9762 = vld [vmem:[#allocation7 + $0xab0] sm:$0xff]
    %v9763 = vld [vmem:[#allocation7 + $0xab8] sm:$0xff]
    %v9764 = vld [vmem:[#allocation7 + $0xac0] sm:$0xff]
    %v9765 = vld [vmem:[#allocation7 + $0xac8] sm:$0xff]
    %v9766 = vld [vmem:[#allocation7 + $0xad0] sm:$0xff]
    %v9767 = vld [vmem:[#allocation7 + $0xad8] sm:$0xff]
    %v9768 = vld [vmem:[#allocation7 + $0xae0] sm:$0xff]
    %v9769 = vld [vmem:[#allocation7 + $0xae8] sm:$0xff]
    %v9770 = vld [vmem:[#allocation7 + $0xaf0] sm:$0xff]
    %v9771 = vld [vmem:[#allocation7 + $0xaf8] sm:$0xff]
    %v9772 = vld [vmem:[#allocation7 + $0xb00] sm:$0xff]
    %v9773 = vld [vmem:[#allocation7 + $0xb08] sm:$0xff]
    %v9774 = vld [vmem:[#allocation7 + $0xb10] sm:$0xff]
    %v9775 = vld [vmem:[#allocation7 + $0xb18] sm:$0xff]
    %v9776 = vld [vmem:[#allocation7 + $0xb20] sm:$0xff]
    %v9777 = vld [vmem:[#allocation7 + $0xb28] sm:$0xff]
    %v9778 = vld [vmem:[#allocation7 + $0xb30] sm:$0xff]
    %v9779 = vld [vmem:[#allocation7 + $0xb38] sm:$0xff]
    %v9780 = vld [vmem:[#allocation7 + $0xb40] sm:$0xff]
    %v9781 = vld [vmem:[#allocation7 + $0xb48] sm:$0xff]
    %v9782 = vld [vmem:[#allocation7 + $0xb50] sm:$0xff]
    %v9783 = vld [vmem:[#allocation7 + $0xb58] sm:$0xff]
    %v9784 = vld [vmem:[#allocation7 + $0xb60] sm:$0xff]
    %v9785 = vld [vmem:[#allocation7 + $0xb68] sm:$0xff]
    %v9786 = vld [vmem:[#allocation7 + $0xb70] sm:$0xff]
    %v9787 = vld [vmem:[#allocation7 + $0xb78] sm:$0xff]
    %v9788 = vld [vmem:[#allocation7 + $0xb80] sm:$0xff]
    %v9789 = vld [vmem:[#allocation7 + $0xb88] sm:$0xff]
    %v9790 = vld [vmem:[#allocation7 + $0xb90] sm:$0xff]
    %v9791 = vld [vmem:[#allocation7 + $0xb98] sm:$0xff]
    %v9792 = vld [vmem:[#allocation7 + $0xba0] sm:$0xff]
    %v9793 = vld [vmem:[#allocation7 + $0xba8] sm:$0xff]
    %v9794 = vld [vmem:[#allocation7 + $0xbb0] sm:$0xff]
    %v9795 = vld [vmem:[#allocation7 + $0xbb8] sm:$0xff]
    %v9796 = vld [vmem:[#allocation7 + $0xbc0] sm:$0xff]
    %v9797 = vld [vmem:[#allocation7 + $0xbc8] sm:$0xff]
    %v9798 = vld [vmem:[#allocation7 + $0xbd0] sm:$0xff]
    %v9799 = vld [vmem:[#allocation7 + $0xbd8] sm:$0xff]
    %v9800 = vld [vmem:[#allocation7 + $0xbe0] sm:$0xff]
    %v9801 = vld [vmem:[#allocation7 + $0xbe8] sm:$0xff]
    %v9802 = vld [vmem:[#allocation7 + $0xbf0] sm:$0xff]
    %v9803 = vld [vmem:[#allocation7 + $0xbf8] sm:$0xff]
    %v9804 = vld [vmem:[#allocation7 + $0xc00] sm:$0xff]
    %v9805 = vld [vmem:[#allocation7 + $0xc08] sm:$0xff]
    %v9806 = vld [vmem:[#allocation7 + $0xc10] sm:$0xff]
    %v9807 = vld [vmem:[#allocation7 + $0xc18] sm:$0xff]
    %v9808 = vld [vmem:[#allocation7 + $0xc20] sm:$0xff]
    %v9809 = vld [vmem:[#allocation7 + $0xc28] sm:$0xff]
    %v9810 = vld [vmem:[#allocation7 + $0xc30] sm:$0xff]
    %v9811 = vld [vmem:[#allocation7 + $0xc38] sm:$0xff]
    %v9812 = vld [vmem:[#allocation7 + $0xc40] sm:$0xff]
    %v9813 = vld [vmem:[#allocation7 + $0xc48] sm:$0xff]
    %v9814 = vld [vmem:[#allocation7 + $0xc50] sm:$0xff]
    %v9815 = vld [vmem:[#allocation7 + $0xc58] sm:$0xff]
    %v9816 = vld [vmem:[#allocation7 + $0xc60] sm:$0xff]
    %v9817 = vld [vmem:[#allocation7 + $0xc68] sm:$0xff]
    %v9818 = vld [vmem:[#allocation7 + $0xc70] sm:$0xff]
    %v9819 = vld [vmem:[#allocation7 + $0xc78] sm:$0xff]
    %v9820 = vld [vmem:[#allocation7 + $0xc80] sm:$0xff]
    %v9821 = vld [vmem:[#allocation7 + $0xc88] sm:$0xff]
    %v9822 = vld [vmem:[#allocation7 + $0xc90] sm:$0xff]
    %v9823 = vld [vmem:[#allocation7 + $0xc98] sm:$0xff]
    %v9824 = vld [vmem:[#allocation7 + $0xca0] sm:$0xff]
    %v9825 = vld [vmem:[#allocation7 + $0xca8] sm:$0xff]
    %v9826 = vld [vmem:[#allocation7 + $0xcb0] sm:$0xff]
    %v9827 = vld [vmem:[#allocation7 + $0xcb8] sm:$0xff]
    %v9828 = vld [vmem:[#allocation7 + $0xcc0] sm:$0xff]
    %v9829 = vld [vmem:[#allocation7 + $0xcc8] sm:$0xff]
    %v9830 = vld [vmem:[#allocation7 + $0xcd0] sm:$0xff]
    %v9831 = vld [vmem:[#allocation7 + $0xcd8] sm:$0xff]
    %v9832 = vld [vmem:[#allocation7 + $0xce0] sm:$0xff]
    %v9833 = vld [vmem:[#allocation7 + $0xce8] sm:$0xff]
    %v9834 = vld [vmem:[#allocation7 + $0xcf0] sm:$0xff]
    %v9835 = vld [vmem:[#allocation7 + $0xcf8] sm:$0xff]
    %v9836 = vld [vmem:[#allocation7 + $0xd00] sm:$0xff]
    %v9837 = vld [vmem:[#allocation7 + $0xd08] sm:$0xff]
    %v9838 = vld [vmem:[#allocation7 + $0xd10] sm:$0xff]
    %v9839 = vld [vmem:[#allocation7 + $0xd18] sm:$0xff]
    %v9840 = vld [vmem:[#allocation7 + $0xd20] sm:$0xff]
    %v9841 = vld [vmem:[#allocation7 + $0xd28] sm:$0xff]
    %v9842 = vld [vmem:[#allocation7 + $0xd30] sm:$0xff]
    %v9843 = vld [vmem:[#allocation7 + $0xd38] sm:$0xff]
    %v9844 = vld [vmem:[#allocation7 + $0xd40] sm:$0xff]
    %v9845 = vld [vmem:[#allocation7 + $0xd48] sm:$0xff]
    %v9846 = vld [vmem:[#allocation7 + $0xd50] sm:$0xff]
    %v9847 = vld [vmem:[#allocation7 + $0xd58] sm:$0xff]
    %v9848 = vld [vmem:[#allocation7 + $0xd60] sm:$0xff]
    %v9849 = vld [vmem:[#allocation7 + $0xd68] sm:$0xff]
    %v9850 = vld [vmem:[#allocation7 + $0xd70] sm:$0xff]
    %v9851 = vld [vmem:[#allocation7 + $0xd78] sm:$0xff]
    %v9996 = vunpack.c.l.b16 %v9708
    %v9997 = vunpack.c.h.b16 %v9708
    %v9998 = vunpack.c.l.b16 %v9709
    %v9999 = vunpack.c.h.b16 %v9709
    %v10000 = vunpack.c.l.b16 %v9710
    %v10001 = vunpack.c.h.b16 %v9710
    %v10002 = vunpack.c.l.b16 %v9711
    %v10003 = vunpack.c.h.b16 %v9711
    %v10004 = vunpack.c.l.b16 %v9712
    %v10005 = vunpack.c.h.b16 %v9712
    %v10006 = vunpack.c.l.b16 %v9713
    %v10007 = vunpack.c.h.b16 %v9713
    %v10008 = vunpack.c.l.b16 %v9714
    %v10009 = vunpack.c.h.b16 %v9714
    %v10010 = vunpack.c.l.b16 %v9715
    %v10011 = vunpack.c.h.b16 %v9715
    %v10012 = vunpack.c.l.b16 %v9716
    %v10013 = vunpack.c.h.b16 %v9716
    %v10014 = vunpack.c.l.b16 %v9717
    %v10015 = vunpack.c.h.b16 %v9717
    %v10016 = vunpack.c.l.b16 %v9718
    %v10017 = vunpack.c.h.b16 %v9718
    %v10018 = vunpack.c.l.b16 %v9719
    %v10019 = vunpack.c.h.b16 %v9719
    %v10020 = vunpack.c.l.b16 %v9720
    %v10021 = vunpack.c.h.b16 %v9720
    %v10022 = vunpack.c.l.b16 %v9721
    %v10023 = vunpack.c.h.b16 %v9721
    %v10024 = vunpack.c.l.b16 %v9722
    %v10025 = vunpack.c.h.b16 %v9722
    %v10026 = vunpack.c.l.b16 %v9723
    %v10027 = vunpack.c.h.b16 %v9723
    %v10028 = vunpack.c.l.b16 %v9724
    %v10029 = vunpack.c.h.b16 %v9724
    %v10030 = vunpack.c.l.b16 %v9725
    %v10031 = vunpack.c.h.b16 %v9725
    %v10032 = vunpack.c.l.b16 %v9726
    %v10033 = vunpack.c.h.b16 %v9726
    %v10034 = vunpack.c.l.b16 %v9727
    %v10035 = vunpack.c.h.b16 %v9727
    %v10036 = vunpack.c.l.b16 %v9728
    %v10037 = vunpack.c.h.b16 %v9728
    %v10038 = vunpack.c.l.b16 %v9729
    %v10039 = vunpack.c.h.b16 %v9729
    %v10040 = vunpack.c.l.b16 %v9730
    %v10041 = vunpack.c.h.b16 %v9730
    %v10042 = vunpack.c.l.b16 %v9731
    %v10043 = vunpack.c.h.b16 %v9731
    %v10044 = vunpack.c.l.b16 %v9732
    %v10045 = vunpack.c.h.b16 %v9732
    %v10046 = vunpack.c.l.b16 %v9733
    %v10047 = vunpack.c.h.b16 %v9733
    %v10048 = vunpack.c.l.b16 %v9734
    %v10049 = vunpack.c.h.b16 %v9734
    %v10050 = vunpack.c.l.b16 %v9735
    %v10051 = vunpack.c.h.b16 %v9735
    %v10052 = vunpack.c.l.b16 %v9736
    %v10053 = vunpack.c.h.b16 %v9736
    %v10054 = vunpack.c.l.b16 %v9737
    %v10055 = vunpack.c.h.b16 %v9737
    %v10056 = vunpack.c.l.b16 %v9738
    %v10057 = vunpack.c.h.b16 %v9738
    %v10058 = vunpack.c.l.b16 %v9739
    %v10059 = vunpack.c.h.b16 %v9739
    %v10060 = vunpack.c.l.b16 %v9740
    %v10061 = vunpack.c.h.b16 %v9740
    %v10062 = vunpack.c.l.b16 %v9741
    %v10063 = vunpack.c.h.b16 %v9741
    %v10064 = vunpack.c.l.b16 %v9742
    %v10065 = vunpack.c.h.b16 %v9742
    %v10066 = vunpack.c.l.b16 %v9743
    %v10067 = vunpack.c.h.b16 %v9743
    %v10068 = vunpack.c.l.b16 %v9744
    %v10069 = vunpack.c.h.b16 %v9744
    %v10070 = vunpack.c.l.b16 %v9745
    %v10071 = vunpack.c.h.b16 %v9745
    %v10072 = vunpack.c.l.b16 %v9746
    %v10073 = vunpack.c.h.b16 %v9746
    %v10074 = vunpack.c.l.b16 %v9747
    %v10075 = vunpack.c.h.b16 %v9747
    %v10076 = vunpack.c.l.b16 %v9748
    %v10077 = vunpack.c.h.b16 %v9748
    %v10078 = vunpack.c.l.b16 %v9749
    %v10079 = vunpack.c.h.b16 %v9749
    %v10080 = vunpack.c.l.b16 %v9750
    %v10081 = vunpack.c.h.b16 %v9750
    %v10082 = vunpack.c.l.b16 %v9751
    %v10083 = vunpack.c.h.b16 %v9751
    %v10084 = vunpack.c.l.b16 %v9752
    %v10085 = vunpack.c.h.b16 %v9752
    %v10086 = vunpack.c.l.b16 %v9753
    %v10087 = vunpack.c.h.b16 %v9753
    %v10088 = vunpack.c.l.b16 %v9754
    %v10089 = vunpack.c.h.b16 %v9754
    %v10090 = vunpack.c.l.b16 %v9755
    %v10091 = vunpack.c.h.b16 %v9755
    %v10092 = vunpack.c.l.b16 %v9756
    %v10093 = vunpack.c.h.b16 %v9756
    %v10094 = vunpack.c.l.b16 %v9757
    %v10095 = vunpack.c.h.b16 %v9757
    %v10096 = vunpack.c.l.b16 %v9758
    %v10097 = vunpack.c.h.b16 %v9758
    %v10098 = vunpack.c.l.b16 %v9759
    %v10099 = vunpack.c.h.b16 %v9759
    %v10100 = vunpack.c.l.b16 %v9760
    %v10101 = vunpack.c.h.b16 %v9760
    %v10102 = vunpack.c.l.b16 %v9761
    %v10103 = vunpack.c.h.b16 %v9761
    %v10104 = vunpack.c.l.b16 %v9762
    %v10105 = vunpack.c.h.b16 %v9762
    %v10106 = vunpack.c.l.b16 %v9763
    %v10107 = vunpack.c.h.b16 %v9763
    %v10108 = vunpack.c.l.b16 %v9764
    %v10109 = vunpack.c.h.b16 %v9764
    %v10110 = vunpack.c.l.b16 %v9765
    %v10111 = vunpack.c.h.b16 %v9765
    %v10112 = vunpack.c.l.b16 %v9766
    %v10113 = vunpack.c.h.b16 %v9766
    %v10114 = vunpack.c.l.b16 %v9767
    %v10115 = vunpack.c.h.b16 %v9767
    %v10116 = vunpack.c.l.b16 %v9768
    %v10117 = vunpack.c.h.b16 %v9768
    %v10118 = vunpack.c.l.b16 %v9769
    %v10119 = vunpack.c.h.b16 %v9769
    %v10120 = vunpack.c.l.b16 %v9770
    %v10121 = vunpack.c.h.b16 %v9770
    %v10122 = vunpack.c.l.b16 %v9771
    %v10123 = vunpack.c.h.b16 %v9771
    %v10124 = vunpack.c.l.b16 %v9772
    %v10125 = vunpack.c.h.b16 %v9772
    %v10126 = vunpack.c.l.b16 %v9773
    %v10127 = vunpack.c.h.b16 %v9773
    %v10128 = vunpack.c.l.b16 %v9774
    %v10129 = vunpack.c.h.b16 %v9774
    %v10130 = vunpack.c.l.b16 %v9775
    %v10131 = vunpack.c.h.b16 %v9775
    %v10132 = vunpack.c.l.b16 %v9776
    %v10133 = vunpack.c.h.b16 %v9776
    %v10134 = vunpack.c.l.b16 %v9777
    %v10135 = vunpack.c.h.b16 %v9777
    %v10136 = vunpack.c.l.b16 %v9778
    %v10137 = vunpack.c.h.b16 %v9778
    %v10138 = vunpack.c.l.b16 %v9779
    %v10139 = vunpack.c.h.b16 %v9779
    %v10140 = vunpack.c.l.b16 %v9780
    %v10141 = vunpack.c.h.b16 %v9780
    %v10142 = vunpack.c.l.b16 %v9781
    %v10143 = vunpack.c.h.b16 %v9781
    %v10144 = vunpack.c.l.b16 %v9782
    %v10145 = vunpack.c.h.b16 %v9782
    %v10146 = vunpack.c.l.b16 %v9783
    %v10147 = vunpack.c.h.b16 %v9783
    %v10148 = vunpack.c.l.b16 %v9784
    %v10149 = vunpack.c.h.b16 %v9784
    %v10150 = vunpack.c.l.b16 %v9785
    %v10151 = vunpack.c.h.b16 %v9785
    %v10152 = vunpack.c.l.b16 %v9786
    %v10153 = vunpack.c.h.b16 %v9786
    %v10154 = vunpack.c.l.b16 %v9787
    %v10155 = vunpack.c.h.b16 %v9787
    %v10156 = vunpack.c.l.b16 %v9788
    %v10157 = vunpack.c.h.b16 %v9788
    %v10158 = vunpack.c.l.b16 %v9789
    %v10159 = vunpack.c.h.b16 %v9789
    %v10160 = vunpack.c.l.b16 %v9790
    %v10161 = vunpack.c.h.b16 %v9790
    %v10162 = vunpack.c.l.b16 %v9791
    %v10163 = vunpack.c.h.b16 %v9791
    %v10164 = vunpack.c.l.b16 %v9792
    %v10165 = vunpack.c.h.b16 %v9792
    %v10166 = vunpack.c.l.b16 %v9793
    %v10167 = vunpack.c.h.b16 %v9793
    %v10168 = vunpack.c.l.b16 %v9794
    %v10169 = vunpack.c.h.b16 %v9794
    %v10170 = vunpack.c.l.b16 %v9795
    %v10171 = vunpack.c.h.b16 %v9795
    %v10172 = vunpack.c.l.b16 %v9796
    %v10173 = vunpack.c.h.b16 %v9796
    %v10174 = vunpack.c.l.b16 %v9797
    %v10175 = vunpack.c.h.b16 %v9797
    %v10176 = vunpack.c.l.b16 %v9798
    %v10177 = vunpack.c.h.b16 %v9798
    %v10178 = vunpack.c.l.b16 %v9799
    %v10179 = vunpack.c.h.b16 %v9799
    %v10180 = vunpack.c.l.b16 %v9800
    %v10181 = vunpack.c.h.b16 %v9800
    %v10182 = vunpack.c.l.b16 %v9801
    %v10183 = vunpack.c.h.b16 %v9801
    %v10184 = vunpack.c.l.b16 %v9802
    %v10185 = vunpack.c.h.b16 %v9802
    %v10186 = vunpack.c.l.b16 %v9803
    %v10187 = vunpack.c.h.b16 %v9803
    %v10188 = vunpack.c.l.b16 %v9804
    %v10189 = vunpack.c.h.b16 %v9804
    %v10190 = vunpack.c.l.b16 %v9805
    %v10191 = vunpack.c.h.b16 %v9805
    %v10192 = vunpack.c.l.b16 %v9806
    %v10193 = vunpack.c.h.b16 %v9806
    %v10194 = vunpack.c.l.b16 %v9807
    %v10195 = vunpack.c.h.b16 %v9807
    %v10196 = vunpack.c.l.b16 %v9808
    %v10197 = vunpack.c.h.b16 %v9808
    %v10198 = vunpack.c.l.b16 %v9809
    %v10199 = vunpack.c.h.b16 %v9809
    %v10200 = vunpack.c.l.b16 %v9810
    %v10201 = vunpack.c.h.b16 %v9810
    %v10202 = vunpack.c.l.b16 %v9811
    %v10203 = vunpack.c.h.b16 %v9811
    %v10204 = vunpack.c.l.b16 %v9812
    %v10205 = vunpack.c.h.b16 %v9812
    %v10206 = vunpack.c.l.b16 %v9813
    %v10207 = vunpack.c.h.b16 %v9813
    %v10208 = vunpack.c.l.b16 %v9814
    %v10209 = vunpack.c.h.b16 %v9814
    %v10210 = vunpack.c.l.b16 %v9815
    %v10211 = vunpack.c.h.b16 %v9815
    %v10212 = vunpack.c.l.b16 %v9816
    %v10213 = vunpack.c.h.b16 %v9816
    %v10214 = vunpack.c.l.b16 %v9817
    %v10215 = vunpack.c.h.b16 %v9817
    %v10216 = vunpack.c.l.b16 %v9818
    %v10217 = vunpack.c.h.b16 %v9818
    %v10218 = vunpack.c.l.b16 %v9819
    %v10219 = vunpack.c.h.b16 %v9819
    %v10220 = vunpack.c.l.b16 %v9820
    %v10221 = vunpack.c.h.b16 %v9820
    %v10222 = vunpack.c.l.b16 %v9821
    %v10223 = vunpack.c.h.b16 %v9821
    %v10224 = vunpack.c.l.b16 %v9822
    %v10225 = vunpack.c.h.b16 %v9822
    %v10226 = vunpack.c.l.b16 %v9823
    %v10227 = vunpack.c.h.b16 %v9823
    %v10228 = vunpack.c.l.b16 %v9824
    %v10229 = vunpack.c.h.b16 %v9824
    %v10230 = vunpack.c.l.b16 %v9825
    %v10231 = vunpack.c.h.b16 %v9825
    %v10232 = vunpack.c.l.b16 %v9826
    %v10233 = vunpack.c.h.b16 %v9826
    %v10234 = vunpack.c.l.b16 %v9827
    %v10235 = vunpack.c.h.b16 %v9827
    %v10236 = vunpack.c.l.b16 %v9828
    %v10237 = vunpack.c.h.b16 %v9828
    %v10238 = vunpack.c.l.b16 %v9829
    %v10239 = vunpack.c.h.b16 %v9829
    %v10240 = vunpack.c.l.b16 %v9830
    %v10241 = vunpack.c.h.b16 %v9830
    %v10242 = vunpack.c.l.b16 %v9831
    %v10243 = vunpack.c.h.b16 %v9831
    %v10244 = vunpack.c.l.b16 %v9832
    %v10245 = vunpack.c.h.b16 %v9832
    %v10246 = vunpack.c.l.b16 %v9833
    %v10247 = vunpack.c.h.b16 %v9833
    %v10248 = vunpack.c.l.b16 %v9834
    %v10249 = vunpack.c.h.b16 %v9834
    %v10250 = vunpack.c.l.b16 %v9835
    %v10251 = vunpack.c.h.b16 %v9835
    %v10252 = vunpack.c.l.b16 %v9836
    %v10253 = vunpack.c.h.b16 %v9836
    %v10254 = vunpack.c.l.b16 %v9837
    %v10255 = vunpack.c.h.b16 %v9837
    %v10256 = vunpack.c.l.b16 %v9838
    %v10257 = vunpack.c.h.b16 %v9838
    %v10258 = vunpack.c.l.b16 %v9839
    %v10259 = vunpack.c.h.b16 %v9839
    %v10260 = vunpack.c.l.b16 %v9840
    %v10261 = vunpack.c.h.b16 %v9840
    %v10262 = vunpack.c.l.b16 %v9841
    %v10263 = vunpack.c.h.b16 %v9841
    %v10264 = vunpack.c.l.b16 %v9842
    %v10265 = vunpack.c.h.b16 %v9842
    %v10266 = vunpack.c.l.b16 %v9843
    %v10267 = vunpack.c.h.b16 %v9843
    %v10268 = vunpack.c.l.b16 %v9844
    %v10269 = vunpack.c.h.b16 %v9844
    %v10270 = vunpack.c.l.b16 %v9845
    %v10271 = vunpack.c.h.b16 %v9845
    %v10272 = vunpack.c.l.b16 %v9846
    %v10273 = vunpack.c.h.b16 %v9846
    %v10274 = vunpack.c.l.b16 %v9847
    %v10275 = vunpack.c.h.b16 %v9847
    %v10276 = vunpack.c.l.b16 %v9848
    %v10277 = vunpack.c.h.b16 %v9848
    %v10278 = vunpack.c.l.b16 %v9849
    %v10279 = vunpack.c.h.b16 %v9849
    %v10280 = vunpack.c.l.b16 %v9850
    %v10281 = vunpack.c.h.b16 %v9850
    %v10282 = vunpack.c.l.b16 %v9851
    %v10283 = vunpack.c.h.b16 %v9851
    %v10284 = vpack.c.b16 %v10002, %v9996
    %v10285 = vpack.c.b16 %v10003, %v9997
    %v10286 = vpack.c.b16 %v10004, %v9998
    %v10287 = vpack.c.b16 %v10005, %v9999
    %v10288 = vpack.c.b16 %v10006, %v10000
    %v10289 = vpack.c.b16 %v10007, %v10001
    %v10290 = vpack.c.b16 %v10014, %v10008
    %v10291 = vpack.c.b16 %v10015, %v10009
    %v10292 = vpack.c.b16 %v10016, %v10010
    %v10293 = vpack.c.b16 %v10017, %v10011
    %v10294 = vpack.c.b16 %v10018, %v10012
    %v10295 = vpack.c.b16 %v10019, %v10013
    %v10296 = vpack.c.b16 %v10026, %v10020
    %v10297 = vpack.c.b16 %v10027, %v10021
    %v10298 = vpack.c.b16 %v10028, %v10022
    %v10299 = vpack.c.b16 %v10029, %v10023
    %v10300 = vpack.c.b16 %v10030, %v10024
    %v10301 = vpack.c.b16 %v10031, %v10025
    %v10302 = vpack.c.b16 %v10038, %v10032
    %v10303 = vpack.c.b16 %v10039, %v10033
    %v10304 = vpack.c.b16 %v10040, %v10034
    %v10305 = vpack.c.b16 %v10041, %v10035
    %v10306 = vpack.c.b16 %v10042, %v10036
    %v10307 = vpack.c.b16 %v10043, %v10037
    %v10308 = vpack.c.b16 %v10050, %v10044
    %v10309 = vpack.c.b16 %v10051, %v10045
    %v10310 = vpack.c.b16 %v10052, %v10046
    %v10311 = vpack.c.b16 %v10053, %v10047
    %v10312 = vpack.c.b16 %v10054, %v10048
    %v10313 = vpack.c.b16 %v10055, %v10049
    %v10314 = vpack.c.b16 %v10062, %v10056
    %v10315 = vpack.c.b16 %v10063, %v10057
    %v10316 = vpack.c.b16 %v10064, %v10058
    %v10317 = vpack.c.b16 %v10065, %v10059
    %v10318 = vpack.c.b16 %v10066, %v10060
    %v10319 = vpack.c.b16 %v10067, %v10061
    %v10320 = vpack.c.b16 %v10074, %v10068
    %v10321 = vpack.c.b16 %v10075, %v10069
    %v10322 = vpack.c.b16 %v10076, %v10070
    %v10323 = vpack.c.b16 %v10077, %v10071
    %v10324 = vpack.c.b16 %v10078, %v10072
    %v10325 = vpack.c.b16 %v10079, %v10073
    %v10326 = vpack.c.b16 %v10086, %v10080
    %v10327 = vpack.c.b16 %v10087, %v10081
    %v10328 = vpack.c.b16 %v10088, %v10082
    %v10329 = vpack.c.b16 %v10089, %v10083
    %v10330 = vpack.c.b16 %v10090, %v10084
    %v10331 = vpack.c.b16 %v10091, %v10085
    %v10332 = vpack.c.b16 %v10098, %v10092
    %v10333 = vpack.c.b16 %v10099, %v10093
    %v10334 = vpack.c.b16 %v10100, %v10094
    %v10335 = vpack.c.b16 %v10101, %v10095
    %v10336 = vpack.c.b16 %v10102, %v10096
    %v10337 = vpack.c.b16 %v10103, %v10097
    %v10338 = vpack.c.b16 %v10110, %v10104
    %v10339 = vpack.c.b16 %v10111, %v10105
    %v10340 = vpack.c.b16 %v10112, %v10106
    %v10341 = vpack.c.b16 %v10113, %v10107
    %v10342 = vpack.c.b16 %v10114, %v10108
    %v10343 = vpack.c.b16 %v10115, %v10109
    %v10344 = vpack.c.b16 %v10122, %v10116
    %v10345 = vpack.c.b16 %v10123, %v10117
    %v10346 = vpack.c.b16 %v10124, %v10118
    %v10347 = vpack.c.b16 %v10125, %v10119
    %v10348 = vpack.c.b16 %v10126, %v10120
    %v10349 = vpack.c.b16 %v10127, %v10121
    %v10350 = vpack.c.b16 %v10134, %v10128
    %v10351 = vpack.c.b16 %v10135, %v10129
    %v10352 = vpack.c.b16 %v10136, %v10130
    %v10353 = vpack.c.b16 %v10137, %v10131
    %v10354 = vpack.c.b16 %v10138, %v10132
    %v10355 = vpack.c.b16 %v10139, %v10133
    %v10356 = vpack.c.b16 %v10146, %v10140
    %v10357 = vpack.c.b16 %v10147, %v10141
    %v10358 = vpack.c.b16 %v10148, %v10142
    %v10359 = vpack.c.b16 %v10149, %v10143
    %v10360 = vpack.c.b16 %v10150, %v10144
    %v10361 = vpack.c.b16 %v10151, %v10145
    %v10362 = vpack.c.b16 %v10158, %v10152
    %v10363 = vpack.c.b16 %v10159, %v10153
    %v10364 = vpack.c.b16 %v10160, %v10154
    %v10365 = vpack.c.b16 %v10161, %v10155
    %v10366 = vpack.c.b16 %v10162, %v10156
    %v10367 = vpack.c.b16 %v10163, %v10157
    %v10368 = vpack.c.b16 %v10170, %v10164
    %v10369 = vpack.c.b16 %v10171, %v10165
    %v10370 = vpack.c.b16 %v10172, %v10166
    %v10371 = vpack.c.b16 %v10173, %v10167
    %v10372 = vpack.c.b16 %v10174, %v10168
    %v10373 = vpack.c.b16 %v10175, %v10169
    %v10374 = vpack.c.b16 %v10182, %v10176
    %v10375 = vpack.c.b16 %v10183, %v10177
    %v10376 = vpack.c.b16 %v10184, %v10178
    %v10377 = vpack.c.b16 %v10185, %v10179
    %v10378 = vpack.c.b16 %v10186, %v10180
    %v10379 = vpack.c.b16 %v10187, %v10181
    %v10380 = vpack.c.b16 %v10194, %v10188
    %v10381 = vpack.c.b16 %v10195, %v10189
    %v10382 = vpack.c.b16 %v10196, %v10190
    %v10383 = vpack.c.b16 %v10197, %v10191
    %v10384 = vpack.c.b16 %v10198, %v10192
    %v10385 = vpack.c.b16 %v10199, %v10193
    %v10386 = vpack.c.b16 %v10206, %v10200
    %v10387 = vpack.c.b16 %v10207, %v10201
    %v10388 = vpack.c.b16 %v10208, %v10202
    %v10389 = vpack.c.b16 %v10209, %v10203
    %v10390 = vpack.c.b16 %v10210, %v10204
    %v10391 = vpack.c.b16 %v10211, %v10205
    %v10392 = vpack.c.b16 %v10218, %v10212
    %v10393 = vpack.c.b16 %v10219, %v10213
    %v10394 = vpack.c.b16 %v10220, %v10214
    %v10395 = vpack.c.b16 %v10221, %v10215
    %v10396 = vpack.c.b16 %v10222, %v10216
    %v10397 = vpack.c.b16 %v10223, %v10217
    %v10398 = vpack.c.b16 %v10230, %v10224
    %v10399 = vpack.c.b16 %v10231, %v10225
    %v10400 = vpack.c.b16 %v10232, %v10226
    %v10401 = vpack.c.b16 %v10233, %v10227
    %v10402 = vpack.c.b16 %v10234, %v10228
    %v10403 = vpack.c.b16 %v10235, %v10229
    %v10404 = vpack.c.b16 %v10242, %v10236
    %v10405 = vpack.c.b16 %v10243, %v10237
    %v10406 = vpack.c.b16 %v10244, %v10238
    %v10407 = vpack.c.b16 %v10245, %v10239
    %v10408 = vpack.c.b16 %v10246, %v10240
    %v10409 = vpack.c.b16 %v10247, %v10241
    %v10410 = vpack.c.b16 %v10254, %v10248
    %v10411 = vpack.c.b16 %v10255, %v10249
    %v10412 = vpack.c.b16 %v10256, %v10250
    %v10413 = vpack.c.b16 %v10257, %v10251
    %v10414 = vpack.c.b16 %v10258, %v10252
    %v10415 = vpack.c.b16 %v10259, %v10253
    %v10416 = vpack.c.b16 %v10266, %v10260
    %v10417 = vpack.c.b16 %v10267, %v10261
    %v10418 = vpack.c.b16 %v10268, %v10262
    %v10419 = vpack.c.b16 %v10269, %v10263
    %v10420 = vpack.c.b16 %v10270, %v10264
    %v10421 = vpack.c.b16 %v10271, %v10265
    %v10422 = vpack.c.b16 %v10278, %v10272
    %v10423 = vpack.c.b16 %v10279, %v10273
    %v10424 = vpack.c.b16 %v10280, %v10274
    %v10425 = vpack.c.b16 %v10281, %v10275
    %v10426 = vpack.c.b16 %v10282, %v10276
    %v10427 = vpack.c.b16 %v10283, %v10277
    %10572 = vmatprep.subr.bf16.mxu0 %v10285
    %10573 = vmatpush1.bf16.msra.mxu0 %v10284
    %10574 = vmatprep.subr.bf16.mxu0 %v10291
    %10575 = vmatpush1.bf16.msra.mxu0 %v10290
    %10576 = vmatprep.subr.bf16.mxu0 %v10297
    %10577 = vmatpush1.bf16.msra.mxu0 %v10296
    %10578 = vmatprep.subr.bf16.mxu0 %v10303
    %10579 = vmatpush1.bf16.msra.mxu0 %v10302
    %10580 = vmatprep.subr.bf16.mxu0 %v10309
    %10581 = vmatpush1.bf16.msra.mxu0 %v10308
    %10582 = vmatprep.subr.bf16.mxu0 %v10315
    %10583 = vmatpush1.bf16.msra.mxu0 %v10314
    %10584 = vmatprep.subr.bf16.mxu0 %v10321
    %10585 = vmatpush1.bf16.msra.mxu0 %v10320
    %10586 = vmatprep.subr.bf16.mxu0 %v10327
    %10587 = vmatpush1.bf16.msra.mxu0 %v10326
    %10588 = vmatprep.subr.bf16.mxu0 %v10333
    %10589 = vmatpush1.bf16.msra.mxu0 %v10332
    %10590 = vmatprep.subr.bf16.mxu0 %v10339
    %10591 = vmatpush1.bf16.msra.mxu0 %v10338
    %10592 = vmatprep.subr.bf16.mxu0 %v10345
    %10593 = vmatpush1.bf16.msra.mxu0 %v10344
    %10594 = vmatprep.subr.bf16.mxu0 %v10351
    %10595 = vmatpush1.bf16.msra.mxu0 %v10350
    %10596 = vmatprep.subr.bf16.mxu0 %v10357
    %10597 = vmatpush1.bf16.msra.mxu0 %v10356
    %10598 = vmatprep.subr.bf16.mxu0 %v10363
    %10599 = vmatpush1.bf16.msra.mxu0 %v10362
    %10600 = vmatprep.subr.bf16.mxu0 %v10369
    %10601 = vmatpush1.bf16.msra.mxu0 %v10368
    %10602 = vmatprep.subr.bf16.mxu0 %v10375
    %10603 = vmatpush1.bf16.msra.mxu0 %v10374
    %10604 = vmatprep.mubr.bf16.mxu0 %v9706
    %10605 = vmatmul.mubr.bf16.gmra.mrb[0].mxu0 %v9705
    %v10606 = vpop.f32.mrb[0].mxu0
    %v10607 = vadd.f32 0.0, %v10606
    %v10608 = vpop.f32.mrb[0].mxu0
    %v10609 = vadd.f32 0.0, %v10608
    %v10610 = vpop.f32.mrb[0].mxu0
    %v10611 = vadd.f32 0.0, %v10610
    %v10612 = vpop.f32.mrb[0].mxu0
    %v10613 = vadd.f32 0.0, %v10612
    %10614 = vdwg.mxu0
    %10615 = vmatprep.subr.bf16.mxu0 %v10381
    %10616 = vmatpush1.bf16.msra.mxu0 %v10380
    %10617 = vmatprep.subr.bf16.mxu0 %v10387
    %10618 = vmatpush1.bf16.msra.mxu0 %v10386
    %10619 = vmatprep.subr.bf16.mxu0 %v10393
    %10620 = vmatpush1.bf16.msra.mxu0 %v10392
    %10621 = vmatprep.subr.bf16.mxu0 %v10399
    %10622 = vmatpush1.bf16.msra.mxu0 %v10398
    %10623 = vmatprep.subr.bf16.mxu0 %v10405
    %10624 = vmatpush1.bf16.msra.mxu0 %v10404
    %10625 = vmatprep.subr.bf16.mxu0 %v10411
    %10626 = vmatpush1.bf16.msra.mxu0 %v10410
    %10627 = vmatprep.subr.bf16.mxu0 %v10417
    %10628 = vmatpush1.bf16.msra.mxu0 %v10416
    %10629 = vmatprep.subr.bf16.mxu0 %v10423
    %10630 = vmatpush1.bf16.msra.mxu0 %v10422
    %10631 = vmatprep.subr.bf16.mxu0 0
    %10632 = vmatpush1.bf16.msra.mxu0 0
    %10633 = vmatprep.subr.bf16.mxu0 0
    %10634 = vmatpush1.bf16.msra.mxu0 0
    %10635 = vmatprep.subr.bf16.mxu0 0
    %10636 = vmatpush1.bf16.msra.mxu0 0
    %10637 = vmatprep.subr.bf16.mxu0 0
    %10638 = vmatpush1.bf16.msra.mxu0 0
    %10639 = vmatprep.subr.bf16.mxu0 0
    %10640 = vmatpush1.bf16.msra.mxu0 0
    %10641 = vmatprep.subr.bf16.mxu0 0
    %10642 = vmatpush1.bf16.msra.mxu0 0
    %10643 = vmatprep.subr.bf16.mxu0 0
    %10644 = vmatpush1.bf16.msra.mxu0 0
    %10645 = vmatprep.subr.bf16.mxu0 0
    %10646 = vmatpush1.bf16.msra.mxu0 0
    %10647 = vmatprep.mubr.bf16.mxu0 0
    %10648 = vmatmul.mubr.bf16.gmra.mrb[0].mxu0 %v9707
    %v10649 = vpop.f32.mrb[0].mxu0
    %v10650 = vadd.f32 %v10607, %v10649
    %v10651 = vpop.f32.mrb[0].mxu0
    %v10652 = vadd.f32 %v10609, %v10651
    %v10653 = vpop.f32.mrb[0].mxu0
    %v10654 = vadd.f32 %v10611, %v10653
    %v10655 = vpop.f32.mrb[0].mxu0
    %v10656 = vadd.f32 %v10613, %v10655
    %10657 = vdwg.mxu0
    %10658 = vmatprep.subr.bf16.mxu0 %v10287
    %10659 = vmatpush1.bf16.msra.mxu0 %v10286
    %10660 = vmatprep.subr.bf16.mxu0 %v10293
    %10661 = vmatpush1.bf16.msra.mxu0 %v10292
    %10662 = vmatprep.subr.bf16.mxu0 %v10299
    %10663 = vmatpush1.bf16.msra.mxu0 %v10298
    %10664 = vmatprep.subr.bf16.mxu0 %v10305
    %10665 = vmatpush1.bf16.msra.mxu0 %v10304
    %10666 = vmatprep.subr.bf16.mxu0 %v10311
    %10667 = vmatpush1.bf16.msra.mxu0 %v10310
    %10668 = vmatprep.subr.bf16.mxu0 %v10317
    %10669 = vmatpush1.bf16.msra.mxu0 %v10316
    %10670 = vmatprep.subr.bf16.mxu0 %v10323
    %10671 = vmatpush1.bf16.msra.mxu0 %v10322
    %10672 = vmatprep.subr.bf16.mxu0 %v10329
    %10673 = vmatpush1.bf16.msra.mxu0 %v10328
    %10674 = vmatprep.subr.bf16.mxu0 %v10335
    %10675 = vmatpush1.bf16.msra.mxu0 %v10334
    %10676 = vmatprep.subr.bf16.mxu0 %v10341
    %10677 = vmatpush1.bf16.msra.mxu0 %v10340
    %10678 = vmatprep.subr.bf16.mxu0 %v10347
    %10679 = vmatpush1.bf16.msra.mxu0 %v10346
    %10680 = vmatprep.subr.bf16.mxu0 %v10353
    %10681 = vmatpush1.bf16.msra.mxu0 %v10352
    %10682 = vmatprep.subr.bf16.mxu0 %v10359
    %10683 = vmatpush1.bf16.msra.mxu0 %v10358
    %10684 = vmatprep.subr.bf16.mxu0 %v10365
    %10685 = vmatpush1.bf16.msra.mxu0 %v10364
    %10686 = vmatprep.subr.bf16.mxu0 %v10371
    %10687 = vmatpush1.bf16.msra.mxu0 %v10370
    %10688 = vmatprep.subr.bf16.mxu0 %v10377
    %10689 = vmatpush1.bf16.msra.mxu0 %v10376
    %10690 = vmatprep.mubr.bf16.mxu0 %v9706
    %10691 = vmatmul.mubr.bf16.gmra.mrb[0].mxu0 %v9705
    %v10692 = vpop.f32.mrb[0].mxu0
    %v10693 = vadd.f32 0.0, %v10692
    %v10694 = vpop.f32.mrb[0].mxu0
    %v10695 = vadd.f32 0.0, %v10694
    %v10696 = vpop.f32.mrb[0].mxu0
    %v10697 = vadd.f32 0.0, %v10696
    %v10698 = vpop.f32.mrb[0].mxu0
    %v10699 = vadd.f32 0.0, %v10698
    %10700 = vdwg.mxu0
    %10701 = vmatprep.subr.bf16.mxu0 %v10383
    %10702 = vmatpush1.bf16.msra.mxu0 %v10382
    %10703 = vmatprep.subr.bf16.mxu0 %v10389
    %10704 = vmatpush1.bf16.msra.mxu0 %v10388
    %10705 = vmatprep.subr.bf16.mxu0 %v10395
    %10706 = vmatpush1.bf16.msra.mxu0 %v10394
    %10707 = vmatprep.subr.bf16.mxu0 %v10401
    %10708 = vmatpush1.bf16.msra.mxu0 %v10400
    %10709 = vmatprep.subr.bf16.mxu0 %v10407
    %10710 = vmatpush1.bf16.msra.mxu0 %v10406
    %10711 = vmatprep.subr.bf16.mxu0 %v10413
    %10712 = vmatpush1.bf16.msra.mxu0 %v10412
    %10713 = vmatprep.subr.bf16.mxu0 %v10419
    %10714 = vmatpush1.bf16.msra.mxu0 %v10418
    %10715 = vmatprep.subr.bf16.mxu0 %v10425
    %10716 = vmatpush1.bf16.msra.mxu0 %v10424
    %10717 = vmatprep.subr.bf16.mxu0 0
    %10718 = vmatpush1.bf16.msra.mxu0 0
    %10719 = vmatprep.subr.bf16.mxu0 0
    %10720 = vmatpush1.bf16.msra.mxu0 0
    %10721 = vmatprep.subr.bf16.mxu0 0
    %10722 = vmatpush1.bf16.msra.mxu0 0
    %10723 = vmatprep.subr.bf16.mxu0 0
    %10724 = vmatpush1.bf16.msra.mxu0 0
    %10725 = vmatprep.subr.bf16.mxu0 0
    %10726 = vmatpush1.bf16.msra.mxu0 0
    %10727 = vmatprep.subr.bf16.mxu0 0
    %10728 = vmatpush1.bf16.msra.mxu0 0
    %10729 = vmatprep.subr.bf16.mxu0 0
    %10730 = vmatpush1.bf16.msra.mxu0 0
    %10731 = vmatprep.subr.bf16.mxu0 0
    %10732 = vmatpush1.bf16.msra.mxu0 0
    %10733 = vmatprep.mubr.bf16.mxu0 0
    %10734 = vmatmul.mubr.bf16.gmra.mrb[0].mxu0 %v9707
    %v10735 = vpop.f32.mrb[0].mxu0
    %v10736 = vadd.f32 %v10693, %v10735
    %v10737 = vpop.f32.mrb[0].mxu0
    %v10738 = vadd.f32 %v10695, %v10737
    %v10739 = vpop.f32.mrb[0].mxu0
    %v10740 = vadd.f32 %v10697, %v10739
    %v10741 = vpop.f32.mrb[0].mxu0
    %v10742 = vadd.f32 %v10699, %v10741
    %10743 = vdwg.mxu0
    %10744 = vmatprep.subr.bf16.mxu0 %v10289
    %10745 = vmatpush1.bf16.msra.mxu0 %v10288
    %10746 = vmatprep.subr.bf16.mxu0 %v10295
    %10747 = vmatpush1.bf16.msra.mxu0 %v10294
    %10748 = vmatprep.subr.bf16.mxu0 %v10301
    %10749 = vmatpush1.bf16.msra.mxu0 %v10300
    %10750 = vmatprep.subr.bf16.mxu0 %v10307
    %10751 = vmatpush1.bf16.msra.mxu0 %v10306
    %10752 = vmatprep.subr.bf16.mxu0 %v10313
    %10753 = vmatpush1.bf16.msra.mxu0 %v10312
    %10754 = vmatprep.subr.bf16.mxu0 %v10319
    %10755 = vmatpush1.bf16.msra.mxu0 %v10318
    %10756 = vmatprep.subr.bf16.mxu0 %v10325
    %10757 = vmatpush1.bf16.msra.mxu0 %v10324
    %10758 = vmatprep.subr.bf16.mxu0 %v10331
    %10759 = vmatpush1.bf16.msra.mxu0 %v10330
    %10760 = vmatprep.subr.bf16.mxu0 %v10337
    %10761 = vmatpush1.bf16.msra.mxu0 %v10336
    %10762 = vmatprep.subr.bf16.mxu0 %v10343
    %10763 = vmatpush1.bf16.msra.mxu0 %v10342
    %10764 = vmatprep.subr.bf16.mxu0 %v10349
    %10765 = vmatpush1.bf16.msra.mxu0 %v10348
    %10766 = vmatprep.subr.bf16.mxu0 %v10355
    %10767 = vmatpush1.bf16.msra.mxu0 %v10354
    %10768 = vmatprep.subr.bf16.mxu0 %v10361
    %10769 = vmatpush1.bf16.msra.mxu0 %v10360
    %10770 = vmatprep.subr.bf16.mxu0 %v10367
    %10771 = vmatpush1.bf16.msra.mxu0 %v10366
    %10772 = vmatprep.subr.bf16.mxu0 %v10373
    %10773 = vmatpush1.bf16.msra.mxu0 %v10372
    %10774 = vmatprep.subr.bf16.mxu0 %v10379
    %10775 = vmatpush1.bf16.msra.mxu0 %v10378
    %10776 = vmatprep.mubr.bf16.mxu0 %v9706
    %10777 = vmatmul.mubr.bf16.gmra.mrb[0].mxu0 %v9705
    %v10778 = vpop.f32.mrb[0].mxu0
    %v10779 = vadd.f32 0.0, %v10778
    %v10780 = vpop.f32.mrb[0].mxu0
    %v10781 = vadd.f32 0.0, %v10780
    %v10782 = vpop.f32.mrb[0].mxu0
    %v10783 = vadd.f32 0.0, %v10782
    %v10784 = vpop.f32.mrb[0].mxu0
    %v10785 = vadd.f32 0.0, %v10784
    %10786 = vdwg.mxu0
    %10787 = vmatprep.subr.bf16.mxu0 %v10385
    %10788 = vmatpush1.bf16.msra.mxu0 %v10384
    %10789 = vmatprep.subr.bf16.mxu0 %v10391
    %10790 = vmatpush1.bf16.msra.mxu0 %v10390
    %10791 = vmatprep.subr.bf16.mxu0 %v10397
    %10792 = vmatpush1.bf16.msra.mxu0 %v10396
    %10793 = vmatprep.subr.bf16.mxu0 %v10403
    %10794 = vmatpush1.bf16.msra.mxu0 %v10402
    %10795 = vmatprep.subr.bf16.mxu0 %v10409
    %10796 = vmatpush1.bf16.msra.mxu0 %v10408
    %10797 = vmatprep.subr.bf16.mxu0 %v10415
    %10798 = vmatpush1.bf16.msra.mxu0 %v10414
    %10799 = vmatprep.subr.bf16.mxu0 %v10421
    %10800 = vmatpush1.bf16.msra.mxu0 %v10420
    %10801 = vmatprep.subr.bf16.mxu0 %v10427
    %10802 = vmatpush1.bf16.msra.mxu0 %v10426
    %10803 = vmatprep.subr.bf16.mxu0 0
    %10804 = vmatpush1.bf16.msra.mxu0 0
    %10805 = vmatprep.subr.bf16.mxu0 0
    %10806 = vmatpush1.bf16.msra.mxu0 0
    %10807 = vmatprep.subr.bf16.mxu0 0
    %10808 = vmatpush1.bf16.msra.mxu0 0
    %10809 = vmatprep.subr.bf16.mxu0 0
    %10810 = vmatpush1.bf16.msra.mxu0 0
    %10811 = vmatprep.subr.bf16.mxu0 0
    %10812 = vmatpush1.bf16.msra.mxu0 0
    %10813 = vmatprep.subr.bf16.mxu0 0
    %10814 = vmatpush1.bf16.msra.mxu0 0
    %10815 = vmatprep.subr.bf16.mxu0 0
    %10816 = vmatpush1.bf16.msra.mxu0 0
    %10817 = vmatprep.subr.bf16.mxu0 0
    %10818 = vmatpush1.bf16.msra.mxu0 0
    %10819 = vmatprep.mubr.bf16.mxu0 0
    %10820 = vmatmul.mubr.bf16.gmra.mrb[0].mxu0 %v9707
    %v10821 = vpop.f32.mrb[0].mxu0
    %v10822 = vadd.f32 %v10779, %v10821
    %v10823 = vpop.f32.mrb[0].mxu0
    %v10824 = vadd.f32 %v10781, %v10823
    %v10825 = vpop.f32.mrb[0].mxu0
    %v10826 = vadd.f32 %v10783, %v10825
    %v10827 = vpop.f32.mrb[0].mxu0
    %v10828 = vadd.f32 %v10785, %v10827
    %10829 = vdwg.mxu0
    %v10830 = vadd.f32 %v7065, %v10650
    %v10831 = vadd.f32 %v7067, %v10652
    %v10832 = vadd.f32 %v7151, %v10736
    %v10833 = vadd.f32 %v7153, %v10738
    %v10834 = vadd.f32 %v7237, %v10822
    %v10835 = vadd.f32 %v7239, %v10824
    %v10836 = vadd.f32 %v7069, %v10654
    %v10837 = vadd.f32 %v7071, %v10656
    %v10838 = vadd.f32 %v7155, %v10740
    %v10839 = vadd.f32 %v7157, %v10742
    %v10840 = vadd.f32 %v7241, %v10826
    %v10841 = vadd.f32 %v7243, %v10828
    %10842 = vst [vmem:[#allocation8] sm:$0xff] %v10830
    %10843 = vst [vmem:[#allocation8 + $0x8] sm:$0xff] %v10831
    %10844 = vst [vmem:[#allocation8 + $0x10] sm:$0xff] %v10832
    %10845 = vst [vmem:[#allocation8 + $0x18] sm:$0xff] %v10833
    %10846 = vst [vmem:[#allocation8 + $0x20] sm:$0xff] %v10834
    %10847 = vst [vmem:[#allocation8 + $0x28] sm:$0xff] %v10835
    %10848 = vst [vmem:[#allocation8 + $0x30] sm:$0xff] %v10836
    %10849 = vst [vmem:[#allocation8 + $0x38] sm:$0xff] %v10837
    %10850 = vst [vmem:[#allocation8 + $0x40] sm:$0xff] %v10838
    %10851 = vst [vmem:[#allocation8 + $0x48] sm:$0xff] %v10839
    %10852 = vst [vmem:[#allocation8 + $0x50] sm:$0xff] %v10840
    %10853 = vst [vmem:[#allocation8 + $0x58] sm:$0xff] %v10841
    // Predicated region
    $region26: #{tpu_custom_call.1} parent=1 // pred_check
      _
    $region27: #{tpu_custom_call.1} parent=1 // pred_check_branch
      %10855 = sbr.rel (0) target = $region29
    $region28: #{tpu_custom_call.1} parent=1 // pred_region
      %s10857 = ssub.s32 1536, 1536
      %10858 = vsyncadd [#allocation4], %s10857
      %s10859 = sshll.u32 [#allocation8], 4
      %s10860 = int_to_ptr.vmem [resolvable:$true] %s10859
      %10865 = dma.vmem_to_hbm [thread:$0]  %s10860, 1536, %s3, [#allocation4], 768, 768, 48
    $region29: #{tpu_custom_call.1} parent=1 // pred_fallthru
      _
    // Predicated region
    $region30: #{tpu_custom_call.1} parent=1 // pred_check
      _
    $region31: #{tpu_custom_call.1} parent=1 // pred_check_branch
      %10867 = sbr.rel (0) target = $region33
    $region32: #{tpu_custom_call.1} parent=1 // pred_region
      %10868 = dma.done [#allocation4], 1536
    $region33: #{tpu_custom_call.1} parent=1 // pred_fallthru
      _
    %10869 = vsyncpa [#allocation3], 1
    %10870 = vsyncpa [#allocation6], 1
    %10871 = vsyncpa [#allocation4], 1

</llo_original>
